<compile_context>
chip_gen: v6e
topology: v6e:2x2x1
jax: 0.10.0
libtpu: 0.0.40
codegen_flags: <defaults>
</compile_context>

<pallas_src>
import functools

import jax
import jax.numpy as jnp
from jax import lax
from jax.experimental import pallas as pl
from jax.experimental.pallas import tpu as pltpu

# Padded sizes (lane-dense layouts).
C1P = 128    # conv1 out channels: 6   -> 128 lanes
C2P = 128    # conv2 out channels: 16  -> 128 lanes
FP = 128     # fc features: 120/84/10  -> 128 lanes
K1P = 32     # conv1 im2col K: 25      -> 32 (sublane-friendly)
WPAD = 16    # pooled conv1 width: 12  -> 16 (keeps in-kernel reshapes vreg-aligned)


# ----------------------------------------------------------------------------
# The single fused kernel.
# ----------------------------------------------------------------------------
def _lenet_kernel(p1_ref, w1_ref, b1_ref, w2_ref, b2_ref,
                  f1w_ref, f1b_ref, f2w_ref, f2b_ref, f3w_ref, f3b_ref,
                  o_ref, *, bt):
    f32 = jnp.float32

    # ---- conv1 (matmul on pre-extracted patches) + 2x2 maxpool + ReLU -------
    # p1_ref: (4, bt*12*16, 32).  Leading axis enumerates the position inside
    # each 2x2 pooling window, so the pool is an elementwise max of 4 matmuls.
    y = jnp.dot(p1_ref[0], w1_ref[...], preferred_element_type=f32)
    for widx in range(1, 4):
        y = jnp.maximum(
            y, jnp.dot(p1_ref[widx], w1_ref[...], preferred_element_type=f32))
    h1 = jnp.maximum(y + b1_ref[...], 0.0)          # (bt*192, 128)
    h1 = h1.reshape(bt, 12, WPAD, C1P)              # NHWC; W padded 12->16

    # ---- conv2 as a 25-tap matmul accumulation (im2col stays in registers) --
    acc = jnp.zeros((bt * 64, C2P), f32)
    for di in range(5):
        for dj in range(5):
            slab = h1[:, di:di + 8, dj:dj + 8, :].reshape(bt * 64, C1P)
            acc = acc + jnp.dot(slab, w2_ref[di * 5 + dj],
                                preferred_element_type=f32)
    y2 = (acc + b2_ref[...]).reshape(bt, 8, 8, C2P)

    # ---- 2x2 maxpool + ReLU on the 8x8 map ----------------------------------
    y2 = y2.reshape(bt, 4, 2, 8, C2P)
    ym = jnp.maximum(y2[:, :, 0], y2[:, :, 1])                # rows pooled: (bt,4,8,128)
    m = jnp.maximum(ym[:, :, 0:7, :], ym[:, :, 1:8, :])       # col pairs; valid at even w
    m = jnp.maximum(m, 0.0)                                   # ReLU (odd-w cols never read)

    # ---- fc1(+ReLU), fc2(+ReLU), fc3 — all resident in VMEM/vregs -----------
    # fc1 weights were pre-permuted so NHWC activations can be consumed directly.
    hf = jnp.zeros((bt, FP), f32)
    for h in range(4):
        for w in range(4):
            hf = hf + jnp.dot(m[:, h, 2 * w, :], f1w_ref[h * 4 + w],
                              preferred_element_type=f32)
    hf = jnp.maximum(hf + f1b_ref[...], 0.0)
    hf = jnp.maximum(
        jnp.dot(hf, f2w_ref[...], preferred_element_type=f32) + f2b_ref[...], 0.0)
    out = jnp.dot(hf, f3w_ref[...], preferred_element_type=f32) + f3b_ref[...]
    o_ref[...] = out.astype(o_ref.dtype)


# ----------------------------------------------------------------------------
# Host-side glue: conv1 patch extraction with pool-window-major row ordering.
# ----------------------------------------------------------------------------
def _conv1_patches(x_nchw):
    b = x_nchw.shape[0]
    x = x_nchw[:, 0, :, :]                                   # (B, 28, 28), Cin = 1
    cols = [x[:, di:di + 24, dj:dj + 24]
            for di in range(5) for dj in range(5)]
    pat = jnp.stack(cols, axis=-1)                           # (B, 24, 24, 25)
    pat = pat.reshape(b, 12, 2, 12, 2, 25)                   # (b, ph, wy, pw, wx, k)
    pat = pat.transpose(2, 4, 0, 1, 3, 5)                    # (wy, wx, b, ph, pw, k)
    pat = jnp.pad(pat, ((0, 0), (0, 0), (0, 0), (0, 0),
                        (0, WPAD - 12), (0, K1P - 25)))
    return pat.reshape(4, b * 12 * WPAD, K1P)                # (4, B*192, 32)


# ----------------------------------------------------------------------------
# One-time parameter prep: pad to lane-dense shapes, fold the NCHW flatten
# permutation into fc1, reorder conv weights to (tap, cin, cout).
# ----------------------------------------------------------------------------
def prepare_params(p):
    f32 = jnp.float32
    w1 = jnp.zeros((K1P, C1P), f32).at[:25, :6].set(
        p["w1"].transpose(1, 2, 3, 0).reshape(25, 6))
    b1 = jnp.zeros((1, C1P), f32).at[0, :6].set(p["b1"])
    w2 = jnp.zeros((25, C1P, C2P), f32).at[:, :6, :16].set(
        p["w2"].transpose(2, 3, 1, 0).reshape(25, 6, 16))
    b2 = jnp.zeros((1, C2P), f32).at[0, :16].set(p["b2"])
    # torch flatten index = c*16 + h*4 + w ; kernel feeds (s=h*4+w, c) order.
    f1 = p["fc1_w"].reshape(120, 16, 16).transpose(2, 1, 0)  # (s, c, n)
    fc1w = jnp.zeros((16, C2P, FP), f32).at[:, :16, :120].set(f1)
    fc1b = jnp.zeros((1, FP), f32).at[0, :120].set(p["fc1_b"])
    fc2w = jnp.zeros((FP, FP), f32).at[:120, :84].set(p["fc2_w"].T)
    fc2b = jnp.zeros((1, FP), f32).at[0, :84].set(p["fc2_b"])
    fc3w = jnp.zeros((FP, FP), f32).at[:84, :10].set(p["fc3_w"].T)
    fc3b = jnp.zeros((1, FP), f32).at[0, :10].set(p["fc3_b"])
    return dict(w1=w1, b1=b1, w2=w2, b2=b2, fc1w=fc1w, fc1b=fc1b,
                fc2w=fc2w, fc2b=fc2b, fc3w=fc3w, fc3b=fc3b)


# ----------------------------------------------------------------------------
# Forward pass: one pallas_call for the whole network.
# ----------------------------------------------------------------------------
def lenet_forward(x_nchw, pp):
    b = x_nchw.shape[0]
    # Single block for small batch; batch-tile only when it is big and divisible.
    bt = 8 if (b > 8 and b % 8 == 0) else b
    rows = 12 * WPAD                                          # 192 rows / image / window pos

    p1 = _conv1_patches(x_nchw)
    kernel = functools.partial(_lenet_kernel, bt=bt)
    out_pad = pl.pallas_call(
        kernel,
        out_shape=jax.ShapeDtypeStruct((b, FP), jnp.float32),
        grid=(b // bt,),
        in_specs=[
            pl.BlockSpec((4, bt * rows, K1P), lambda i: (0, i, 0)),
            pl.BlockSpec((K1P, C1P), lambda i: (0, 0)),
            pl.BlockSpec((1, C1P), lambda i: (0, 0)),
            pl.BlockSpec((25, C1P, C2P), lambda i: (0, 0, 0)),
            pl.BlockSpec((1, C2P), lambda i: (0, 0)),
            pl.BlockSpec((16, C2P, FP), lambda i: (0, 0, 0)),
            pl.BlockSpec((1, FP), lambda i: (0, 0)),
            pl.BlockSpec((FP, FP), lambda i: (0, 0)),
            pl.BlockSpec((1, FP), lambda i: (0, 0)),
            pl.BlockSpec((FP, FP), lambda i: (0, 0)),
            pl.BlockSpec((1, FP), lambda i: (0, 0)),
        ],
        out_specs=pl.BlockSpec((bt, FP), lambda i: (i, 0)),
        compiler_params=pltpu.CompilerParams(
            dimension_semantics=("parallel",)),
    )(p1, pp["w1"], pp["b1"], pp["w2"], pp["b2"],
      pp["fc1w"], pp["fc1b"], pp["fc2w"], pp["fc2b"], pp["fc3w"], pp["fc3b"])
    return out_pad[:, :10]


# ----------------------------------------------------------------------------
# Deterministic parameter init (PyTorch-style uniform bounds, synthetic).
# ----------------------------------------------------------------------------
def init_params(key):
    ks = jax.random.split(key, 10)

    def u(k, shape, fan_in):
        bound = 1.0 / float(fan_in) ** 0.5
        return jax.random.uniform(k, shape, jnp.float32, -bound, bound)

    return {
        "w1": u(ks[0], (6, 1, 5, 5), 1 * 25),   "b1": u(ks[1], (6,), 1 * 25),
        "w2": u(ks[2], (16, 6, 5, 5), 6 * 25),  "b2": u(ks[3], (16,), 6 * 25),
        "fc1_w": u(ks[4], (120, 256), 256),     "fc1_b": u(ks[5], (120,), 256),
        "fc2_w": u(ks[6], (84, 120), 120),      "fc2_b": u(ks[7], (84,), 120),
        "fc3_w": u(ks[8], (10, 84), 84),        "fc3_b": u(ks[9], (10,), 84),
    }


# ----------------------------------------------------------------------------
# Pure-JAX reference (lax.conv / reduce_window) for correctness checking.
# ----------------------------------------------------------------------------
def reference_forward(x_nchw, p):
    dn = ("NCHW", "OIHW", "NCHW")
    hp = lax.Precision.HIGHEST
    y = lax.conv_general_dilated(x_nchw, p["w1"], (1, 1), "VALID",
                                 dimension_numbers=dn, precision=hp)
    y = y + p["b1"][None, :, None, None]
    y = lax.reduce_window(y, -jnp.inf, lax.max, (1, 1, 2, 2), (1, 1, 2, 2), "VALID")
    y = jnp.maximum(y, 0.0)
    y = lax.conv_general_dilated(y, p["w2"], (1, 1), "VALID",
                                 dimension_numbers=dn, precision=hp)
    y = y + p["b2"][None, :, None, None]
    y = lax.reduce_window(y, -jnp.inf, lax.max, (1, 1, 2, 2), (1, 1, 2, 2), "VALID")
    y = jnp.maximum(y, 0.0)
    y = y.reshape(y.shape[0], -1)
    y = jnp.maximum(jnp.dot(y, p["fc1_w"].T, precision=hp) + p["fc1_b"], 0.0)
    y = jnp.maximum(jnp.dot(y, p["fc2_w"].T, precision=hp) + p["fc2_b"], 0.0)
    y = jnp.dot(y, p["fc3_w"].T, precision=hp) + p["fc3_b"]
    return y


if __name__ == "__main__":
    key = jax.random.PRNGKey(0)
    pkey, xkey = jax.random.split(key)
    params = init_params(pkey)
    # LeNet geometry (fc1 = Linear(256, 120)) implies 28x28 single-channel input.
    x = jax.random.normal(xkey, (2, 1, 28, 28), dtype=jnp.float32)

    pp = prepare_params(params)            # one-time weight prep (not per-step)
    out = jax.jit(lenet_forward)(x, pp)
    out = jax.block_until_ready(out)

    assert out.shape == (2, 10), out.shape
    ref = reference_forward(x, params)
    if not jnp.allclose(out, ref, atol=5e-3, rtol=5e-3):
        raise AssertionError(
            f"Pallas output mismatch: max abs err = {jnp.max(jnp.abs(out - ref))}")
    print("KERNEL_OK")
</pallas_src>

<mosaic_0001>
module attributes {stable_mosaic.version = 11 : i64} {
  func.func @_lenet_kernel(%arg0: i32, %arg1: memref<4x384x32xf32, #tpu.memory_space<vmem>>, %arg2: memref<32x128xf32, #tpu.memory_space<vmem>>, %arg3: memref<1x128xf32, #tpu.memory_space<vmem>>, %arg4: memref<25x128x128xf32, #tpu.memory_space<vmem>>, %arg5: memref<1x128xf32, #tpu.memory_space<vmem>>, %arg6: memref<16x128x128xf32, #tpu.memory_space<vmem>>, %arg7: memref<1x128xf32, #tpu.memory_space<vmem>>, %arg8: memref<128x128xf32, #tpu.memory_space<vmem>>, %arg9: memref<1x128xf32, #tpu.memory_space<vmem>>, %arg10: memref<128x128xf32, #tpu.memory_space<vmem>>, %arg11: memref<1x128xf32, #tpu.memory_space<vmem>>, %arg12: memref<2x128xf32, #tpu.memory_space<vmem>>) attributes {dimension_semantics = [#tpu.dimension_semantics<parallel>], iteration_bounds = array<i64: 1>, scalar_prefetch = 0 : i64, scratch_operands = 0 : i64, tpu.core_type = #tpu.core_type<tc>, window_params = [{transform_indices = @transform_0, window_bounds = array<i64: 4, 384, 32>}, {pipeline_mode = #tpu.pipeline_mode<synchronous>, transform_indices = @transform_1, window_bounds = array<i64: 32, 128>}, {pipeline_mode = #tpu.pipeline_mode<synchronous>, transform_indices = @transform_2, window_bounds = array<i64: 1, 128>}, {pipeline_mode = #tpu.pipeline_mode<synchronous>, transform_indices = @transform_3, window_bounds = array<i64: 25, 128, 128>}, {pipeline_mode = #tpu.pipeline_mode<synchronous>, transform_indices = @transform_4, window_bounds = array<i64: 1, 128>}, {pipeline_mode = #tpu.pipeline_mode<synchronous>, transform_indices = @transform_5, window_bounds = array<i64: 16, 128, 128>}, {pipeline_mode = #tpu.pipeline_mode<synchronous>, transform_indices = @transform_6, window_bounds = array<i64: 1, 128>}, {pipeline_mode = #tpu.pipeline_mode<synchronous>, transform_indices = @transform_7, window_bounds = array<i64: 128, 128>}, {pipeline_mode = #tpu.pipeline_mode<synchronous>, transform_indices = @transform_8, window_bounds = array<i64: 1, 128>}, {pipeline_mode = #tpu.pipeline_mode<synchronous>, transform_indices = @transform_9, window_bounds = array<i64: 128, 128>}, {pipeline_mode = #tpu.pipeline_mode<synchronous>, transform_indices = @transform_10, window_bounds = array<i64: 1, 128>}, {transform_indices = @transform_11, window_bounds = array<i64: 2, 128>}]} {
    %c0 = arith.constant 0 : index
    %c0_0 = arith.constant 0 : index
    %c0_1 = arith.constant 0 : index
    %0 = vector.load %arg1[%c0, %c0_0, %c0_1] : memref<4x384x32xf32, #tpu.memory_space<vmem>>, vector<1x384x32xf32>
    %1 = vector.shape_cast %0 : vector<1x384x32xf32> to vector<384x32xf32>
    %c0_2 = arith.constant 0 : index
    %c0_3 = arith.constant 0 : index
    %2 = vector.load %arg2[%c0_2, %c0_3] : memref<32x128xf32, #tpu.memory_space<vmem>>, vector<32x128xf32>
    %cst = arith.constant dense<0.000000e+00> : vector<384x128xf32>
    %3 = tpu.matmul %1, %2, %cst {dimension_numbers = #tpu.dot_dimension_numbers<[1], [0], [0], [1], [0, 0, 1, 1], [], []>} : vector<384x32xf32>, vector<32x128xf32>, vector<384x128xf32> -> vector<384x128xf32>
    %c1 = arith.constant 1 : index
    %c0_4 = arith.constant 0 : index
    %c0_5 = arith.constant 0 : index
    %4 = vector.load %arg1[%c1, %c0_4, %c0_5] : memref<4x384x32xf32, #tpu.memory_space<vmem>>, vector<1x384x32xf32>
    %5 = vector.shape_cast %4 : vector<1x384x32xf32> to vector<384x32xf32>
    %c0_6 = arith.constant 0 : index
    %c0_7 = arith.constant 0 : index
    %6 = vector.load %arg2[%c0_6, %c0_7] : memref<32x128xf32, #tpu.memory_space<vmem>>, vector<32x128xf32>
    %cst_8 = arith.constant dense<0.000000e+00> : vector<384x128xf32>
    %7 = tpu.matmul %5, %6, %cst_8 {dimension_numbers = #tpu.dot_dimension_numbers<[1], [0], [0], [1], [0, 0, 1, 1], [], []>} : vector<384x32xf32>, vector<32x128xf32>, vector<384x128xf32> -> vector<384x128xf32>
    %8 = arith.maximumf %3, %7 : vector<384x128xf32>
    %c2 = arith.constant 2 : index
    %c0_9 = arith.constant 0 : index
    %c0_10 = arith.constant 0 : index
    %9 = vector.load %arg1[%c2, %c0_9, %c0_10] : memref<4x384x32xf32, #tpu.memory_space<vmem>>, vector<1x384x32xf32>
    %10 = vector.shape_cast %9 : vector<1x384x32xf32> to vector<384x32xf32>
    %c0_11 = arith.constant 0 : index
    %c0_12 = arith.constant 0 : index
    %11 = vector.load %arg2[%c0_11, %c0_12] : memref<32x128xf32, #tpu.memory_space<vmem>>, vector<32x128xf32>
    %cst_13 = arith.constant dense<0.000000e+00> : vector<384x128xf32>
    %12 = tpu.matmul %10, %11, %cst_13 {dimension_numbers = #tpu.dot_dimension_numbers<[1], [0], [0], [1], [0, 0, 1, 1], [], []>} : vector<384x32xf32>, vector<32x128xf32>, vector<384x128xf32> -> vector<384x128xf32>
    %13 = arith.maximumf %8, %12 : vector<384x128xf32>
    %c3 = arith.constant 3 : index
    %c0_14 = arith.constant 0 : index
    %c0_15 = arith.constant 0 : index
    %14 = vector.load %arg1[%c3, %c0_14, %c0_15] : memref<4x384x32xf32, #tpu.memory_space<vmem>>, vector<1x384x32xf32>
    %15 = vector.shape_cast %14 : vector<1x384x32xf32> to vector<384x32xf32>
    %c0_16 = arith.constant 0 : index
    %c0_17 = arith.constant 0 : index
    %16 = vector.load %arg2[%c0_16, %c0_17] : memref<32x128xf32, #tpu.memory_space<vmem>>, vector<32x128xf32>
    %cst_18 = arith.constant dense<0.000000e+00> : vector<384x128xf32>
    %17 = tpu.matmul %15, %16, %cst_18 {dimension_numbers = #tpu.dot_dimension_numbers<[1], [0], [0], [1], [0, 0, 1, 1], [], []>} : vector<384x32xf32>, vector<32x128xf32>, vector<384x128xf32> -> vector<384x128xf32>
    %18 = arith.maximumf %13, %17 : vector<384x128xf32>
    %c0_19 = arith.constant 0 : index
    %c0_20 = arith.constant 0 : index
    %19 = vector.load %arg3[%c0_19, %c0_20] : memref<1x128xf32, #tpu.memory_space<vmem>>, vector<1x128xf32>
    %20 = vector.broadcast %19 : vector<1x128xf32> to vector<384x128xf32>
    %21 = arith.addf %18, %20 : vector<384x128xf32>
    %cst_21 = arith.constant 0.000000e+00 : f32
    %22 = vector.broadcast %cst_21 : f32 to vector<384x128xf32>
    %23 = arith.maximumf %21, %22 : vector<384x128xf32>
    %24 = vector.shape_cast %23 : vector<384x128xf32> to vector<2x12x16x128xf32>
    %cst_22 = arith.constant 0.000000e+00 : f32
    %25 = vector.broadcast %cst_22 : f32 to vector<128x128xf32>
    %26 = vector.extract_strided_slice %24 {offsets = [0, 0, 0, 0], sizes = [2, 8, 8, 128], strides = [1, 1, 1, 1]} : vector<2x12x16x128xf32> to vector<2x8x8x128xf32>
    %27 = vector.shape_cast %26 : vector<2x8x8x128xf32> to vector<128x128xf32>
    %c0_23 = arith.constant 0 : index
    %c0_24 = arith.constant 0 : index
    %c0_25 = arith.constant 0 : index
    %28 = vector.load %arg4[%c0_23, %c0_24, %c0_25] : memref<25x128x128xf32, #tpu.memory_space<vmem>>, vector<1x128x128xf32>
    %29 = vector.shape_cast %28 : vector<1x128x128xf32> to vector<128x128xf32>
    %cst_26 = arith.constant dense<0.000000e+00> : vector<128x128xf32>
    %30 = tpu.matmul %27, %29, %cst_26 {dimension_numbers = #tpu.dot_dimension_numbers<[1], [0], [0], [1], [0, 0, 1, 1], [], []>} : vector<128x128xf32>, vector<128x128xf32>, vector<128x128xf32> -> vector<128x128xf32>
    %31 = arith.addf %25, %30 : vector<128x128xf32>
    %32 = vector.extract_strided_slice %24 {offsets = [0, 0, 1, 0], sizes = [2, 8, 8, 128], strides = [1, 1, 1, 1]} : vector<2x12x16x128xf32> to vector<2x8x8x128xf32>
    %33 = vector.shape_cast %32 : vector<2x8x8x128xf32> to vector<128x128xf32>
    %c1_27 = arith.constant 1 : index
    %c0_28 = arith.constant 0 : index
    %c0_29 = arith.constant 0 : index
    %34 = vector.load %arg4[%c1_27, %c0_28, %c0_29] : memref<25x128x128xf32, #tpu.memory_space<vmem>>, vector<1x128x128xf32>
    %35 = vector.shape_cast %34 : vector<1x128x128xf32> to vector<128x128xf32>
    %cst_30 = arith.constant dense<0.000000e+00> : vector<128x128xf32>
    %36 = tpu.matmul %33, %35, %cst_30 {dimension_numbers = #tpu.dot_dimension_numbers<[1], [0], [0], [1], [0, 0, 1, 1], [], []>} : vector<128x128xf32>, vector<128x128xf32>, vector<128x128xf32> -> vector<128x128xf32>
    %37 = arith.addf %31, %36 : vector<128x128xf32>
    %38 = vector.extract_strided_slice %24 {offsets = [0, 0, 2, 0], sizes = [2, 8, 8, 128], strides = [1, 1, 1, 1]} : vector<2x12x16x128xf32> to vector<2x8x8x128xf32>
    %39 = vector.shape_cast %38 : vector<2x8x8x128xf32> to vector<128x128xf32>
    %c2_31 = arith.constant 2 : index
    %c0_32 = arith.constant 0 : index
    %c0_33 = arith.constant 0 : index
    %40 = vector.load %arg4[%c2_31, %c0_32, %c0_33] : memref<25x128x128xf32, #tpu.memory_space<vmem>>, vector<1x128x128xf32>
    %41 = vector.shape_cast %40 : vector<1x128x128xf32> to vector<128x128xf32>
    %cst_34 = arith.constant dense<0.000000e+00> : vector<128x128xf32>
    %42 = tpu.matmul %39, %41, %cst_34 {dimension_numbers = #tpu.dot_dimension_numbers<[1], [0], [0], [1], [0, 0, 1, 1], [], []>} : vector<128x128xf32>, vector<128x128xf32>, vector<128x128xf32> -> vector<128x128xf32>
    %43 = arith.addf %37, %42 : vector<128x128xf32>
    %44 = vector.extract_strided_slice %24 {offsets = [0, 0, 3, 0], sizes = [2, 8, 8, 128], strides = [1, 1, 1, 1]} : vector<2x12x16x128xf32> to vector<2x8x8x128xf32>
    %45 = vector.shape_cast %44 : vector<2x8x8x128xf32> to vector<128x128xf32>
    %c3_35 = arith.constant 3 : index
    %c0_36 = arith.constant 0 : index
    %c0_37 = arith.constant 0 : index
    %46 = vector.load %arg4[%c3_35, %c0_36, %c0_37] : memref<25x128x128xf32, #tpu.memory_space<vmem>>, vector<1x128x128xf32>
    %47 = vector.shape_cast %46 : vector<1x128x128xf32> to vector<128x128xf32>
    %cst_38 = arith.constant dense<0.000000e+00> : vector<128x128xf32>
    %48 = tpu.matmul %45, %47, %cst_38 {dimension_numbers = #tpu.dot_dimension_numbers<[1], [0], [0], [1], [0, 0, 1, 1], [], []>} : vector<128x128xf32>, vector<128x128xf32>, vector<128x128xf32> -> vector<128x128xf32>
    %49 = arith.addf %43, %48 : vector<128x128xf32>
    %50 = vector.extract_strided_slice %24 {offsets = [0, 0, 4, 0], sizes = [2, 8, 8, 128], strides = [1, 1, 1, 1]} : vector<2x12x16x128xf32> to vector<2x8x8x128xf32>
    %51 = vector.shape_cast %50 : vector<2x8x8x128xf32> to vector<128x128xf32>
    %c4 = arith.constant 4 : index
    %c0_39 = arith.constant 0 : index
    %c0_40 = arith.constant 0 : index
    %52 = vector.load %arg4[%c4, %c0_39, %c0_40] : memref<25x128x128xf32, #tpu.memory_space<vmem>>, vector<1x128x128xf32>
    %53 = vector.shape_cast %52 : vector<1x128x128xf32> to vector<128x128xf32>
    %cst_41 = arith.constant dense<0.000000e+00> : vector<128x128xf32>
    %54 = tpu.matmul %51, %53, %cst_41 {dimension_numbers = #tpu.dot_dimension_numbers<[1], [0], [0], [1], [0, 0, 1, 1], [], []>} : vector<128x128xf32>, vector<128x128xf32>, vector<128x128xf32> -> vector<128x128xf32>
    %55 = arith.addf %49, %54 : vector<128x128xf32>
    %56 = vector.extract_strided_slice %24 {offsets = [0, 1, 0, 0], sizes = [2, 8, 8, 128], strides = [1, 1, 1, 1]} : vector<2x12x16x128xf32> to vector<2x8x8x128xf32>
    %57 = vector.shape_cast %56 : vector<2x8x8x128xf32> to vector<128x128xf32>
    %c5 = arith.constant 5 : index
    %c0_42 = arith.constant 0 : index
    %c0_43 = arith.constant 0 : index
    %58 = vector.load %arg4[%c5, %c0_42, %c0_43] : memref<25x128x128xf32, #tpu.memory_space<vmem>>, vector<1x128x128xf32>
    %59 = vector.shape_cast %58 : vector<1x128x128xf32> to vector<128x128xf32>
    %cst_44 = arith.constant dense<0.000000e+00> : vector<128x128xf32>
    %60 = tpu.matmul %57, %59, %cst_44 {dimension_numbers = #tpu.dot_dimension_numbers<[1], [0], [0], [1], [0, 0, 1, 1], [], []>} : vector<128x128xf32>, vector<128x128xf32>, vector<128x128xf32> -> vector<128x128xf32>
    %61 = arith.addf %55, %60 : vector<128x128xf32>
    %62 = vector.extract_strided_slice %24 {offsets = [0, 1, 1, 0], sizes = [2, 8, 8, 128], strides = [1, 1, 1, 1]} : vector<2x12x16x128xf32> to vector<2x8x8x128xf32>
    %63 = vector.shape_cast %62 : vector<2x8x8x128xf32> to vector<128x128xf32>
    %c6 = arith.constant 6 : index
    %c0_45 = arith.constant 0 : index
    %c0_46 = arith.constant 0 : index
    %64 = vector.load %arg4[%c6, %c0_45, %c0_46] : memref<25x128x128xf32, #tpu.memory_space<vmem>>, vector<1x128x128xf32>
    %65 = vector.shape_cast %64 : vector<1x128x128xf32> to vector<128x128xf32>
    %cst_47 = arith.constant dense<0.000000e+00> : vector<128x128xf32>
    %66 = tpu.matmul %63, %65, %cst_47 {dimension_numbers = #tpu.dot_dimension_numbers<[1], [0], [0], [1], [0, 0, 1, 1], [], []>} : vector<128x128xf32>, vector<128x128xf32>, vector<128x128xf32> -> vector<128x128xf32>
    %67 = arith.addf %61, %66 : vector<128x128xf32>
    %68 = vector.extract_strided_slice %24 {offsets = [0, 1, 2, 0], sizes = [2, 8, 8, 128], strides = [1, 1, 1, 1]} : vector<2x12x16x128xf32> to vector<2x8x8x128xf32>
    %69 = vector.shape_cast %68 : vector<2x8x8x128xf32> to vector<128x128xf32>
    %c7 = arith.constant 7 : index
    %c0_48 = arith.constant 0 : index
    %c0_49 = arith.constant 0 : index
    %70 = vector.load %arg4[%c7, %c0_48, %c0_49] : memref<25x128x128xf32, #tpu.memory_space<vmem>>, vector<1x128x128xf32>
    %71 = vector.shape_cast %70 : vector<1x128x128xf32> to vector<128x128xf32>
    %cst_50 = arith.constant dense<0.000000e+00> : vector<128x128xf32>
    %72 = tpu.matmul %69, %71, %cst_50 {dimension_numbers = #tpu.dot_dimension_numbers<[1], [0], [0], [1], [0, 0, 1, 1], [], []>} : vector<128x128xf32>, vector<128x128xf32>, vector<128x128xf32> -> vector<128x128xf32>
    %73 = arith.addf %67, %72 : vector<128x128xf32>
    %74 = vector.extract_strided_slice %24 {offsets = [0, 1, 3, 0], sizes = [2, 8, 8, 128], strides = [1, 1, 1, 1]} : vector<2x12x16x128xf32> to vector<2x8x8x128xf32>
    %75 = vector.shape_cast %74 : vector<2x8x8x128xf32> to vector<128x128xf32>
    %c8 = arith.constant 8 : index
    %c0_51 = arith.constant 0 : index
    %c0_52 = arith.constant 0 : index
    %76 = vector.load %arg4[%c8, %c0_51, %c0_52] : memref<25x128x128xf32, #tpu.memory_space<vmem>>, vector<1x128x128xf32>
    %77 = vector.shape_cast %76 : vector<1x128x128xf32> to vector<128x128xf32>
    %cst_53 = arith.constant dense<0.000000e+00> : vector<128x128xf32>
    %78 = tpu.matmul %75, %77, %cst_53 {dimension_numbers = #tpu.dot_dimension_numbers<[1], [0], [0], [1], [0, 0, 1, 1], [], []>} : vector<128x128xf32>, vector<128x128xf32>, vector<128x128xf32> -> vector<128x128xf32>
    %79 = arith.addf %73, %78 : vector<128x128xf32>
    %80 = vector.extract_strided_slice %24 {offsets = [0, 1, 4, 0], sizes = [2, 8, 8, 128], strides = [1, 1, 1, 1]} : vector<2x12x16x128xf32> to vector<2x8x8x128xf32>
    %81 = vector.shape_cast %80 : vector<2x8x8x128xf32> to vector<128x128xf32>
    %c9 = arith.constant 9 : index
    %c0_54 = arith.constant 0 : index
    %c0_55 = arith.constant 0 : index
    %82 = vector.load %arg4[%c9, %c0_54, %c0_55] : memref<25x128x128xf32, #tpu.memory_space<vmem>>, vector<1x128x128xf32>
    %83 = vector.shape_cast %82 : vector<1x128x128xf32> to vector<128x128xf32>
    %cst_56 = arith.constant dense<0.000000e+00> : vector<128x128xf32>
    %84 = tpu.matmul %81, %83, %cst_56 {dimension_numbers = #tpu.dot_dimension_numbers<[1], [0], [0], [1], [0, 0, 1, 1], [], []>} : vector<128x128xf32>, vector<128x128xf32>, vector<128x128xf32> -> vector<128x128xf32>
    %85 = arith.addf %79, %84 : vector<128x128xf32>
    %86 = vector.extract_strided_slice %24 {offsets = [0, 2, 0, 0], sizes = [2, 8, 8, 128], strides = [1, 1, 1, 1]} : vector<2x12x16x128xf32> to vector<2x8x8x128xf32>
    %87 = vector.shape_cast %86 : vector<2x8x8x128xf32> to vector<128x128xf32>
    %c10 = arith.constant 10 : index
    %c0_57 = arith.constant 0 : index
    %c0_58 = arith.constant 0 : index
    %88 = vector.load %arg4[%c10, %c0_57, %c0_58] : memref<25x128x128xf32, #tpu.memory_space<vmem>>, vector<1x128x128xf32>
    %89 = vector.shape_cast %88 : vector<1x128x128xf32> to vector<128x128xf32>
    %cst_59 = arith.constant dense<0.000000e+00> : vector<128x128xf32>
    %90 = tpu.matmul %87, %89, %cst_59 {dimension_numbers = #tpu.dot_dimension_numbers<[1], [0], [0], [1], [0, 0, 1, 1], [], []>} : vector<128x128xf32>, vector<128x128xf32>, vector<128x128xf32> -> vector<128x128xf32>
    %91 = arith.addf %85, %90 : vector<128x128xf32>
    %92 = vector.extract_strided_slice %24 {offsets = [0, 2, 1, 0], sizes = [2, 8, 8, 128], strides = [1, 1, 1, 1]} : vector<2x12x16x128xf32> to vector<2x8x8x128xf32>
    %93 = vector.shape_cast %92 : vector<2x8x8x128xf32> to vector<128x128xf32>
    %c11 = arith.constant 11 : index
    %c0_60 = arith.constant 0 : index
    %c0_61 = arith.constant 0 : index
    %94 = vector.load %arg4[%c11, %c0_60, %c0_61] : memref<25x128x128xf32, #tpu.memory_space<vmem>>, vector<1x128x128xf32>
    %95 = vector.shape_cast %94 : vector<1x128x128xf32> to vector<128x128xf32>
    %cst_62 = arith.constant dense<0.000000e+00> : vector<128x128xf32>
    %96 = tpu.matmul %93, %95, %cst_62 {dimension_numbers = #tpu.dot_dimension_numbers<[1], [0], [0], [1], [0, 0, 1, 1], [], []>} : vector<128x128xf32>, vector<128x128xf32>, vector<128x128xf32> -> vector<128x128xf32>
    %97 = arith.addf %91, %96 : vector<128x128xf32>
    %98 = vector.extract_strided_slice %24 {offsets = [0, 2, 2, 0], sizes = [2, 8, 8, 128], strides = [1, 1, 1, 1]} : vector<2x12x16x128xf32> to vector<2x8x8x128xf32>
    %99 = vector.shape_cast %98 : vector<2x8x8x128xf32> to vector<128x128xf32>
    %c12 = arith.constant 12 : index
    %c0_63 = arith.constant 0 : index
    %c0_64 = arith.constant 0 : index
    %100 = vector.load %arg4[%c12, %c0_63, %c0_64] : memref<25x128x128xf32, #tpu.memory_space<vmem>>, vector<1x128x128xf32>
    %101 = vector.shape_cast %100 : vector<1x128x128xf32> to vector<128x128xf32>
    %cst_65 = arith.constant dense<0.000000e+00> : vector<128x128xf32>
    %102 = tpu.matmul %99, %101, %cst_65 {dimension_numbers = #tpu.dot_dimension_numbers<[1], [0], [0], [1], [0, 0, 1, 1], [], []>} : vector<128x128xf32>, vector<128x128xf32>, vector<128x128xf32> -> vector<128x128xf32>
    %103 = arith.addf %97, %102 : vector<128x128xf32>
    %104 = vector.extract_strided_slice %24 {offsets = [0, 2, 3, 0], sizes = [2, 8, 8, 128], strides = [1, 1, 1, 1]} : vector<2x12x16x128xf32> to vector<2x8x8x128xf32>
    %105 = vector.shape_cast %104 : vector<2x8x8x128xf32> to vector<128x128xf32>
    %c13 = arith.constant 13 : index
    %c0_66 = arith.constant 0 : index
    %c0_67 = arith.constant 0 : index
    %106 = vector.load %arg4[%c13, %c0_66, %c0_67] : memref<25x128x128xf32, #tpu.memory_space<vmem>>, vector<1x128x128xf32>
    %107 = vector.shape_cast %106 : vector<1x128x128xf32> to vector<128x128xf32>
    %cst_68 = arith.constant dense<0.000000e+00> : vector<128x128xf32>
    %108 = tpu.matmul %105, %107, %cst_68 {dimension_numbers = #tpu.dot_dimension_numbers<[1], [0], [0], [1], [0, 0, 1, 1], [], []>} : vector<128x128xf32>, vector<128x128xf32>, vector<128x128xf32> -> vector<128x128xf32>
    %109 = arith.addf %103, %108 : vector<128x128xf32>
    %110 = vector.extract_strided_slice %24 {offsets = [0, 2, 4, 0], sizes = [2, 8, 8, 128], strides = [1, 1, 1, 1]} : vector<2x12x16x128xf32> to vector<2x8x8x128xf32>
    %111 = vector.shape_cast %110 : vector<2x8x8x128xf32> to vector<128x128xf32>
    %c14 = arith.constant 14 : index
    %c0_69 = arith.constant 0 : index
    %c0_70 = arith.constant 0 : index
    %112 = vector.load %arg4[%c14, %c0_69, %c0_70] : memref<25x128x128xf32, #tpu.memory_space<vmem>>, vector<1x128x128xf32>
    %113 = vector.shape_cast %112 : vector<1x128x128xf32> to vector<128x128xf32>
    %cst_71 = arith.constant dense<0.000000e+00> : vector<128x128xf32>
    %114 = tpu.matmul %111, %113, %cst_71 {dimension_numbers = #tpu.dot_dimension_numbers<[1], [0], [0], [1], [0, 0, 1, 1], [], []>} : vector<128x128xf32>, vector<128x128xf32>, vector<128x128xf32> -> vector<128x128xf32>
    %115 = arith.addf %109, %114 : vector<128x128xf32>
    %116 = vector.extract_strided_slice %24 {offsets = [0, 3, 0, 0], sizes = [2, 8, 8, 128], strides = [1, 1, 1, 1]} : vector<2x12x16x128xf32> to vector<2x8x8x128xf32>
    %117 = vector.shape_cast %116 : vector<2x8x8x128xf32> to vector<128x128xf32>
    %c15 = arith.constant 15 : index
    %c0_72 = arith.constant 0 : index
    %c0_73 = arith.constant 0 : index
    %118 = vector.load %arg4[%c15, %c0_72, %c0_73] : memref<25x128x128xf32, #tpu.memory_space<vmem>>, vector<1x128x128xf32>
    %119 = vector.shape_cast %118 : vector<1x128x128xf32> to vector<128x128xf32>
    %cst_74 = arith.constant dense<0.000000e+00> : vector<128x128xf32>
    %120 = tpu.matmul %117, %119, %cst_74 {dimension_numbers = #tpu.dot_dimension_numbers<[1], [0], [0], [1], [0, 0, 1, 1], [], []>} : vector<128x128xf32>, vector<128x128xf32>, vector<128x128xf32> -> vector<128x128xf32>
    %121 = arith.addf %115, %120 : vector<128x128xf32>
    %122 = vector.extract_strided_slice %24 {offsets = [0, 3, 1, 0], sizes = [2, 8, 8, 128], strides = [1, 1, 1, 1]} : vector<2x12x16x128xf32> to vector<2x8x8x128xf32>
    %123 = vector.shape_cast %122 : vector<2x8x8x128xf32> to vector<128x128xf32>
    %c16 = arith.constant 16 : index
    %c0_75 = arith.constant 0 : index
    %c0_76 = arith.constant 0 : index
    %124 = vector.load %arg4[%c16, %c0_75, %c0_76] : memref<25x128x128xf32, #tpu.memory_space<vmem>>, vector<1x128x128xf32>
    %125 = vector.shape_cast %124 : vector<1x128x128xf32> to vector<128x128xf32>
    %cst_77 = arith.constant dense<0.000000e+00> : vector<128x128xf32>
    %126 = tpu.matmul %123, %125, %cst_77 {dimension_numbers = #tpu.dot_dimension_numbers<[1], [0], [0], [1], [0, 0, 1, 1], [], []>} : vector<128x128xf32>, vector<128x128xf32>, vector<128x128xf32> -> vector<128x128xf32>
    %127 = arith.addf %121, %126 : vector<128x128xf32>
    %128 = vector.extract_strided_slice %24 {offsets = [0, 3, 2, 0], sizes = [2, 8, 8, 128], strides = [1, 1, 1, 1]} : vector<2x12x16x128xf32> to vector<2x8x8x128xf32>
    %129 = vector.shape_cast %128 : vector<2x8x8x128xf32> to vector<128x128xf32>
    %c17 = arith.constant 17 : index
    %c0_78 = arith.constant 0 : index
    %c0_79 = arith.constant 0 : index
    %130 = vector.load %arg4[%c17, %c0_78, %c0_79] : memref<25x128x128xf32, #tpu.memory_space<vmem>>, vector<1x128x128xf32>
    %131 = vector.shape_cast %130 : vector<1x128x128xf32> to vector<128x128xf32>
    %cst_80 = arith.constant dense<0.000000e+00> : vector<128x128xf32>
    %132 = tpu.matmul %129, %131, %cst_80 {dimension_numbers = #tpu.dot_dimension_numbers<[1], [0], [0], [1], [0, 0, 1, 1], [], []>} : vector<128x128xf32>, vector<128x128xf32>, vector<128x128xf32> -> vector<128x128xf32>
    %133 = arith.addf %127, %132 : vector<128x128xf32>
    %134 = vector.extract_strided_slice %24 {offsets = [0, 3, 3, 0], sizes = [2, 8, 8, 128], strides = [1, 1, 1, 1]} : vector<2x12x16x128xf32> to vector<2x8x8x128xf32>
    %135 = vector.shape_cast %134 : vector<2x8x8x128xf32> to vector<128x128xf32>
    %c18 = arith.constant 18 : index
    %c0_81 = arith.constant 0 : index
    %c0_82 = arith.constant 0 : index
    %136 = vector.load %arg4[%c18, %c0_81, %c0_82] : memref<25x128x128xf32, #tpu.memory_space<vmem>>, vector<1x128x128xf32>
    %137 = vector.shape_cast %136 : vector<1x128x128xf32> to vector<128x128xf32>
    %cst_83 = arith.constant dense<0.000000e+00> : vector<128x128xf32>
    %138 = tpu.matmul %135, %137, %cst_83 {dimension_numbers = #tpu.dot_dimension_numbers<[1], [0], [0], [1], [0, 0, 1, 1], [], []>} : vector<128x128xf32>, vector<128x128xf32>, vector<128x128xf32> -> vector<128x128xf32>
    %139 = arith.addf %133, %138 : vector<128x128xf32>
    %140 = vector.extract_strided_slice %24 {offsets = [0, 3, 4, 0], sizes = [2, 8, 8, 128], strides = [1, 1, 1, 1]} : vector<2x12x16x128xf32> to vector<2x8x8x128xf32>
    %141 = vector.shape_cast %140 : vector<2x8x8x128xf32> to vector<128x128xf32>
    %c19 = arith.constant 19 : index
    %c0_84 = arith.constant 0 : index
    %c0_85 = arith.constant 0 : index
    %142 = vector.load %arg4[%c19, %c0_84, %c0_85] : memref<25x128x128xf32, #tpu.memory_space<vmem>>, vector<1x128x128xf32>
    %143 = vector.shape_cast %142 : vector<1x128x128xf32> to vector<128x128xf32>
    %cst_86 = arith.constant dense<0.000000e+00> : vector<128x128xf32>
    %144 = tpu.matmul %141, %143, %cst_86 {dimension_numbers = #tpu.dot_dimension_numbers<[1], [0], [0], [1], [0, 0, 1, 1], [], []>} : vector<128x128xf32>, vector<128x128xf32>, vector<128x128xf32> -> vector<128x128xf32>
    %145 = arith.addf %139, %144 : vector<128x128xf32>
    %146 = vector.extract_strided_slice %24 {offsets = [0, 4, 0, 0], sizes = [2, 8, 8, 128], strides = [1, 1, 1, 1]} : vector<2x12x16x128xf32> to vector<2x8x8x128xf32>
    %147 = vector.shape_cast %146 : vector<2x8x8x128xf32> to vector<128x128xf32>
    %c20 = arith.constant 20 : index
    %c0_87 = arith.constant 0 : index
    %c0_88 = arith.constant 0 : index
    %148 = vector.load %arg4[%c20, %c0_87, %c0_88] : memref<25x128x128xf32, #tpu.memory_space<vmem>>, vector<1x128x128xf32>
    %149 = vector.shape_cast %148 : vector<1x128x128xf32> to vector<128x128xf32>
    %cst_89 = arith.constant dense<0.000000e+00> : vector<128x128xf32>
    %150 = tpu.matmul %147, %149, %cst_89 {dimension_numbers = #tpu.dot_dimension_numbers<[1], [0], [0], [1], [0, 0, 1, 1], [], []>} : vector<128x128xf32>, vector<128x128xf32>, vector<128x128xf32> -> vector<128x128xf32>
    %151 = arith.addf %145, %150 : vector<128x128xf32>
    %152 = vector.extract_strided_slice %24 {offsets = [0, 4, 1, 0], sizes = [2, 8, 8, 128], strides = [1, 1, 1, 1]} : vector<2x12x16x128xf32> to vector<2x8x8x128xf32>
    %153 = vector.shape_cast %152 : vector<2x8x8x128xf32> to vector<128x128xf32>
    %c21 = arith.constant 21 : index
    %c0_90 = arith.constant 0 : index
    %c0_91 = arith.constant 0 : index
    %154 = vector.load %arg4[%c21, %c0_90, %c0_91] : memref<25x128x128xf32, #tpu.memory_space<vmem>>, vector<1x128x128xf32>
    %155 = vector.shape_cast %154 : vector<1x128x128xf32> to vector<128x128xf32>
    %cst_92 = arith.constant dense<0.000000e+00> : vector<128x128xf32>
    %156 = tpu.matmul %153, %155, %cst_92 {dimension_numbers = #tpu.dot_dimension_numbers<[1], [0], [0], [1], [0, 0, 1, 1], [], []>} : vector<128x128xf32>, vector<128x128xf32>, vector<128x128xf32> -> vector<128x128xf32>
    %157 = arith.addf %151, %156 : vector<128x128xf32>
    %158 = vector.extract_strided_slice %24 {offsets = [0, 4, 2, 0], sizes = [2, 8, 8, 128], strides = [1, 1, 1, 1]} : vector<2x12x16x128xf32> to vector<2x8x8x128xf32>
    %159 = vector.shape_cast %158 : vector<2x8x8x128xf32> to vector<128x128xf32>
    %c22 = arith.constant 22 : index
    %c0_93 = arith.constant 0 : index
    %c0_94 = arith.constant 0 : index
    %160 = vector.load %arg4[%c22, %c0_93, %c0_94] : memref<25x128x128xf32, #tpu.memory_space<vmem>>, vector<1x128x128xf32>
    %161 = vector.shape_cast %160 : vector<1x128x128xf32> to vector<128x128xf32>
    %cst_95 = arith.constant dense<0.000000e+00> : vector<128x128xf32>
    %162 = tpu.matmul %159, %161, %cst_95 {dimension_numbers = #tpu.dot_dimension_numbers<[1], [0], [0], [1], [0, 0, 1, 1], [], []>} : vector<128x128xf32>, vector<128x128xf32>, vector<128x128xf32> -> vector<128x128xf32>
    %163 = arith.addf %157, %162 : vector<128x128xf32>
    %164 = vector.extract_strided_slice %24 {offsets = [0, 4, 3, 0], sizes = [2, 8, 8, 128], strides = [1, 1, 1, 1]} : vector<2x12x16x128xf32> to vector<2x8x8x128xf32>
    %165 = vector.shape_cast %164 : vector<2x8x8x128xf32> to vector<128x128xf32>
    %c23 = arith.constant 23 : index
    %c0_96 = arith.constant 0 : index
    %c0_97 = arith.constant 0 : index
    %166 = vector.load %arg4[%c23, %c0_96, %c0_97] : memref<25x128x128xf32, #tpu.memory_space<vmem>>, vector<1x128x128xf32>
    %167 = vector.shape_cast %166 : vector<1x128x128xf32> to vector<128x128xf32>
    %cst_98 = arith.constant dense<0.000000e+00> : vector<128x128xf32>
    %168 = tpu.matmul %165, %167, %cst_98 {dimension_numbers = #tpu.dot_dimension_numbers<[1], [0], [0], [1], [0, 0, 1, 1], [], []>} : vector<128x128xf32>, vector<128x128xf32>, vector<128x128xf32> -> vector<128x128xf32>
    %169 = arith.addf %163, %168 : vector<128x128xf32>
    %170 = vector.extract_strided_slice %24 {offsets = [0, 4, 4, 0], sizes = [2, 8, 8, 128], strides = [1, 1, 1, 1]} : vector<2x12x16x128xf32> to vector<2x8x8x128xf32>
    %171 = vector.shape_cast %170 : vector<2x8x8x128xf32> to vector<128x128xf32>
    %c24 = arith.constant 24 : index
    %c0_99 = arith.constant 0 : index
    %c0_100 = arith.constant 0 : index
    %172 = vector.load %arg4[%c24, %c0_99, %c0_100] : memref<25x128x128xf32, #tpu.memory_space<vmem>>, vector<1x128x128xf32>
    %173 = vector.shape_cast %172 : vector<1x128x128xf32> to vector<128x128xf32>
    %cst_101 = arith.constant dense<0.000000e+00> : vector<128x128xf32>
    %174 = tpu.matmul %171, %173, %cst_101 {dimension_numbers = #tpu.dot_dimension_numbers<[1], [0], [0], [1], [0, 0, 1, 1], [], []>} : vector<128x128xf32>, vector<128x128xf32>, vector<128x128xf32> -> vector<128x128xf32>
    %175 = arith.addf %169, %174 : vector<128x128xf32>
    %c0_102 = arith.constant 0 : index
    %c0_103 = arith.constant 0 : index
    %176 = vector.load %arg5[%c0_102, %c0_103] : memref<1x128xf32, #tpu.memory_space<vmem>>, vector<1x128xf32>
    %177 = vector.broadcast %176 : vector<1x128xf32> to vector<128x128xf32>
    %178 = arith.addf %175, %177 : vector<128x128xf32>
    %179 = vector.shape_cast %178 : vector<128x128xf32> to vector<2x8x8x128xf32>
    %180 = vector.shape_cast %179 : vector<2x8x8x128xf32> to vector<2x4x2x8x128xf32>
    %181 = vector.extract_strided_slice %180 {offsets = [0, 0, 0, 0, 0], sizes = [2, 4, 1, 8, 128], strides = [1, 1, 1, 1, 1]} : vector<2x4x2x8x128xf32> to vector<2x4x1x8x128xf32>
    %182 = vector.shape_cast %181 : vector<2x4x1x8x128xf32> to vector<2x4x8x128xf32>
    %183 = vector.extract_strided_slice %180 {offsets = [0, 0, 1, 0, 0], sizes = [2, 4, 1, 8, 128], strides = [1, 1, 1, 1, 1]} : vector<2x4x2x8x128xf32> to vector<2x4x1x8x128xf32>
    %184 = vector.shape_cast %183 : vector<2x4x1x8x128xf32> to vector<2x4x8x128xf32>
    %185 = arith.maximumf %182, %184 : vector<2x4x8x128xf32>
    %186 = vector.extract_strided_slice %185 {offsets = [0, 0, 0, 0], sizes = [2, 4, 7, 128], strides = [1, 1, 1, 1]} : vector<2x4x8x128xf32> to vector<2x4x7x128xf32>
    %187 = vector.extract_strided_slice %185 {offsets = [0, 0, 1, 0], sizes = [2, 4, 7, 128], strides = [1, 1, 1, 1]} : vector<2x4x8x128xf32> to vector<2x4x7x128xf32>
    %188 = arith.maximumf %186, %187 : vector<2x4x7x128xf32>
    %cst_104 = arith.constant 0.000000e+00 : f32
    %189 = vector.broadcast %cst_104 : f32 to vector<2x4x7x128xf32>
    %190 = arith.maximumf %188, %189 : vector<2x4x7x128xf32>
    %cst_105 = arith.constant 0.000000e+00 : f32
    %191 = vector.broadcast %cst_105 : f32 to vector<2x128xf32>
    %192 = vector.extract_strided_slice %190 {offsets = [0, 0, 0, 0], sizes = [2, 1, 1, 128], strides = [1, 1, 1, 1]} : vector<2x4x7x128xf32> to vector<2x1x1x128xf32>
    %193 = vector.shape_cast %192 : vector<2x1x1x128xf32> to vector<2x128xf32>
    %c0_106 = arith.constant 0 : index
    %c0_107 = arith.constant 0 : index
    %c0_108 = arith.constant 0 : index
    %194 = vector.load %arg6[%c0_106, %c0_107, %c0_108] : memref<16x128x128xf32, #tpu.memory_space<vmem>>, vector<1x128x128xf32>
    %195 = vector.shape_cast %194 : vector<1x128x128xf32> to vector<128x128xf32>
    %cst_109 = arith.constant dense<0.000000e+00> : vector<2x128xf32>
    %196 = tpu.matmul %193, %195, %cst_109 {dimension_numbers = #tpu.dot_dimension_numbers<[1], [0], [0], [1], [0, 0, 1, 1], [], []>} : vector<2x128xf32>, vector<128x128xf32>, vector<2x128xf32> -> vector<2x128xf32>
    %197 = arith.addf %191, %196 : vector<2x128xf32>
    %198 = vector.extract_strided_slice %190 {offsets = [0, 0, 2, 0], sizes = [2, 1, 1, 128], strides = [1, 1, 1, 1]} : vector<2x4x7x128xf32> to vector<2x1x1x128xf32>
    %199 = vector.shape_cast %198 : vector<2x1x1x128xf32> to vector<2x128xf32>
    %c1_110 = arith.constant 1 : index
    %c0_111 = arith.constant 0 : index
    %c0_112 = arith.constant 0 : index
    %200 = vector.load %arg6[%c1_110, %c0_111, %c0_112] : memref<16x128x128xf32, #tpu.memory_space<vmem>>, vector<1x128x128xf32>
    %201 = vector.shape_cast %200 : vector<1x128x128xf32> to vector<128x128xf32>
    %cst_113 = arith.constant dense<0.000000e+00> : vector<2x128xf32>
    %202 = tpu.matmul %199, %201, %cst_113 {dimension_numbers = #tpu.dot_dimension_numbers<[1], [0], [0], [1], [0, 0, 1, 1], [], []>} : vector<2x128xf32>, vector<128x128xf32>, vector<2x128xf32> -> vector<2x128xf32>
    %203 = arith.addf %197, %202 : vector<2x128xf32>
    %204 = vector.extract_strided_slice %190 {offsets = [0, 0, 4, 0], sizes = [2, 1, 1, 128], strides = [1, 1, 1, 1]} : vector<2x4x7x128xf32> to vector<2x1x1x128xf32>
    %205 = vector.shape_cast %204 : vector<2x1x1x128xf32> to vector<2x128xf32>
    %c2_114 = arith.constant 2 : index
    %c0_115 = arith.constant 0 : index
    %c0_116 = arith.constant 0 : index
    %206 = vector.load %arg6[%c2_114, %c0_115, %c0_116] : memref<16x128x128xf32, #tpu.memory_space<vmem>>, vector<1x128x128xf32>
    %207 = vector.shape_cast %206 : vector<1x128x128xf32> to vector<128x128xf32>
    %cst_117 = arith.constant dense<0.000000e+00> : vector<2x128xf32>
    %208 = tpu.matmul %205, %207, %cst_117 {dimension_numbers = #tpu.dot_dimension_numbers<[1], [0], [0], [1], [0, 0, 1, 1], [], []>} : vector<2x128xf32>, vector<128x128xf32>, vector<2x128xf32> -> vector<2x128xf32>
    %209 = arith.addf %203, %208 : vector<2x128xf32>
    %210 = vector.extract_strided_slice %190 {offsets = [0, 0, 6, 0], sizes = [2, 1, 1, 128], strides = [1, 1, 1, 1]} : vector<2x4x7x128xf32> to vector<2x1x1x128xf32>
    %211 = vector.shape_cast %210 : vector<2x1x1x128xf32> to vector<2x128xf32>
    %c3_118 = arith.constant 3 : index
    %c0_119 = arith.constant 0 : index
    %c0_120 = arith.constant 0 : index
    %212 = vector.load %arg6[%c3_118, %c0_119, %c0_120] : memref<16x128x128xf32, #tpu.memory_space<vmem>>, vector<1x128x128xf32>
    %213 = vector.shape_cast %212 : vector<1x128x128xf32> to vector<128x128xf32>
    %cst_121 = arith.constant dense<0.000000e+00> : vector<2x128xf32>
    %214 = tpu.matmul %211, %213, %cst_121 {dimension_numbers = #tpu.dot_dimension_numbers<[1], [0], [0], [1], [0, 0, 1, 1], [], []>} : vector<2x128xf32>, vector<128x128xf32>, vector<2x128xf32> -> vector<2x128xf32>
    %215 = arith.addf %209, %214 : vector<2x128xf32>
    %216 = vector.extract_strided_slice %190 {offsets = [0, 1, 0, 0], sizes = [2, 1, 1, 128], strides = [1, 1, 1, 1]} : vector<2x4x7x128xf32> to vector<2x1x1x128xf32>
    %217 = vector.shape_cast %216 : vector<2x1x1x128xf32> to vector<2x128xf32>
    %c4_122 = arith.constant 4 : index
    %c0_123 = arith.constant 0 : index
    %c0_124 = arith.constant 0 : index
    %218 = vector.load %arg6[%c4_122, %c0_123, %c0_124] : memref<16x128x128xf32, #tpu.memory_space<vmem>>, vector<1x128x128xf32>
    %219 = vector.shape_cast %218 : vector<1x128x128xf32> to vector<128x128xf32>
    %cst_125 = arith.constant dense<0.000000e+00> : vector<2x128xf32>
    %220 = tpu.matmul %217, %219, %cst_125 {dimension_numbers = #tpu.dot_dimension_numbers<[1], [0], [0], [1], [0, 0, 1, 1], [], []>} : vector<2x128xf32>, vector<128x128xf32>, vector<2x128xf32> -> vector<2x128xf32>
    %221 = arith.addf %215, %220 : vector<2x128xf32>
    %222 = vector.extract_strided_slice %190 {offsets = [0, 1, 2, 0], sizes = [2, 1, 1, 128], strides = [1, 1, 1, 1]} : vector<2x4x7x128xf32> to vector<2x1x1x128xf32>
    %223 = vector.shape_cast %222 : vector<2x1x1x128xf32> to vector<2x128xf32>
    %c5_126 = arith.constant 5 : index
    %c0_127 = arith.constant 0 : index
    %c0_128 = arith.constant 0 : index
    %224 = vector.load %arg6[%c5_126, %c0_127, %c0_128] : memref<16x128x128xf32, #tpu.memory_space<vmem>>, vector<1x128x128xf32>
    %225 = vector.shape_cast %224 : vector<1x128x128xf32> to vector<128x128xf32>
    %cst_129 = arith.constant dense<0.000000e+00> : vector<2x128xf32>
    %226 = tpu.matmul %223, %225, %cst_129 {dimension_numbers = #tpu.dot_dimension_numbers<[1], [0], [0], [1], [0, 0, 1, 1], [], []>} : vector<2x128xf32>, vector<128x128xf32>, vector<2x128xf32> -> vector<2x128xf32>
    %227 = arith.addf %221, %226 : vector<2x128xf32>
    %228 = vector.extract_strided_slice %190 {offsets = [0, 1, 4, 0], sizes = [2, 1, 1, 128], strides = [1, 1, 1, 1]} : vector<2x4x7x128xf32> to vector<2x1x1x128xf32>
    %229 = vector.shape_cast %228 : vector<2x1x1x128xf32> to vector<2x128xf32>
    %c6_130 = arith.constant 6 : index
    %c0_131 = arith.constant 0 : index
    %c0_132 = arith.constant 0 : index
    %230 = vector.load %arg6[%c6_130, %c0_131, %c0_132] : memref<16x128x128xf32, #tpu.memory_space<vmem>>, vector<1x128x128xf32>
    %231 = vector.shape_cast %230 : vector<1x128x128xf32> to vector<128x128xf32>
    %cst_133 = arith.constant dense<0.000000e+00> : vector<2x128xf32>
    %232 = tpu.matmul %229, %231, %cst_133 {dimension_numbers = #tpu.dot_dimension_numbers<[1], [0], [0], [1], [0, 0, 1, 1], [], []>} : vector<2x128xf32>, vector<128x128xf32>, vector<2x128xf32> -> vector<2x128xf32>
    %233 = arith.addf %227, %232 : vector<2x128xf32>
    %234 = vector.extract_strided_slice %190 {offsets = [0, 1, 6, 0], sizes = [2, 1, 1, 128], strides = [1, 1, 1, 1]} : vector<2x4x7x128xf32> to vector<2x1x1x128xf32>
    %235 = vector.shape_cast %234 : vector<2x1x1x128xf32> to vector<2x128xf32>
    %c7_134 = arith.constant 7 : index
    %c0_135 = arith.constant 0 : index
    %c0_136 = arith.constant 0 : index
    %236 = vector.load %arg6[%c7_134, %c0_135, %c0_136] : memref<16x128x128xf32, #tpu.memory_space<vmem>>, vector<1x128x128xf32>
    %237 = vector.shape_cast %236 : vector<1x128x128xf32> to vector<128x128xf32>
    %cst_137 = arith.constant dense<0.000000e+00> : vector<2x128xf32>
    %238 = tpu.matmul %235, %237, %cst_137 {dimension_numbers = #tpu.dot_dimension_numbers<[1], [0], [0], [1], [0, 0, 1, 1], [], []>} : vector<2x128xf32>, vector<128x128xf32>, vector<2x128xf32> -> vector<2x128xf32>
    %239 = arith.addf %233, %238 : vector<2x128xf32>
    %240 = vector.extract_strided_slice %190 {offsets = [0, 2, 0, 0], sizes = [2, 1, 1, 128], strides = [1, 1, 1, 1]} : vector<2x4x7x128xf32> to vector<2x1x1x128xf32>
    %241 = vector.shape_cast %240 : vector<2x1x1x128xf32> to vector<2x128xf32>
    %c8_138 = arith.constant 8 : index
    %c0_139 = arith.constant 0 : index
    %c0_140 = arith.constant 0 : index
    %242 = vector.load %arg6[%c8_138, %c0_139, %c0_140] : memref<16x128x128xf32, #tpu.memory_space<vmem>>, vector<1x128x128xf32>
    %243 = vector.shape_cast %242 : vector<1x128x128xf32> to vector<128x128xf32>
    %cst_141 = arith.constant dense<0.000000e+00> : vector<2x128xf32>
    %244 = tpu.matmul %241, %243, %cst_141 {dimension_numbers = #tpu.dot_dimension_numbers<[1], [0], [0], [1], [0, 0, 1, 1], [], []>} : vector<2x128xf32>, vector<128x128xf32>, vector<2x128xf32> -> vector<2x128xf32>
    %245 = arith.addf %239, %244 : vector<2x128xf32>
    %246 = vector.extract_strided_slice %190 {offsets = [0, 2, 2, 0], sizes = [2, 1, 1, 128], strides = [1, 1, 1, 1]} : vector<2x4x7x128xf32> to vector<2x1x1x128xf32>
    %247 = vector.shape_cast %246 : vector<2x1x1x128xf32> to vector<2x128xf32>
    %c9_142 = arith.constant 9 : index
    %c0_143 = arith.constant 0 : index
    %c0_144 = arith.constant 0 : index
    %248 = vector.load %arg6[%c9_142, %c0_143, %c0_144] : memref<16x128x128xf32, #tpu.memory_space<vmem>>, vector<1x128x128xf32>
    %249 = vector.shape_cast %248 : vector<1x128x128xf32> to vector<128x128xf32>
    %cst_145 = arith.constant dense<0.000000e+00> : vector<2x128xf32>
    %250 = tpu.matmul %247, %249, %cst_145 {dimension_numbers = #tpu.dot_dimension_numbers<[1], [0], [0], [1], [0, 0, 1, 1], [], []>} : vector<2x128xf32>, vector<128x128xf32>, vector<2x128xf32> -> vector<2x128xf32>
    %251 = arith.addf %245, %250 : vector<2x128xf32>
    %252 = vector.extract_strided_slice %190 {offsets = [0, 2, 4, 0], sizes = [2, 1, 1, 128], strides = [1, 1, 1, 1]} : vector<2x4x7x128xf32> to vector<2x1x1x128xf32>
    %253 = vector.shape_cast %252 : vector<2x1x1x128xf32> to vector<2x128xf32>
    %c10_146 = arith.constant 10 : index
    %c0_147 = arith.constant 0 : index
    %c0_148 = arith.constant 0 : index
    %254 = vector.load %arg6[%c10_146, %c0_147, %c0_148] : memref<16x128x128xf32, #tpu.memory_space<vmem>>, vector<1x128x128xf32>
    %255 = vector.shape_cast %254 : vector<1x128x128xf32> to vector<128x128xf32>
    %cst_149 = arith.constant dense<0.000000e+00> : vector<2x128xf32>
    %256 = tpu.matmul %253, %255, %cst_149 {dimension_numbers = #tpu.dot_dimension_numbers<[1], [0], [0], [1], [0, 0, 1, 1], [], []>} : vector<2x128xf32>, vector<128x128xf32>, vector<2x128xf32> -> vector<2x128xf32>
    %257 = arith.addf %251, %256 : vector<2x128xf32>
    %258 = vector.extract_strided_slice %190 {offsets = [0, 2, 6, 0], sizes = [2, 1, 1, 128], strides = [1, 1, 1, 1]} : vector<2x4x7x128xf32> to vector<2x1x1x128xf32>
    %259 = vector.shape_cast %258 : vector<2x1x1x128xf32> to vector<2x128xf32>
    %c11_150 = arith.constant 11 : index
    %c0_151 = arith.constant 0 : index
    %c0_152 = arith.constant 0 : index
    %260 = vector.load %arg6[%c11_150, %c0_151, %c0_152] : memref<16x128x128xf32, #tpu.memory_space<vmem>>, vector<1x128x128xf32>
    %261 = vector.shape_cast %260 : vector<1x128x128xf32> to vector<128x128xf32>
    %cst_153 = arith.constant dense<0.000000e+00> : vector<2x128xf32>
    %262 = tpu.matmul %259, %261, %cst_153 {dimension_numbers = #tpu.dot_dimension_numbers<[1], [0], [0], [1], [0, 0, 1, 1], [], []>} : vector<2x128xf32>, vector<128x128xf32>, vector<2x128xf32> -> vector<2x128xf32>
    %263 = arith.addf %257, %262 : vector<2x128xf32>
    %264 = vector.extract_strided_slice %190 {offsets = [0, 3, 0, 0], sizes = [2, 1, 1, 128], strides = [1, 1, 1, 1]} : vector<2x4x7x128xf32> to vector<2x1x1x128xf32>
    %265 = vector.shape_cast %264 : vector<2x1x1x128xf32> to vector<2x128xf32>
    %c12_154 = arith.constant 12 : index
    %c0_155 = arith.constant 0 : index
    %c0_156 = arith.constant 0 : index
    %266 = vector.load %arg6[%c12_154, %c0_155, %c0_156] : memref<16x128x128xf32, #tpu.memory_space<vmem>>, vector<1x128x128xf32>
    %267 = vector.shape_cast %266 : vector<1x128x128xf32> to vector<128x128xf32>
    %cst_157 = arith.constant dense<0.000000e+00> : vector<2x128xf32>
    %268 = tpu.matmul %265, %267, %cst_157 {dimension_numbers = #tpu.dot_dimension_numbers<[1], [0], [0], [1], [0, 0, 1, 1], [], []>} : vector<2x128xf32>, vector<128x128xf32>, vector<2x128xf32> -> vector<2x128xf32>
    %269 = arith.addf %263, %268 : vector<2x128xf32>
    %270 = vector.extract_strided_slice %190 {offsets = [0, 3, 2, 0], sizes = [2, 1, 1, 128], strides = [1, 1, 1, 1]} : vector<2x4x7x128xf32> to vector<2x1x1x128xf32>
    %271 = vector.shape_cast %270 : vector<2x1x1x128xf32> to vector<2x128xf32>
    %c13_158 = arith.constant 13 : index
    %c0_159 = arith.constant 0 : index
    %c0_160 = arith.constant 0 : index
    %272 = vector.load %arg6[%c13_158, %c0_159, %c0_160] : memref<16x128x128xf32, #tpu.memory_space<vmem>>, vector<1x128x128xf32>
    %273 = vector.shape_cast %272 : vector<1x128x128xf32> to vector<128x128xf32>
    %cst_161 = arith.constant dense<0.000000e+00> : vector<2x128xf32>
    %274 = tpu.matmul %271, %273, %cst_161 {dimension_numbers = #tpu.dot_dimension_numbers<[1], [0], [0], [1], [0, 0, 1, 1], [], []>} : vector<2x128xf32>, vector<128x128xf32>, vector<2x128xf32> -> vector<2x128xf32>
    %275 = arith.addf %269, %274 : vector<2x128xf32>
    %276 = vector.extract_strided_slice %190 {offsets = [0, 3, 4, 0], sizes = [2, 1, 1, 128], strides = [1, 1, 1, 1]} : vector<2x4x7x128xf32> to vector<2x1x1x128xf32>
    %277 = vector.shape_cast %276 : vector<2x1x1x128xf32> to vector<2x128xf32>
    %c14_162 = arith.constant 14 : index
    %c0_163 = arith.constant 0 : index
    %c0_164 = arith.constant 0 : index
    %278 = vector.load %arg6[%c14_162, %c0_163, %c0_164] : memref<16x128x128xf32, #tpu.memory_space<vmem>>, vector<1x128x128xf32>
    %279 = vector.shape_cast %278 : vector<1x128x128xf32> to vector<128x128xf32>
    %cst_165 = arith.constant dense<0.000000e+00> : vector<2x128xf32>
    %280 = tpu.matmul %277, %279, %cst_165 {dimension_numbers = #tpu.dot_dimension_numbers<[1], [0], [0], [1], [0, 0, 1, 1], [], []>} : vector<2x128xf32>, vector<128x128xf32>, vector<2x128xf32> -> vector<2x128xf32>
    %281 = arith.addf %275, %280 : vector<2x128xf32>
    %282 = vector.extract_strided_slice %190 {offsets = [0, 3, 6, 0], sizes = [2, 1, 1, 128], strides = [1, 1, 1, 1]} : vector<2x4x7x128xf32> to vector<2x1x1x128xf32>
    %283 = vector.shape_cast %282 : vector<2x1x1x128xf32> to vector<2x128xf32>
    %c15_166 = arith.constant 15 : index
    %c0_167 = arith.constant 0 : index
    %c0_168 = arith.constant 0 : index
    %284 = vector.load %arg6[%c15_166, %c0_167, %c0_168] : memref<16x128x128xf32, #tpu.memory_space<vmem>>, vector<1x128x128xf32>
    %285 = vector.shape_cast %284 : vector<1x128x128xf32> to vector<128x128xf32>
    %cst_169 = arith.constant dense<0.000000e+00> : vector<2x128xf32>
    %286 = tpu.matmul %283, %285, %cst_169 {dimension_numbers = #tpu.dot_dimension_numbers<[1], [0], [0], [1], [0, 0, 1, 1], [], []>} : vector<2x128xf32>, vector<128x128xf32>, vector<2x128xf32> -> vector<2x128xf32>
    %287 = arith.addf %281, %286 : vector<2x128xf32>
    %c0_170 = arith.constant 0 : index
    %c0_171 = arith.constant 0 : index
    %288 = vector.load %arg7[%c0_170, %c0_171] : memref<1x128xf32, #tpu.memory_space<vmem>>, vector<1x128xf32>
    %289 = vector.broadcast %288 : vector<1x128xf32> to vector<2x128xf32>
    %290 = arith.addf %287, %289 : vector<2x128xf32>
    %cst_172 = arith.constant 0.000000e+00 : f32
    %291 = vector.broadcast %cst_172 : f32 to vector<2x128xf32>
    %292 = arith.maximumf %290, %291 : vector<2x128xf32>
    %c0_173 = arith.constant 0 : index
    %c0_174 = arith.constant 0 : index
    %293 = vector.load %arg8[%c0_173, %c0_174] : memref<128x128xf32, #tpu.memory_space<vmem>>, vector<128x128xf32>
    %cst_175 = arith.constant dense<0.000000e+00> : vector<2x128xf32>
    %294 = tpu.matmul %292, %293, %cst_175 {dimension_numbers = #tpu.dot_dimension_numbers<[1], [0], [0], [1], [0, 0, 1, 1], [], []>} : vector<2x128xf32>, vector<128x128xf32>, vector<2x128xf32> -> vector<2x128xf32>
    %c0_176 = arith.constant 0 : index
    %c0_177 = arith.constant 0 : index
    %295 = vector.load %arg9[%c0_176, %c0_177] : memref<1x128xf32, #tpu.memory_space<vmem>>, vector<1x128xf32>
    %296 = vector.broadcast %295 : vector<1x128xf32> to vector<2x128xf32>
    %297 = arith.addf %294, %296 : vector<2x128xf32>
    %cst_178 = arith.constant 0.000000e+00 : f32
    %298 = vector.broadcast %cst_178 : f32 to vector<2x128xf32>
    %299 = arith.maximumf %297, %298 : vector<2x128xf32>
    %c0_179 = arith.constant 0 : index
    %c0_180 = arith.constant 0 : index
    %300 = vector.load %arg10[%c0_179, %c0_180] : memref<128x128xf32, #tpu.memory_space<vmem>>, vector<128x128xf32>
    %cst_181 = arith.constant dense<0.000000e+00> : vector<2x128xf32>
    %301 = tpu.matmul %299, %300, %cst_181 {dimension_numbers = #tpu.dot_dimension_numbers<[1], [0], [0], [1], [0, 0, 1, 1], [], []>} : vector<2x128xf32>, vector<128x128xf32>, vector<2x128xf32> -> vector<2x128xf32>
    %c0_182 = arith.constant 0 : index
    %c0_183 = arith.constant 0 : index
    %302 = vector.load %arg11[%c0_182, %c0_183] : memref<1x128xf32, #tpu.memory_space<vmem>>, vector<1x128xf32>
    %303 = vector.broadcast %302 : vector<1x128xf32> to vector<2x128xf32>
    %304 = arith.addf %301, %303 : vector<2x128xf32>
    %c0_184 = arith.constant 0 : index
    %c0_185 = arith.constant 0 : index
    %305 = vector.load %arg12[%c0_184, %c0_185] : memref<2x128xf32, #tpu.memory_space<vmem>>, vector<2x128xf32>
    tpu.vector_store %arg12[%c0_184, %c0_185], %304 {strides = array<i32>} : memref<2x128xf32, #tpu.memory_space<vmem>>, vector<2x128xf32>,
    return
  }
  func.func @transform_0(%arg0: i32) -> (i32, i32, i32) {
    %c0_i32 = arith.constant 0 : i32
    %c0_i32_0 = arith.constant 0 : i32
    %c0_i32_1 = arith.constant 0 : i32
    return %c0_i32, %arg0, %c0_i32_0 : i32, i32, i32
  }
  func.func @transform_1(%arg0: i32) -> (i32, i32) {
    %c0_i32 = arith.constant 0 : i32
    %c0_i32_0 = arith.constant 0 : i32
    %c0_i32_1 = arith.constant 0 : i32
    return %c0_i32, %c0_i32_0 : i32, i32
  }
  func.func @transform_2(%arg0: i32) -> (i32, i32) {
    %c0_i32 = arith.constant 0 : i32
    %c0_i32_0 = arith.constant 0 : i32
    %c0_i32_1 = arith.constant 0 : i32
    return %c0_i32, %c0_i32_0 : i32, i32
  }
  func.func @transform_3(%arg0: i32) -> (i32, i32, i32) {
    %c0_i32 = arith.constant 0 : i32
    %c0_i32_0 = arith.constant 0 : i32
    %c0_i32_1 = arith.constant 0 : i32
    %c0_i32_2 = arith.constant 0 : i32
    return %c0_i32, %c0_i32_0, %c0_i32_1 : i32, i32, i32
  }
  func.func @transform_4(%arg0: i32) -> (i32, i32) {
    %c0_i32 = arith.constant 0 : i32
    %c0_i32_0 = arith.constant 0 : i32
    %c0_i32_1 = arith.constant 0 : i32
    return %c0_i32, %c0_i32_0 : i32, i32
  }
  func.func @transform_5(%arg0: i32) -> (i32, i32, i32) {
    %c0_i32 = arith.constant 0 : i32
    %c0_i32_0 = arith.constant 0 : i32
    %c0_i32_1 = arith.constant 0 : i32
    %c0_i32_2 = arith.constant 0 : i32
    return %c0_i32, %c0_i32_0, %c0_i32_1 : i32, i32, i32
  }
  func.func @transform_6(%arg0: i32) -> (i32, i32) {
    %c0_i32 = arith.constant 0 : i32
    %c0_i32_0 = arith.constant 0 : i32
    %c0_i32_1 = arith.constant 0 : i32
    return %c0_i32, %c0_i32_0 : i32, i32
  }
  func.func @transform_7(%arg0: i32) -> (i32, i32) {
    %c0_i32 = arith.constant 0 : i32
    %c0_i32_0 = arith.constant 0 : i32
    %c0_i32_1 = arith.constant 0 : i32
    return %c0_i32, %c0_i32_0 : i32, i32
  }
  func.func @transform_8(%arg0: i32) -> (i32, i32) {
    %c0_i32 = arith.constant 0 : i32
    %c0_i32_0 = arith.constant 0 : i32
    %c0_i32_1 = arith.constant 0 : i32
    return %c0_i32, %c0_i32_0 : i32, i32
  }
  func.func @transform_9(%arg0: i32) -> (i32, i32) {
    %c0_i32 = arith.constant 0 : i32
    %c0_i32_0 = arith.constant 0 : i32
    %c0_i32_1 = arith.constant 0 : i32
    return %c0_i32, %c0_i32_0 : i32, i32
  }
  func.func @transform_10(%arg0: i32) -> (i32, i32) {
    %c0_i32 = arith.constant 0 : i32
    %c0_i32_0 = arith.constant 0 : i32
    %c0_i32_1 = arith.constant 0 : i32
    return %c0_i32, %c0_i32_0 : i32, i32
  }
  func.func @transform_11(%arg0: i32) -> (i32, i32) {
    %c0_i32 = arith.constant 0 : i32
    %c0_i32_0 = arith.constant 0 : i32
    return %arg0, %c0_i32 : i32, i32
  }
}

</mosaic_0001>

<llo_original>
// kernel: lenet_forward.1
$region0: #{lenet_forward.1}
  #allocation0 [shape = 'u32[]', space=smem, size = 0x4, offset = 0x4, fixed_abs, tag = 'smem constant byte address 0x4 - core index']
  #allocation1 [shape = 'u32[144,128]{1,0:T(1,128)}', space=vmem, size = 0x12000, scoped, tag = 'internal scratch']
  %s0 = inlined_call_operand.vmem [shape: f32[4,384,32], index: 0, kind: input, shape index: {}]
  %s1 = inlined_call_operand.vmem [shape: f32[32,128], index: 1, kind: input, shape index: {}]
  %s2 = inlined_call_operand.vmem [shape: f32[1,128], index: 2, kind: input, shape index: {}]
  %s3 = inlined_call_operand.vmem [shape: f32[25,128,128], index: 3, kind: input, shape index: {}]
  %s4 = inlined_call_operand.vmem [shape: f32[1,128], index: 4, kind: input, shape index: {}]
  %s5 = inlined_call_operand.vmem [shape: f32[16,128,128], index: 5, kind: input, shape index: {}]
  %s6 = inlined_call_operand.vmem [shape: f32[1,128], index: 6, kind: input, shape index: {}]
  %s7 = inlined_call_operand.vmem [shape: f32[128,128], index: 7, kind: input, shape index: {}]
  %s8 = inlined_call_operand.vmem [shape: f32[1,128], index: 8, kind: input, shape index: {}]
  %s9 = inlined_call_operand.vmem [shape: f32[128,128], index: 9, kind: input, shape index: {}]
  %s10 = inlined_call_operand.vmem [shape: f32[1,128], index: 10, kind: input, shape index: {}]
  %s11 = inlined_call_operand.hbm [shape: f32[2,128], index: 11, kind: output, shape index: {}]
  %s12 = sld [smem:[#allocation0]]
  $region54: #{lenet_forward.1} parent=0
    _
  %s14 = ssub.s32 1, %s12
  %s15 = scalar_select 0, %s14, %s12
  $region1: #{lenet_forward.1} parent=0
    #allocation2 [shape = 'u8[1024]{0}', space=vmem, size = 0x400, scoped, tag = 'output window, operand 0, single buffered']
    #allocation3 [shape = 's32[1]{0}', space=sflag, size = 0x4, scoped, tag = 'scoped memory for lenet_forward.1']
    %16 = vsyncpa [#allocation3], 0
    // Predicated region
    $region2: #{lenet_forward.1} parent=1 // pred_check
      _
    $region3: #{lenet_forward.1} parent=1 // pred_check_branch
      %18 = sbr.rel (0) target = $region5
    $region4: #{lenet_forward.1} parent=1 // pred_region
      _
    $region5: #{lenet_forward.1} parent=1 // pred_fallthru
      _
    // Predicated region
    $region6: #{lenet_forward.1} parent=1 // pred_check
      _
    $region7: #{lenet_forward.1} parent=1 // pred_check_branch
      %20 = sbr.rel (0) target = $region9
    $region8: #{lenet_forward.1} parent=1 // pred_region
      _
    $region9: #{lenet_forward.1} parent=1 // pred_fallthru
      _
    // Predicated region
    $region10: #{lenet_forward.1} parent=1 // pred_check
      _
    $region11: #{lenet_forward.1} parent=1 // pred_check_branch
      %22 = sbr.rel (0) target = $region13
    $region12: #{lenet_forward.1} parent=1 // pred_region
      _
    $region13: #{lenet_forward.1} parent=1 // pred_fallthru
      _
    // Predicated region
    $region14: #{lenet_forward.1} parent=1 // pred_check
      _
    $region15: #{lenet_forward.1} parent=1 // pred_check_branch
      %24 = sbr.rel (0) target = $region17
    $region16: #{lenet_forward.1} parent=1 // pred_region
      _
    $region17: #{lenet_forward.1} parent=1 // pred_fallthru
      _
    // Predicated region
    $region18: #{lenet_forward.1} parent=1 // pred_check
      _
    $region19: #{lenet_forward.1} parent=1 // pred_check_branch
      %26 = sbr.rel (0) target = $region21
    $region20: #{lenet_forward.1} parent=1 // pred_region
      _
    $region21: #{lenet_forward.1} parent=1 // pred_fallthru
      _
    // Predicated region
    $region22: #{lenet_forward.1} parent=1 // pred_check
      _
    $region23: #{lenet_forward.1} parent=1 // pred_check_branch
      %28 = sbr.rel (0) target = $region25
    $region24: #{lenet_forward.1} parent=1 // pred_region
      _
    $region25: #{lenet_forward.1} parent=1 // pred_fallthru
      _
    // Predicated region
    $region26: #{lenet_forward.1} parent=1 // pred_check
      _
    $region27: #{lenet_forward.1} parent=1 // pred_check_branch
      %30 = sbr.rel (0) target = $region29
    $region28: #{lenet_forward.1} parent=1 // pred_region
      _
    $region29: #{lenet_forward.1} parent=1 // pred_fallthru
      _
    // Predicated region
    $region30: #{lenet_forward.1} parent=1 // pred_check
      _
    $region31: #{lenet_forward.1} parent=1 // pred_check_branch
      %32 = sbr.rel (0) target = $region33
    $region32: #{lenet_forward.1} parent=1 // pred_region
      _
    $region33: #{lenet_forward.1} parent=1 // pred_fallthru
      _
    // Predicated region
    $region34: #{lenet_forward.1} parent=1 // pred_check
      _
    $region35: #{lenet_forward.1} parent=1 // pred_check_branch
      %34 = sbr.rel (0) target = $region37
    $region36: #{lenet_forward.1} parent=1 // pred_region
      _
    $region37: #{lenet_forward.1} parent=1 // pred_fallthru
      _
    // Predicated region
    $region38: #{lenet_forward.1} parent=1 // pred_check
      _
    $region39: #{lenet_forward.1} parent=1 // pred_check_branch
      %36 = sbr.rel (0) target = $region41
    $region40: #{lenet_forward.1} parent=1 // pred_region
      _
    $region41: #{lenet_forward.1} parent=1 // pred_fallthru
      _
    // Predicated region
    $region42: #{lenet_forward.1} parent=1 // pred_check
      _
    $region43: #{lenet_forward.1} parent=1 // pred_check_branch
      %38 = sbr.rel (0) target = $region45
    $region44: #{lenet_forward.1} parent=1 // pred_region
      _
    $region45: #{lenet_forward.1} parent=1 // pred_fallthru
      _
    %v39 = vld [vmem:[%s0] sm:$0xff]
    %v40 = vld [vmem:[%s0 + $0x8] sm:$0xff]
    %v41 = vld [vmem:[%s0 + $0x10] sm:$0xff]
    %v42 = vld [vmem:[%s0 + $0x18] sm:$0xff]
    %v43 = vld [vmem:[%s0 + $0x20] sm:$0xff]
    %v44 = vld [vmem:[%s0 + $0x28] sm:$0xff]
    %v45 = vld [vmem:[%s0 + $0x30] sm:$0xff]
    %v46 = vld [vmem:[%s0 + $0x38] sm:$0xff]
    %v47 = vld [vmem:[%s0 + $0x40] sm:$0xff]
    %v48 = vld [vmem:[%s0 + $0x48] sm:$0xff]
    %v49 = vld [vmem:[%s0 + $0x50] sm:$0xff]
    %v50 = vld [vmem:[%s0 + $0x58] sm:$0xff]
    %v51 = vld [vmem:[%s0 + $0x60] sm:$0xff]
    %v52 = vld [vmem:[%s0 + $0x68] sm:$0xff]
    %v53 = vld [vmem:[%s0 + $0x70] sm:$0xff]
    %v54 = vld [vmem:[%s0 + $0x78] sm:$0xff]
    %v55 = vld [vmem:[%s0 + $0x80] sm:$0xff]
    %v56 = vld [vmem:[%s0 + $0x88] sm:$0xff]
    %v57 = vld [vmem:[%s0 + $0x90] sm:$0xff]
    %v58 = vld [vmem:[%s0 + $0x98] sm:$0xff]
    %v59 = vld [vmem:[%s0 + $0xa0] sm:$0xff]
    %v60 = vld [vmem:[%s0 + $0xa8] sm:$0xff]
    %v61 = vld [vmem:[%s0 + $0xb0] sm:$0xff]
    %v62 = vld [vmem:[%s0 + $0xb8] sm:$0xff]
    %v63 = vld [vmem:[%s0 + $0xc0] sm:$0xff]
    %v64 = vld [vmem:[%s0 + $0xc8] sm:$0xff]
    %v65 = vld [vmem:[%s0 + $0xd0] sm:$0xff]
    %v66 = vld [vmem:[%s0 + $0xd8] sm:$0xff]
    %v67 = vld [vmem:[%s0 + $0xe0] sm:$0xff]
    %v68 = vld [vmem:[%s0 + $0xe8] sm:$0xff]
    %v69 = vld [vmem:[%s0 + $0xf0] sm:$0xff]
    %v70 = vld [vmem:[%s0 + $0xf8] sm:$0xff]
    %v71 = vld [vmem:[%s0 + $0x100] sm:$0xff]
    %v72 = vld [vmem:[%s0 + $0x108] sm:$0xff]
    %v73 = vld [vmem:[%s0 + $0x110] sm:$0xff]
    %v74 = vld [vmem:[%s0 + $0x118] sm:$0xff]
    %v75 = vld [vmem:[%s0 + $0x120] sm:$0xff]
    %v76 = vld [vmem:[%s0 + $0x128] sm:$0xff]
    %v77 = vld [vmem:[%s0 + $0x130] sm:$0xff]
    %v78 = vld [vmem:[%s0 + $0x138] sm:$0xff]
    %v79 = vld [vmem:[%s0 + $0x140] sm:$0xff]
    %v80 = vld [vmem:[%s0 + $0x148] sm:$0xff]
    %v81 = vld [vmem:[%s0 + $0x150] sm:$0xff]
    %v82 = vld [vmem:[%s0 + $0x158] sm:$0xff]
    %v83 = vld [vmem:[%s0 + $0x160] sm:$0xff]
    %v84 = vld [vmem:[%s0 + $0x168] sm:$0xff]
    %v85 = vld [vmem:[%s0 + $0x170] sm:$0xff]
    %v86 = vld [vmem:[%s0 + $0x178] sm:$0xff]
    %v87 = vld [vmem:[%s1] sm:$0xff]
    %v88 = vld [vmem:[%s1 + $0x8] sm:$0xff]
    %v89 = vld [vmem:[%s1 + $0x10] sm:$0xff]
    %v90 = vld [vmem:[%s1 + $0x18] sm:$0xff]
    %vm91 = vcmask 261120
    %v93 = vsel %vm91, %v39, 0
    %v96 = vsel %vm91, %v40, 0
    %v99 = vsel %vm91, %v41, 0
    %v102 = vsel %vm91, %v42, 0
    %v105 = vsel %vm91, %v43, 0
    %v108 = vsel %vm91, %v44, 0
    %v111 = vsel %vm91, %v45, 0
    %v114 = vsel %vm91, %v46, 0
    %v117 = vsel %vm91, %v47, 0
    %v120 = vsel %vm91, %v48, 0
    %v123 = vsel %vm91, %v49, 0
    %v126 = vsel %vm91, %v50, 0
    %v129 = vsel %vm91, %v51, 0
    %v132 = vsel %vm91, %v52, 0
    %v135 = vsel %vm91, %v53, 0
    %v138 = vsel %vm91, %v54, 0
    %v141 = vsel %vm91, %v55, 0
    %v144 = vsel %vm91, %v56, 0
    %v147 = vsel %vm91, %v57, 0
    %v150 = vsel %vm91, %v58, 0
    %v153 = vsel %vm91, %v59, 0
    %v156 = vsel %vm91, %v60, 0
    %v159 = vsel %vm91, %v61, 0
    %v162 = vsel %vm91, %v62, 0
    %v165 = vsel %vm91, %v63, 0
    %v168 = vsel %vm91, %v64, 0
    %v171 = vsel %vm91, %v65, 0
    %v174 = vsel %vm91, %v66, 0
    %v177 = vsel %vm91, %v67, 0
    %v180 = vsel %vm91, %v68, 0
    %v183 = vsel %vm91, %v69, 0
    %v186 = vsel %vm91, %v70, 0
    %v189 = vsel %vm91, %v71, 0
    %v192 = vsel %vm91, %v72, 0
    %v195 = vsel %vm91, %v73, 0
    %v198 = vsel %vm91, %v74, 0
    %v201 = vsel %vm91, %v75, 0
    %v204 = vsel %vm91, %v76, 0
    %v207 = vsel %vm91, %v77, 0
    %v210 = vsel %vm91, %v78, 0
    %v213 = vsel %vm91, %v79, 0
    %v216 = vsel %vm91, %v80, 0
    %v219 = vsel %vm91, %v81, 0
    %v222 = vsel %vm91, %v82, 0
    %v225 = vsel %vm91, %v83, 0
    %v228 = vsel %vm91, %v84, 0
    %v231 = vsel %vm91, %v85, 0
    %v234 = vsel %vm91, %v86, 0
    %236 = vmatprep.subr.mxu0 0.0
    %237 = vmatpush1.msra.mxu0 0.0
    %238 = vmatprep.subr.mxu0 0.0
    %239 = vmatpush1.msra.mxu0 0.0
    %240 = vmatprep.subr.mxu0 0.0
    %241 = vmatpush1.msra.mxu0 0.0
    %242 = vmatprep.subr.mxu0 0.0
    %243 = vmatpush1.msra.mxu0 0.0
    %244 = vmatprep.subr.mxu0 0.0
    %245 = vmatpush1.msra.mxu0 0.0
    %246 = vmatprep.subr.mxu0 0.0
    %247 = vmatpush1.msra.mxu0 0.0
    %248 = vmatprep.subr.mxu0 0.0
    %249 = vmatpush1.msra.mxu0 0.0
    %250 = vmatprep.subr.mxu0 0.0
    %251 = vmatpush1.msra.mxu0 0.0
    %252 = vmatprep.subr.mxu0 0.0
    %253 = vmatpush1.msra.mxu0 0.0
    %254 = vmatprep.subr.mxu0 0.0
    %255 = vmatpush1.msra.mxu0 0.0
    %256 = vmatprep.subr.mxu0 0.0
    %257 = vmatpush1.msra.mxu0 0.0
    %258 = vmatprep.subr.mxu0 0.0
    %259 = vmatpush1.msra.mxu0 0.0
    %260 = vmatprep.subr.mxu0 0.0
    %261 = vmatpush1.msra.mxu0 %v90
    %262 = vmatprep.subr.mxu0 0.0
    %263 = vmatpush1.msra.mxu0 %v89
    %264 = vmatprep.subr.mxu0 0.0
    %265 = vmatpush1.msra.mxu0 %v88
    %266 = vmatprep.subr.mxu0 0.0
    %267 = vmatpush1.msra.mxu0 %v87
    %268 = vmatprep.subr.mxu0 0.0
    %269 = vmatpush2.msra.mxu0 0.0
    %270 = vmatprep.subr.mxu0 0.0
    %271 = vmatpush2.msra.mxu0 0.0
    %272 = vmatprep.subr.mxu0 0.0
    %273 = vmatpush2.msra.mxu0 0.0
    %274 = vmatprep.subr.mxu0 0.0
    %275 = vmatpush2.msra.mxu0 0.0
    %276 = vmatprep.subr.mxu0 0.0
    %277 = vmatpush2.msra.mxu0 0.0
    %278 = vmatprep.subr.mxu0 0.0
    %279 = vmatpush2.msra.mxu0 0.0
    %280 = vmatprep.subr.mxu0 0.0
    %281 = vmatpush2.msra.mxu0 0.0
    %282 = vmatprep.subr.mxu0 0.0
    %283 = vmatpush2.msra.mxu0 0.0
    %284 = vmatprep.subr.mxu0 0.0
    %285 = vmatpush2.msra.mxu0 0.0
    %286 = vmatprep.subr.mxu0 0.0
    %287 = vmatpush2.msra.mxu0 0.0
    %288 = vmatprep.subr.mxu0 0.0
    %289 = vmatpush2.msra.mxu0 0.0
    %290 = vmatprep.subr.mxu0 0.0
    %291 = vmatpush2.msra.mxu0 0.0
    %292 = vmatprep.subr.mxu0 0.0
    %293 = vmatpush2.msra.mxu0 0.0
    %294 = vmatprep.subr.mxu0 0.0
    %295 = vmatpush2.msra.mxu0 0.0
    %296 = vmatprep.subr.mxu0 0.0
    %297 = vmatpush2.msra.mxu0 0.0
    %298 = vmatprep.subr.mxu0 0.0
    %299 = vmatpush2.msra.mxu0 0.0
    %300 = vmatprep.mubr.f32.mxu0 0.0
    %301 = vmatmul.mubr.f32.gmra.mxu0 %v93
    %v302 = vpop.f32.mrf.mxu0
    %v303 = vadd.f32 0.0, %v302
    %v304 = vpop.f32.mrf.mxu0
    %305 = vmatprep.mubr.f32.mxu0 0.0
    %306 = vmatmul.mubr.f32.gmra.mxu0 %v96
    %v307 = vpop.f32.mrf.mxu0
    %v308 = vadd.f32 0.0, %v307
    %v309 = vpop.f32.mrf.mxu0
    %310 = vmatprep.mubr.f32.mxu0 0.0
    %311 = vmatmul.mubr.f32.gmra.mxu0 %v99
    %v312 = vpop.f32.mrf.mxu0
    %v313 = vadd.f32 0.0, %v312
    %v314 = vpop.f32.mrf.mxu0
    %315 = vmatprep.mubr.f32.mxu0 0.0
    %316 = vmatmul.mubr.f32.gmra.mxu0 %v102
    %v317 = vpop.f32.mrf.mxu0
    %v318 = vadd.f32 0.0, %v317
    %v319 = vpop.f32.mrf.mxu0
    %320 = vmatprep.mubr.f32.mxu0 0.0
    %321 = vmatmul.mubr.f32.gmra.mxu0 %v105
    %v322 = vpop.f32.mrf.mxu0
    %v323 = vadd.f32 0.0, %v322
    %v324 = vpop.f32.mrf.mxu0
    %325 = vmatprep.mubr.f32.mxu0 0.0
    %326 = vmatmul.mubr.f32.gmra.mxu0 %v108
    %v327 = vpop.f32.mrf.mxu0
    %v328 = vadd.f32 0.0, %v327
    %v329 = vpop.f32.mrf.mxu0
    %330 = vmatprep.mubr.f32.mxu0 0.0
    %331 = vmatmul.mubr.f32.gmra.mxu0 %v111
    %v332 = vpop.f32.mrf.mxu0
    %v333 = vadd.f32 0.0, %v332
    %v334 = vpop.f32.mrf.mxu0
    %335 = vmatprep.mubr.f32.mxu0 0.0
    %336 = vmatmul.mubr.f32.gmra.mxu0 %v114
    %v337 = vpop.f32.mrf.mxu0
    %v338 = vadd.f32 0.0, %v337
    %v339 = vpop.f32.mrf.mxu0
    %340 = vmatprep.mubr.f32.mxu0 0.0
    %341 = vmatmul.mubr.f32.gmra.mxu0 %v117
    %v342 = vpop.f32.mrf.mxu0
    %v343 = vadd.f32 0.0, %v342
    %v344 = vpop.f32.mrf.mxu0
    %345 = vmatprep.mubr.f32.mxu0 0.0
    %346 = vmatmul.mubr.f32.gmra.mxu0 %v120
    %v347 = vpop.f32.mrf.mxu0
    %v348 = vadd.f32 0.0, %v347
    %v349 = vpop.f32.mrf.mxu0
    %350 = vmatprep.mubr.f32.mxu0 0.0
    %351 = vmatmul.mubr.f32.gmra.mxu0 %v123
    %v352 = vpop.f32.mrf.mxu0
    %v353 = vadd.f32 0.0, %v352
    %v354 = vpop.f32.mrf.mxu0
    %355 = vmatprep.mubr.f32.mxu0 0.0
    %356 = vmatmul.mubr.f32.gmra.mxu0 %v126
    %v357 = vpop.f32.mrf.mxu0
    %v358 = vadd.f32 0.0, %v357
    %v359 = vpop.f32.mrf.mxu0
    %360 = vmatprep.mubr.f32.mxu0 0.0
    %361 = vmatmul.mubr.f32.gmra.mxu0 %v129
    %v362 = vpop.f32.mrf.mxu0
    %v363 = vadd.f32 0.0, %v362
    %v364 = vpop.f32.mrf.mxu0
    %365 = vmatprep.mubr.f32.mxu0 0.0
    %366 = vmatmul.mubr.f32.gmra.mxu0 %v132
    %v367 = vpop.f32.mrf.mxu0
    %v368 = vadd.f32 0.0, %v367
    %v369 = vpop.f32.mrf.mxu0
    %370 = vmatprep.mubr.f32.mxu0 0.0
    %371 = vmatmul.mubr.f32.gmra.mxu0 %v135
    %v372 = vpop.f32.mrf.mxu0
    %v373 = vadd.f32 0.0, %v372
    %v374 = vpop.f32.mrf.mxu0
    %375 = vmatprep.mubr.f32.mxu0 0.0
    %376 = vmatmul.mubr.f32.gmra.mxu0 %v138
    %v377 = vpop.f32.mrf.mxu0
    %v378 = vadd.f32 0.0, %v377
    %v379 = vpop.f32.mrf.mxu0
    %380 = vmatprep.mubr.f32.mxu0 0.0
    %381 = vmatmul.mubr.f32.gmra.mxu0 %v141
    %v382 = vpop.f32.mrf.mxu0
    %v383 = vadd.f32 0.0, %v382
    %v384 = vpop.f32.mrf.mxu0
    %385 = vmatprep.mubr.f32.mxu0 0.0
    %386 = vmatmul.mubr.f32.gmra.mxu0 %v144
    %v387 = vpop.f32.mrf.mxu0
    %v388 = vadd.f32 0.0, %v387
    %v389 = vpop.f32.mrf.mxu0
    %390 = vmatprep.mubr.f32.mxu0 0.0
    %391 = vmatmul.mubr.f32.gmra.mxu0 %v147
    %v392 = vpop.f32.mrf.mxu0
    %v393 = vadd.f32 0.0, %v392
    %v394 = vpop.f32.mrf.mxu0
    %395 = vmatprep.mubr.f32.mxu0 0.0
    %396 = vmatmul.mubr.f32.gmra.mxu0 %v150
    %v397 = vpop.f32.mrf.mxu0
    %v398 = vadd.f32 0.0, %v397
    %v399 = vpop.f32.mrf.mxu0
    %400 = vmatprep.mubr.f32.mxu0 0.0
    %401 = vmatmul.mubr.f32.gmra.mxu0 %v153
    %v402 = vpop.f32.mrf.mxu0
    %v403 = vadd.f32 0.0, %v402
    %v404 = vpop.f32.mrf.mxu0
    %405 = vmatprep.mubr.f32.mxu0 0.0
    %406 = vmatmul.mubr.f32.gmra.mxu0 %v156
    %v407 = vpop.f32.mrf.mxu0
    %v408 = vadd.f32 0.0, %v407
    %v409 = vpop.f32.mrf.mxu0
    %410 = vmatprep.mubr.f32.mxu0 0.0
    %411 = vmatmul.mubr.f32.gmra.mxu0 %v159
    %v412 = vpop.f32.mrf.mxu0
    %v413 = vadd.f32 0.0, %v412
    %v414 = vpop.f32.mrf.mxu0
    %415 = vmatprep.mubr.f32.mxu0 0.0
    %416 = vmatmul.mubr.f32.gmra.mxu0 %v162
    %v417 = vpop.f32.mrf.mxu0
    %v418 = vadd.f32 0.0, %v417
    %v419 = vpop.f32.mrf.mxu0
    %420 = vmatprep.mubr.f32.mxu0 0.0
    %421 = vmatmul.mubr.f32.gmra.mxu0 %v165
    %v422 = vpop.f32.mrf.mxu0
    %v423 = vadd.f32 0.0, %v422
    %v424 = vpop.f32.mrf.mxu0
    %425 = vmatprep.mubr.f32.mxu0 0.0
    %426 = vmatmul.mubr.f32.gmra.mxu0 %v168
    %v427 = vpop.f32.mrf.mxu0
    %v428 = vadd.f32 0.0, %v427
    %v429 = vpop.f32.mrf.mxu0
    %430 = vmatprep.mubr.f32.mxu0 0.0
    %431 = vmatmul.mubr.f32.gmra.mxu0 %v171
    %v432 = vpop.f32.mrf.mxu0
    %v433 = vadd.f32 0.0, %v432
    %v434 = vpop.f32.mrf.mxu0
    %435 = vmatprep.mubr.f32.mxu0 0.0
    %436 = vmatmul.mubr.f32.gmra.mxu0 %v174
    %v437 = vpop.f32.mrf.mxu0
    %v438 = vadd.f32 0.0, %v437
    %v439 = vpop.f32.mrf.mxu0
    %440 = vmatprep.mubr.f32.mxu0 0.0
    %441 = vmatmul.mubr.f32.gmra.mxu0 %v177
    %v442 = vpop.f32.mrf.mxu0
    %v443 = vadd.f32 0.0, %v442
    %v444 = vpop.f32.mrf.mxu0
    %445 = vmatprep.mubr.f32.mxu0 0.0
    %446 = vmatmul.mubr.f32.gmra.mxu0 %v180
    %v447 = vpop.f32.mrf.mxu0
    %v448 = vadd.f32 0.0, %v447
    %v449 = vpop.f32.mrf.mxu0
    %450 = vmatprep.mubr.f32.mxu0 0.0
    %451 = vmatmul.mubr.f32.gmra.mxu0 %v183
    %v452 = vpop.f32.mrf.mxu0
    %v453 = vadd.f32 0.0, %v452
    %v454 = vpop.f32.mrf.mxu0
    %455 = vmatprep.mubr.f32.mxu0 0.0
    %456 = vmatmul.mubr.f32.gmra.mxu0 %v186
    %v457 = vpop.f32.mrf.mxu0
    %v458 = vadd.f32 0.0, %v457
    %v459 = vpop.f32.mrf.mxu0
    %460 = vmatprep.mubr.f32.mxu0 0.0
    %461 = vmatmul.mubr.f32.gmra.mxu0 %v189
    %v462 = vpop.f32.mrf.mxu0
    %v463 = vadd.f32 0.0, %v462
    %v464 = vpop.f32.mrf.mxu0
    %465 = vmatprep.mubr.f32.mxu0 0.0
    %466 = vmatmul.mubr.f32.gmra.mxu0 %v192
    %v467 = vpop.f32.mrf.mxu0
    %v468 = vadd.f32 0.0, %v467
    %v469 = vpop.f32.mrf.mxu0
    %470 = vmatprep.mubr.f32.mxu0 0.0
    %471 = vmatmul.mubr.f32.gmra.mxu0 %v195
    %v472 = vpop.f32.mrf.mxu0
    %v473 = vadd.f32 0.0, %v472
    %v474 = vpop.f32.mrf.mxu0
    %475 = vmatprep.mubr.f32.mxu0 0.0
    %476 = vmatmul.mubr.f32.gmra.mxu0 %v198
    %v477 = vpop.f32.mrf.mxu0
    %v478 = vadd.f32 0.0, %v477
    %v479 = vpop.f32.mrf.mxu0
    %480 = vmatprep.mubr.f32.mxu0 0.0
    %481 = vmatmul.mubr.f32.gmra.mxu0 %v201
    %v482 = vpop.f32.mrf.mxu0
    %v483 = vadd.f32 0.0, %v482
    %v484 = vpop.f32.mrf.mxu0
    %485 = vmatprep.mubr.f32.mxu0 0.0
    %486 = vmatmul.mubr.f32.gmra.mxu0 %v204
    %v487 = vpop.f32.mrf.mxu0
    %v488 = vadd.f32 0.0, %v487
    %v489 = vpop.f32.mrf.mxu0
    %490 = vmatprep.mubr.f32.mxu0 0.0
    %491 = vmatmul.mubr.f32.gmra.mxu0 %v207
    %v492 = vpop.f32.mrf.mxu0
    %v493 = vadd.f32 0.0, %v492
    %v494 = vpop.f32.mrf.mxu0
    %495 = vmatprep.mubr.f32.mxu0 0.0
    %496 = vmatmul.mubr.f32.gmra.mxu0 %v210
    %v497 = vpop.f32.mrf.mxu0
    %v498 = vadd.f32 0.0, %v497
    %v499 = vpop.f32.mrf.mxu0
    %500 = vmatprep.mubr.f32.mxu0 0.0
    %501 = vmatmul.mubr.f32.gmra.mxu0 %v213
    %v502 = vpop.f32.mrf.mxu0
    %v503 = vadd.f32 0.0, %v502
    %v504 = vpop.f32.mrf.mxu0
    %505 = vmatprep.mubr.f32.mxu0 0.0
    %506 = vmatmul.mubr.f32.gmra.mxu0 %v216
    %v507 = vpop.f32.mrf.mxu0
    %v508 = vadd.f32 0.0, %v507
    %v509 = vpop.f32.mrf.mxu0
    %510 = vmatprep.mubr.f32.mxu0 0.0
    %511 = vmatmul.mubr.f32.gmra.mxu0 %v219
    %v512 = vpop.f32.mrf.mxu0
    %v513 = vadd.f32 0.0, %v512
    %v514 = vpop.f32.mrf.mxu0
    %515 = vmatprep.mubr.f32.mxu0 0.0
    %516 = vmatmul.mubr.f32.gmra.mxu0 %v222
    %v517 = vpop.f32.mrf.mxu0
    %v518 = vadd.f32 0.0, %v517
    %v519 = vpop.f32.mrf.mxu0
    %520 = vmatprep.mubr.f32.mxu0 0.0
    %521 = vmatmul.mubr.f32.gmra.mxu0 %v225
    %v522 = vpop.f32.mrf.mxu0
    %v523 = vadd.f32 0.0, %v522
    %v524 = vpop.f32.mrf.mxu0
    %525 = vmatprep.mubr.f32.mxu0 0.0
    %526 = vmatmul.mubr.f32.gmra.mxu0 %v228
    %v527 = vpop.f32.mrf.mxu0
    %v528 = vadd.f32 0.0, %v527
    %v529 = vpop.f32.mrf.mxu0
    %530 = vmatprep.mubr.f32.mxu0 0.0
    %531 = vmatmul.mubr.f32.gmra.mxu0 %v231
    %v532 = vpop.f32.mrf.mxu0
    %v533 = vadd.f32 0.0, %v532
    %v534 = vpop.f32.mrf.mxu0
    %535 = vmatprep.mubr.f32.mxu0 0.0
    %536 = vmatmul.mubr.f32.gmra.mxu0 %v234
    %v537 = vpop.f32.mrf.mxu0
    %v538 = vadd.f32 0.0, %v537
    %v539 = vpop.f32.mrf.mxu0
    %540 = vdwg.mxu0
    %s541 = scalar_lea.vmem %s0, 384
    %v542 = vld [vmem:[%s541] sm:$0xff]
    %v543 = vld [vmem:[%s541 + $0x8] sm:$0xff]
    %v544 = vld [vmem:[%s541 + $0x10] sm:$0xff]
    %v545 = vld [vmem:[%s541 + $0x18] sm:$0xff]
    %v546 = vld [vmem:[%s541 + $0x20] sm:$0xff]
    %v547 = vld [vmem:[%s541 + $0x28] sm:$0xff]
    %v548 = vld [vmem:[%s541 + $0x30] sm:$0xff]
    %v549 = vld [vmem:[%s541 + $0x38] sm:$0xff]
    %v550 = vld [vmem:[%s541 + $0x40] sm:$0xff]
    %v551 = vld [vmem:[%s541 + $0x48] sm:$0xff]
    %v552 = vld [vmem:[%s541 + $0x50] sm:$0xff]
    %v553 = vld [vmem:[%s541 + $0x58] sm:$0xff]
    %v554 = vld [vmem:[%s541 + $0x60] sm:$0xff]
    %v555 = vld [vmem:[%s541 + $0x68] sm:$0xff]
    %v556 = vld [vmem:[%s541 + $0x70] sm:$0xff]
    %v557 = vld [vmem:[%s541 + $0x78] sm:$0xff]
    %v558 = vld [vmem:[%s541 + $0x80] sm:$0xff]
    %v559 = vld [vmem:[%s541 + $0x88] sm:$0xff]
    %v560 = vld [vmem:[%s541 + $0x90] sm:$0xff]
    %v561 = vld [vmem:[%s541 + $0x98] sm:$0xff]
    %v562 = vld [vmem:[%s541 + $0xa0] sm:$0xff]
    %v563 = vld [vmem:[%s541 + $0xa8] sm:$0xff]
    %v564 = vld [vmem:[%s541 + $0xb0] sm:$0xff]
    %v565 = vld [vmem:[%s541 + $0xb8] sm:$0xff]
    %v566 = vld [vmem:[%s541 + $0xc0] sm:$0xff]
    %v567 = vld [vmem:[%s541 + $0xc8] sm:$0xff]
    %v568 = vld [vmem:[%s541 + $0xd0] sm:$0xff]
    %v569 = vld [vmem:[%s541 + $0xd8] sm:$0xff]
    %v570 = vld [vmem:[%s541 + $0xe0] sm:$0xff]
    %v571 = vld [vmem:[%s541 + $0xe8] sm:$0xff]
    %v572 = vld [vmem:[%s541 + $0xf0] sm:$0xff]
    %v573 = vld [vmem:[%s541 + $0xf8] sm:$0xff]
    %v574 = vld [vmem:[%s541 + $0x100] sm:$0xff]
    %v575 = vld [vmem:[%s541 + $0x108] sm:$0xff]
    %v576 = vld [vmem:[%s541 + $0x110] sm:$0xff]
    %v577 = vld [vmem:[%s541 + $0x118] sm:$0xff]
    %v578 = vld [vmem:[%s541 + $0x120] sm:$0xff]
    %v579 = vld [vmem:[%s541 + $0x128] sm:$0xff]
    %v580 = vld [vmem:[%s541 + $0x130] sm:$0xff]
    %v581 = vld [vmem:[%s541 + $0x138] sm:$0xff]
    %v582 = vld [vmem:[%s541 + $0x140] sm:$0xff]
    %v583 = vld [vmem:[%s541 + $0x148] sm:$0xff]
    %v584 = vld [vmem:[%s541 + $0x150] sm:$0xff]
    %v585 = vld [vmem:[%s541 + $0x158] sm:$0xff]
    %v586 = vld [vmem:[%s541 + $0x160] sm:$0xff]
    %v587 = vld [vmem:[%s541 + $0x168] sm:$0xff]
    %v588 = vld [vmem:[%s541 + $0x170] sm:$0xff]
    %v589 = vld [vmem:[%s541 + $0x178] sm:$0xff]
    %v591 = vsel %vm91, %v542, 0
    %v594 = vsel %vm91, %v543, 0
    %v597 = vsel %vm91, %v544, 0
    %v600 = vsel %vm91, %v545, 0
    %v603 = vsel %vm91, %v546, 0
    %v606 = vsel %vm91, %v547, 0
    %v609 = vsel %vm91, %v548, 0
    %v612 = vsel %vm91, %v549, 0
    %v615 = vsel %vm91, %v550, 0
    %v618 = vsel %vm91, %v551, 0
    %v621 = vsel %vm91, %v552, 0
    %v624 = vsel %vm91, %v553, 0
    %v627 = vsel %vm91, %v554, 0
    %v630 = vsel %vm91, %v555, 0
    %v633 = vsel %vm91, %v556, 0
    %v636 = vsel %vm91, %v557, 0
    %v639 = vsel %vm91, %v558, 0
    %v642 = vsel %vm91, %v559, 0
    %v645 = vsel %vm91, %v560, 0
    %v648 = vsel %vm91, %v561, 0
    %v651 = vsel %vm91, %v562, 0
    %v654 = vsel %vm91, %v563, 0
    %v657 = vsel %vm91, %v564, 0
    %v660 = vsel %vm91, %v565, 0
    %v663 = vsel %vm91, %v566, 0
    %v666 = vsel %vm91, %v567, 0
    %v669 = vsel %vm91, %v568, 0
    %v672 = vsel %vm91, %v569, 0
    %v675 = vsel %vm91, %v570, 0
    %v678 = vsel %vm91, %v571, 0
    %v681 = vsel %vm91, %v572, 0
    %v684 = vsel %vm91, %v573, 0
    %v687 = vsel %vm91, %v574, 0
    %v690 = vsel %vm91, %v575, 0
    %v693 = vsel %vm91, %v576, 0
    %v696 = vsel %vm91, %v577, 0
    %v699 = vsel %vm91, %v578, 0
    %v702 = vsel %vm91, %v579, 0
    %v705 = vsel %vm91, %v580, 0
    %v708 = vsel %vm91, %v581, 0
    %v711 = vsel %vm91, %v582, 0
    %v714 = vsel %vm91, %v583, 0
    %v717 = vsel %vm91, %v584, 0
    %v720 = vsel %vm91, %v585, 0
    %v723 = vsel %vm91, %v586, 0
    %v726 = vsel %vm91, %v587, 0
    %v729 = vsel %vm91, %v588, 0
    %v732 = vsel %vm91, %v589, 0
    %734 = vmatprep.subr.mxu0 0.0
    %735 = vmatpush1.msra.mxu0 0.0
    %736 = vmatprep.subr.mxu0 0.0
    %737 = vmatpush1.msra.mxu0 0.0
    %738 = vmatprep.subr.mxu0 0.0
    %739 = vmatpush1.msra.mxu0 0.0
    %740 = vmatprep.subr.mxu0 0.0
    %741 = vmatpush1.msra.mxu0 0.0
    %742 = vmatprep.subr.mxu0 0.0
    %743 = vmatpush1.msra.mxu0 0.0
    %744 = vmatprep.subr.mxu0 0.0
    %745 = vmatpush1.msra.mxu0 0.0
    %746 = vmatprep.subr.mxu0 0.0
    %747 = vmatpush1.msra.mxu0 0.0
    %748 = vmatprep.subr.mxu0 0.0
    %749 = vmatpush1.msra.mxu0 0.0
    %750 = vmatprep.subr.mxu0 0.0
    %751 = vmatpush1.msra.mxu0 0.0
    %752 = vmatprep.subr.mxu0 0.0
    %753 = vmatpush1.msra.mxu0 0.0
    %754 = vmatprep.subr.mxu0 0.0
    %755 = vmatpush1.msra.mxu0 0.0
    %756 = vmatprep.subr.mxu0 0.0
    %757 = vmatpush1.msra.mxu0 0.0
    %758 = vmatprep.subr.mxu0 0.0
    %759 = vmatpush1.msra.mxu0 %v90
    %760 = vmatprep.subr.mxu0 0.0
    %761 = vmatpush1.msra.mxu0 %v89
    %762 = vmatprep.subr.mxu0 0.0
    %763 = vmatpush1.msra.mxu0 %v88
    %764 = vmatprep.subr.mxu0 0.0
    %765 = vmatpush1.msra.mxu0 %v87
    %766 = vmatprep.subr.mxu0 0.0
    %767 = vmatpush2.msra.mxu0 0.0
    %768 = vmatprep.subr.mxu0 0.0
    %769 = vmatpush2.msra.mxu0 0.0
    %770 = vmatprep.subr.mxu0 0.0
    %771 = vmatpush2.msra.mxu0 0.0
    %772 = vmatprep.subr.mxu0 0.0
    %773 = vmatpush2.msra.mxu0 0.0
    %774 = vmatprep.subr.mxu0 0.0
    %775 = vmatpush2.msra.mxu0 0.0
    %776 = vmatprep.subr.mxu0 0.0
    %777 = vmatpush2.msra.mxu0 0.0
    %778 = vmatprep.subr.mxu0 0.0
    %779 = vmatpush2.msra.mxu0 0.0
    %780 = vmatprep.subr.mxu0 0.0
    %781 = vmatpush2.msra.mxu0 0.0
    %782 = vmatprep.subr.mxu0 0.0
    %783 = vmatpush2.msra.mxu0 0.0
    %784 = vmatprep.subr.mxu0 0.0
    %785 = vmatpush2.msra.mxu0 0.0
    %786 = vmatprep.subr.mxu0 0.0
    %787 = vmatpush2.msra.mxu0 0.0
    %788 = vmatprep.subr.mxu0 0.0
    %789 = vmatpush2.msra.mxu0 0.0
    %790 = vmatprep.subr.mxu0 0.0
    %791 = vmatpush2.msra.mxu0 0.0
    %792 = vmatprep.subr.mxu0 0.0
    %793 = vmatpush2.msra.mxu0 0.0
    %794 = vmatprep.subr.mxu0 0.0
    %795 = vmatpush2.msra.mxu0 0.0
    %796 = vmatprep.subr.mxu0 0.0
    %797 = vmatpush2.msra.mxu0 0.0
    %798 = vmatprep.mubr.f32.mxu0 0.0
    %799 = vmatmul.mubr.f32.gmra.mxu0 %v591
    %v800 = vpop.f32.mrf.mxu0
    %v801 = vadd.f32 0.0, %v800
    %v802 = vpop.f32.mrf.mxu0
    %803 = vmatprep.mubr.f32.mxu0 0.0
    %804 = vmatmul.mubr.f32.gmra.mxu0 %v594
    %v805 = vpop.f32.mrf.mxu0
    %v806 = vadd.f32 0.0, %v805
    %v807 = vpop.f32.mrf.mxu0
    %808 = vmatprep.mubr.f32.mxu0 0.0
    %809 = vmatmul.mubr.f32.gmra.mxu0 %v597
    %v810 = vpop.f32.mrf.mxu0
    %v811 = vadd.f32 0.0, %v810
    %v812 = vpop.f32.mrf.mxu0
    %813 = vmatprep.mubr.f32.mxu0 0.0
    %814 = vmatmul.mubr.f32.gmra.mxu0 %v600
    %v815 = vpop.f32.mrf.mxu0
    %v816 = vadd.f32 0.0, %v815
    %v817 = vpop.f32.mrf.mxu0
    %818 = vmatprep.mubr.f32.mxu0 0.0
    %819 = vmatmul.mubr.f32.gmra.mxu0 %v603
    %v820 = vpop.f32.mrf.mxu0
    %v821 = vadd.f32 0.0, %v820
    %v822 = vpop.f32.mrf.mxu0
    %823 = vmatprep.mubr.f32.mxu0 0.0
    %824 = vmatmul.mubr.f32.gmra.mxu0 %v606
    %v825 = vpop.f32.mrf.mxu0
    %v826 = vadd.f32 0.0, %v825
    %v827 = vpop.f32.mrf.mxu0
    %828 = vmatprep.mubr.f32.mxu0 0.0
    %829 = vmatmul.mubr.f32.gmra.mxu0 %v609
    %v830 = vpop.f32.mrf.mxu0
    %v831 = vadd.f32 0.0, %v830
    %v832 = vpop.f32.mrf.mxu0
    %833 = vmatprep.mubr.f32.mxu0 0.0
    %834 = vmatmul.mubr.f32.gmra.mxu0 %v612
    %v835 = vpop.f32.mrf.mxu0
    %v836 = vadd.f32 0.0, %v835
    %v837 = vpop.f32.mrf.mxu0
    %838 = vmatprep.mubr.f32.mxu0 0.0
    %839 = vmatmul.mubr.f32.gmra.mxu0 %v615
    %v840 = vpop.f32.mrf.mxu0
    %v841 = vadd.f32 0.0, %v840
    %v842 = vpop.f32.mrf.mxu0
    %843 = vmatprep.mubr.f32.mxu0 0.0
    %844 = vmatmul.mubr.f32.gmra.mxu0 %v618
    %v845 = vpop.f32.mrf.mxu0
    %v846 = vadd.f32 0.0, %v845
    %v847 = vpop.f32.mrf.mxu0
    %848 = vmatprep.mubr.f32.mxu0 0.0
    %849 = vmatmul.mubr.f32.gmra.mxu0 %v621
    %v850 = vpop.f32.mrf.mxu0
    %v851 = vadd.f32 0.0, %v850
    %v852 = vpop.f32.mrf.mxu0
    %853 = vmatprep.mubr.f32.mxu0 0.0
    %854 = vmatmul.mubr.f32.gmra.mxu0 %v624
    %v855 = vpop.f32.mrf.mxu0
    %v856 = vadd.f32 0.0, %v855
    %v857 = vpop.f32.mrf.mxu0
    %858 = vmatprep.mubr.f32.mxu0 0.0
    %859 = vmatmul.mubr.f32.gmra.mxu0 %v627
    %v860 = vpop.f32.mrf.mxu0
    %v861 = vadd.f32 0.0, %v860
    %v862 = vpop.f32.mrf.mxu0
    %863 = vmatprep.mubr.f32.mxu0 0.0
    %864 = vmatmul.mubr.f32.gmra.mxu0 %v630
    %v865 = vpop.f32.mrf.mxu0
    %v866 = vadd.f32 0.0, %v865
    %v867 = vpop.f32.mrf.mxu0
    %868 = vmatprep.mubr.f32.mxu0 0.0
    %869 = vmatmul.mubr.f32.gmra.mxu0 %v633
    %v870 = vpop.f32.mrf.mxu0
    %v871 = vadd.f32 0.0, %v870
    %v872 = vpop.f32.mrf.mxu0
    %873 = vmatprep.mubr.f32.mxu0 0.0
    %874 = vmatmul.mubr.f32.gmra.mxu0 %v636
    %v875 = vpop.f32.mrf.mxu0
    %v876 = vadd.f32 0.0, %v875
    %v877 = vpop.f32.mrf.mxu0
    %878 = vmatprep.mubr.f32.mxu0 0.0
    %879 = vmatmul.mubr.f32.gmra.mxu0 %v639
    %v880 = vpop.f32.mrf.mxu0
    %v881 = vadd.f32 0.0, %v880
    %v882 = vpop.f32.mrf.mxu0
    %883 = vmatprep.mubr.f32.mxu0 0.0
    %884 = vmatmul.mubr.f32.gmra.mxu0 %v642
    %v885 = vpop.f32.mrf.mxu0
    %v886 = vadd.f32 0.0, %v885
    %v887 = vpop.f32.mrf.mxu0
    %888 = vmatprep.mubr.f32.mxu0 0.0
    %889 = vmatmul.mubr.f32.gmra.mxu0 %v645
    %v890 = vpop.f32.mrf.mxu0
    %v891 = vadd.f32 0.0, %v890
    %v892 = vpop.f32.mrf.mxu0
    %893 = vmatprep.mubr.f32.mxu0 0.0
    %894 = vmatmul.mubr.f32.gmra.mxu0 %v648
    %v895 = vpop.f32.mrf.mxu0
    %v896 = vadd.f32 0.0, %v895
    %v897 = vpop.f32.mrf.mxu0
    %898 = vmatprep.mubr.f32.mxu0 0.0
    %899 = vmatmul.mubr.f32.gmra.mxu0 %v651
    %v900 = vpop.f32.mrf.mxu0
    %v901 = vadd.f32 0.0, %v900
    %v902 = vpop.f32.mrf.mxu0
    %903 = vmatprep.mubr.f32.mxu0 0.0
    %904 = vmatmul.mubr.f32.gmra.mxu0 %v654
    %v905 = vpop.f32.mrf.mxu0
    %v906 = vadd.f32 0.0, %v905
    %v907 = vpop.f32.mrf.mxu0
    %908 = vmatprep.mubr.f32.mxu0 0.0
    %909 = vmatmul.mubr.f32.gmra.mxu0 %v657
    %v910 = vpop.f32.mrf.mxu0
    %v911 = vadd.f32 0.0, %v910
    %v912 = vpop.f32.mrf.mxu0
    %913 = vmatprep.mubr.f32.mxu0 0.0
    %914 = vmatmul.mubr.f32.gmra.mxu0 %v660
    %v915 = vpop.f32.mrf.mxu0
    %v916 = vadd.f32 0.0, %v915
    %v917 = vpop.f32.mrf.mxu0
    %918 = vmatprep.mubr.f32.mxu0 0.0
    %919 = vmatmul.mubr.f32.gmra.mxu0 %v663
    %v920 = vpop.f32.mrf.mxu0
    %v921 = vadd.f32 0.0, %v920
    %v922 = vpop.f32.mrf.mxu0
    %923 = vmatprep.mubr.f32.mxu0 0.0
    %924 = vmatmul.mubr.f32.gmra.mxu0 %v666
    %v925 = vpop.f32.mrf.mxu0
    %v926 = vadd.f32 0.0, %v925
    %v927 = vpop.f32.mrf.mxu0
    %928 = vmatprep.mubr.f32.mxu0 0.0
    %929 = vmatmul.mubr.f32.gmra.mxu0 %v669
    %v930 = vpop.f32.mrf.mxu0
    %v931 = vadd.f32 0.0, %v930
    %v932 = vpop.f32.mrf.mxu0
    %933 = vmatprep.mubr.f32.mxu0 0.0
    %934 = vmatmul.mubr.f32.gmra.mxu0 %v672
    %v935 = vpop.f32.mrf.mxu0
    %v936 = vadd.f32 0.0, %v935
    %v937 = vpop.f32.mrf.mxu0
    %938 = vmatprep.mubr.f32.mxu0 0.0
    %939 = vmatmul.mubr.f32.gmra.mxu0 %v675
    %v940 = vpop.f32.mrf.mxu0
    %v941 = vadd.f32 0.0, %v940
    %v942 = vpop.f32.mrf.mxu0
    %943 = vmatprep.mubr.f32.mxu0 0.0
    %944 = vmatmul.mubr.f32.gmra.mxu0 %v678
    %v945 = vpop.f32.mrf.mxu0
    %v946 = vadd.f32 0.0, %v945
    %v947 = vpop.f32.mrf.mxu0
    %948 = vmatprep.mubr.f32.mxu0 0.0
    %949 = vmatmul.mubr.f32.gmra.mxu0 %v681
    %v950 = vpop.f32.mrf.mxu0
    %v951 = vadd.f32 0.0, %v950
    %v952 = vpop.f32.mrf.mxu0
    %953 = vmatprep.mubr.f32.mxu0 0.0
    %954 = vmatmul.mubr.f32.gmra.mxu0 %v684
    %v955 = vpop.f32.mrf.mxu0
    %v956 = vadd.f32 0.0, %v955
    %v957 = vpop.f32.mrf.mxu0
    %958 = vmatprep.mubr.f32.mxu0 0.0
    %959 = vmatmul.mubr.f32.gmra.mxu0 %v687
    %v960 = vpop.f32.mrf.mxu0
    %v961 = vadd.f32 0.0, %v960
    %v962 = vpop.f32.mrf.mxu0
    %963 = vmatprep.mubr.f32.mxu0 0.0
    %964 = vmatmul.mubr.f32.gmra.mxu0 %v690
    %v965 = vpop.f32.mrf.mxu0
    %v966 = vadd.f32 0.0, %v965
    %v967 = vpop.f32.mrf.mxu0
    %968 = vmatprep.mubr.f32.mxu0 0.0
    %969 = vmatmul.mubr.f32.gmra.mxu0 %v693
    %v970 = vpop.f32.mrf.mxu0
    %v971 = vadd.f32 0.0, %v970
    %v972 = vpop.f32.mrf.mxu0
    %973 = vmatprep.mubr.f32.mxu0 0.0
    %974 = vmatmul.mubr.f32.gmra.mxu0 %v696
    %v975 = vpop.f32.mrf.mxu0
    %v976 = vadd.f32 0.0, %v975
    %v977 = vpop.f32.mrf.mxu0
    %978 = vmatprep.mubr.f32.mxu0 0.0
    %979 = vmatmul.mubr.f32.gmra.mxu0 %v699
    %v980 = vpop.f32.mrf.mxu0
    %v981 = vadd.f32 0.0, %v980
    %v982 = vpop.f32.mrf.mxu0
    %983 = vmatprep.mubr.f32.mxu0 0.0
    %984 = vmatmul.mubr.f32.gmra.mxu0 %v702
    %v985 = vpop.f32.mrf.mxu0
    %v986 = vadd.f32 0.0, %v985
    %v987 = vpop.f32.mrf.mxu0
    %988 = vmatprep.mubr.f32.mxu0 0.0
    %989 = vmatmul.mubr.f32.gmra.mxu0 %v705
    %v990 = vpop.f32.mrf.mxu0
    %v991 = vadd.f32 0.0, %v990
    %v992 = vpop.f32.mrf.mxu0
    %993 = vmatprep.mubr.f32.mxu0 0.0
    %994 = vmatmul.mubr.f32.gmra.mxu0 %v708
    %v995 = vpop.f32.mrf.mxu0
    %v996 = vadd.f32 0.0, %v995
    %v997 = vpop.f32.mrf.mxu0
    %998 = vmatprep.mubr.f32.mxu0 0.0
    %999 = vmatmul.mubr.f32.gmra.mxu0 %v711
    %v1000 = vpop.f32.mrf.mxu0
    %v1001 = vadd.f32 0.0, %v1000
    %v1002 = vpop.f32.mrf.mxu0
    %1003 = vmatprep.mubr.f32.mxu0 0.0
    %1004 = vmatmul.mubr.f32.gmra.mxu0 %v714
    %v1005 = vpop.f32.mrf.mxu0
    %v1006 = vadd.f32 0.0, %v1005
    %v1007 = vpop.f32.mrf.mxu0
    %1008 = vmatprep.mubr.f32.mxu0 0.0
    %1009 = vmatmul.mubr.f32.gmra.mxu0 %v717
    %v1010 = vpop.f32.mrf.mxu0
    %v1011 = vadd.f32 0.0, %v1010
    %v1012 = vpop.f32.mrf.mxu0
    %1013 = vmatprep.mubr.f32.mxu0 0.0
    %1014 = vmatmul.mubr.f32.gmra.mxu0 %v720
    %v1015 = vpop.f32.mrf.mxu0
    %v1016 = vadd.f32 0.0, %v1015
    %v1017 = vpop.f32.mrf.mxu0
    %1018 = vmatprep.mubr.f32.mxu0 0.0
    %1019 = vmatmul.mubr.f32.gmra.mxu0 %v723
    %v1020 = vpop.f32.mrf.mxu0
    %v1021 = vadd.f32 0.0, %v1020
    %v1022 = vpop.f32.mrf.mxu0
    %1023 = vmatprep.mubr.f32.mxu0 0.0
    %1024 = vmatmul.mubr.f32.gmra.mxu0 %v726
    %v1025 = vpop.f32.mrf.mxu0
    %v1026 = vadd.f32 0.0, %v1025
    %v1027 = vpop.f32.mrf.mxu0
    %1028 = vmatprep.mubr.f32.mxu0 0.0
    %1029 = vmatmul.mubr.f32.gmra.mxu0 %v729
    %v1030 = vpop.f32.mrf.mxu0
    %v1031 = vadd.f32 0.0, %v1030
    %v1032 = vpop.f32.mrf.mxu0
    %1033 = vmatprep.mubr.f32.mxu0 0.0
    %1034 = vmatmul.mubr.f32.gmra.mxu0 %v732
    %v1035 = vpop.f32.mrf.mxu0
    %v1036 = vadd.f32 0.0, %v1035
    %v1037 = vpop.f32.mrf.mxu0
    %1038 = vdwg.mxu0
    %v1039 = vmax.f32 %v303, %v801
    %v1040 = vmax.f32 %v308, %v806
    %v1041 = vmax.f32 %v313, %v811
    %v1042 = vmax.f32 %v318, %v816
    %v1043 = vmax.f32 %v323, %v821
    %v1044 = vmax.f32 %v328, %v826
    %v1045 = vmax.f32 %v333, %v831
    %v1046 = vmax.f32 %v338, %v836
    %v1047 = vmax.f32 %v343, %v841
    %v1048 = vmax.f32 %v348, %v846
    %v1049 = vmax.f32 %v353, %v851
    %v1050 = vmax.f32 %v358, %v856
    %v1051 = vmax.f32 %v363, %v861
    %v1052 = vmax.f32 %v368, %v866
    %v1053 = vmax.f32 %v373, %v871
    %v1054 = vmax.f32 %v378, %v876
    %v1055 = vmax.f32 %v383, %v881
    %v1056 = vmax.f32 %v388, %v886
    %v1057 = vmax.f32 %v393, %v891
    %v1058 = vmax.f32 %v398, %v896
    %v1059 = vmax.f32 %v403, %v901
    %v1060 = vmax.f32 %v408, %v906
    %v1061 = vmax.f32 %v413, %v911
    %v1062 = vmax.f32 %v418, %v916
    %v1063 = vmax.f32 %v423, %v921
    %v1064 = vmax.f32 %v428, %v926
    %v1065 = vmax.f32 %v433, %v931
    %v1066 = vmax.f32 %v438, %v936
    %v1067 = vmax.f32 %v443, %v941
    %v1068 = vmax.f32 %v448, %v946
    %v1069 = vmax.f32 %v453, %v951
    %v1070 = vmax.f32 %v458, %v956
    %v1071 = vmax.f32 %v463, %v961
    %v1072 = vmax.f32 %v468, %v966
    %v1073 = vmax.f32 %v473, %v971
    %v1074 = vmax.f32 %v478, %v976
    %v1075 = vmax.f32 %v483, %v981
    %v1076 = vmax.f32 %v488, %v986
    %v1077 = vmax.f32 %v493, %v991
    %v1078 = vmax.f32 %v498, %v996
    %v1079 = vmax.f32 %v503, %v1001
    %v1080 = vmax.f32 %v508, %v1006
    %v1081 = vmax.f32 %v513, %v1011
    %v1082 = vmax.f32 %v518, %v1016
    %v1083 = vmax.f32 %v523, %v1021
    %v1084 = vmax.f32 %v528, %v1026
    %v1085 = vmax.f32 %v533, %v1031
    %v1086 = vmax.f32 %v538, %v1036
    %s1087 = scalar_lea.vmem %s0, 768
    %v1088 = vld [vmem:[%s1087] sm:$0xff]
    %v1089 = vld [vmem:[%s1087 + $0x8] sm:$0xff]
    %v1090 = vld [vmem:[%s1087 + $0x10] sm:$0xff]
    %v1091 = vld [vmem:[%s1087 + $0x18] sm:$0xff]
    %v1092 = vld [vmem:[%s1087 + $0x20] sm:$0xff]
    %v1093 = vld [vmem:[%s1087 + $0x28] sm:$0xff]
    %v1094 = vld [vmem:[%s1087 + $0x30] sm:$0xff]
    %v1095 = vld [vmem:[%s1087 + $0x38] sm:$0xff]
    %v1096 = vld [vmem:[%s1087 + $0x40] sm:$0xff]
    %v1097 = vld [vmem:[%s1087 + $0x48] sm:$0xff]
    %v1098 = vld [vmem:[%s1087 + $0x50] sm:$0xff]
    %v1099 = vld [vmem:[%s1087 + $0x58] sm:$0xff]
    %v1100 = vld [vmem:[%s1087 + $0x60] sm:$0xff]
    %v1101 = vld [vmem:[%s1087 + $0x68] sm:$0xff]
    %v1102 = vld [vmem:[%s1087 + $0x70] sm:$0xff]
    %v1103 = vld [vmem:[%s1087 + $0x78] sm:$0xff]
    %v1104 = vld [vmem:[%s1087 + $0x80] sm:$0xff]
    %v1105 = vld [vmem:[%s1087 + $0x88] sm:$0xff]
    %v1106 = vld [vmem:[%s1087 + $0x90] sm:$0xff]
    %v1107 = vld [vmem:[%s1087 + $0x98] sm:$0xff]
    %v1108 = vld [vmem:[%s1087 + $0xa0] sm:$0xff]
    %v1109 = vld [vmem:[%s1087 + $0xa8] sm:$0xff]
    %v1110 = vld [vmem:[%s1087 + $0xb0] sm:$0xff]
    %v1111 = vld [vmem:[%s1087 + $0xb8] sm:$0xff]
    %v1112 = vld [vmem:[%s1087 + $0xc0] sm:$0xff]
    %v1113 = vld [vmem:[%s1087 + $0xc8] sm:$0xff]
    %v1114 = vld [vmem:[%s1087 + $0xd0] sm:$0xff]
    %v1115 = vld [vmem:[%s1087 + $0xd8] sm:$0xff]
    %v1116 = vld [vmem:[%s1087 + $0xe0] sm:$0xff]
    %v1117 = vld [vmem:[%s1087 + $0xe8] sm:$0xff]
    %v1118 = vld [vmem:[%s1087 + $0xf0] sm:$0xff]
    %v1119 = vld [vmem:[%s1087 + $0xf8] sm:$0xff]
    %v1120 = vld [vmem:[%s1087 + $0x100] sm:$0xff]
    %v1121 = vld [vmem:[%s1087 + $0x108] sm:$0xff]
    %v1122 = vld [vmem:[%s1087 + $0x110] sm:$0xff]
    %v1123 = vld [vmem:[%s1087 + $0x118] sm:$0xff]
    %v1124 = vld [vmem:[%s1087 + $0x120] sm:$0xff]
    %v1125 = vld [vmem:[%s1087 + $0x128] sm:$0xff]
    %v1126 = vld [vmem:[%s1087 + $0x130] sm:$0xff]
    %v1127 = vld [vmem:[%s1087 + $0x138] sm:$0xff]
    %v1128 = vld [vmem:[%s1087 + $0x140] sm:$0xff]
    %v1129 = vld [vmem:[%s1087 + $0x148] sm:$0xff]
    %v1130 = vld [vmem:[%s1087 + $0x150] sm:$0xff]
    %v1131 = vld [vmem:[%s1087 + $0x158] sm:$0xff]
    %v1132 = vld [vmem:[%s1087 + $0x160] sm:$0xff]
    %v1133 = vld [vmem:[%s1087 + $0x168] sm:$0xff]
    %v1134 = vld [vmem:[%s1087 + $0x170] sm:$0xff]
    %v1135 = vld [vmem:[%s1087 + $0x178] sm:$0xff]
    %v1137 = vsel %vm91, %v1088, 0
    %v1140 = vsel %vm91, %v1089, 0
    %v1143 = vsel %vm91, %v1090, 0
    %v1146 = vsel %vm91, %v1091, 0
    %v1149 = vsel %vm91, %v1092, 0
    %v1152 = vsel %vm91, %v1093, 0
    %v1155 = vsel %vm91, %v1094, 0
    %v1158 = vsel %vm91, %v1095, 0
    %v1161 = vsel %vm91, %v1096, 0
    %v1164 = vsel %vm91, %v1097, 0
    %v1167 = vsel %vm91, %v1098, 0
    %v1170 = vsel %vm91, %v1099, 0
    %v1173 = vsel %vm91, %v1100, 0
    %v1176 = vsel %vm91, %v1101, 0
    %v1179 = vsel %vm91, %v1102, 0
    %v1182 = vsel %vm91, %v1103, 0
    %v1185 = vsel %vm91, %v1104, 0
    %v1188 = vsel %vm91, %v1105, 0
    %v1191 = vsel %vm91, %v1106, 0
    %v1194 = vsel %vm91, %v1107, 0
    %v1197 = vsel %vm91, %v1108, 0
    %v1200 = vsel %vm91, %v1109, 0
    %v1203 = vsel %vm91, %v1110, 0
    %v1206 = vsel %vm91, %v1111, 0
    %v1209 = vsel %vm91, %v1112, 0
    %v1212 = vsel %vm91, %v1113, 0
    %v1215 = vsel %vm91, %v1114, 0
    %v1218 = vsel %vm91, %v1115, 0
    %v1221 = vsel %vm91, %v1116, 0
    %v1224 = vsel %vm91, %v1117, 0
    %v1227 = vsel %vm91, %v1118, 0
    %v1230 = vsel %vm91, %v1119, 0
    %v1233 = vsel %vm91, %v1120, 0
    %v1236 = vsel %vm91, %v1121, 0
    %v1239 = vsel %vm91, %v1122, 0
    %v1242 = vsel %vm91, %v1123, 0
    %v1245 = vsel %vm91, %v1124, 0
    %v1248 = vsel %vm91, %v1125, 0
    %v1251 = vsel %vm91, %v1126, 0
    %v1254 = vsel %vm91, %v1127, 0
    %v1257 = vsel %vm91, %v1128, 0
    %v1260 = vsel %vm91, %v1129, 0
    %v1263 = vsel %vm91, %v1130, 0
    %v1266 = vsel %vm91, %v1131, 0
    %v1269 = vsel %vm91, %v1132, 0
    %v1272 = vsel %vm91, %v1133, 0
    %v1275 = vsel %vm91, %v1134, 0
    %v1278 = vsel %vm91, %v1135, 0
    %1280 = vmatprep.subr.mxu0 0.0
    %1281 = vmatpush1.msra.mxu0 0.0
    %1282 = vmatprep.subr.mxu0 0.0
    %1283 = vmatpush1.msra.mxu0 0.0
    %1284 = vmatprep.subr.mxu0 0.0
    %1285 = vmatpush1.msra.mxu0 0.0
    %1286 = vmatprep.subr.mxu0 0.0
    %1287 = vmatpush1.msra.mxu0 0.0
    %1288 = vmatprep.subr.mxu0 0.0
    %1289 = vmatpush1.msra.mxu0 0.0
    %1290 = vmatprep.subr.mxu0 0.0
    %1291 = vmatpush1.msra.mxu0 0.0
    %1292 = vmatprep.subr.mxu0 0.0
    %1293 = vmatpush1.msra.mxu0 0.0
    %1294 = vmatprep.subr.mxu0 0.0
    %1295 = vmatpush1.msra.mxu0 0.0
    %1296 = vmatprep.subr.mxu0 0.0
    %1297 = vmatpush1.msra.mxu0 0.0
    %1298 = vmatprep.subr.mxu0 0.0
    %1299 = vmatpush1.msra.mxu0 0.0
    %1300 = vmatprep.subr.mxu0 0.0
    %1301 = vmatpush1.msra.mxu0 0.0
    %1302 = vmatprep.subr.mxu0 0.0
    %1303 = vmatpush1.msra.mxu0 0.0
    %1304 = vmatprep.subr.mxu0 0.0
    %1305 = vmatpush1.msra.mxu0 %v90
    %1306 = vmatprep.subr.mxu0 0.0
    %1307 = vmatpush1.msra.mxu0 %v89
    %1308 = vmatprep.subr.mxu0 0.0
    %1309 = vmatpush1.msra.mxu0 %v88
    %1310 = vmatprep.subr.mxu0 0.0
    %1311 = vmatpush1.msra.mxu0 %v87
    %1312 = vmatprep.subr.mxu0 0.0
    %1313 = vmatpush2.msra.mxu0 0.0
    %1314 = vmatprep.subr.mxu0 0.0
    %1315 = vmatpush2.msra.mxu0 0.0
    %1316 = vmatprep.subr.mxu0 0.0
    %1317 = vmatpush2.msra.mxu0 0.0
    %1318 = vmatprep.subr.mxu0 0.0
    %1319 = vmatpush2.msra.mxu0 0.0
    %1320 = vmatprep.subr.mxu0 0.0
    %1321 = vmatpush2.msra.mxu0 0.0
    %1322 = vmatprep.subr.mxu0 0.0
    %1323 = vmatpush2.msra.mxu0 0.0
    %1324 = vmatprep.subr.mxu0 0.0
    %1325 = vmatpush2.msra.mxu0 0.0
    %1326 = vmatprep.subr.mxu0 0.0
    %1327 = vmatpush2.msra.mxu0 0.0
    %1328 = vmatprep.subr.mxu0 0.0
    %1329 = vmatpush2.msra.mxu0 0.0
    %1330 = vmatprep.subr.mxu0 0.0
    %1331 = vmatpush2.msra.mxu0 0.0
    %1332 = vmatprep.subr.mxu0 0.0
    %1333 = vmatpush2.msra.mxu0 0.0
    %1334 = vmatprep.subr.mxu0 0.0
    %1335 = vmatpush2.msra.mxu0 0.0
    %1336 = vmatprep.subr.mxu0 0.0
    %1337 = vmatpush2.msra.mxu0 0.0
    %1338 = vmatprep.subr.mxu0 0.0
    %1339 = vmatpush2.msra.mxu0 0.0
    %1340 = vmatprep.subr.mxu0 0.0
    %1341 = vmatpush2.msra.mxu0 0.0
    %1342 = vmatprep.subr.mxu0 0.0
    %1343 = vmatpush2.msra.mxu0 0.0
    %1344 = vmatprep.mubr.f32.mxu0 0.0
    %1345 = vmatmul.mubr.f32.gmra.mxu0 %v1137
    %v1346 = vpop.f32.mrf.mxu0
    %v1347 = vadd.f32 0.0, %v1346
    %v1348 = vpop.f32.mrf.mxu0
    %1349 = vmatprep.mubr.f32.mxu0 0.0
    %1350 = vmatmul.mubr.f32.gmra.mxu0 %v1140
    %v1351 = vpop.f32.mrf.mxu0
    %v1352 = vadd.f32 0.0, %v1351
    %v1353 = vpop.f32.mrf.mxu0
    %1354 = vmatprep.mubr.f32.mxu0 0.0
    %1355 = vmatmul.mubr.f32.gmra.mxu0 %v1143
    %v1356 = vpop.f32.mrf.mxu0
    %v1357 = vadd.f32 0.0, %v1356
    %v1358 = vpop.f32.mrf.mxu0
    %1359 = vmatprep.mubr.f32.mxu0 0.0
    %1360 = vmatmul.mubr.f32.gmra.mxu0 %v1146
    %v1361 = vpop.f32.mrf.mxu0
    %v1362 = vadd.f32 0.0, %v1361
    %v1363 = vpop.f32.mrf.mxu0
    %1364 = vmatprep.mubr.f32.mxu0 0.0
    %1365 = vmatmul.mubr.f32.gmra.mxu0 %v1149
    %v1366 = vpop.f32.mrf.mxu0
    %v1367 = vadd.f32 0.0, %v1366
    %v1368 = vpop.f32.mrf.mxu0
    %1369 = vmatprep.mubr.f32.mxu0 0.0
    %1370 = vmatmul.mubr.f32.gmra.mxu0 %v1152
    %v1371 = vpop.f32.mrf.mxu0
    %v1372 = vadd.f32 0.0, %v1371
    %v1373 = vpop.f32.mrf.mxu0
    %1374 = vmatprep.mubr.f32.mxu0 0.0
    %1375 = vmatmul.mubr.f32.gmra.mxu0 %v1155
    %v1376 = vpop.f32.mrf.mxu0
    %v1377 = vadd.f32 0.0, %v1376
    %v1378 = vpop.f32.mrf.mxu0
    %1379 = vmatprep.mubr.f32.mxu0 0.0
    %1380 = vmatmul.mubr.f32.gmra.mxu0 %v1158
    %v1381 = vpop.f32.mrf.mxu0
    %v1382 = vadd.f32 0.0, %v1381
    %v1383 = vpop.f32.mrf.mxu0
    %1384 = vmatprep.mubr.f32.mxu0 0.0
    %1385 = vmatmul.mubr.f32.gmra.mxu0 %v1161
    %v1386 = vpop.f32.mrf.mxu0
    %v1387 = vadd.f32 0.0, %v1386
    %v1388 = vpop.f32.mrf.mxu0
    %1389 = vmatprep.mubr.f32.mxu0 0.0
    %1390 = vmatmul.mubr.f32.gmra.mxu0 %v1164
    %v1391 = vpop.f32.mrf.mxu0
    %v1392 = vadd.f32 0.0, %v1391
    %v1393 = vpop.f32.mrf.mxu0
    %1394 = vmatprep.mubr.f32.mxu0 0.0
    %1395 = vmatmul.mubr.f32.gmra.mxu0 %v1167
    %v1396 = vpop.f32.mrf.mxu0
    %v1397 = vadd.f32 0.0, %v1396
    %v1398 = vpop.f32.mrf.mxu0
    %1399 = vmatprep.mubr.f32.mxu0 0.0
    %1400 = vmatmul.mubr.f32.gmra.mxu0 %v1170
    %v1401 = vpop.f32.mrf.mxu0
    %v1402 = vadd.f32 0.0, %v1401
    %v1403 = vpop.f32.mrf.mxu0
    %1404 = vmatprep.mubr.f32.mxu0 0.0
    %1405 = vmatmul.mubr.f32.gmra.mxu0 %v1173
    %v1406 = vpop.f32.mrf.mxu0
    %v1407 = vadd.f32 0.0, %v1406
    %v1408 = vpop.f32.mrf.mxu0
    %1409 = vmatprep.mubr.f32.mxu0 0.0
    %1410 = vmatmul.mubr.f32.gmra.mxu0 %v1176
    %v1411 = vpop.f32.mrf.mxu0
    %v1412 = vadd.f32 0.0, %v1411
    %v1413 = vpop.f32.mrf.mxu0
    %1414 = vmatprep.mubr.f32.mxu0 0.0
    %1415 = vmatmul.mubr.f32.gmra.mxu0 %v1179
    %v1416 = vpop.f32.mrf.mxu0
    %v1417 = vadd.f32 0.0, %v1416
    %v1418 = vpop.f32.mrf.mxu0
    %1419 = vmatprep.mubr.f32.mxu0 0.0
    %1420 = vmatmul.mubr.f32.gmra.mxu0 %v1182
    %v1421 = vpop.f32.mrf.mxu0
    %v1422 = vadd.f32 0.0, %v1421
    %v1423 = vpop.f32.mrf.mxu0
    %1424 = vmatprep.mubr.f32.mxu0 0.0
    %1425 = vmatmul.mubr.f32.gmra.mxu0 %v1185
    %v1426 = vpop.f32.mrf.mxu0
    %v1427 = vadd.f32 0.0, %v1426
    %v1428 = vpop.f32.mrf.mxu0
    %1429 = vmatprep.mubr.f32.mxu0 0.0
    %1430 = vmatmul.mubr.f32.gmra.mxu0 %v1188
    %v1431 = vpop.f32.mrf.mxu0
    %v1432 = vadd.f32 0.0, %v1431
    %v1433 = vpop.f32.mrf.mxu0
    %1434 = vmatprep.mubr.f32.mxu0 0.0
    %1435 = vmatmul.mubr.f32.gmra.mxu0 %v1191
    %v1436 = vpop.f32.mrf.mxu0
    %v1437 = vadd.f32 0.0, %v1436
    %v1438 = vpop.f32.mrf.mxu0
    %1439 = vmatprep.mubr.f32.mxu0 0.0
    %1440 = vmatmul.mubr.f32.gmra.mxu0 %v1194
    %v1441 = vpop.f32.mrf.mxu0
    %v1442 = vadd.f32 0.0, %v1441
    %v1443 = vpop.f32.mrf.mxu0
    %1444 = vmatprep.mubr.f32.mxu0 0.0
    %1445 = vmatmul.mubr.f32.gmra.mxu0 %v1197
    %v1446 = vpop.f32.mrf.mxu0
    %v1447 = vadd.f32 0.0, %v1446
    %v1448 = vpop.f32.mrf.mxu0
    %1449 = vmatprep.mubr.f32.mxu0 0.0
    %1450 = vmatmul.mubr.f32.gmra.mxu0 %v1200
    %v1451 = vpop.f32.mrf.mxu0
    %v1452 = vadd.f32 0.0, %v1451
    %v1453 = vpop.f32.mrf.mxu0
    %1454 = vmatprep.mubr.f32.mxu0 0.0
    %1455 = vmatmul.mubr.f32.gmra.mxu0 %v1203
    %v1456 = vpop.f32.mrf.mxu0
    %v1457 = vadd.f32 0.0, %v1456
    %v1458 = vpop.f32.mrf.mxu0
    %1459 = vmatprep.mubr.f32.mxu0 0.0
    %1460 = vmatmul.mubr.f32.gmra.mxu0 %v1206
    %v1461 = vpop.f32.mrf.mxu0
    %v1462 = vadd.f32 0.0, %v1461
    %v1463 = vpop.f32.mrf.mxu0
    %1464 = vmatprep.mubr.f32.mxu0 0.0
    %1465 = vmatmul.mubr.f32.gmra.mxu0 %v1209
    %v1466 = vpop.f32.mrf.mxu0
    %v1467 = vadd.f32 0.0, %v1466
    %v1468 = vpop.f32.mrf.mxu0
    %1469 = vmatprep.mubr.f32.mxu0 0.0
    %1470 = vmatmul.mubr.f32.gmra.mxu0 %v1212
    %v1471 = vpop.f32.mrf.mxu0
    %v1472 = vadd.f32 0.0, %v1471
    %v1473 = vpop.f32.mrf.mxu0
    %1474 = vmatprep.mubr.f32.mxu0 0.0
    %1475 = vmatmul.mubr.f32.gmra.mxu0 %v1215
    %v1476 = vpop.f32.mrf.mxu0
    %v1477 = vadd.f32 0.0, %v1476
    %v1478 = vpop.f32.mrf.mxu0
    %1479 = vmatprep.mubr.f32.mxu0 0.0
    %1480 = vmatmul.mubr.f32.gmra.mxu0 %v1218
    %v1481 = vpop.f32.mrf.mxu0
    %v1482 = vadd.f32 0.0, %v1481
    %v1483 = vpop.f32.mrf.mxu0
    %1484 = vmatprep.mubr.f32.mxu0 0.0
    %1485 = vmatmul.mubr.f32.gmra.mxu0 %v1221
    %v1486 = vpop.f32.mrf.mxu0
    %v1487 = vadd.f32 0.0, %v1486
    %v1488 = vpop.f32.mrf.mxu0
    %1489 = vmatprep.mubr.f32.mxu0 0.0
    %1490 = vmatmul.mubr.f32.gmra.mxu0 %v1224
    %v1491 = vpop.f32.mrf.mxu0
    %v1492 = vadd.f32 0.0, %v1491
    %v1493 = vpop.f32.mrf.mxu0
    %1494 = vmatprep.mubr.f32.mxu0 0.0
    %1495 = vmatmul.mubr.f32.gmra.mxu0 %v1227
    %v1496 = vpop.f32.mrf.mxu0
    %v1497 = vadd.f32 0.0, %v1496
    %v1498 = vpop.f32.mrf.mxu0
    %1499 = vmatprep.mubr.f32.mxu0 0.0
    %1500 = vmatmul.mubr.f32.gmra.mxu0 %v1230
    %v1501 = vpop.f32.mrf.mxu0
    %v1502 = vadd.f32 0.0, %v1501
    %v1503 = vpop.f32.mrf.mxu0
    %1504 = vmatprep.mubr.f32.mxu0 0.0
    %1505 = vmatmul.mubr.f32.gmra.mxu0 %v1233
    %v1506 = vpop.f32.mrf.mxu0
    %v1507 = vadd.f32 0.0, %v1506
    %v1508 = vpop.f32.mrf.mxu0
    %1509 = vmatprep.mubr.f32.mxu0 0.0
    %1510 = vmatmul.mubr.f32.gmra.mxu0 %v1236
    %v1511 = vpop.f32.mrf.mxu0
    %v1512 = vadd.f32 0.0, %v1511
    %v1513 = vpop.f32.mrf.mxu0
    %1514 = vmatprep.mubr.f32.mxu0 0.0
    %1515 = vmatmul.mubr.f32.gmra.mxu0 %v1239
    %v1516 = vpop.f32.mrf.mxu0
    %v1517 = vadd.f32 0.0, %v1516
    %v1518 = vpop.f32.mrf.mxu0
    %1519 = vmatprep.mubr.f32.mxu0 0.0
    %1520 = vmatmul.mubr.f32.gmra.mxu0 %v1242
    %v1521 = vpop.f32.mrf.mxu0
    %v1522 = vadd.f32 0.0, %v1521
    %v1523 = vpop.f32.mrf.mxu0
    %1524 = vmatprep.mubr.f32.mxu0 0.0
    %1525 = vmatmul.mubr.f32.gmra.mxu0 %v1245
    %v1526 = vpop.f32.mrf.mxu0
    %v1527 = vadd.f32 0.0, %v1526
    %v1528 = vpop.f32.mrf.mxu0
    %1529 = vmatprep.mubr.f32.mxu0 0.0
    %1530 = vmatmul.mubr.f32.gmra.mxu0 %v1248
    %v1531 = vpop.f32.mrf.mxu0
    %v1532 = vadd.f32 0.0, %v1531
    %v1533 = vpop.f32.mrf.mxu0
    %1534 = vmatprep.mubr.f32.mxu0 0.0
    %1535 = vmatmul.mubr.f32.gmra.mxu0 %v1251
    %v1536 = vpop.f32.mrf.mxu0
    %v1537 = vadd.f32 0.0, %v1536
    %v1538 = vpop.f32.mrf.mxu0
    %1539 = vmatprep.mubr.f32.mxu0 0.0
    %1540 = vmatmul.mubr.f32.gmra.mxu0 %v1254
    %v1541 = vpop.f32.mrf.mxu0
    %v1542 = vadd.f32 0.0, %v1541
    %v1543 = vpop.f32.mrf.mxu0
    %1544 = vmatprep.mubr.f32.mxu0 0.0
    %1545 = vmatmul.mubr.f32.gmra.mxu0 %v1257
    %v1546 = vpop.f32.mrf.mxu0
    %v1547 = vadd.f32 0.0, %v1546
    %v1548 = vpop.f32.mrf.mxu0
    %1549 = vmatprep.mubr.f32.mxu0 0.0
    %1550 = vmatmul.mubr.f32.gmra.mxu0 %v1260
    %v1551 = vpop.f32.mrf.mxu0
    %v1552 = vadd.f32 0.0, %v1551
    %v1553 = vpop.f32.mrf.mxu0
    %1554 = vmatprep.mubr.f32.mxu0 0.0
    %1555 = vmatmul.mubr.f32.gmra.mxu0 %v1263
    %v1556 = vpop.f32.mrf.mxu0
    %v1557 = vadd.f32 0.0, %v1556
    %v1558 = vpop.f32.mrf.mxu0
    %1559 = vmatprep.mubr.f32.mxu0 0.0
    %1560 = vmatmul.mubr.f32.gmra.mxu0 %v1266
    %v1561 = vpop.f32.mrf.mxu0
    %v1562 = vadd.f32 0.0, %v1561
    %v1563 = vpop.f32.mrf.mxu0
    %1564 = vmatprep.mubr.f32.mxu0 0.0
    %1565 = vmatmul.mubr.f32.gmra.mxu0 %v1269
    %v1566 = vpop.f32.mrf.mxu0
    %v1567 = vadd.f32 0.0, %v1566
    %v1568 = vpop.f32.mrf.mxu0
    %1569 = vmatprep.mubr.f32.mxu0 0.0
    %1570 = vmatmul.mubr.f32.gmra.mxu0 %v1272
    %v1571 = vpop.f32.mrf.mxu0
    %v1572 = vadd.f32 0.0, %v1571
    %v1573 = vpop.f32.mrf.mxu0
    %1574 = vmatprep.mubr.f32.mxu0 0.0
    %1575 = vmatmul.mubr.f32.gmra.mxu0 %v1275
    %v1576 = vpop.f32.mrf.mxu0
    %v1577 = vadd.f32 0.0, %v1576
    %v1578 = vpop.f32.mrf.mxu0
    %1579 = vmatprep.mubr.f32.mxu0 0.0
    %1580 = vmatmul.mubr.f32.gmra.mxu0 %v1278
    %v1581 = vpop.f32.mrf.mxu0
    %v1582 = vadd.f32 0.0, %v1581
    %v1583 = vpop.f32.mrf.mxu0
    %1584 = vdwg.mxu0
    %v1585 = vmax.f32 %v1039, %v1347
    %v1586 = vmax.f32 %v1040, %v1352
    %v1587 = vmax.f32 %v1041, %v1357
    %v1588 = vmax.f32 %v1042, %v1362
    %v1589 = vmax.f32 %v1043, %v1367
    %v1590 = vmax.f32 %v1044, %v1372
    %v1591 = vmax.f32 %v1045, %v1377
    %v1592 = vmax.f32 %v1046, %v1382
    %v1593 = vmax.f32 %v1047, %v1387
    %v1594 = vmax.f32 %v1048, %v1392
    %v1595 = vmax.f32 %v1049, %v1397
    %v1596 = vmax.f32 %v1050, %v1402
    %v1597 = vmax.f32 %v1051, %v1407
    %v1598 = vmax.f32 %v1052, %v1412
    %v1599 = vmax.f32 %v1053, %v1417
    %v1600 = vmax.f32 %v1054, %v1422
    %v1601 = vmax.f32 %v1055, %v1427
    %v1602 = vmax.f32 %v1056, %v1432
    %v1603 = vmax.f32 %v1057, %v1437
    %v1604 = vmax.f32 %v1058, %v1442
    %v1605 = vmax.f32 %v1059, %v1447
    %v1606 = vmax.f32 %v1060, %v1452
    %v1607 = vmax.f32 %v1061, %v1457
    %v1608 = vmax.f32 %v1062, %v1462
    %v1609 = vmax.f32 %v1063, %v1467
    %v1610 = vmax.f32 %v1064, %v1472
    %v1611 = vmax.f32 %v1065, %v1477
    %v1612 = vmax.f32 %v1066, %v1482
    %v1613 = vmax.f32 %v1067, %v1487
    %v1614 = vmax.f32 %v1068, %v1492
    %v1615 = vmax.f32 %v1069, %v1497
    %v1616 = vmax.f32 %v1070, %v1502
    %v1617 = vmax.f32 %v1071, %v1507
    %v1618 = vmax.f32 %v1072, %v1512
    %v1619 = vmax.f32 %v1073, %v1517
    %v1620 = vmax.f32 %v1074, %v1522
    %v1621 = vmax.f32 %v1075, %v1527
    %v1622 = vmax.f32 %v1076, %v1532
    %v1623 = vmax.f32 %v1077, %v1537
    %v1624 = vmax.f32 %v1078, %v1542
    %v1625 = vmax.f32 %v1079, %v1547
    %v1626 = vmax.f32 %v1080, %v1552
    %v1627 = vmax.f32 %v1081, %v1557
    %v1628 = vmax.f32 %v1082, %v1562
    %v1629 = vmax.f32 %v1083, %v1567
    %v1630 = vmax.f32 %v1084, %v1572
    %v1631 = vmax.f32 %v1085, %v1577
    %v1632 = vmax.f32 %v1086, %v1582
    %s1633 = scalar_lea.vmem %s0, 1152
    %v1634 = vld [vmem:[%s1633] sm:$0xff]
    %v1635 = vld [vmem:[%s1633 + $0x8] sm:$0xff]
    %v1636 = vld [vmem:[%s1633 + $0x10] sm:$0xff]
    %v1637 = vld [vmem:[%s1633 + $0x18] sm:$0xff]
    %v1638 = vld [vmem:[%s1633 + $0x20] sm:$0xff]
    %v1639 = vld [vmem:[%s1633 + $0x28] sm:$0xff]
    %v1640 = vld [vmem:[%s1633 + $0x30] sm:$0xff]
    %v1641 = vld [vmem:[%s1633 + $0x38] sm:$0xff]
    %v1642 = vld [vmem:[%s1633 + $0x40] sm:$0xff]
    %v1643 = vld [vmem:[%s1633 + $0x48] sm:$0xff]
    %v1644 = vld [vmem:[%s1633 + $0x50] sm:$0xff]
    %v1645 = vld [vmem:[%s1633 + $0x58] sm:$0xff]
    %v1646 = vld [vmem:[%s1633 + $0x60] sm:$0xff]
    %v1647 = vld [vmem:[%s1633 + $0x68] sm:$0xff]
    %v1648 = vld [vmem:[%s1633 + $0x70] sm:$0xff]
    %v1649 = vld [vmem:[%s1633 + $0x78] sm:$0xff]
    %v1650 = vld [vmem:[%s1633 + $0x80] sm:$0xff]
    %v1651 = vld [vmem:[%s1633 + $0x88] sm:$0xff]
    %v1652 = vld [vmem:[%s1633 + $0x90] sm:$0xff]
    %v1653 = vld [vmem:[%s1633 + $0x98] sm:$0xff]
    %v1654 = vld [vmem:[%s1633 + $0xa0] sm:$0xff]
    %v1655 = vld [vmem:[%s1633 + $0xa8] sm:$0xff]
    %v1656 = vld [vmem:[%s1633 + $0xb0] sm:$0xff]
    %v1657 = vld [vmem:[%s1633 + $0xb8] sm:$0xff]
    %v1658 = vld [vmem:[%s1633 + $0xc0] sm:$0xff]
    %v1659 = vld [vmem:[%s1633 + $0xc8] sm:$0xff]
    %v1660 = vld [vmem:[%s1633 + $0xd0] sm:$0xff]
    %v1661 = vld [vmem:[%s1633 + $0xd8] sm:$0xff]
    %v1662 = vld [vmem:[%s1633 + $0xe0] sm:$0xff]
    %v1663 = vld [vmem:[%s1633 + $0xe8] sm:$0xff]
    %v1664 = vld [vmem:[%s1633 + $0xf0] sm:$0xff]
    %v1665 = vld [vmem:[%s1633 + $0xf8] sm:$0xff]
    %v1666 = vld [vmem:[%s1633 + $0x100] sm:$0xff]
    %v1667 = vld [vmem:[%s1633 + $0x108] sm:$0xff]
    %v1668 = vld [vmem:[%s1633 + $0x110] sm:$0xff]
    %v1669 = vld [vmem:[%s1633 + $0x118] sm:$0xff]
    %v1670 = vld [vmem:[%s1633 + $0x120] sm:$0xff]
    %v1671 = vld [vmem:[%s1633 + $0x128] sm:$0xff]
    %v1672 = vld [vmem:[%s1633 + $0x130] sm:$0xff]
    %v1673 = vld [vmem:[%s1633 + $0x138] sm:$0xff]
    %v1674 = vld [vmem:[%s1633 + $0x140] sm:$0xff]
    %v1675 = vld [vmem:[%s1633 + $0x148] sm:$0xff]
    %v1676 = vld [vmem:[%s1633 + $0x150] sm:$0xff]
    %v1677 = vld [vmem:[%s1633 + $0x158] sm:$0xff]
    %v1678 = vld [vmem:[%s1633 + $0x160] sm:$0xff]
    %v1679 = vld [vmem:[%s1633 + $0x168] sm:$0xff]
    %v1680 = vld [vmem:[%s1633 + $0x170] sm:$0xff]
    %v1681 = vld [vmem:[%s1633 + $0x178] sm:$0xff]
    %v1683 = vsel %vm91, %v1634, 0
    %v1686 = vsel %vm91, %v1635, 0
    %v1689 = vsel %vm91, %v1636, 0
    %v1692 = vsel %vm91, %v1637, 0
    %v1695 = vsel %vm91, %v1638, 0
    %v1698 = vsel %vm91, %v1639, 0
    %v1701 = vsel %vm91, %v1640, 0
    %v1704 = vsel %vm91, %v1641, 0
    %v1707 = vsel %vm91, %v1642, 0
    %v1710 = vsel %vm91, %v1643, 0
    %v1713 = vsel %vm91, %v1644, 0
    %v1716 = vsel %vm91, %v1645, 0
    %v1719 = vsel %vm91, %v1646, 0
    %v1722 = vsel %vm91, %v1647, 0
    %v1725 = vsel %vm91, %v1648, 0
    %v1728 = vsel %vm91, %v1649, 0
    %v1731 = vsel %vm91, %v1650, 0
    %v1734 = vsel %vm91, %v1651, 0
    %v1737 = vsel %vm91, %v1652, 0
    %v1740 = vsel %vm91, %v1653, 0
    %v1743 = vsel %vm91, %v1654, 0
    %v1746 = vsel %vm91, %v1655, 0
    %v1749 = vsel %vm91, %v1656, 0
    %v1752 = vsel %vm91, %v1657, 0
    %v1755 = vsel %vm91, %v1658, 0
    %v1758 = vsel %vm91, %v1659, 0
    %v1761 = vsel %vm91, %v1660, 0
    %v1764 = vsel %vm91, %v1661, 0
    %v1767 = vsel %vm91, %v1662, 0
    %v1770 = vsel %vm91, %v1663, 0
    %v1773 = vsel %vm91, %v1664, 0
    %v1776 = vsel %vm91, %v1665, 0
    %v1779 = vsel %vm91, %v1666, 0
    %v1782 = vsel %vm91, %v1667, 0
    %v1785 = vsel %vm91, %v1668, 0
    %v1788 = vsel %vm91, %v1669, 0
    %v1791 = vsel %vm91, %v1670, 0
    %v1794 = vsel %vm91, %v1671, 0
    %v1797 = vsel %vm91, %v1672, 0
    %v1800 = vsel %vm91, %v1673, 0
    %v1803 = vsel %vm91, %v1674, 0
    %v1806 = vsel %vm91, %v1675, 0
    %v1809 = vsel %vm91, %v1676, 0
    %v1812 = vsel %vm91, %v1677, 0
    %v1815 = vsel %vm91, %v1678, 0
    %v1818 = vsel %vm91, %v1679, 0
    %v1821 = vsel %vm91, %v1680, 0
    %v1824 = vsel %vm91, %v1681, 0
    %1826 = vmatprep.subr.mxu0 0.0
    %1827 = vmatpush1.msra.mxu0 0.0
    %1828 = vmatprep.subr.mxu0 0.0
    %1829 = vmatpush1.msra.mxu0 0.0
    %1830 = vmatprep.subr.mxu0 0.0
    %1831 = vmatpush1.msra.mxu0 0.0
    %1832 = vmatprep.subr.mxu0 0.0
    %1833 = vmatpush1.msra.mxu0 0.0
    %1834 = vmatprep.subr.mxu0 0.0
    %1835 = vmatpush1.msra.mxu0 0.0
    %1836 = vmatprep.subr.mxu0 0.0
    %1837 = vmatpush1.msra.mxu0 0.0
    %1838 = vmatprep.subr.mxu0 0.0
    %1839 = vmatpush1.msra.mxu0 0.0
    %1840 = vmatprep.subr.mxu0 0.0
    %1841 = vmatpush1.msra.mxu0 0.0
    %1842 = vmatprep.subr.mxu0 0.0
    %1843 = vmatpush1.msra.mxu0 0.0
    %1844 = vmatprep.subr.mxu0 0.0
    %1845 = vmatpush1.msra.mxu0 0.0
    %1846 = vmatprep.subr.mxu0 0.0
    %1847 = vmatpush1.msra.mxu0 0.0
    %1848 = vmatprep.subr.mxu0 0.0
    %1849 = vmatpush1.msra.mxu0 0.0
    %1850 = vmatprep.subr.mxu0 0.0
    %1851 = vmatpush1.msra.mxu0 %v90
    %1852 = vmatprep.subr.mxu0 0.0
    %1853 = vmatpush1.msra.mxu0 %v89
    %1854 = vmatprep.subr.mxu0 0.0
    %1855 = vmatpush1.msra.mxu0 %v88
    %1856 = vmatprep.subr.mxu0 0.0
    %1857 = vmatpush1.msra.mxu0 %v87
    %1858 = vmatprep.subr.mxu0 0.0
    %1859 = vmatpush2.msra.mxu0 0.0
    %1860 = vmatprep.subr.mxu0 0.0
    %1861 = vmatpush2.msra.mxu0 0.0
    %1862 = vmatprep.subr.mxu0 0.0
    %1863 = vmatpush2.msra.mxu0 0.0
    %1864 = vmatprep.subr.mxu0 0.0
    %1865 = vmatpush2.msra.mxu0 0.0
    %1866 = vmatprep.subr.mxu0 0.0
    %1867 = vmatpush2.msra.mxu0 0.0
    %1868 = vmatprep.subr.mxu0 0.0
    %1869 = vmatpush2.msra.mxu0 0.0
    %1870 = vmatprep.subr.mxu0 0.0
    %1871 = vmatpush2.msra.mxu0 0.0
    %1872 = vmatprep.subr.mxu0 0.0
    %1873 = vmatpush2.msra.mxu0 0.0
    %1874 = vmatprep.subr.mxu0 0.0
    %1875 = vmatpush2.msra.mxu0 0.0
    %1876 = vmatprep.subr.mxu0 0.0
    %1877 = vmatpush2.msra.mxu0 0.0
    %1878 = vmatprep.subr.mxu0 0.0
    %1879 = vmatpush2.msra.mxu0 0.0
    %1880 = vmatprep.subr.mxu0 0.0
    %1881 = vmatpush2.msra.mxu0 0.0
    %1882 = vmatprep.subr.mxu0 0.0
    %1883 = vmatpush2.msra.mxu0 0.0
    %1884 = vmatprep.subr.mxu0 0.0
    %1885 = vmatpush2.msra.mxu0 0.0
    %1886 = vmatprep.subr.mxu0 0.0
    %1887 = vmatpush2.msra.mxu0 0.0
    %1888 = vmatprep.subr.mxu0 0.0
    %1889 = vmatpush2.msra.mxu0 0.0
    %1890 = vmatprep.mubr.f32.mxu0 0.0
    %1891 = vmatmul.mubr.f32.gmra.mxu0 %v1683
    %v1892 = vpop.f32.mrf.mxu0
    %v1893 = vadd.f32 0.0, %v1892
    %v1894 = vpop.f32.mrf.mxu0
    %1895 = vmatprep.mubr.f32.mxu0 0.0
    %1896 = vmatmul.mubr.f32.gmra.mxu0 %v1686
    %v1897 = vpop.f32.mrf.mxu0
    %v1898 = vadd.f32 0.0, %v1897
    %v1899 = vpop.f32.mrf.mxu0
    %1900 = vmatprep.mubr.f32.mxu0 0.0
    %1901 = vmatmul.mubr.f32.gmra.mxu0 %v1689
    %v1902 = vpop.f32.mrf.mxu0
    %v1903 = vadd.f32 0.0, %v1902
    %v1904 = vpop.f32.mrf.mxu0
    %1905 = vmatprep.mubr.f32.mxu0 0.0
    %1906 = vmatmul.mubr.f32.gmra.mxu0 %v1692
    %v1907 = vpop.f32.mrf.mxu0
    %v1908 = vadd.f32 0.0, %v1907
    %v1909 = vpop.f32.mrf.mxu0
    %1910 = vmatprep.mubr.f32.mxu0 0.0
    %1911 = vmatmul.mubr.f32.gmra.mxu0 %v1695
    %v1912 = vpop.f32.mrf.mxu0
    %v1913 = vadd.f32 0.0, %v1912
    %v1914 = vpop.f32.mrf.mxu0
    %1915 = vmatprep.mubr.f32.mxu0 0.0
    %1916 = vmatmul.mubr.f32.gmra.mxu0 %v1698
    %v1917 = vpop.f32.mrf.mxu0
    %v1918 = vadd.f32 0.0, %v1917
    %v1919 = vpop.f32.mrf.mxu0
    %1920 = vmatprep.mubr.f32.mxu0 0.0
    %1921 = vmatmul.mubr.f32.gmra.mxu0 %v1701
    %v1922 = vpop.f32.mrf.mxu0
    %v1923 = vadd.f32 0.0, %v1922
    %v1924 = vpop.f32.mrf.mxu0
    %1925 = vmatprep.mubr.f32.mxu0 0.0
    %1926 = vmatmul.mubr.f32.gmra.mxu0 %v1704
    %v1927 = vpop.f32.mrf.mxu0
    %v1928 = vadd.f32 0.0, %v1927
    %v1929 = vpop.f32.mrf.mxu0
    %1930 = vmatprep.mubr.f32.mxu0 0.0
    %1931 = vmatmul.mubr.f32.gmra.mxu0 %v1707
    %v1932 = vpop.f32.mrf.mxu0
    %v1933 = vadd.f32 0.0, %v1932
    %v1934 = vpop.f32.mrf.mxu0
    %1935 = vmatprep.mubr.f32.mxu0 0.0
    %1936 = vmatmul.mubr.f32.gmra.mxu0 %v1710
    %v1937 = vpop.f32.mrf.mxu0
    %v1938 = vadd.f32 0.0, %v1937
    %v1939 = vpop.f32.mrf.mxu0
    %1940 = vmatprep.mubr.f32.mxu0 0.0
    %1941 = vmatmul.mubr.f32.gmra.mxu0 %v1713
    %v1942 = vpop.f32.mrf.mxu0
    %v1943 = vadd.f32 0.0, %v1942
    %v1944 = vpop.f32.mrf.mxu0
    %1945 = vmatprep.mubr.f32.mxu0 0.0
    %1946 = vmatmul.mubr.f32.gmra.mxu0 %v1716
    %v1947 = vpop.f32.mrf.mxu0
    %v1948 = vadd.f32 0.0, %v1947
    %v1949 = vpop.f32.mrf.mxu0
    %1950 = vmatprep.mubr.f32.mxu0 0.0
    %1951 = vmatmul.mubr.f32.gmra.mxu0 %v1719
    %v1952 = vpop.f32.mrf.mxu0
    %v1953 = vadd.f32 0.0, %v1952
    %v1954 = vpop.f32.mrf.mxu0
    %1955 = vmatprep.mubr.f32.mxu0 0.0
    %1956 = vmatmul.mubr.f32.gmra.mxu0 %v1722
    %v1957 = vpop.f32.mrf.mxu0
    %v1958 = vadd.f32 0.0, %v1957
    %v1959 = vpop.f32.mrf.mxu0
    %1960 = vmatprep.mubr.f32.mxu0 0.0
    %1961 = vmatmul.mubr.f32.gmra.mxu0 %v1725
    %v1962 = vpop.f32.mrf.mxu0
    %v1963 = vadd.f32 0.0, %v1962
    %v1964 = vpop.f32.mrf.mxu0
    %1965 = vmatprep.mubr.f32.mxu0 0.0
    %1966 = vmatmul.mubr.f32.gmra.mxu0 %v1728
    %v1967 = vpop.f32.mrf.mxu0
    %v1968 = vadd.f32 0.0, %v1967
    %v1969 = vpop.f32.mrf.mxu0
    %1970 = vmatprep.mubr.f32.mxu0 0.0
    %1971 = vmatmul.mubr.f32.gmra.mxu0 %v1731
    %v1972 = vpop.f32.mrf.mxu0
    %v1973 = vadd.f32 0.0, %v1972
    %v1974 = vpop.f32.mrf.mxu0
    %1975 = vmatprep.mubr.f32.mxu0 0.0
    %1976 = vmatmul.mubr.f32.gmra.mxu0 %v1734
    %v1977 = vpop.f32.mrf.mxu0
    %v1978 = vadd.f32 0.0, %v1977
    %v1979 = vpop.f32.mrf.mxu0
    %1980 = vmatprep.mubr.f32.mxu0 0.0
    %1981 = vmatmul.mubr.f32.gmra.mxu0 %v1737
    %v1982 = vpop.f32.mrf.mxu0
    %v1983 = vadd.f32 0.0, %v1982
    %v1984 = vpop.f32.mrf.mxu0
    %1985 = vmatprep.mubr.f32.mxu0 0.0
    %1986 = vmatmul.mubr.f32.gmra.mxu0 %v1740
    %v1987 = vpop.f32.mrf.mxu0
    %v1988 = vadd.f32 0.0, %v1987
    %v1989 = vpop.f32.mrf.mxu0
    %1990 = vmatprep.mubr.f32.mxu0 0.0
    %1991 = vmatmul.mubr.f32.gmra.mxu0 %v1743
    %v1992 = vpop.f32.mrf.mxu0
    %v1993 = vadd.f32 0.0, %v1992
    %v1994 = vpop.f32.mrf.mxu0
    %1995 = vmatprep.mubr.f32.mxu0 0.0
    %1996 = vmatmul.mubr.f32.gmra.mxu0 %v1746
    %v1997 = vpop.f32.mrf.mxu0
    %v1998 = vadd.f32 0.0, %v1997
    %v1999 = vpop.f32.mrf.mxu0
    %2000 = vmatprep.mubr.f32.mxu0 0.0
    %2001 = vmatmul.mubr.f32.gmra.mxu0 %v1749
    %v2002 = vpop.f32.mrf.mxu0
    %v2003 = vadd.f32 0.0, %v2002
    %v2004 = vpop.f32.mrf.mxu0
    %2005 = vmatprep.mubr.f32.mxu0 0.0
    %2006 = vmatmul.mubr.f32.gmra.mxu0 %v1752
    %v2007 = vpop.f32.mrf.mxu0
    %v2008 = vadd.f32 0.0, %v2007
    %v2009 = vpop.f32.mrf.mxu0
    %2010 = vmatprep.mubr.f32.mxu0 0.0
    %2011 = vmatmul.mubr.f32.gmra.mxu0 %v1755
    %v2012 = vpop.f32.mrf.mxu0
    %v2013 = vadd.f32 0.0, %v2012
    %v2014 = vpop.f32.mrf.mxu0
    %2015 = vmatprep.mubr.f32.mxu0 0.0
    %2016 = vmatmul.mubr.f32.gmra.mxu0 %v1758
    %v2017 = vpop.f32.mrf.mxu0
    %v2018 = vadd.f32 0.0, %v2017
    %v2019 = vpop.f32.mrf.mxu0
    %2020 = vmatprep.mubr.f32.mxu0 0.0
    %2021 = vmatmul.mubr.f32.gmra.mxu0 %v1761
    %v2022 = vpop.f32.mrf.mxu0
    %v2023 = vadd.f32 0.0, %v2022
    %v2024 = vpop.f32.mrf.mxu0
    %2025 = vmatprep.mubr.f32.mxu0 0.0
    %2026 = vmatmul.mubr.f32.gmra.mxu0 %v1764
    %v2027 = vpop.f32.mrf.mxu0
    %v2028 = vadd.f32 0.0, %v2027
    %v2029 = vpop.f32.mrf.mxu0
    %2030 = vmatprep.mubr.f32.mxu0 0.0
    %2031 = vmatmul.mubr.f32.gmra.mxu0 %v1767
    %v2032 = vpop.f32.mrf.mxu0
    %v2033 = vadd.f32 0.0, %v2032
    %v2034 = vpop.f32.mrf.mxu0
    %2035 = vmatprep.mubr.f32.mxu0 0.0
    %2036 = vmatmul.mubr.f32.gmra.mxu0 %v1770
    %v2037 = vpop.f32.mrf.mxu0
    %v2038 = vadd.f32 0.0, %v2037
    %v2039 = vpop.f32.mrf.mxu0
    %2040 = vmatprep.mubr.f32.mxu0 0.0
    %2041 = vmatmul.mubr.f32.gmra.mxu0 %v1773
    %v2042 = vpop.f32.mrf.mxu0
    %v2043 = vadd.f32 0.0, %v2042
    %v2044 = vpop.f32.mrf.mxu0
    %2045 = vmatprep.mubr.f32.mxu0 0.0
    %2046 = vmatmul.mubr.f32.gmra.mxu0 %v1776
    %v2047 = vpop.f32.mrf.mxu0
    %v2048 = vadd.f32 0.0, %v2047
    %v2049 = vpop.f32.mrf.mxu0
    %2050 = vmatprep.mubr.f32.mxu0 0.0
    %2051 = vmatmul.mubr.f32.gmra.mxu0 %v1779
    %v2052 = vpop.f32.mrf.mxu0
    %v2053 = vadd.f32 0.0, %v2052
    %v2054 = vpop.f32.mrf.mxu0
    %2055 = vmatprep.mubr.f32.mxu0 0.0
    %2056 = vmatmul.mubr.f32.gmra.mxu0 %v1782
    %v2057 = vpop.f32.mrf.mxu0
    %v2058 = vadd.f32 0.0, %v2057
    %v2059 = vpop.f32.mrf.mxu0
    %2060 = vmatprep.mubr.f32.mxu0 0.0
    %2061 = vmatmul.mubr.f32.gmra.mxu0 %v1785
    %v2062 = vpop.f32.mrf.mxu0
    %v2063 = vadd.f32 0.0, %v2062
    %v2064 = vpop.f32.mrf.mxu0
    %2065 = vmatprep.mubr.f32.mxu0 0.0
    %2066 = vmatmul.mubr.f32.gmra.mxu0 %v1788
    %v2067 = vpop.f32.mrf.mxu0
    %v2068 = vadd.f32 0.0, %v2067
    %v2069 = vpop.f32.mrf.mxu0
    %2070 = vmatprep.mubr.f32.mxu0 0.0
    %2071 = vmatmul.mubr.f32.gmra.mxu0 %v1791
    %v2072 = vpop.f32.mrf.mxu0
    %v2073 = vadd.f32 0.0, %v2072
    %v2074 = vpop.f32.mrf.mxu0
    %2075 = vmatprep.mubr.f32.mxu0 0.0
    %2076 = vmatmul.mubr.f32.gmra.mxu0 %v1794
    %v2077 = vpop.f32.mrf.mxu0
    %v2078 = vadd.f32 0.0, %v2077
    %v2079 = vpop.f32.mrf.mxu0
    %2080 = vmatprep.mubr.f32.mxu0 0.0
    %2081 = vmatmul.mubr.f32.gmra.mxu0 %v1797
    %v2082 = vpop.f32.mrf.mxu0
    %v2083 = vadd.f32 0.0, %v2082
    %v2084 = vpop.f32.mrf.mxu0
    %2085 = vmatprep.mubr.f32.mxu0 0.0
    %2086 = vmatmul.mubr.f32.gmra.mxu0 %v1800
    %v2087 = vpop.f32.mrf.mxu0
    %v2088 = vadd.f32 0.0, %v2087
    %v2089 = vpop.f32.mrf.mxu0
    %2090 = vmatprep.mubr.f32.mxu0 0.0
    %2091 = vmatmul.mubr.f32.gmra.mxu0 %v1803
    %v2092 = vpop.f32.mrf.mxu0
    %v2093 = vadd.f32 0.0, %v2092
    %v2094 = vpop.f32.mrf.mxu0
    %2095 = vmatprep.mubr.f32.mxu0 0.0
    %2096 = vmatmul.mubr.f32.gmra.mxu0 %v1806
    %v2097 = vpop.f32.mrf.mxu0
    %v2098 = vadd.f32 0.0, %v2097
    %v2099 = vpop.f32.mrf.mxu0
    %2100 = vmatprep.mubr.f32.mxu0 0.0
    %2101 = vmatmul.mubr.f32.gmra.mxu0 %v1809
    %v2102 = vpop.f32.mrf.mxu0
    %v2103 = vadd.f32 0.0, %v2102
    %v2104 = vpop.f32.mrf.mxu0
    %2105 = vmatprep.mubr.f32.mxu0 0.0
    %2106 = vmatmul.mubr.f32.gmra.mxu0 %v1812
    %v2107 = vpop.f32.mrf.mxu0
    %v2108 = vadd.f32 0.0, %v2107
    %v2109 = vpop.f32.mrf.mxu0
    %2110 = vmatprep.mubr.f32.mxu0 0.0
    %2111 = vmatmul.mubr.f32.gmra.mxu0 %v1815
    %v2112 = vpop.f32.mrf.mxu0
    %v2113 = vadd.f32 0.0, %v2112
    %v2114 = vpop.f32.mrf.mxu0
    %2115 = vmatprep.mubr.f32.mxu0 0.0
    %2116 = vmatmul.mubr.f32.gmra.mxu0 %v1818
    %v2117 = vpop.f32.mrf.mxu0
    %v2118 = vadd.f32 0.0, %v2117
    %v2119 = vpop.f32.mrf.mxu0
    %2120 = vmatprep.mubr.f32.mxu0 0.0
    %2121 = vmatmul.mubr.f32.gmra.mxu0 %v1821
    %v2122 = vpop.f32.mrf.mxu0
    %v2123 = vadd.f32 0.0, %v2122
    %v2124 = vpop.f32.mrf.mxu0
    %2125 = vmatprep.mubr.f32.mxu0 0.0
    %2126 = vmatmul.mubr.f32.gmra.mxu0 %v1824
    %v2127 = vpop.f32.mrf.mxu0
    %v2128 = vadd.f32 0.0, %v2127
    %v2129 = vpop.f32.mrf.mxu0
    %2130 = vdwg.mxu0
    %v2131 = vmax.f32 %v1585, %v1893
    %v2132 = vmax.f32 %v1586, %v1898
    %v2133 = vmax.f32 %v1587, %v1903
    %v2134 = vmax.f32 %v1588, %v1908
    %v2135 = vmax.f32 %v1589, %v1913
    %v2136 = vmax.f32 %v1590, %v1918
    %v2137 = vmax.f32 %v1591, %v1923
    %v2138 = vmax.f32 %v1592, %v1928
    %v2139 = vmax.f32 %v1593, %v1933
    %v2140 = vmax.f32 %v1594, %v1938
    %v2141 = vmax.f32 %v1595, %v1943
    %v2142 = vmax.f32 %v1596, %v1948
    %v2143 = vmax.f32 %v1597, %v1953
    %v2144 = vmax.f32 %v1598, %v1958
    %v2145 = vmax.f32 %v1599, %v1963
    %v2146 = vmax.f32 %v1600, %v1968
    %v2147 = vmax.f32 %v1601, %v1973
    %v2148 = vmax.f32 %v1602, %v1978
    %v2149 = vmax.f32 %v1603, %v1983
    %v2150 = vmax.f32 %v1604, %v1988
    %v2151 = vmax.f32 %v1605, %v1993
    %v2152 = vmax.f32 %v1606, %v1998
    %v2153 = vmax.f32 %v1607, %v2003
    %v2154 = vmax.f32 %v1608, %v2008
    %v2155 = vmax.f32 %v1609, %v2013
    %v2156 = vmax.f32 %v1610, %v2018
    %v2157 = vmax.f32 %v1611, %v2023
    %v2158 = vmax.f32 %v1612, %v2028
    %v2159 = vmax.f32 %v1613, %v2033
    %v2160 = vmax.f32 %v1614, %v2038
    %v2161 = vmax.f32 %v1615, %v2043
    %v2162 = vmax.f32 %v1616, %v2048
    %v2163 = vmax.f32 %v1617, %v2053
    %v2164 = vmax.f32 %v1618, %v2058
    %v2165 = vmax.f32 %v1619, %v2063
    %v2166 = vmax.f32 %v1620, %v2068
    %v2167 = vmax.f32 %v1621, %v2073
    %v2168 = vmax.f32 %v1622, %v2078
    %v2169 = vmax.f32 %v1623, %v2083
    %v2170 = vmax.f32 %v1624, %v2088
    %v2171 = vmax.f32 %v1625, %v2093
    %v2172 = vmax.f32 %v1626, %v2098
    %v2173 = vmax.f32 %v1627, %v2103
    %v2174 = vmax.f32 %v1628, %v2108
    %v2175 = vmax.f32 %v1629, %v2113
    %v2176 = vmax.f32 %v1630, %v2118
    %v2177 = vmax.f32 %v1631, %v2123
    %v2178 = vmax.f32 %v1632, %v2128
    %v2179 = vld [vmem:[%s2] sm:$0x1]
    %v2181 = vlaneseq
    %v2182 = vshrl.u32 %v2181, 7
    %v2183 = vsub.s32 0, %v2182
    %v2184 = vrot.slane %v2179, %v2183
    %v2186 = vadd.f32 %v2131, %v2184
    %v2187 = vadd.f32 %v2132, %v2184
    %v2188 = vadd.f32 %v2133, %v2184
    %v2189 = vadd.f32 %v2134, %v2184
    %v2190 = vadd.f32 %v2135, %v2184
    %v2191 = vadd.f32 %v2136, %v2184
    %v2192 = vadd.f32 %v2137, %v2184
    %v2193 = vadd.f32 %v2138, %v2184
    %v2194 = vadd.f32 %v2139, %v2184
    %v2195 = vadd.f32 %v2140, %v2184
    %v2196 = vadd.f32 %v2141, %v2184
    %v2197 = vadd.f32 %v2142, %v2184
    %v2198 = vadd.f32 %v2143, %v2184
    %v2199 = vadd.f32 %v2144, %v2184
    %v2200 = vadd.f32 %v2145, %v2184
    %v2201 = vadd.f32 %v2146, %v2184
    %v2202 = vadd.f32 %v2147, %v2184
    %v2203 = vadd.f32 %v2148, %v2184
    %v2204 = vadd.f32 %v2149, %v2184
    %v2205 = vadd.f32 %v2150, %v2184
    %v2206 = vadd.f32 %v2151, %v2184
    %v2207 = vadd.f32 %v2152, %v2184
    %v2208 = vadd.f32 %v2153, %v2184
    %v2209 = vadd.f32 %v2154, %v2184
    %v2210 = vadd.f32 %v2155, %v2184
    %v2211 = vadd.f32 %v2156, %v2184
    %v2212 = vadd.f32 %v2157, %v2184
    %v2213 = vadd.f32 %v2158, %v2184
    %v2214 = vadd.f32 %v2159, %v2184
    %v2215 = vadd.f32 %v2160, %v2184
    %v2216 = vadd.f32 %v2161, %v2184
    %v2217 = vadd.f32 %v2162, %v2184
    %v2218 = vadd.f32 %v2163, %v2184
    %v2219 = vadd.f32 %v2164, %v2184
    %v2220 = vadd.f32 %v2165, %v2184
    %v2221 = vadd.f32 %v2166, %v2184
    %v2222 = vadd.f32 %v2167, %v2184
    %v2223 = vadd.f32 %v2168, %v2184
    %v2224 = vadd.f32 %v2169, %v2184
    %v2225 = vadd.f32 %v2170, %v2184
    %v2226 = vadd.f32 %v2171, %v2184
    %v2227 = vadd.f32 %v2172, %v2184
    %v2228 = vadd.f32 %v2173, %v2184
    %v2229 = vadd.f32 %v2174, %v2184
    %v2230 = vadd.f32 %v2175, %v2184
    %v2231 = vadd.f32 %v2176, %v2184
    %v2232 = vadd.f32 %v2177, %v2184
    %v2233 = vadd.f32 %v2178, %v2184
    %v2234 = vmax.f32 %v2186, 0.0
    %v2235 = vmax.f32 %v2187, 0.0
    %v2236 = vmax.f32 %v2188, 0.0
    %v2237 = vmax.f32 %v2189, 0.0
    %v2238 = vmax.f32 %v2190, 0.0
    %v2239 = vmax.f32 %v2191, 0.0
    %v2240 = vmax.f32 %v2192, 0.0
    %v2241 = vmax.f32 %v2193, 0.0
    %v2242 = vmax.f32 %v2194, 0.0
    %v2243 = vmax.f32 %v2195, 0.0
    %v2244 = vmax.f32 %v2196, 0.0
    %v2245 = vmax.f32 %v2197, 0.0
    %v2246 = vmax.f32 %v2198, 0.0
    %v2247 = vmax.f32 %v2199, 0.0
    %v2248 = vmax.f32 %v2200, 0.0
    %v2249 = vmax.f32 %v2201, 0.0
    %v2250 = vmax.f32 %v2202, 0.0
    %v2251 = vmax.f32 %v2203, 0.0
    %v2252 = vmax.f32 %v2204, 0.0
    %v2253 = vmax.f32 %v2205, 0.0
    %v2254 = vmax.f32 %v2206, 0.0
    %v2255 = vmax.f32 %v2207, 0.0
    %v2256 = vmax.f32 %v2208, 0.0
    %v2257 = vmax.f32 %v2209, 0.0
    %v2258 = vmax.f32 %v2210, 0.0
    %v2259 = vmax.f32 %v2211, 0.0
    %v2260 = vmax.f32 %v2212, 0.0
    %v2261 = vmax.f32 %v2213, 0.0
    %v2262 = vmax.f32 %v2214, 0.0
    %v2263 = vmax.f32 %v2215, 0.0
    %v2264 = vmax.f32 %v2216, 0.0
    %v2265 = vmax.f32 %v2217, 0.0
    %v2266 = vmax.f32 %v2218, 0.0
    %v2267 = vmax.f32 %v2219, 0.0
    %v2268 = vmax.f32 %v2220, 0.0
    %v2269 = vmax.f32 %v2221, 0.0
    %v2270 = vmax.f32 %v2222, 0.0
    %v2271 = vmax.f32 %v2223, 0.0
    %v2272 = vmax.f32 %v2224, 0.0
    %v2273 = vmax.f32 %v2225, 0.0
    %v2274 = vmax.f32 %v2226, 0.0
    %v2275 = vmax.f32 %v2227, 0.0
    %v2276 = vmax.f32 %v2228, 0.0
    %v2277 = vmax.f32 %v2229, 0.0
    %v2278 = vmax.f32 %v2230, 0.0
    %v2279 = vmax.f32 %v2231, 0.0
    %v2280 = vmax.f32 %v2232, 0.0
    %v2281 = vmax.f32 %v2233, 0.0
    %v2282 = vld [vmem:[%s3] sm:$0xff]
    %v2283 = vld [vmem:[%s3 + $0x8] sm:$0xff]
    %v2284 = vld [vmem:[%s3 + $0x10] sm:$0xff]
    %v2285 = vld [vmem:[%s3 + $0x18] sm:$0xff]
    %v2286 = vld [vmem:[%s3 + $0x20] sm:$0xff]
    %v2287 = vld [vmem:[%s3 + $0x28] sm:$0xff]
    %v2288 = vld [vmem:[%s3 + $0x30] sm:$0xff]
    %v2289 = vld [vmem:[%s3 + $0x38] sm:$0xff]
    %v2290 = vld [vmem:[%s3 + $0x40] sm:$0xff]
    %v2291 = vld [vmem:[%s3 + $0x48] sm:$0xff]
    %v2292 = vld [vmem:[%s3 + $0x50] sm:$0xff]
    %v2293 = vld [vmem:[%s3 + $0x58] sm:$0xff]
    %v2294 = vld [vmem:[%s3 + $0x60] sm:$0xff]
    %v2295 = vld [vmem:[%s3 + $0x68] sm:$0xff]
    %v2296 = vld [vmem:[%s3 + $0x70] sm:$0xff]
    %v2297 = vld [vmem:[%s3 + $0x78] sm:$0xff]
    %vm2330 = vcmask 1046528
    %v2331 = vrot.slane %v2234, 1
    %v2332 = vrot.slane %v2235, 1
    %v2333 = vsel %vm2330, %v2331, %v2332
    %v2334 = vrot.slane %v2236, 1
    %v2335 = vrot.slane %v2237, 1
    %v2336 = vsel %vm2330, %v2334, %v2335
    %v2337 = vrot.slane %v2238, 1
    %v2338 = vrot.slane %v2239, 1
    %v2339 = vsel %vm2330, %v2337, %v2338
    %v2340 = vrot.slane %v2240, 1
    %v2341 = vrot.slane %v2241, 1
    %v2342 = vsel %vm2330, %v2340, %v2341
    %v2343 = vrot.slane %v2242, 1
    %v2344 = vrot.slane %v2243, 1
    %v2345 = vsel %vm2330, %v2343, %v2344
    %v2346 = vrot.slane %v2244, 1
    %v2347 = vrot.slane %v2245, 1
    %v2348 = vsel %vm2330, %v2346, %v2347
    %v2349 = vrot.slane %v2246, 1
    %v2350 = vrot.slane %v2247, 1
    %v2351 = vsel %vm2330, %v2349, %v2350
    %v2352 = vrot.slane %v2248, 1
    %v2353 = vrot.slane %v2249, 1
    %v2354 = vsel %vm2330, %v2352, %v2353
    %v2355 = vrot.slane %v2258, 1
    %v2356 = vrot.slane %v2259, 1
    %v2357 = vsel %vm2330, %v2355, %v2356
    %v2358 = vrot.slane %v2260, 1
    %v2359 = vrot.slane %v2261, 1
    %v2360 = vsel %vm2330, %v2358, %v2359
    %v2361 = vrot.slane %v2262, 1
    %v2362 = vrot.slane %v2263, 1
    %v2363 = vsel %vm2330, %v2361, %v2362
    %v2364 = vrot.slane %v2264, 1
    %v2365 = vrot.slane %v2265, 1
    %v2366 = vsel %vm2330, %v2364, %v2365
    %v2367 = vrot.slane %v2266, 1
    %v2368 = vrot.slane %v2267, 1
    %v2369 = vsel %vm2330, %v2367, %v2368
    %v2370 = vrot.slane %v2268, 1
    %v2371 = vrot.slane %v2269, 1
    %v2372 = vsel %vm2330, %v2370, %v2371
    %v2373 = vrot.slane %v2270, 1
    %v2374 = vrot.slane %v2271, 1
    %v2375 = vsel %vm2330, %v2373, %v2374
    %v2376 = vrot.slane %v2272, 1
    %v2377 = vrot.slane %v2273, 1
    %v2378 = vsel %vm2330, %v2376, %v2377
    %s2395 = scalar_lea.vmem %s3, 128
    %v2396 = vld [vmem:[%s2395] sm:$0xff]
    %v2397 = vld [vmem:[%s2395 + $0x8] sm:$0xff]
    %v2398 = vld [vmem:[%s2395 + $0x10] sm:$0xff]
    %v2399 = vld [vmem:[%s2395 + $0x18] sm:$0xff]
    %v2400 = vld [vmem:[%s2395 + $0x20] sm:$0xff]
    %v2401 = vld [vmem:[%s2395 + $0x28] sm:$0xff]
    %v2402 = vld [vmem:[%s2395 + $0x30] sm:$0xff]
    %v2403 = vld [vmem:[%s2395 + $0x38] sm:$0xff]
    %v2404 = vld [vmem:[%s2395 + $0x40] sm:$0xff]
    %v2405 = vld [vmem:[%s2395 + $0x48] sm:$0xff]
    %v2406 = vld [vmem:[%s2395 + $0x50] sm:$0xff]
    %v2407 = vld [vmem:[%s2395 + $0x58] sm:$0xff]
    %v2408 = vld [vmem:[%s2395 + $0x60] sm:$0xff]
    %v2409 = vld [vmem:[%s2395 + $0x68] sm:$0xff]
    %v2410 = vld [vmem:[%s2395 + $0x70] sm:$0xff]
    %v2411 = vld [vmem:[%s2395 + $0x78] sm:$0xff]
    %2412 = vmatprep.subr.mxu0 0.0
    %2413 = vmatpush1.msra.mxu0 %v2411
    %2414 = vmatprep.subr.mxu0 0.0
    %2415 = vmatpush1.msra.mxu0 %v2410
    %2416 = vmatprep.subr.mxu0 0.0
    %2417 = vmatpush1.msra.mxu0 %v2409
    %2418 = vmatprep.subr.mxu0 0.0
    %2419 = vmatpush1.msra.mxu0 %v2408
    %2420 = vmatprep.subr.mxu0 0.0
    %2421 = vmatpush1.msra.mxu0 %v2407
    %2422 = vmatprep.subr.mxu0 0.0
    %2423 = vmatpush1.msra.mxu0 %v2406
    %2424 = vmatprep.subr.mxu0 0.0
    %2425 = vmatpush1.msra.mxu0 %v2405
    %2426 = vmatprep.subr.mxu0 0.0
    %2427 = vmatpush1.msra.mxu0 %v2404
    %2428 = vmatprep.subr.mxu0 0.0
    %2429 = vmatpush1.msra.mxu0 %v2403
    %2430 = vmatprep.subr.mxu0 0.0
    %2431 = vmatpush1.msra.mxu0 %v2402
    %2432 = vmatprep.subr.mxu0 0.0
    %2433 = vmatpush1.msra.mxu0 %v2401
    %2434 = vmatprep.subr.mxu0 0.0
    %2435 = vmatpush1.msra.mxu0 %v2400
    %2436 = vmatprep.subr.mxu0 0.0
    %2437 = vmatpush1.msra.mxu0 %v2399
    %2438 = vmatprep.subr.mxu0 0.0
    %2439 = vmatpush1.msra.mxu0 %v2398
    %2440 = vmatprep.subr.mxu0 0.0
    %2441 = vmatpush1.msra.mxu0 %v2397
    %2442 = vmatprep.subr.mxu0 0.0
    %2443 = vmatpush1.msra.mxu0 %v2396
    %2444 = vmatprep.subr.mxu0 0.0
    %2445 = vmatpush2.msra.mxu0 0.0
    %2446 = vmatprep.subr.mxu0 0.0
    %2447 = vmatpush2.msra.mxu0 0.0
    %2448 = vmatprep.subr.mxu0 0.0
    %2449 = vmatpush2.msra.mxu0 0.0
    %2450 = vmatprep.subr.mxu0 0.0
    %2451 = vmatpush2.msra.mxu0 0.0
    %2452 = vmatprep.subr.mxu0 0.0
    %2453 = vmatpush2.msra.mxu0 0.0
    %2454 = vmatprep.subr.mxu0 0.0
    %2455 = vmatpush2.msra.mxu0 0.0
    %2456 = vmatprep.subr.mxu0 0.0
    %2457 = vmatpush2.msra.mxu0 0.0
    %2458 = vmatprep.subr.mxu0 0.0
    %2459 = vmatpush2.msra.mxu0 0.0
    %2460 = vmatprep.subr.mxu0 0.0
    %2461 = vmatpush2.msra.mxu0 0.0
    %2462 = vmatprep.subr.mxu0 0.0
    %2463 = vmatpush2.msra.mxu0 0.0
    %2464 = vmatprep.subr.mxu0 0.0
    %2465 = vmatpush2.msra.mxu0 0.0
    %2466 = vmatprep.subr.mxu0 0.0
    %2467 = vmatpush2.msra.mxu0 0.0
    %2468 = vmatprep.subr.mxu0 0.0
    %2469 = vmatpush2.msra.mxu0 0.0
    %2470 = vmatprep.subr.mxu0 0.0
    %2471 = vmatpush2.msra.mxu0 0.0
    %2472 = vmatprep.subr.mxu0 0.0
    %2473 = vmatpush2.msra.mxu0 0.0
    %2474 = vmatprep.subr.mxu0 0.0
    %2475 = vmatpush2.msra.mxu0 0.0
    %2476 = vmatprep.mubr.f32.mxu0 0.0
    %2477 = vmatmul.mubr.f32.gmra.mxu0 %v2333
    %v2478 = vpop.f32.mrf.mxu0
    %v2479 = vadd.f32 0.0, %v2478
    %v2480 = vpop.f32.mrf.mxu0
    %2481 = vmatprep.mubr.f32.mxu0 0.0
    %2482 = vmatmul.mubr.f32.gmra.mxu0 %v2336
    %v2483 = vpop.f32.mrf.mxu0
    %v2484 = vadd.f32 0.0, %v2483
    %v2485 = vpop.f32.mrf.mxu0
    %2486 = vmatprep.mubr.f32.mxu0 0.0
    %2487 = vmatmul.mubr.f32.gmra.mxu0 %v2339
    %v2488 = vpop.f32.mrf.mxu0
    %v2489 = vadd.f32 0.0, %v2488
    %v2490 = vpop.f32.mrf.mxu0
    %2491 = vmatprep.mubr.f32.mxu0 0.0
    %2492 = vmatmul.mubr.f32.gmra.mxu0 %v2342
    %v2493 = vpop.f32.mrf.mxu0
    %v2494 = vadd.f32 0.0, %v2493
    %v2495 = vpop.f32.mrf.mxu0
    %2496 = vmatprep.mubr.f32.mxu0 0.0
    %2497 = vmatmul.mubr.f32.gmra.mxu0 %v2345
    %v2498 = vpop.f32.mrf.mxu0
    %v2499 = vadd.f32 0.0, %v2498
    %v2500 = vpop.f32.mrf.mxu0
    %2501 = vmatprep.mubr.f32.mxu0 0.0
    %2502 = vmatmul.mubr.f32.gmra.mxu0 %v2348
    %v2503 = vpop.f32.mrf.mxu0
    %v2504 = vadd.f32 0.0, %v2503
    %v2505 = vpop.f32.mrf.mxu0
    %2506 = vmatprep.mubr.f32.mxu0 0.0
    %2507 = vmatmul.mubr.f32.gmra.mxu0 %v2351
    %v2508 = vpop.f32.mrf.mxu0
    %v2509 = vadd.f32 0.0, %v2508
    %v2510 = vpop.f32.mrf.mxu0
    %2511 = vmatprep.mubr.f32.mxu0 0.0
    %2512 = vmatmul.mubr.f32.gmra.mxu0 %v2354
    %v2513 = vpop.f32.mrf.mxu0
    %v2514 = vadd.f32 0.0, %v2513
    %v2515 = vpop.f32.mrf.mxu0
    %2516 = vmatprep.mubr.f32.mxu0 0.0
    %2517 = vmatmul.mubr.f32.gmra.mxu0 %v2357
    %v2518 = vpop.f32.mrf.mxu0
    %v2519 = vadd.f32 0.0, %v2518
    %v2520 = vpop.f32.mrf.mxu0
    %2521 = vmatprep.mubr.f32.mxu0 0.0
    %2522 = vmatmul.mubr.f32.gmra.mxu0 %v2360
    %v2523 = vpop.f32.mrf.mxu0
    %v2524 = vadd.f32 0.0, %v2523
    %v2525 = vpop.f32.mrf.mxu0
    %2526 = vmatprep.mubr.f32.mxu0 0.0
    %2527 = vmatmul.mubr.f32.gmra.mxu0 %v2363
    %v2528 = vpop.f32.mrf.mxu0
    %v2529 = vadd.f32 0.0, %v2528
    %v2530 = vpop.f32.mrf.mxu0
    %2531 = vmatprep.mubr.f32.mxu0 0.0
    %2532 = vmatmul.mubr.f32.gmra.mxu0 %v2366
    %v2533 = vpop.f32.mrf.mxu0
    %v2534 = vadd.f32 0.0, %v2533
    %v2535 = vpop.f32.mrf.mxu0
    %2536 = vmatprep.mubr.f32.mxu0 0.0
    %2537 = vmatmul.mubr.f32.gmra.mxu0 %v2369
    %v2538 = vpop.f32.mrf.mxu0
    %v2539 = vadd.f32 0.0, %v2538
    %v2540 = vpop.f32.mrf.mxu0
    %2541 = vmatprep.mubr.f32.mxu0 0.0
    %2542 = vmatmul.mubr.f32.gmra.mxu0 %v2372
    %v2543 = vpop.f32.mrf.mxu0
    %v2544 = vadd.f32 0.0, %v2543
    %v2545 = vpop.f32.mrf.mxu0
    %2546 = vmatprep.mubr.f32.mxu0 0.0
    %2547 = vmatmul.mubr.f32.gmra.mxu0 %v2375
    %v2548 = vpop.f32.mrf.mxu0
    %v2549 = vadd.f32 0.0, %v2548
    %v2550 = vpop.f32.mrf.mxu0
    %2551 = vmatprep.mubr.f32.mxu0 0.0
    %2552 = vmatmul.mubr.f32.gmra.mxu0 %v2378
    %v2553 = vpop.f32.mrf.mxu0
    %v2554 = vadd.f32 0.0, %v2553
    %v2555 = vpop.f32.mrf.mxu0
    %2556 = vdwg.mxu0
    %2557 = vmatprep.subr.mxu0 0.0
    %2558 = vmatpush1.msra.mxu0 %v2297
    %2559 = vmatprep.subr.mxu0 0.0
    %2560 = vmatpush1.msra.mxu0 %v2296
    %2561 = vmatprep.subr.mxu0 0.0
    %2562 = vmatpush1.msra.mxu0 %v2295
    %2563 = vmatprep.subr.mxu0 0.0
    %2564 = vmatpush1.msra.mxu0 %v2294
    %2565 = vmatprep.subr.mxu0 0.0
    %2566 = vmatpush1.msra.mxu0 %v2293
    %2567 = vmatprep.subr.mxu0 0.0
    %2568 = vmatpush1.msra.mxu0 %v2292
    %2569 = vmatprep.subr.mxu0 0.0
    %2570 = vmatpush1.msra.mxu0 %v2291
    %2571 = vmatprep.subr.mxu0 0.0
    %2572 = vmatpush1.msra.mxu0 %v2290
    %2573 = vmatprep.subr.mxu0 0.0
    %2574 = vmatpush1.msra.mxu0 %v2289
    %2575 = vmatprep.subr.mxu0 0.0
    %2576 = vmatpush1.msra.mxu0 %v2288
    %2577 = vmatprep.subr.mxu0 0.0
    %2578 = vmatpush1.msra.mxu0 %v2287
    %2579 = vmatprep.subr.mxu0 0.0
    %2580 = vmatpush1.msra.mxu0 %v2286
    %2581 = vmatprep.subr.mxu0 0.0
    %2582 = vmatpush1.msra.mxu0 %v2285
    %2583 = vmatprep.subr.mxu0 0.0
    %2584 = vmatpush1.msra.mxu0 %v2284
    %2585 = vmatprep.subr.mxu0 0.0
    %2586 = vmatpush1.msra.mxu0 %v2283
    %2587 = vmatprep.subr.mxu0 0.0
    %2588 = vmatpush1.msra.mxu0 %v2282
    %2589 = vmatprep.subr.mxu0 0.0
    %2590 = vmatpush2.msra.mxu0 0.0
    %2591 = vmatprep.subr.mxu0 0.0
    %2592 = vmatpush2.msra.mxu0 0.0
    %2593 = vmatprep.subr.mxu0 0.0
    %2594 = vmatpush2.msra.mxu0 0.0
    %2595 = vmatprep.subr.mxu0 0.0
    %2596 = vmatpush2.msra.mxu0 0.0
    %2597 = vmatprep.subr.mxu0 0.0
    %2598 = vmatpush2.msra.mxu0 0.0
    %2599 = vmatprep.subr.mxu0 0.0
    %2600 = vmatpush2.msra.mxu0 0.0
    %2601 = vmatprep.subr.mxu0 0.0
    %2602 = vmatpush2.msra.mxu0 0.0
    %2603 = vmatprep.subr.mxu0 0.0
    %2604 = vmatpush2.msra.mxu0 0.0
    %2605 = vmatprep.subr.mxu0 0.0
    %2606 = vmatpush2.msra.mxu0 0.0
    %2607 = vmatprep.subr.mxu0 0.0
    %2608 = vmatpush2.msra.mxu0 0.0
    %2609 = vmatprep.subr.mxu0 0.0
    %2610 = vmatpush2.msra.mxu0 0.0
    %2611 = vmatprep.subr.mxu0 0.0
    %2612 = vmatpush2.msra.mxu0 0.0
    %2613 = vmatprep.subr.mxu0 0.0
    %2614 = vmatpush2.msra.mxu0 0.0
    %2615 = vmatprep.subr.mxu0 0.0
    %2616 = vmatpush2.msra.mxu0 0.0
    %2617 = vmatprep.subr.mxu0 0.0
    %2618 = vmatpush2.msra.mxu0 0.0
    %2619 = vmatprep.subr.mxu0 0.0
    %2620 = vmatpush2.msra.mxu0 0.0
    %2621 = vmatprep.mubr.f32.mxu0 0.0
    %2622 = vmatmul.mubr.f32.gmra.mxu0 %v2234
    %v2623 = vpop.f32.mrf.mxu0
    %v2624 = vadd.f32 %v2479, %v2623
    %v2625 = vpop.f32.mrf.mxu0
    %2626 = vmatprep.mubr.f32.mxu0 0.0
    %2627 = vmatmul.mubr.f32.gmra.mxu0 %v2236
    %v2628 = vpop.f32.mrf.mxu0
    %v2629 = vadd.f32 %v2484, %v2628
    %v2630 = vpop.f32.mrf.mxu0
    %2631 = vmatprep.mubr.f32.mxu0 0.0
    %2632 = vmatmul.mubr.f32.gmra.mxu0 %v2238
    %v2633 = vpop.f32.mrf.mxu0
    %v2634 = vadd.f32 %v2489, %v2633
    %v2635 = vpop.f32.mrf.mxu0
    %2636 = vmatprep.mubr.f32.mxu0 0.0
    %2637 = vmatmul.mubr.f32.gmra.mxu0 %v2240
    %v2638 = vpop.f32.mrf.mxu0
    %v2639 = vadd.f32 %v2494, %v2638
    %v2640 = vpop.f32.mrf.mxu0
    %2641 = vmatprep.mubr.f32.mxu0 0.0
    %2642 = vmatmul.mubr.f32.gmra.mxu0 %v2242
    %v2643 = vpop.f32.mrf.mxu0
    %v2644 = vadd.f32 %v2499, %v2643
    %v2645 = vpop.f32.mrf.mxu0
    %2646 = vmatprep.mubr.f32.mxu0 0.0
    %2647 = vmatmul.mubr.f32.gmra.mxu0 %v2244
    %v2648 = vpop.f32.mrf.mxu0
    %v2649 = vadd.f32 %v2504, %v2648
    %v2650 = vpop.f32.mrf.mxu0
    %2651 = vmatprep.mubr.f32.mxu0 0.0
    %2652 = vmatmul.mubr.f32.gmra.mxu0 %v2246
    %v2653 = vpop.f32.mrf.mxu0
    %v2654 = vadd.f32 %v2509, %v2653
    %v2655 = vpop.f32.mrf.mxu0
    %2656 = vmatprep.mubr.f32.mxu0 0.0
    %2657 = vmatmul.mubr.f32.gmra.mxu0 %v2248
    %v2658 = vpop.f32.mrf.mxu0
    %v2659 = vadd.f32 %v2514, %v2658
    %v2660 = vpop.f32.mrf.mxu0
    %2661 = vmatprep.mubr.f32.mxu0 0.0
    %2662 = vmatmul.mubr.f32.gmra.mxu0 %v2258
    %v2663 = vpop.f32.mrf.mxu0
    %v2664 = vadd.f32 %v2519, %v2663
    %v2665 = vpop.f32.mrf.mxu0
    %2666 = vmatprep.mubr.f32.mxu0 0.0
    %2667 = vmatmul.mubr.f32.gmra.mxu0 %v2260
    %v2668 = vpop.f32.mrf.mxu0
    %v2669 = vadd.f32 %v2524, %v2668
    %v2670 = vpop.f32.mrf.mxu0
    %2671 = vmatprep.mubr.f32.mxu0 0.0
    %2672 = vmatmul.mubr.f32.gmra.mxu0 %v2262
    %v2673 = vpop.f32.mrf.mxu0
    %v2674 = vadd.f32 %v2529, %v2673
    %v2675 = vpop.f32.mrf.mxu0
    %2676 = vmatprep.mubr.f32.mxu0 0.0
    %2677 = vmatmul.mubr.f32.gmra.mxu0 %v2264
    %v2678 = vpop.f32.mrf.mxu0
    %v2679 = vadd.f32 %v2534, %v2678
    %v2680 = vpop.f32.mrf.mxu0
    %2681 = vmatprep.mubr.f32.mxu0 0.0
    %2682 = vmatmul.mubr.f32.gmra.mxu0 %v2266
    %v2683 = vpop.f32.mrf.mxu0
    %v2684 = vadd.f32 %v2539, %v2683
    %v2685 = vpop.f32.mrf.mxu0
    %2686 = vmatprep.mubr.f32.mxu0 0.0
    %2687 = vmatmul.mubr.f32.gmra.mxu0 %v2268
    %v2688 = vpop.f32.mrf.mxu0
    %v2689 = vadd.f32 %v2544, %v2688
    %v2690 = vpop.f32.mrf.mxu0
    %2691 = vmatprep.mubr.f32.mxu0 0.0
    %2692 = vmatmul.mubr.f32.gmra.mxu0 %v2270
    %v2693 = vpop.f32.mrf.mxu0
    %v2694 = vadd.f32 %v2549, %v2693
    %v2695 = vpop.f32.mrf.mxu0
    %2696 = vmatprep.mubr.f32.mxu0 0.0
    %2697 = vmatmul.mubr.f32.gmra.mxu0 %v2272
    %v2698 = vpop.f32.mrf.mxu0
    %v2699 = vadd.f32 %v2554, %v2698
    %v2700 = vpop.f32.mrf.mxu0
    %2701 = vdwg.mxu0
    %vm2702 = vcmask 1045504
    %v2703 = vrot.slane %v2234, 2
    %v2704 = vrot.slane %v2235, 2
    %v2705 = vsel %vm2702, %v2703, %v2704
    %v2706 = vrot.slane %v2236, 2
    %v2707 = vrot.slane %v2237, 2
    %v2708 = vsel %vm2702, %v2706, %v2707
    %v2709 = vrot.slane %v2238, 2
    %v2710 = vrot.slane %v2239, 2
    %v2711 = vsel %vm2702, %v2709, %v2710
    %v2712 = vrot.slane %v2240, 2
    %v2713 = vrot.slane %v2241, 2
    %v2714 = vsel %vm2702, %v2712, %v2713
    %v2715 = vrot.slane %v2242, 2
    %v2716 = vrot.slane %v2243, 2
    %v2717 = vsel %vm2702, %v2715, %v2716
    %v2718 = vrot.slane %v2244, 2
    %v2719 = vrot.slane %v2245, 2
    %v2720 = vsel %vm2702, %v2718, %v2719
    %v2721 = vrot.slane %v2246, 2
    %v2722 = vrot.slane %v2247, 2
    %v2723 = vsel %vm2702, %v2721, %v2722
    %v2724 = vrot.slane %v2248, 2
    %v2725 = vrot.slane %v2249, 2
    %v2726 = vsel %vm2702, %v2724, %v2725
    %v2727 = vrot.slane %v2258, 2
    %v2728 = vrot.slane %v2259, 2
    %v2729 = vsel %vm2702, %v2727, %v2728
    %v2730 = vrot.slane %v2260, 2
    %v2731 = vrot.slane %v2261, 2
    %v2732 = vsel %vm2702, %v2730, %v2731
    %v2733 = vrot.slane %v2262, 2
    %v2734 = vrot.slane %v2263, 2
    %v2735 = vsel %vm2702, %v2733, %v2734
    %v2736 = vrot.slane %v2264, 2
    %v2737 = vrot.slane %v2265, 2
    %v2738 = vsel %vm2702, %v2736, %v2737
    %v2739 = vrot.slane %v2266, 2
    %v2740 = vrot.slane %v2267, 2
    %v2741 = vsel %vm2702, %v2739, %v2740
    %v2742 = vrot.slane %v2268, 2
    %v2743 = vrot.slane %v2269, 2
    %v2744 = vsel %vm2702, %v2742, %v2743
    %v2745 = vrot.slane %v2270, 2
    %v2746 = vrot.slane %v2271, 2
    %v2747 = vsel %vm2702, %v2745, %v2746
    %v2748 = vrot.slane %v2272, 2
    %v2749 = vrot.slane %v2273, 2
    %v2750 = vsel %vm2702, %v2748, %v2749
    %s2767 = scalar_lea.vmem %s3, 256
    %v2768 = vld [vmem:[%s2767] sm:$0xff]
    %v2769 = vld [vmem:[%s2767 + $0x8] sm:$0xff]
    %v2770 = vld [vmem:[%s2767 + $0x10] sm:$0xff]
    %v2771 = vld [vmem:[%s2767 + $0x18] sm:$0xff]
    %v2772 = vld [vmem:[%s2767 + $0x20] sm:$0xff]
    %v2773 = vld [vmem:[%s2767 + $0x28] sm:$0xff]
    %v2774 = vld [vmem:[%s2767 + $0x30] sm:$0xff]
    %v2775 = vld [vmem:[%s2767 + $0x38] sm:$0xff]
    %v2776 = vld [vmem:[%s2767 + $0x40] sm:$0xff]
    %v2777 = vld [vmem:[%s2767 + $0x48] sm:$0xff]
    %v2778 = vld [vmem:[%s2767 + $0x50] sm:$0xff]
    %v2779 = vld [vmem:[%s2767 + $0x58] sm:$0xff]
    %v2780 = vld [vmem:[%s2767 + $0x60] sm:$0xff]
    %v2781 = vld [vmem:[%s2767 + $0x68] sm:$0xff]
    %v2782 = vld [vmem:[%s2767 + $0x70] sm:$0xff]
    %v2783 = vld [vmem:[%s2767 + $0x78] sm:$0xff]
    %2784 = vmatprep.subr.mxu0 0.0
    %2785 = vmatpush1.msra.mxu0 %v2783
    %2786 = vmatprep.subr.mxu0 0.0
    %2787 = vmatpush1.msra.mxu0 %v2782
    %2788 = vmatprep.subr.mxu0 0.0
    %2789 = vmatpush1.msra.mxu0 %v2781
    %2790 = vmatprep.subr.mxu0 0.0
    %2791 = vmatpush1.msra.mxu0 %v2780
    %2792 = vmatprep.subr.mxu0 0.0
    %2793 = vmatpush1.msra.mxu0 %v2779
    %2794 = vmatprep.subr.mxu0 0.0
    %2795 = vmatpush1.msra.mxu0 %v2778
    %2796 = vmatprep.subr.mxu0 0.0
    %2797 = vmatpush1.msra.mxu0 %v2777
    %2798 = vmatprep.subr.mxu0 0.0
    %2799 = vmatpush1.msra.mxu0 %v2776
    %2800 = vmatprep.subr.mxu0 0.0
    %2801 = vmatpush1.msra.mxu0 %v2775
    %2802 = vmatprep.subr.mxu0 0.0
    %2803 = vmatpush1.msra.mxu0 %v2774
    %2804 = vmatprep.subr.mxu0 0.0
    %2805 = vmatpush1.msra.mxu0 %v2773
    %2806 = vmatprep.subr.mxu0 0.0
    %2807 = vmatpush1.msra.mxu0 %v2772
    %2808 = vmatprep.subr.mxu0 0.0
    %2809 = vmatpush1.msra.mxu0 %v2771
    %2810 = vmatprep.subr.mxu0 0.0
    %2811 = vmatpush1.msra.mxu0 %v2770
    %2812 = vmatprep.subr.mxu0 0.0
    %2813 = vmatpush1.msra.mxu0 %v2769
    %2814 = vmatprep.subr.mxu0 0.0
    %2815 = vmatpush1.msra.mxu0 %v2768
    %2816 = vmatprep.subr.mxu0 0.0
    %2817 = vmatpush2.msra.mxu0 0.0
    %2818 = vmatprep.subr.mxu0 0.0
    %2819 = vmatpush2.msra.mxu0 0.0
    %2820 = vmatprep.subr.mxu0 0.0
    %2821 = vmatpush2.msra.mxu0 0.0
    %2822 = vmatprep.subr.mxu0 0.0
    %2823 = vmatpush2.msra.mxu0 0.0
    %2824 = vmatprep.subr.mxu0 0.0
    %2825 = vmatpush2.msra.mxu0 0.0
    %2826 = vmatprep.subr.mxu0 0.0
    %2827 = vmatpush2.msra.mxu0 0.0
    %2828 = vmatprep.subr.mxu0 0.0
    %2829 = vmatpush2.msra.mxu0 0.0
    %2830 = vmatprep.subr.mxu0 0.0
    %2831 = vmatpush2.msra.mxu0 0.0
    %2832 = vmatprep.subr.mxu0 0.0
    %2833 = vmatpush2.msra.mxu0 0.0
    %2834 = vmatprep.subr.mxu0 0.0
    %2835 = vmatpush2.msra.mxu0 0.0
    %2836 = vmatprep.subr.mxu0 0.0
    %2837 = vmatpush2.msra.mxu0 0.0
    %2838 = vmatprep.subr.mxu0 0.0
    %2839 = vmatpush2.msra.mxu0 0.0
    %2840 = vmatprep.subr.mxu0 0.0
    %2841 = vmatpush2.msra.mxu0 0.0
    %2842 = vmatprep.subr.mxu0 0.0
    %2843 = vmatpush2.msra.mxu0 0.0
    %2844 = vmatprep.subr.mxu0 0.0
    %2845 = vmatpush2.msra.mxu0 0.0
    %2846 = vmatprep.subr.mxu0 0.0
    %2847 = vmatpush2.msra.mxu0 0.0
    %2848 = vmatprep.mubr.f32.mxu0 0.0
    %2849 = vmatmul.mubr.f32.gmra.mxu0 %v2705
    %v2850 = vpop.f32.mrf.mxu0
    %v2851 = vadd.f32 0.0, %v2850
    %v2852 = vpop.f32.mrf.mxu0
    %2853 = vmatprep.mubr.f32.mxu0 0.0
    %2854 = vmatmul.mubr.f32.gmra.mxu0 %v2708
    %v2855 = vpop.f32.mrf.mxu0
    %v2856 = vadd.f32 0.0, %v2855
    %v2857 = vpop.f32.mrf.mxu0
    %2858 = vmatprep.mubr.f32.mxu0 0.0
    %2859 = vmatmul.mubr.f32.gmra.mxu0 %v2711
    %v2860 = vpop.f32.mrf.mxu0
    %v2861 = vadd.f32 0.0, %v2860
    %v2862 = vpop.f32.mrf.mxu0
    %2863 = vmatprep.mubr.f32.mxu0 0.0
    %2864 = vmatmul.mubr.f32.gmra.mxu0 %v2714
    %v2865 = vpop.f32.mrf.mxu0
    %v2866 = vadd.f32 0.0, %v2865
    %v2867 = vpop.f32.mrf.mxu0
    %2868 = vmatprep.mubr.f32.mxu0 0.0
    %2869 = vmatmul.mubr.f32.gmra.mxu0 %v2717
    %v2870 = vpop.f32.mrf.mxu0
    %v2871 = vadd.f32 0.0, %v2870
    %v2872 = vpop.f32.mrf.mxu0
    %2873 = vmatprep.mubr.f32.mxu0 0.0
    %2874 = vmatmul.mubr.f32.gmra.mxu0 %v2720
    %v2875 = vpop.f32.mrf.mxu0
    %v2876 = vadd.f32 0.0, %v2875
    %v2877 = vpop.f32.mrf.mxu0
    %2878 = vmatprep.mubr.f32.mxu0 0.0
    %2879 = vmatmul.mubr.f32.gmra.mxu0 %v2723
    %v2880 = vpop.f32.mrf.mxu0
    %v2881 = vadd.f32 0.0, %v2880
    %v2882 = vpop.f32.mrf.mxu0
    %2883 = vmatprep.mubr.f32.mxu0 0.0
    %2884 = vmatmul.mubr.f32.gmra.mxu0 %v2726
    %v2885 = vpop.f32.mrf.mxu0
    %v2886 = vadd.f32 0.0, %v2885
    %v2887 = vpop.f32.mrf.mxu0
    %2888 = vmatprep.mubr.f32.mxu0 0.0
    %2889 = vmatmul.mubr.f32.gmra.mxu0 %v2729
    %v2890 = vpop.f32.mrf.mxu0
    %v2891 = vadd.f32 0.0, %v2890
    %v2892 = vpop.f32.mrf.mxu0
    %2893 = vmatprep.mubr.f32.mxu0 0.0
    %2894 = vmatmul.mubr.f32.gmra.mxu0 %v2732
    %v2895 = vpop.f32.mrf.mxu0
    %v2896 = vadd.f32 0.0, %v2895
    %v2897 = vpop.f32.mrf.mxu0
    %2898 = vmatprep.mubr.f32.mxu0 0.0
    %2899 = vmatmul.mubr.f32.gmra.mxu0 %v2735
    %v2900 = vpop.f32.mrf.mxu0
    %v2901 = vadd.f32 0.0, %v2900
    %v2902 = vpop.f32.mrf.mxu0
    %2903 = vmatprep.mubr.f32.mxu0 0.0
    %2904 = vmatmul.mubr.f32.gmra.mxu0 %v2738
    %v2905 = vpop.f32.mrf.mxu0
    %v2906 = vadd.f32 0.0, %v2905
    %v2907 = vpop.f32.mrf.mxu0
    %2908 = vmatprep.mubr.f32.mxu0 0.0
    %2909 = vmatmul.mubr.f32.gmra.mxu0 %v2741
    %v2910 = vpop.f32.mrf.mxu0
    %v2911 = vadd.f32 0.0, %v2910
    %v2912 = vpop.f32.mrf.mxu0
    %2913 = vmatprep.mubr.f32.mxu0 0.0
    %2914 = vmatmul.mubr.f32.gmra.mxu0 %v2744
    %v2915 = vpop.f32.mrf.mxu0
    %v2916 = vadd.f32 0.0, %v2915
    %v2917 = vpop.f32.mrf.mxu0
    %2918 = vmatprep.mubr.f32.mxu0 0.0
    %2919 = vmatmul.mubr.f32.gmra.mxu0 %v2747
    %v2920 = vpop.f32.mrf.mxu0
    %v2921 = vadd.f32 0.0, %v2920
    %v2922 = vpop.f32.mrf.mxu0
    %2923 = vmatprep.mubr.f32.mxu0 0.0
    %2924 = vmatmul.mubr.f32.gmra.mxu0 %v2750
    %v2925 = vpop.f32.mrf.mxu0
    %v2926 = vadd.f32 0.0, %v2925
    %v2927 = vpop.f32.mrf.mxu0
    %2928 = vdwg.mxu0
    %v2929 = vadd.f32 %v2624, %v2851
    %v2930 = vadd.f32 %v2629, %v2856
    %v2931 = vadd.f32 %v2634, %v2861
    %v2932 = vadd.f32 %v2639, %v2866
    %v2933 = vadd.f32 %v2644, %v2871
    %v2934 = vadd.f32 %v2649, %v2876
    %v2935 = vadd.f32 %v2654, %v2881
    %v2936 = vadd.f32 %v2659, %v2886
    %v2937 = vadd.f32 %v2664, %v2891
    %v2938 = vadd.f32 %v2669, %v2896
    %v2939 = vadd.f32 %v2674, %v2901
    %v2940 = vadd.f32 %v2679, %v2906
    %v2941 = vadd.f32 %v2684, %v2911
    %v2942 = vadd.f32 %v2689, %v2916
    %v2943 = vadd.f32 %v2694, %v2921
    %v2944 = vadd.f32 %v2699, %v2926
    %vm2945 = vcmask 1044480
    %v2946 = vrot.slane %v2234, 3
    %v2947 = vrot.slane %v2235, 3
    %v2948 = vsel %vm2945, %v2946, %v2947
    %v2949 = vrot.slane %v2236, 3
    %v2950 = vrot.slane %v2237, 3
    %v2951 = vsel %vm2945, %v2949, %v2950
    %v2952 = vrot.slane %v2238, 3
    %v2953 = vrot.slane %v2239, 3
    %v2954 = vsel %vm2945, %v2952, %v2953
    %v2955 = vrot.slane %v2240, 3
    %v2956 = vrot.slane %v2241, 3
    %v2957 = vsel %vm2945, %v2955, %v2956
    %v2958 = vrot.slane %v2242, 3
    %v2959 = vrot.slane %v2243, 3
    %v2960 = vsel %vm2945, %v2958, %v2959
    %v2961 = vrot.slane %v2244, 3
    %v2962 = vrot.slane %v2245, 3
    %v2963 = vsel %vm2945, %v2961, %v2962
    %v2964 = vrot.slane %v2246, 3
    %v2965 = vrot.slane %v2247, 3
    %v2966 = vsel %vm2945, %v2964, %v2965
    %v2967 = vrot.slane %v2248, 3
    %v2968 = vrot.slane %v2249, 3
    %v2969 = vsel %vm2945, %v2967, %v2968
    %v2970 = vrot.slane %v2258, 3
    %v2971 = vrot.slane %v2259, 3
    %v2972 = vsel %vm2945, %v2970, %v2971
    %v2973 = vrot.slane %v2260, 3
    %v2974 = vrot.slane %v2261, 3
    %v2975 = vsel %vm2945, %v2973, %v2974
    %v2976 = vrot.slane %v2262, 3
    %v2977 = vrot.slane %v2263, 3
    %v2978 = vsel %vm2945, %v2976, %v2977
    %v2979 = vrot.slane %v2264, 3
    %v2980 = vrot.slane %v2265, 3
    %v2981 = vsel %vm2945, %v2979, %v2980
    %v2982 = vrot.slane %v2266, 3
    %v2983 = vrot.slane %v2267, 3
    %v2984 = vsel %vm2945, %v2982, %v2983
    %v2985 = vrot.slane %v2268, 3
    %v2986 = vrot.slane %v2269, 3
    %v2987 = vsel %vm2945, %v2985, %v2986
    %v2988 = vrot.slane %v2270, 3
    %v2989 = vrot.slane %v2271, 3
    %v2990 = vsel %vm2945, %v2988, %v2989
    %v2991 = vrot.slane %v2272, 3
    %v2992 = vrot.slane %v2273, 3
    %v2993 = vsel %vm2945, %v2991, %v2992
    %s3010 = scalar_lea.vmem %s3, 384
    %v3011 = vld [vmem:[%s3010] sm:$0xff]
    %v3012 = vld [vmem:[%s3010 + $0x8] sm:$0xff]
    %v3013 = vld [vmem:[%s3010 + $0x10] sm:$0xff]
    %v3014 = vld [vmem:[%s3010 + $0x18] sm:$0xff]
    %v3015 = vld [vmem:[%s3010 + $0x20] sm:$0xff]
    %v3016 = vld [vmem:[%s3010 + $0x28] sm:$0xff]
    %v3017 = vld [vmem:[%s3010 + $0x30] sm:$0xff]
    %v3018 = vld [vmem:[%s3010 + $0x38] sm:$0xff]
    %v3019 = vld [vmem:[%s3010 + $0x40] sm:$0xff]
    %v3020 = vld [vmem:[%s3010 + $0x48] sm:$0xff]
    %v3021 = vld [vmem:[%s3010 + $0x50] sm:$0xff]
    %v3022 = vld [vmem:[%s3010 + $0x58] sm:$0xff]
    %v3023 = vld [vmem:[%s3010 + $0x60] sm:$0xff]
    %v3024 = vld [vmem:[%s3010 + $0x68] sm:$0xff]
    %v3025 = vld [vmem:[%s3010 + $0x70] sm:$0xff]
    %v3026 = vld [vmem:[%s3010 + $0x78] sm:$0xff]
    %3027 = vmatprep.subr.mxu0 0.0
    %3028 = vmatpush1.msra.mxu0 %v3026
    %3029 = vmatprep.subr.mxu0 0.0
    %3030 = vmatpush1.msra.mxu0 %v3025
    %3031 = vmatprep.subr.mxu0 0.0
    %3032 = vmatpush1.msra.mxu0 %v3024
    %3033 = vmatprep.subr.mxu0 0.0
    %3034 = vmatpush1.msra.mxu0 %v3023
    %3035 = vmatprep.subr.mxu0 0.0
    %3036 = vmatpush1.msra.mxu0 %v3022
    %3037 = vmatprep.subr.mxu0 0.0
    %3038 = vmatpush1.msra.mxu0 %v3021
    %3039 = vmatprep.subr.mxu0 0.0
    %3040 = vmatpush1.msra.mxu0 %v3020
    %3041 = vmatprep.subr.mxu0 0.0
    %3042 = vmatpush1.msra.mxu0 %v3019
    %3043 = vmatprep.subr.mxu0 0.0
    %3044 = vmatpush1.msra.mxu0 %v3018
    %3045 = vmatprep.subr.mxu0 0.0
    %3046 = vmatpush1.msra.mxu0 %v3017
    %3047 = vmatprep.subr.mxu0 0.0
    %3048 = vmatpush1.msra.mxu0 %v3016
    %3049 = vmatprep.subr.mxu0 0.0
    %3050 = vmatpush1.msra.mxu0 %v3015
    %3051 = vmatprep.subr.mxu0 0.0
    %3052 = vmatpush1.msra.mxu0 %v3014
    %3053 = vmatprep.subr.mxu0 0.0
    %3054 = vmatpush1.msra.mxu0 %v3013
    %3055 = vmatprep.subr.mxu0 0.0
    %3056 = vmatpush1.msra.mxu0 %v3012
    %3057 = vmatprep.subr.mxu0 0.0
    %3058 = vmatpush1.msra.mxu0 %v3011
    %3059 = vmatprep.subr.mxu0 0.0
    %3060 = vmatpush2.msra.mxu0 0.0
    %3061 = vmatprep.subr.mxu0 0.0
    %3062 = vmatpush2.msra.mxu0 0.0
    %3063 = vmatprep.subr.mxu0 0.0
    %3064 = vmatpush2.msra.mxu0 0.0
    %3065 = vmatprep.subr.mxu0 0.0
    %3066 = vmatpush2.msra.mxu0 0.0
    %3067 = vmatprep.subr.mxu0 0.0
    %3068 = vmatpush2.msra.mxu0 0.0
    %3069 = vmatprep.subr.mxu0 0.0
    %3070 = vmatpush2.msra.mxu0 0.0
    %3071 = vmatprep.subr.mxu0 0.0
    %3072 = vmatpush2.msra.mxu0 0.0
    %3073 = vmatprep.subr.mxu0 0.0
    %3074 = vmatpush2.msra.mxu0 0.0
    %3075 = vmatprep.subr.mxu0 0.0
    %3076 = vmatpush2.msra.mxu0 0.0
    %3077 = vmatprep.subr.mxu0 0.0
    %3078 = vmatpush2.msra.mxu0 0.0
    %3079 = vmatprep.subr.mxu0 0.0
    %3080 = vmatpush2.msra.mxu0 0.0
    %3081 = vmatprep.subr.mxu0 0.0
    %3082 = vmatpush2.msra.mxu0 0.0
    %3083 = vmatprep.subr.mxu0 0.0
    %3084 = vmatpush2.msra.mxu0 0.0
    %3085 = vmatprep.subr.mxu0 0.0
    %3086 = vmatpush2.msra.mxu0 0.0
    %3087 = vmatprep.subr.mxu0 0.0
    %3088 = vmatpush2.msra.mxu0 0.0
    %3089 = vmatprep.subr.mxu0 0.0
    %3090 = vmatpush2.msra.mxu0 0.0
    %3091 = vmatprep.mubr.f32.mxu0 0.0
    %3092 = vmatmul.mubr.f32.gmra.mxu0 %v2948
    %v3093 = vpop.f32.mrf.mxu0
    %v3094 = vadd.f32 0.0, %v3093
    %v3095 = vpop.f32.mrf.mxu0
    %3096 = vmatprep.mubr.f32.mxu0 0.0
    %3097 = vmatmul.mubr.f32.gmra.mxu0 %v2951
    %v3098 = vpop.f32.mrf.mxu0
    %v3099 = vadd.f32 0.0, %v3098
    %v3100 = vpop.f32.mrf.mxu0
    %3101 = vmatprep.mubr.f32.mxu0 0.0
    %3102 = vmatmul.mubr.f32.gmra.mxu0 %v2954
    %v3103 = vpop.f32.mrf.mxu0
    %v3104 = vadd.f32 0.0, %v3103
    %v3105 = vpop.f32.mrf.mxu0
    %3106 = vmatprep.mubr.f32.mxu0 0.0
    %3107 = vmatmul.mubr.f32.gmra.mxu0 %v2957
    %v3108 = vpop.f32.mrf.mxu0
    %v3109 = vadd.f32 0.0, %v3108
    %v3110 = vpop.f32.mrf.mxu0
    %3111 = vmatprep.mubr.f32.mxu0 0.0
    %3112 = vmatmul.mubr.f32.gmra.mxu0 %v2960
    %v3113 = vpop.f32.mrf.mxu0
    %v3114 = vadd.f32 0.0, %v3113
    %v3115 = vpop.f32.mrf.mxu0
    %3116 = vmatprep.mubr.f32.mxu0 0.0
    %3117 = vmatmul.mubr.f32.gmra.mxu0 %v2963
    %v3118 = vpop.f32.mrf.mxu0
    %v3119 = vadd.f32 0.0, %v3118
    %v3120 = vpop.f32.mrf.mxu0
    %3121 = vmatprep.mubr.f32.mxu0 0.0
    %3122 = vmatmul.mubr.f32.gmra.mxu0 %v2966
    %v3123 = vpop.f32.mrf.mxu0
    %v3124 = vadd.f32 0.0, %v3123
    %v3125 = vpop.f32.mrf.mxu0
    %3126 = vmatprep.mubr.f32.mxu0 0.0
    %3127 = vmatmul.mubr.f32.gmra.mxu0 %v2969
    %v3128 = vpop.f32.mrf.mxu0
    %v3129 = vadd.f32 0.0, %v3128
    %v3130 = vpop.f32.mrf.mxu0
    %3131 = vmatprep.mubr.f32.mxu0 0.0
    %3132 = vmatmul.mubr.f32.gmra.mxu0 %v2972
    %v3133 = vpop.f32.mrf.mxu0
    %v3134 = vadd.f32 0.0, %v3133
    %v3135 = vpop.f32.mrf.mxu0
    %3136 = vmatprep.mubr.f32.mxu0 0.0
    %3137 = vmatmul.mubr.f32.gmra.mxu0 %v2975
    %v3138 = vpop.f32.mrf.mxu0
    %v3139 = vadd.f32 0.0, %v3138
    %v3140 = vpop.f32.mrf.mxu0
    %3141 = vmatprep.mubr.f32.mxu0 0.0
    %3142 = vmatmul.mubr.f32.gmra.mxu0 %v2978
    %v3143 = vpop.f32.mrf.mxu0
    %v3144 = vadd.f32 0.0, %v3143
    %v3145 = vpop.f32.mrf.mxu0
    %3146 = vmatprep.mubr.f32.mxu0 0.0
    %3147 = vmatmul.mubr.f32.gmra.mxu0 %v2981
    %v3148 = vpop.f32.mrf.mxu0
    %v3149 = vadd.f32 0.0, %v3148
    %v3150 = vpop.f32.mrf.mxu0
    %3151 = vmatprep.mubr.f32.mxu0 0.0
    %3152 = vmatmul.mubr.f32.gmra.mxu0 %v2984
    %v3153 = vpop.f32.mrf.mxu0
    %v3154 = vadd.f32 0.0, %v3153
    %v3155 = vpop.f32.mrf.mxu0
    %3156 = vmatprep.mubr.f32.mxu0 0.0
    %3157 = vmatmul.mubr.f32.gmra.mxu0 %v2987
    %v3158 = vpop.f32.mrf.mxu0
    %v3159 = vadd.f32 0.0, %v3158
    %v3160 = vpop.f32.mrf.mxu0
    %3161 = vmatprep.mubr.f32.mxu0 0.0
    %3162 = vmatmul.mubr.f32.gmra.mxu0 %v2990
    %v3163 = vpop.f32.mrf.mxu0
    %v3164 = vadd.f32 0.0, %v3163
    %v3165 = vpop.f32.mrf.mxu0
    %3166 = vmatprep.mubr.f32.mxu0 0.0
    %3167 = vmatmul.mubr.f32.gmra.mxu0 %v2993
    %v3168 = vpop.f32.mrf.mxu0
    %v3169 = vadd.f32 0.0, %v3168
    %v3170 = vpop.f32.mrf.mxu0
    %3171 = vdwg.mxu0
    %v3172 = vadd.f32 %v2929, %v3094
    %v3173 = vadd.f32 %v2930, %v3099
    %v3174 = vadd.f32 %v2931, %v3104
    %v3175 = vadd.f32 %v2932, %v3109
    %v3176 = vadd.f32 %v2933, %v3114
    %v3177 = vadd.f32 %v2934, %v3119
    %v3178 = vadd.f32 %v2935, %v3124
    %v3179 = vadd.f32 %v2936, %v3129
    %v3180 = vadd.f32 %v2937, %v3134
    %v3181 = vadd.f32 %v2938, %v3139
    %v3182 = vadd.f32 %v2939, %v3144
    %v3183 = vadd.f32 %v2940, %v3149
    %v3184 = vadd.f32 %v2941, %v3154
    %v3185 = vadd.f32 %v2942, %v3159
    %v3186 = vadd.f32 %v2943, %v3164
    %v3187 = vadd.f32 %v2944, %v3169
    %vm3188 = vcmask 1043456
    %v3189 = vrot.slane %v2234, 4
    %v3190 = vrot.slane %v2235, 4
    %v3191 = vsel %vm3188, %v3189, %v3190
    %v3192 = vrot.slane %v2236, 4
    %v3193 = vrot.slane %v2237, 4
    %v3194 = vsel %vm3188, %v3192, %v3193
    %v3195 = vrot.slane %v2238, 4
    %v3196 = vrot.slane %v2239, 4
    %v3197 = vsel %vm3188, %v3195, %v3196
    %v3198 = vrot.slane %v2240, 4
    %v3199 = vrot.slane %v2241, 4
    %v3200 = vsel %vm3188, %v3198, %v3199
    %v3201 = vrot.slane %v2242, 4
    %v3202 = vrot.slane %v2243, 4
    %v3203 = vsel %vm3188, %v3201, %v3202
    %v3204 = vrot.slane %v2244, 4
    %v3205 = vrot.slane %v2245, 4
    %v3206 = vsel %vm3188, %v3204, %v3205
    %v3207 = vrot.slane %v2246, 4
    %v3208 = vrot.slane %v2247, 4
    %v3209 = vsel %vm3188, %v3207, %v3208
    %v3210 = vrot.slane %v2248, 4
    %v3211 = vrot.slane %v2249, 4
    %v3212 = vsel %vm3188, %v3210, %v3211
    %v3213 = vrot.slane %v2258, 4
    %v3214 = vrot.slane %v2259, 4
    %v3215 = vsel %vm3188, %v3213, %v3214
    %v3216 = vrot.slane %v2260, 4
    %v3217 = vrot.slane %v2261, 4
    %v3218 = vsel %vm3188, %v3216, %v3217
    %v3219 = vrot.slane %v2262, 4
    %v3220 = vrot.slane %v2263, 4
    %v3221 = vsel %vm3188, %v3219, %v3220
    %v3222 = vrot.slane %v2264, 4
    %v3223 = vrot.slane %v2265, 4
    %v3224 = vsel %vm3188, %v3222, %v3223
    %v3225 = vrot.slane %v2266, 4
    %v3226 = vrot.slane %v2267, 4
    %v3227 = vsel %vm3188, %v3225, %v3226
    %v3228 = vrot.slane %v2268, 4
    %v3229 = vrot.slane %v2269, 4
    %v3230 = vsel %vm3188, %v3228, %v3229
    %v3231 = vrot.slane %v2270, 4
    %v3232 = vrot.slane %v2271, 4
    %v3233 = vsel %vm3188, %v3231, %v3232
    %v3234 = vrot.slane %v2272, 4
    %v3235 = vrot.slane %v2273, 4
    %v3236 = vsel %vm3188, %v3234, %v3235
    %s3253 = scalar_lea.vmem %s3, 512
    %v3254 = vld [vmem:[%s3253] sm:$0xff]
    %v3255 = vld [vmem:[%s3253 + $0x8] sm:$0xff]
    %v3256 = vld [vmem:[%s3253 + $0x10] sm:$0xff]
    %v3257 = vld [vmem:[%s3253 + $0x18] sm:$0xff]
    %v3258 = vld [vmem:[%s3253 + $0x20] sm:$0xff]
    %v3259 = vld [vmem:[%s3253 + $0x28] sm:$0xff]
    %v3260 = vld [vmem:[%s3253 + $0x30] sm:$0xff]
    %v3261 = vld [vmem:[%s3253 + $0x38] sm:$0xff]
    %v3262 = vld [vmem:[%s3253 + $0x40] sm:$0xff]
    %v3263 = vld [vmem:[%s3253 + $0x48] sm:$0xff]
    %v3264 = vld [vmem:[%s3253 + $0x50] sm:$0xff]
    %v3265 = vld [vmem:[%s3253 + $0x58] sm:$0xff]
    %v3266 = vld [vmem:[%s3253 + $0x60] sm:$0xff]
    %v3267 = vld [vmem:[%s3253 + $0x68] sm:$0xff]
    %v3268 = vld [vmem:[%s3253 + $0x70] sm:$0xff]
    %v3269 = vld [vmem:[%s3253 + $0x78] sm:$0xff]
    %3270 = vmatprep.subr.mxu0 0.0
    %3271 = vmatpush1.msra.mxu0 %v3269
    %3272 = vmatprep.subr.mxu0 0.0
    %3273 = vmatpush1.msra.mxu0 %v3268
    %3274 = vmatprep.subr.mxu0 0.0
    %3275 = vmatpush1.msra.mxu0 %v3267
    %3276 = vmatprep.subr.mxu0 0.0
    %3277 = vmatpush1.msra.mxu0 %v3266
    %3278 = vmatprep.subr.mxu0 0.0
    %3279 = vmatpush1.msra.mxu0 %v3265
    %3280 = vmatprep.subr.mxu0 0.0
    %3281 = vmatpush1.msra.mxu0 %v3264
    %3282 = vmatprep.subr.mxu0 0.0
    %3283 = vmatpush1.msra.mxu0 %v3263
    %3284 = vmatprep.subr.mxu0 0.0
    %3285 = vmatpush1.msra.mxu0 %v3262
    %3286 = vmatprep.subr.mxu0 0.0
    %3287 = vmatpush1.msra.mxu0 %v3261
    %3288 = vmatprep.subr.mxu0 0.0
    %3289 = vmatpush1.msra.mxu0 %v3260
    %3290 = vmatprep.subr.mxu0 0.0
    %3291 = vmatpush1.msra.mxu0 %v3259
    %3292 = vmatprep.subr.mxu0 0.0
    %3293 = vmatpush1.msra.mxu0 %v3258
    %3294 = vmatprep.subr.mxu0 0.0
    %3295 = vmatpush1.msra.mxu0 %v3257
    %3296 = vmatprep.subr.mxu0 0.0
    %3297 = vmatpush1.msra.mxu0 %v3256
    %3298 = vmatprep.subr.mxu0 0.0
    %3299 = vmatpush1.msra.mxu0 %v3255
    %3300 = vmatprep.subr.mxu0 0.0
    %3301 = vmatpush1.msra.mxu0 %v3254
    %3302 = vmatprep.subr.mxu0 0.0
    %3303 = vmatpush2.msra.mxu0 0.0
    %3304 = vmatprep.subr.mxu0 0.0
    %3305 = vmatpush2.msra.mxu0 0.0
    %3306 = vmatprep.subr.mxu0 0.0
    %3307 = vmatpush2.msra.mxu0 0.0
    %3308 = vmatprep.subr.mxu0 0.0
    %3309 = vmatpush2.msra.mxu0 0.0
    %3310 = vmatprep.subr.mxu0 0.0
    %3311 = vmatpush2.msra.mxu0 0.0
    %3312 = vmatprep.subr.mxu0 0.0
    %3313 = vmatpush2.msra.mxu0 0.0
    %3314 = vmatprep.subr.mxu0 0.0
    %3315 = vmatpush2.msra.mxu0 0.0
    %3316 = vmatprep.subr.mxu0 0.0
    %3317 = vmatpush2.msra.mxu0 0.0
    %3318 = vmatprep.subr.mxu0 0.0
    %3319 = vmatpush2.msra.mxu0 0.0
    %3320 = vmatprep.subr.mxu0 0.0
    %3321 = vmatpush2.msra.mxu0 0.0
    %3322 = vmatprep.subr.mxu0 0.0
    %3323 = vmatpush2.msra.mxu0 0.0
    %3324 = vmatprep.subr.mxu0 0.0
    %3325 = vmatpush2.msra.mxu0 0.0
    %3326 = vmatprep.subr.mxu0 0.0
    %3327 = vmatpush2.msra.mxu0 0.0
    %3328 = vmatprep.subr.mxu0 0.0
    %3329 = vmatpush2.msra.mxu0 0.0
    %3330 = vmatprep.subr.mxu0 0.0
    %3331 = vmatpush2.msra.mxu0 0.0
    %3332 = vmatprep.subr.mxu0 0.0
    %3333 = vmatpush2.msra.mxu0 0.0
    %3334 = vmatprep.mubr.f32.mxu0 0.0
    %3335 = vmatmul.mubr.f32.gmra.mxu0 %v3191
    %v3336 = vpop.f32.mrf.mxu0
    %v3337 = vadd.f32 0.0, %v3336
    %v3338 = vpop.f32.mrf.mxu0
    %3339 = vmatprep.mubr.f32.mxu0 0.0
    %3340 = vmatmul.mubr.f32.gmra.mxu0 %v3194
    %v3341 = vpop.f32.mrf.mxu0
    %v3342 = vadd.f32 0.0, %v3341
    %v3343 = vpop.f32.mrf.mxu0
    %3344 = vmatprep.mubr.f32.mxu0 0.0
    %3345 = vmatmul.mubr.f32.gmra.mxu0 %v3197
    %v3346 = vpop.f32.mrf.mxu0
    %v3347 = vadd.f32 0.0, %v3346
    %v3348 = vpop.f32.mrf.mxu0
    %3349 = vmatprep.mubr.f32.mxu0 0.0
    %3350 = vmatmul.mubr.f32.gmra.mxu0 %v3200
    %v3351 = vpop.f32.mrf.mxu0
    %v3352 = vadd.f32 0.0, %v3351
    %v3353 = vpop.f32.mrf.mxu0
    %3354 = vmatprep.mubr.f32.mxu0 0.0
    %3355 = vmatmul.mubr.f32.gmra.mxu0 %v3203
    %v3356 = vpop.f32.mrf.mxu0
    %v3357 = vadd.f32 0.0, %v3356
    %v3358 = vpop.f32.mrf.mxu0
    %3359 = vmatprep.mubr.f32.mxu0 0.0
    %3360 = vmatmul.mubr.f32.gmra.mxu0 %v3206
    %v3361 = vpop.f32.mrf.mxu0
    %v3362 = vadd.f32 0.0, %v3361
    %v3363 = vpop.f32.mrf.mxu0
    %3364 = vmatprep.mubr.f32.mxu0 0.0
    %3365 = vmatmul.mubr.f32.gmra.mxu0 %v3209
    %v3366 = vpop.f32.mrf.mxu0
    %v3367 = vadd.f32 0.0, %v3366
    %v3368 = vpop.f32.mrf.mxu0
    %3369 = vmatprep.mubr.f32.mxu0 0.0
    %3370 = vmatmul.mubr.f32.gmra.mxu0 %v3212
    %v3371 = vpop.f32.mrf.mxu0
    %v3372 = vadd.f32 0.0, %v3371
    %v3373 = vpop.f32.mrf.mxu0
    %3374 = vmatprep.mubr.f32.mxu0 0.0
    %3375 = vmatmul.mubr.f32.gmra.mxu0 %v3215
    %v3376 = vpop.f32.mrf.mxu0
    %v3377 = vadd.f32 0.0, %v3376
    %v3378 = vpop.f32.mrf.mxu0
    %3379 = vmatprep.mubr.f32.mxu0 0.0
    %3380 = vmatmul.mubr.f32.gmra.mxu0 %v3218
    %v3381 = vpop.f32.mrf.mxu0
    %v3382 = vadd.f32 0.0, %v3381
    %v3383 = vpop.f32.mrf.mxu0
    %3384 = vmatprep.mubr.f32.mxu0 0.0
    %3385 = vmatmul.mubr.f32.gmra.mxu0 %v3221
    %v3386 = vpop.f32.mrf.mxu0
    %v3387 = vadd.f32 0.0, %v3386
    %v3388 = vpop.f32.mrf.mxu0
    %3389 = vmatprep.mubr.f32.mxu0 0.0
    %3390 = vmatmul.mubr.f32.gmra.mxu0 %v3224
    %v3391 = vpop.f32.mrf.mxu0
    %v3392 = vadd.f32 0.0, %v3391
    %v3393 = vpop.f32.mrf.mxu0
    %3394 = vmatprep.mubr.f32.mxu0 0.0
    %3395 = vmatmul.mubr.f32.gmra.mxu0 %v3227
    %v3396 = vpop.f32.mrf.mxu0
    %v3397 = vadd.f32 0.0, %v3396
    %v3398 = vpop.f32.mrf.mxu0
    %3399 = vmatprep.mubr.f32.mxu0 0.0
    %3400 = vmatmul.mubr.f32.gmra.mxu0 %v3230
    %v3401 = vpop.f32.mrf.mxu0
    %v3402 = vadd.f32 0.0, %v3401
    %v3403 = vpop.f32.mrf.mxu0
    %3404 = vmatprep.mubr.f32.mxu0 0.0
    %3405 = vmatmul.mubr.f32.gmra.mxu0 %v3233
    %v3406 = vpop.f32.mrf.mxu0
    %v3407 = vadd.f32 0.0, %v3406
    %v3408 = vpop.f32.mrf.mxu0
    %3409 = vmatprep.mubr.f32.mxu0 0.0
    %3410 = vmatmul.mubr.f32.gmra.mxu0 %v3236
    %v3411 = vpop.f32.mrf.mxu0
    %v3412 = vadd.f32 0.0, %v3411
    %v3413 = vpop.f32.mrf.mxu0
    %3414 = vdwg.mxu0
    %v3415 = vadd.f32 %v3172, %v3337
    %v3416 = vadd.f32 %v3173, %v3342
    %v3417 = vadd.f32 %v3174, %v3347
    %v3418 = vadd.f32 %v3175, %v3352
    %v3419 = vadd.f32 %v3176, %v3357
    %v3420 = vadd.f32 %v3177, %v3362
    %v3421 = vadd.f32 %v3178, %v3367
    %v3422 = vadd.f32 %v3179, %v3372
    %v3423 = vadd.f32 %v3180, %v3377
    %v3424 = vadd.f32 %v3181, %v3382
    %v3425 = vadd.f32 %v3182, %v3387
    %v3426 = vadd.f32 %v3183, %v3392
    %v3427 = vadd.f32 %v3184, %v3397
    %v3428 = vadd.f32 %v3185, %v3402
    %v3429 = vadd.f32 %v3186, %v3407
    %v3430 = vadd.f32 %v3187, %v3412
    %s3431 = scalar_lea.vmem %s3, 640
    %v3432 = vld [vmem:[%s3431] sm:$0xff]
    %v3433 = vld [vmem:[%s3431 + $0x8] sm:$0xff]
    %v3434 = vld [vmem:[%s3431 + $0x10] sm:$0xff]
    %v3435 = vld [vmem:[%s3431 + $0x18] sm:$0xff]
    %v3436 = vld [vmem:[%s3431 + $0x20] sm:$0xff]
    %v3437 = vld [vmem:[%s3431 + $0x28] sm:$0xff]
    %v3438 = vld [vmem:[%s3431 + $0x30] sm:$0xff]
    %v3439 = vld [vmem:[%s3431 + $0x38] sm:$0xff]
    %v3440 = vld [vmem:[%s3431 + $0x40] sm:$0xff]
    %v3441 = vld [vmem:[%s3431 + $0x48] sm:$0xff]
    %v3442 = vld [vmem:[%s3431 + $0x50] sm:$0xff]
    %v3443 = vld [vmem:[%s3431 + $0x58] sm:$0xff]
    %v3444 = vld [vmem:[%s3431 + $0x60] sm:$0xff]
    %v3445 = vld [vmem:[%s3431 + $0x68] sm:$0xff]
    %v3446 = vld [vmem:[%s3431 + $0x70] sm:$0xff]
    %v3447 = vld [vmem:[%s3431 + $0x78] sm:$0xff]
    %3448 = vmatprep.subr.mxu0 0.0
    %3449 = vmatpush1.msra.mxu0 %v3447
    %3450 = vmatprep.subr.mxu0 0.0
    %3451 = vmatpush1.msra.mxu0 %v3446
    %3452 = vmatprep.subr.mxu0 0.0
    %3453 = vmatpush1.msra.mxu0 %v3445
    %3454 = vmatprep.subr.mxu0 0.0
    %3455 = vmatpush1.msra.mxu0 %v3444
    %3456 = vmatprep.subr.mxu0 0.0
    %3457 = vmatpush1.msra.mxu0 %v3443
    %3458 = vmatprep.subr.mxu0 0.0
    %3459 = vmatpush1.msra.mxu0 %v3442
    %3460 = vmatprep.subr.mxu0 0.0
    %3461 = vmatpush1.msra.mxu0 %v3441
    %3462 = vmatprep.subr.mxu0 0.0
    %3463 = vmatpush1.msra.mxu0 %v3440
    %3464 = vmatprep.subr.mxu0 0.0
    %3465 = vmatpush1.msra.mxu0 %v3439
    %3466 = vmatprep.subr.mxu0 0.0
    %3467 = vmatpush1.msra.mxu0 %v3438
    %3468 = vmatprep.subr.mxu0 0.0
    %3469 = vmatpush1.msra.mxu0 %v3437
    %3470 = vmatprep.subr.mxu0 0.0
    %3471 = vmatpush1.msra.mxu0 %v3436
    %3472 = vmatprep.subr.mxu0 0.0
    %3473 = vmatpush1.msra.mxu0 %v3435
    %3474 = vmatprep.subr.mxu0 0.0
    %3475 = vmatpush1.msra.mxu0 %v3434
    %3476 = vmatprep.subr.mxu0 0.0
    %3477 = vmatpush1.msra.mxu0 %v3433
    %3478 = vmatprep.subr.mxu0 0.0
    %3479 = vmatpush1.msra.mxu0 %v3432
    %3480 = vmatprep.subr.mxu0 0.0
    %3481 = vmatpush2.msra.mxu0 0.0
    %3482 = vmatprep.subr.mxu0 0.0
    %3483 = vmatpush2.msra.mxu0 0.0
    %3484 = vmatprep.subr.mxu0 0.0
    %3485 = vmatpush2.msra.mxu0 0.0
    %3486 = vmatprep.subr.mxu0 0.0
    %3487 = vmatpush2.msra.mxu0 0.0
    %3488 = vmatprep.subr.mxu0 0.0
    %3489 = vmatpush2.msra.mxu0 0.0
    %3490 = vmatprep.subr.mxu0 0.0
    %3491 = vmatpush2.msra.mxu0 0.0
    %3492 = vmatprep.subr.mxu0 0.0
    %3493 = vmatpush2.msra.mxu0 0.0
    %3494 = vmatprep.subr.mxu0 0.0
    %3495 = vmatpush2.msra.mxu0 0.0
    %3496 = vmatprep.subr.mxu0 0.0
    %3497 = vmatpush2.msra.mxu0 0.0
    %3498 = vmatprep.subr.mxu0 0.0
    %3499 = vmatpush2.msra.mxu0 0.0
    %3500 = vmatprep.subr.mxu0 0.0
    %3501 = vmatpush2.msra.mxu0 0.0
    %3502 = vmatprep.subr.mxu0 0.0
    %3503 = vmatpush2.msra.mxu0 0.0
    %3504 = vmatprep.subr.mxu0 0.0
    %3505 = vmatpush2.msra.mxu0 0.0
    %3506 = vmatprep.subr.mxu0 0.0
    %3507 = vmatpush2.msra.mxu0 0.0
    %3508 = vmatprep.subr.mxu0 0.0
    %3509 = vmatpush2.msra.mxu0 0.0
    %3510 = vmatprep.subr.mxu0 0.0
    %3511 = vmatpush2.msra.mxu0 0.0
    %3512 = vmatprep.mubr.f32.mxu0 0.0
    %3513 = vmatmul.mubr.f32.gmra.mxu0 %v2236
    %v3514 = vpop.f32.mrf.mxu0
    %v3515 = vadd.f32 0.0, %v3514
    %v3516 = vpop.f32.mrf.mxu0
    %3517 = vmatprep.mubr.f32.mxu0 0.0
    %3518 = vmatmul.mubr.f32.gmra.mxu0 %v2238
    %v3519 = vpop.f32.mrf.mxu0
    %v3520 = vadd.f32 0.0, %v3519
    %v3521 = vpop.f32.mrf.mxu0
    %3522 = vmatprep.mubr.f32.mxu0 0.0
    %3523 = vmatmul.mubr.f32.gmra.mxu0 %v2240
    %v3524 = vpop.f32.mrf.mxu0
    %v3525 = vadd.f32 0.0, %v3524
    %v3526 = vpop.f32.mrf.mxu0
    %3527 = vmatprep.mubr.f32.mxu0 0.0
    %3528 = vmatmul.mubr.f32.gmra.mxu0 %v2242
    %v3529 = vpop.f32.mrf.mxu0
    %v3530 = vadd.f32 0.0, %v3529
    %v3531 = vpop.f32.mrf.mxu0
    %3532 = vmatprep.mubr.f32.mxu0 0.0
    %3533 = vmatmul.mubr.f32.gmra.mxu0 %v2244
    %v3534 = vpop.f32.mrf.mxu0
    %v3535 = vadd.f32 0.0, %v3534
    %v3536 = vpop.f32.mrf.mxu0
    %3537 = vmatprep.mubr.f32.mxu0 0.0
    %3538 = vmatmul.mubr.f32.gmra.mxu0 %v2246
    %v3539 = vpop.f32.mrf.mxu0
    %v3540 = vadd.f32 0.0, %v3539
    %v3541 = vpop.f32.mrf.mxu0
    %3542 = vmatprep.mubr.f32.mxu0 0.0
    %3543 = vmatmul.mubr.f32.gmra.mxu0 %v2248
    %v3544 = vpop.f32.mrf.mxu0
    %v3545 = vadd.f32 0.0, %v3544
    %v3546 = vpop.f32.mrf.mxu0
    %3547 = vmatprep.mubr.f32.mxu0 0.0
    %3548 = vmatmul.mubr.f32.gmra.mxu0 %v2250
    %v3549 = vpop.f32.mrf.mxu0
    %v3550 = vadd.f32 0.0, %v3549
    %v3551 = vpop.f32.mrf.mxu0
    %3552 = vmatprep.mubr.f32.mxu0 0.0
    %3553 = vmatmul.mubr.f32.gmra.mxu0 %v2260
    %v3554 = vpop.f32.mrf.mxu0
    %v3555 = vadd.f32 0.0, %v3554
    %v3556 = vpop.f32.mrf.mxu0
    %3557 = vmatprep.mubr.f32.mxu0 0.0
    %3558 = vmatmul.mubr.f32.gmra.mxu0 %v2262
    %v3559 = vpop.f32.mrf.mxu0
    %v3560 = vadd.f32 0.0, %v3559
    %v3561 = vpop.f32.mrf.mxu0
    %3562 = vmatprep.mubr.f32.mxu0 0.0
    %3563 = vmatmul.mubr.f32.gmra.mxu0 %v2264
    %v3564 = vpop.f32.mrf.mxu0
    %v3565 = vadd.f32 0.0, %v3564
    %v3566 = vpop.f32.mrf.mxu0
    %3567 = vmatprep.mubr.f32.mxu0 0.0
    %3568 = vmatmul.mubr.f32.gmra.mxu0 %v2266
    %v3569 = vpop.f32.mrf.mxu0
    %v3570 = vadd.f32 0.0, %v3569
    %v3571 = vpop.f32.mrf.mxu0
    %3572 = vmatprep.mubr.f32.mxu0 0.0
    %3573 = vmatmul.mubr.f32.gmra.mxu0 %v2268
    %v3574 = vpop.f32.mrf.mxu0
    %v3575 = vadd.f32 0.0, %v3574
    %v3576 = vpop.f32.mrf.mxu0
    %3577 = vmatprep.mubr.f32.mxu0 0.0
    %3578 = vmatmul.mubr.f32.gmra.mxu0 %v2270
    %v3579 = vpop.f32.mrf.mxu0
    %v3580 = vadd.f32 0.0, %v3579
    %v3581 = vpop.f32.mrf.mxu0
    %3582 = vmatprep.mubr.f32.mxu0 0.0
    %3583 = vmatmul.mubr.f32.gmra.mxu0 %v2272
    %v3584 = vpop.f32.mrf.mxu0
    %v3585 = vadd.f32 0.0, %v3584
    %v3586 = vpop.f32.mrf.mxu0
    %3587 = vmatprep.mubr.f32.mxu0 0.0
    %3588 = vmatmul.mubr.f32.gmra.mxu0 %v2274
    %v3589 = vpop.f32.mrf.mxu0
    %v3590 = vadd.f32 0.0, %v3589
    %v3591 = vpop.f32.mrf.mxu0
    %3592 = vdwg.mxu0
    %v3593 = vadd.f32 %v3415, %v3515
    %v3594 = vadd.f32 %v3416, %v3520
    %v3595 = vadd.f32 %v3417, %v3525
    %v3596 = vadd.f32 %v3418, %v3530
    %v3597 = vadd.f32 %v3419, %v3535
    %v3598 = vadd.f32 %v3420, %v3540
    %v3599 = vadd.f32 %v3421, %v3545
    %v3600 = vadd.f32 %v3422, %v3550
    %v3601 = vadd.f32 %v3423, %v3555
    %v3602 = vadd.f32 %v3424, %v3560
    %v3603 = vadd.f32 %v3425, %v3565
    %v3604 = vadd.f32 %v3426, %v3570
    %v3605 = vadd.f32 %v3427, %v3575
    %v3606 = vadd.f32 %v3428, %v3580
    %v3607 = vadd.f32 %v3429, %v3585
    %v3608 = vadd.f32 %v3430, %v3590
    %v3613 = vrot.slane %v2250, 1
    %v3614 = vrot.slane %v2251, 1
    %v3615 = vsel %vm2330, %v3613, %v3614
    %v3616 = vrot.slane %v2274, 1
    %v3617 = vrot.slane %v2275, 1
    %v3618 = vsel %vm2330, %v3616, %v3617
    %s3621 = scalar_lea.vmem %s3, 768
    %v3622 = vld [vmem:[%s3621] sm:$0xff]
    %v3623 = vld [vmem:[%s3621 + $0x8] sm:$0xff]
    %v3624 = vld [vmem:[%s3621 + $0x10] sm:$0xff]
    %v3625 = vld [vmem:[%s3621 + $0x18] sm:$0xff]
    %v3626 = vld [vmem:[%s3621 + $0x20] sm:$0xff]
    %v3627 = vld [vmem:[%s3621 + $0x28] sm:$0xff]
    %v3628 = vld [vmem:[%s3621 + $0x30] sm:$0xff]
    %v3629 = vld [vmem:[%s3621 + $0x38] sm:$0xff]
    %v3630 = vld [vmem:[%s3621 + $0x40] sm:$0xff]
    %v3631 = vld [vmem:[%s3621 + $0x48] sm:$0xff]
    %v3632 = vld [vmem:[%s3621 + $0x50] sm:$0xff]
    %v3633 = vld [vmem:[%s3621 + $0x58] sm:$0xff]
    %v3634 = vld [vmem:[%s3621 + $0x60] sm:$0xff]
    %v3635 = vld [vmem:[%s3621 + $0x68] sm:$0xff]
    %v3636 = vld [vmem:[%s3621 + $0x70] sm:$0xff]
    %v3637 = vld [vmem:[%s3621 + $0x78] sm:$0xff]
    %3638 = vmatprep.subr.mxu0 0.0
    %3639 = vmatpush1.msra.mxu0 %v3637
    %3640 = vmatprep.subr.mxu0 0.0
    %3641 = vmatpush1.msra.mxu0 %v3636
    %3642 = vmatprep.subr.mxu0 0.0
    %3643 = vmatpush1.msra.mxu0 %v3635
    %3644 = vmatprep.subr.mxu0 0.0
    %3645 = vmatpush1.msra.mxu0 %v3634
    %3646 = vmatprep.subr.mxu0 0.0
    %3647 = vmatpush1.msra.mxu0 %v3633
    %3648 = vmatprep.subr.mxu0 0.0
    %3649 = vmatpush1.msra.mxu0 %v3632
    %3650 = vmatprep.subr.mxu0 0.0
    %3651 = vmatpush1.msra.mxu0 %v3631
    %3652 = vmatprep.subr.mxu0 0.0
    %3653 = vmatpush1.msra.mxu0 %v3630
    %3654 = vmatprep.subr.mxu0 0.0
    %3655 = vmatpush1.msra.mxu0 %v3629
    %3656 = vmatprep.subr.mxu0 0.0
    %3657 = vmatpush1.msra.mxu0 %v3628
    %3658 = vmatprep.subr.mxu0 0.0
    %3659 = vmatpush1.msra.mxu0 %v3627
    %3660 = vmatprep.subr.mxu0 0.0
    %3661 = vmatpush1.msra.mxu0 %v3626
    %3662 = vmatprep.subr.mxu0 0.0
    %3663 = vmatpush1.msra.mxu0 %v3625
    %3664 = vmatprep.subr.mxu0 0.0
    %3665 = vmatpush1.msra.mxu0 %v3624
    %3666 = vmatprep.subr.mxu0 0.0
    %3667 = vmatpush1.msra.mxu0 %v3623
    %3668 = vmatprep.subr.mxu0 0.0
    %3669 = vmatpush1.msra.mxu0 %v3622
    %3670 = vmatprep.subr.mxu0 0.0
    %3671 = vmatpush2.msra.mxu0 0.0
    %3672 = vmatprep.subr.mxu0 0.0
    %3673 = vmatpush2.msra.mxu0 0.0
    %3674 = vmatprep.subr.mxu0 0.0
    %3675 = vmatpush2.msra.mxu0 0.0
    %3676 = vmatprep.subr.mxu0 0.0
    %3677 = vmatpush2.msra.mxu0 0.0
    %3678 = vmatprep.subr.mxu0 0.0
    %3679 = vmatpush2.msra.mxu0 0.0
    %3680 = vmatprep.subr.mxu0 0.0
    %3681 = vmatpush2.msra.mxu0 0.0
    %3682 = vmatprep.subr.mxu0 0.0
    %3683 = vmatpush2.msra.mxu0 0.0
    %3684 = vmatprep.subr.mxu0 0.0
    %3685 = vmatpush2.msra.mxu0 0.0
    %3686 = vmatprep.subr.mxu0 0.0
    %3687 = vmatpush2.msra.mxu0 0.0
    %3688 = vmatprep.subr.mxu0 0.0
    %3689 = vmatpush2.msra.mxu0 0.0
    %3690 = vmatprep.subr.mxu0 0.0
    %3691 = vmatpush2.msra.mxu0 0.0
    %3692 = vmatprep.subr.mxu0 0.0
    %3693 = vmatpush2.msra.mxu0 0.0
    %3694 = vmatprep.subr.mxu0 0.0
    %3695 = vmatpush2.msra.mxu0 0.0
    %3696 = vmatprep.subr.mxu0 0.0
    %3697 = vmatpush2.msra.mxu0 0.0
    %3698 = vmatprep.subr.mxu0 0.0
    %3699 = vmatpush2.msra.mxu0 0.0
    %3700 = vmatprep.subr.mxu0 0.0
    %3701 = vmatpush2.msra.mxu0 0.0
    %3702 = vmatprep.mubr.f32.mxu0 0.0
    %3703 = vmatmul.mubr.f32.gmra.mxu0 %v2336
    %v3704 = vpop.f32.mrf.mxu0
    %v3705 = vadd.f32 0.0, %v3704
    %v3706 = vpop.f32.mrf.mxu0
    %3707 = vmatprep.mubr.f32.mxu0 0.0
    %3708 = vmatmul.mubr.f32.gmra.mxu0 %v2339
    %v3709 = vpop.f32.mrf.mxu0
    %v3710 = vadd.f32 0.0, %v3709
    %v3711 = vpop.f32.mrf.mxu0
    %3712 = vmatprep.mubr.f32.mxu0 0.0
    %3713 = vmatmul.mubr.f32.gmra.mxu0 %v2342
    %v3714 = vpop.f32.mrf.mxu0
    %v3715 = vadd.f32 0.0, %v3714
    %v3716 = vpop.f32.mrf.mxu0
    %3717 = vmatprep.mubr.f32.mxu0 0.0
    %3718 = vmatmul.mubr.f32.gmra.mxu0 %v2345
    %v3719 = vpop.f32.mrf.mxu0
    %v3720 = vadd.f32 0.0, %v3719
    %v3721 = vpop.f32.mrf.mxu0
    %3722 = vmatprep.mubr.f32.mxu0 0.0
    %3723 = vmatmul.mubr.f32.gmra.mxu0 %v2348
    %v3724 = vpop.f32.mrf.mxu0
    %v3725 = vadd.f32 0.0, %v3724
    %v3726 = vpop.f32.mrf.mxu0
    %3727 = vmatprep.mubr.f32.mxu0 0.0
    %3728 = vmatmul.mubr.f32.gmra.mxu0 %v2351
    %v3729 = vpop.f32.mrf.mxu0
    %v3730 = vadd.f32 0.0, %v3729
    %v3731 = vpop.f32.mrf.mxu0
    %3732 = vmatprep.mubr.f32.mxu0 0.0
    %3733 = vmatmul.mubr.f32.gmra.mxu0 %v2354
    %v3734 = vpop.f32.mrf.mxu0
    %v3735 = vadd.f32 0.0, %v3734
    %v3736 = vpop.f32.mrf.mxu0
    %3737 = vmatprep.mubr.f32.mxu0 0.0
    %3738 = vmatmul.mubr.f32.gmra.mxu0 %v3615
    %v3739 = vpop.f32.mrf.mxu0
    %v3740 = vadd.f32 0.0, %v3739
    %v3741 = vpop.f32.mrf.mxu0
    %3742 = vmatprep.mubr.f32.mxu0 0.0
    %3743 = vmatmul.mubr.f32.gmra.mxu0 %v2360
    %v3744 = vpop.f32.mrf.mxu0
    %v3745 = vadd.f32 0.0, %v3744
    %v3746 = vpop.f32.mrf.mxu0
    %3747 = vmatprep.mubr.f32.mxu0 0.0
    %3748 = vmatmul.mubr.f32.gmra.mxu0 %v2363
    %v3749 = vpop.f32.mrf.mxu0
    %v3750 = vadd.f32 0.0, %v3749
    %v3751 = vpop.f32.mrf.mxu0
    %3752 = vmatprep.mubr.f32.mxu0 0.0
    %3753 = vmatmul.mubr.f32.gmra.mxu0 %v2366
    %v3754 = vpop.f32.mrf.mxu0
    %v3755 = vadd.f32 0.0, %v3754
    %v3756 = vpop.f32.mrf.mxu0
    %3757 = vmatprep.mubr.f32.mxu0 0.0
    %3758 = vmatmul.mubr.f32.gmra.mxu0 %v2369
    %v3759 = vpop.f32.mrf.mxu0
    %v3760 = vadd.f32 0.0, %v3759
    %v3761 = vpop.f32.mrf.mxu0
    %3762 = vmatprep.mubr.f32.mxu0 0.0
    %3763 = vmatmul.mubr.f32.gmra.mxu0 %v2372
    %v3764 = vpop.f32.mrf.mxu0
    %v3765 = vadd.f32 0.0, %v3764
    %v3766 = vpop.f32.mrf.mxu0
    %3767 = vmatprep.mubr.f32.mxu0 0.0
    %3768 = vmatmul.mubr.f32.gmra.mxu0 %v2375
    %v3769 = vpop.f32.mrf.mxu0
    %v3770 = vadd.f32 0.0, %v3769
    %v3771 = vpop.f32.mrf.mxu0
    %3772 = vmatprep.mubr.f32.mxu0 0.0
    %3773 = vmatmul.mubr.f32.gmra.mxu0 %v2378
    %v3774 = vpop.f32.mrf.mxu0
    %v3775 = vadd.f32 0.0, %v3774
    %v3776 = vpop.f32.mrf.mxu0
    %3777 = vmatprep.mubr.f32.mxu0 0.0
    %3778 = vmatmul.mubr.f32.gmra.mxu0 %v3618
    %v3779 = vpop.f32.mrf.mxu0
    %v3780 = vadd.f32 0.0, %v3779
    %v3781 = vpop.f32.mrf.mxu0
    %3782 = vdwg.mxu0
    %v3783 = vadd.f32 %v3593, %v3705
    %v3784 = vadd.f32 %v3594, %v3710
    %v3785 = vadd.f32 %v3595, %v3715
    %v3786 = vadd.f32 %v3596, %v3720
    %v3787 = vadd.f32 %v3597, %v3725
    %v3788 = vadd.f32 %v3598, %v3730
    %v3789 = vadd.f32 %v3599, %v3735
    %v3790 = vadd.f32 %v3600, %v3740
    %v3791 = vadd.f32 %v3601, %v3745
    %v3792 = vadd.f32 %v3602, %v3750
    %v3793 = vadd.f32 %v3603, %v3755
    %v3794 = vadd.f32 %v3604, %v3760
    %v3795 = vadd.f32 %v3605, %v3765
    %v3796 = vadd.f32 %v3606, %v3770
    %v3797 = vadd.f32 %v3607, %v3775
    %v3798 = vadd.f32 %v3608, %v3780
    %v3799 = vrot.slane %v2250, 2
    %v3800 = vrot.slane %v2251, 2
    %v3801 = vsel %vm2702, %v3799, %v3800
    %v3802 = vrot.slane %v2274, 2
    %v3803 = vrot.slane %v2275, 2
    %v3804 = vsel %vm2702, %v3802, %v3803
    %s3807 = scalar_lea.vmem %s3, 896
    %v3808 = vld [vmem:[%s3807] sm:$0xff]
    %v3809 = vld [vmem:[%s3807 + $0x8] sm:$0xff]
    %v3810 = vld [vmem:[%s3807 + $0x10] sm:$0xff]
    %v3811 = vld [vmem:[%s3807 + $0x18] sm:$0xff]
    %v3812 = vld [vmem:[%s3807 + $0x20] sm:$0xff]
    %v3813 = vld [vmem:[%s3807 + $0x28] sm:$0xff]
    %v3814 = vld [vmem:[%s3807 + $0x30] sm:$0xff]
    %v3815 = vld [vmem:[%s3807 + $0x38] sm:$0xff]
    %v3816 = vld [vmem:[%s3807 + $0x40] sm:$0xff]
    %v3817 = vld [vmem:[%s3807 + $0x48] sm:$0xff]
    %v3818 = vld [vmem:[%s3807 + $0x50] sm:$0xff]
    %v3819 = vld [vmem:[%s3807 + $0x58] sm:$0xff]
    %v3820 = vld [vmem:[%s3807 + $0x60] sm:$0xff]
    %v3821 = vld [vmem:[%s3807 + $0x68] sm:$0xff]
    %v3822 = vld [vmem:[%s3807 + $0x70] sm:$0xff]
    %v3823 = vld [vmem:[%s3807 + $0x78] sm:$0xff]
    %3824 = vmatprep.subr.mxu0 0.0
    %3825 = vmatpush1.msra.mxu0 %v3823
    %3826 = vmatprep.subr.mxu0 0.0
    %3827 = vmatpush1.msra.mxu0 %v3822
    %3828 = vmatprep.subr.mxu0 0.0
    %3829 = vmatpush1.msra.mxu0 %v3821
    %3830 = vmatprep.subr.mxu0 0.0
    %3831 = vmatpush1.msra.mxu0 %v3820
    %3832 = vmatprep.subr.mxu0 0.0
    %3833 = vmatpush1.msra.mxu0 %v3819
    %3834 = vmatprep.subr.mxu0 0.0
    %3835 = vmatpush1.msra.mxu0 %v3818
    %3836 = vmatprep.subr.mxu0 0.0
    %3837 = vmatpush1.msra.mxu0 %v3817
    %3838 = vmatprep.subr.mxu0 0.0
    %3839 = vmatpush1.msra.mxu0 %v3816
    %3840 = vmatprep.subr.mxu0 0.0
    %3841 = vmatpush1.msra.mxu0 %v3815
    %3842 = vmatprep.subr.mxu0 0.0
    %3843 = vmatpush1.msra.mxu0 %v3814
    %3844 = vmatprep.subr.mxu0 0.0
    %3845 = vmatpush1.msra.mxu0 %v3813
    %3846 = vmatprep.subr.mxu0 0.0
    %3847 = vmatpush1.msra.mxu0 %v3812
    %3848 = vmatprep.subr.mxu0 0.0
    %3849 = vmatpush1.msra.mxu0 %v3811
    %3850 = vmatprep.subr.mxu0 0.0
    %3851 = vmatpush1.msra.mxu0 %v3810
    %3852 = vmatprep.subr.mxu0 0.0
    %3853 = vmatpush1.msra.mxu0 %v3809
    %3854 = vmatprep.subr.mxu0 0.0
    %3855 = vmatpush1.msra.mxu0 %v3808
    %3856 = vmatprep.subr.mxu0 0.0
    %3857 = vmatpush2.msra.mxu0 0.0
    %3858 = vmatprep.subr.mxu0 0.0
    %3859 = vmatpush2.msra.mxu0 0.0
    %3860 = vmatprep.subr.mxu0 0.0
    %3861 = vmatpush2.msra.mxu0 0.0
    %3862 = vmatprep.subr.mxu0 0.0
    %3863 = vmatpush2.msra.mxu0 0.0
    %3864 = vmatprep.subr.mxu0 0.0
    %3865 = vmatpush2.msra.mxu0 0.0
    %3866 = vmatprep.subr.mxu0 0.0
    %3867 = vmatpush2.msra.mxu0 0.0
    %3868 = vmatprep.subr.mxu0 0.0
    %3869 = vmatpush2.msra.mxu0 0.0
    %3870 = vmatprep.subr.mxu0 0.0
    %3871 = vmatpush2.msra.mxu0 0.0
    %3872 = vmatprep.subr.mxu0 0.0
    %3873 = vmatpush2.msra.mxu0 0.0
    %3874 = vmatprep.subr.mxu0 0.0
    %3875 = vmatpush2.msra.mxu0 0.0
    %3876 = vmatprep.subr.mxu0 0.0
    %3877 = vmatpush2.msra.mxu0 0.0
    %3878 = vmatprep.subr.mxu0 0.0
    %3879 = vmatpush2.msra.mxu0 0.0
    %3880 = vmatprep.subr.mxu0 0.0
    %3881 = vmatpush2.msra.mxu0 0.0
    %3882 = vmatprep.subr.mxu0 0.0
    %3883 = vmatpush2.msra.mxu0 0.0
    %3884 = vmatprep.subr.mxu0 0.0
    %3885 = vmatpush2.msra.mxu0 0.0
    %3886 = vmatprep.subr.mxu0 0.0
    %3887 = vmatpush2.msra.mxu0 0.0
    %3888 = vmatprep.mubr.f32.mxu0 0.0
    %3889 = vmatmul.mubr.f32.gmra.mxu0 %v2708
    %v3890 = vpop.f32.mrf.mxu0
    %v3891 = vadd.f32 0.0, %v3890
    %v3892 = vpop.f32.mrf.mxu0
    %3893 = vmatprep.mubr.f32.mxu0 0.0
    %3894 = vmatmul.mubr.f32.gmra.mxu0 %v2711
    %v3895 = vpop.f32.mrf.mxu0
    %v3896 = vadd.f32 0.0, %v3895
    %v3897 = vpop.f32.mrf.mxu0
    %3898 = vmatprep.mubr.f32.mxu0 0.0
    %3899 = vmatmul.mubr.f32.gmra.mxu0 %v2714
    %v3900 = vpop.f32.mrf.mxu0
    %v3901 = vadd.f32 0.0, %v3900
    %v3902 = vpop.f32.mrf.mxu0
    %3903 = vmatprep.mubr.f32.mxu0 0.0
    %3904 = vmatmul.mubr.f32.gmra.mxu0 %v2717
    %v3905 = vpop.f32.mrf.mxu0
    %v3906 = vadd.f32 0.0, %v3905
    %v3907 = vpop.f32.mrf.mxu0
    %3908 = vmatprep.mubr.f32.mxu0 0.0
    %3909 = vmatmul.mubr.f32.gmra.mxu0 %v2720
    %v3910 = vpop.f32.mrf.mxu0
    %v3911 = vadd.f32 0.0, %v3910
    %v3912 = vpop.f32.mrf.mxu0
    %3913 = vmatprep.mubr.f32.mxu0 0.0
    %3914 = vmatmul.mubr.f32.gmra.mxu0 %v2723
    %v3915 = vpop.f32.mrf.mxu0
    %v3916 = vadd.f32 0.0, %v3915
    %v3917 = vpop.f32.mrf.mxu0
    %3918 = vmatprep.mubr.f32.mxu0 0.0
    %3919 = vmatmul.mubr.f32.gmra.mxu0 %v2726
    %v3920 = vpop.f32.mrf.mxu0
    %v3921 = vadd.f32 0.0, %v3920
    %v3922 = vpop.f32.mrf.mxu0
    %3923 = vmatprep.mubr.f32.mxu0 0.0
    %3924 = vmatmul.mubr.f32.gmra.mxu0 %v3801
    %v3925 = vpop.f32.mrf.mxu0
    %v3926 = vadd.f32 0.0, %v3925
    %v3927 = vpop.f32.mrf.mxu0
    %3928 = vmatprep.mubr.f32.mxu0 0.0
    %3929 = vmatmul.mubr.f32.gmra.mxu0 %v2732
    %v3930 = vpop.f32.mrf.mxu0
    %v3931 = vadd.f32 0.0, %v3930
    %v3932 = vpop.f32.mrf.mxu0
    %3933 = vmatprep.mubr.f32.mxu0 0.0
    %3934 = vmatmul.mubr.f32.gmra.mxu0 %v2735
    %v3935 = vpop.f32.mrf.mxu0
    %v3936 = vadd.f32 0.0, %v3935
    %v3937 = vpop.f32.mrf.mxu0
    %3938 = vmatprep.mubr.f32.mxu0 0.0
    %3939 = vmatmul.mubr.f32.gmra.mxu0 %v2738
    %v3940 = vpop.f32.mrf.mxu0
    %v3941 = vadd.f32 0.0, %v3940
    %v3942 = vpop.f32.mrf.mxu0
    %3943 = vmatprep.mubr.f32.mxu0 0.0
    %3944 = vmatmul.mubr.f32.gmra.mxu0 %v2741
    %v3945 = vpop.f32.mrf.mxu0
    %v3946 = vadd.f32 0.0, %v3945
    %v3947 = vpop.f32.mrf.mxu0
    %3948 = vmatprep.mubr.f32.mxu0 0.0
    %3949 = vmatmul.mubr.f32.gmra.mxu0 %v2744
    %v3950 = vpop.f32.mrf.mxu0
    %v3951 = vadd.f32 0.0, %v3950
    %v3952 = vpop.f32.mrf.mxu0
    %3953 = vmatprep.mubr.f32.mxu0 0.0
    %3954 = vmatmul.mubr.f32.gmra.mxu0 %v2747
    %v3955 = vpop.f32.mrf.mxu0
    %v3956 = vadd.f32 0.0, %v3955
    %v3957 = vpop.f32.mrf.mxu0
    %3958 = vmatprep.mubr.f32.mxu0 0.0
    %3959 = vmatmul.mubr.f32.gmra.mxu0 %v2750
    %v3960 = vpop.f32.mrf.mxu0
    %v3961 = vadd.f32 0.0, %v3960
    %v3962 = vpop.f32.mrf.mxu0
    %3963 = vmatprep.mubr.f32.mxu0 0.0
    %3964 = vmatmul.mubr.f32.gmra.mxu0 %v3804
    %v3965 = vpop.f32.mrf.mxu0
    %v3966 = vadd.f32 0.0, %v3965
    %v3967 = vpop.f32.mrf.mxu0
    %3968 = vdwg.mxu0
    %v3969 = vadd.f32 %v3783, %v3891
    %v3970 = vadd.f32 %v3784, %v3896
    %v3971 = vadd.f32 %v3785, %v3901
    %v3972 = vadd.f32 %v3786, %v3906
    %v3973 = vadd.f32 %v3787, %v3911
    %v3974 = vadd.f32 %v3788, %v3916
    %v3975 = vadd.f32 %v3789, %v3921
    %v3976 = vadd.f32 %v3790, %v3926
    %v3977 = vadd.f32 %v3791, %v3931
    %v3978 = vadd.f32 %v3792, %v3936
    %v3979 = vadd.f32 %v3793, %v3941
    %v3980 = vadd.f32 %v3794, %v3946
    %v3981 = vadd.f32 %v3795, %v3951
    %v3982 = vadd.f32 %v3796, %v3956
    %v3983 = vadd.f32 %v3797, %v3961
    %v3984 = vadd.f32 %v3798, %v3966
    %v3985 = vrot.slane %v2250, 3
    %v3986 = vrot.slane %v2251, 3
    %v3987 = vsel %vm2945, %v3985, %v3986
    %v3988 = vrot.slane %v2274, 3
    %v3989 = vrot.slane %v2275, 3
    %v3990 = vsel %vm2945, %v3988, %v3989
    %s3993 = scalar_lea.vmem %s3, 1024
    %v3994 = vld [vmem:[%s3993] sm:$0xff]
    %v3995 = vld [vmem:[%s3993 + $0x8] sm:$0xff]
    %v3996 = vld [vmem:[%s3993 + $0x10] sm:$0xff]
    %v3997 = vld [vmem:[%s3993 + $0x18] sm:$0xff]
    %v3998 = vld [vmem:[%s3993 + $0x20] sm:$0xff]
    %v3999 = vld [vmem:[%s3993 + $0x28] sm:$0xff]
    %v4000 = vld [vmem:[%s3993 + $0x30] sm:$0xff]
    %v4001 = vld [vmem:[%s3993 + $0x38] sm:$0xff]
    %v4002 = vld [vmem:[%s3993 + $0x40] sm:$0xff]
    %v4003 = vld [vmem:[%s3993 + $0x48] sm:$0xff]
    %v4004 = vld [vmem:[%s3993 + $0x50] sm:$0xff]
    %v4005 = vld [vmem:[%s3993 + $0x58] sm:$0xff]
    %v4006 = vld [vmem:[%s3993 + $0x60] sm:$0xff]
    %v4007 = vld [vmem:[%s3993 + $0x68] sm:$0xff]
    %v4008 = vld [vmem:[%s3993 + $0x70] sm:$0xff]
    %v4009 = vld [vmem:[%s3993 + $0x78] sm:$0xff]
    %4010 = vmatprep.subr.mxu0 0.0
    %4011 = vmatpush1.msra.mxu0 %v4009
    %4012 = vmatprep.subr.mxu0 0.0
    %4013 = vmatpush1.msra.mxu0 %v4008
    %4014 = vmatprep.subr.mxu0 0.0
    %4015 = vmatpush1.msra.mxu0 %v4007
    %4016 = vmatprep.subr.mxu0 0.0
    %4017 = vmatpush1.msra.mxu0 %v4006
    %4018 = vmatprep.subr.mxu0 0.0
    %4019 = vmatpush1.msra.mxu0 %v4005
    %4020 = vmatprep.subr.mxu0 0.0
    %4021 = vmatpush1.msra.mxu0 %v4004
    %4022 = vmatprep.subr.mxu0 0.0
    %4023 = vmatpush1.msra.mxu0 %v4003
    %4024 = vmatprep.subr.mxu0 0.0
    %4025 = vmatpush1.msra.mxu0 %v4002
    %4026 = vmatprep.subr.mxu0 0.0
    %4027 = vmatpush1.msra.mxu0 %v4001
    %4028 = vmatprep.subr.mxu0 0.0
    %4029 = vmatpush1.msra.mxu0 %v4000
    %4030 = vmatprep.subr.mxu0 0.0
    %4031 = vmatpush1.msra.mxu0 %v3999
    %4032 = vmatprep.subr.mxu0 0.0
    %4033 = vmatpush1.msra.mxu0 %v3998
    %4034 = vmatprep.subr.mxu0 0.0
    %4035 = vmatpush1.msra.mxu0 %v3997
    %4036 = vmatprep.subr.mxu0 0.0
    %4037 = vmatpush1.msra.mxu0 %v3996
    %4038 = vmatprep.subr.mxu0 0.0
    %4039 = vmatpush1.msra.mxu0 %v3995
    %4040 = vmatprep.subr.mxu0 0.0
    %4041 = vmatpush1.msra.mxu0 %v3994
    %4042 = vmatprep.subr.mxu0 0.0
    %4043 = vmatpush2.msra.mxu0 0.0
    %4044 = vmatprep.subr.mxu0 0.0
    %4045 = vmatpush2.msra.mxu0 0.0
    %4046 = vmatprep.subr.mxu0 0.0
    %4047 = vmatpush2.msra.mxu0 0.0
    %4048 = vmatprep.subr.mxu0 0.0
    %4049 = vmatpush2.msra.mxu0 0.0
    %4050 = vmatprep.subr.mxu0 0.0
    %4051 = vmatpush2.msra.mxu0 0.0
    %4052 = vmatprep.subr.mxu0 0.0
    %4053 = vmatpush2.msra.mxu0 0.0
    %4054 = vmatprep.subr.mxu0 0.0
    %4055 = vmatpush2.msra.mxu0 0.0
    %4056 = vmatprep.subr.mxu0 0.0
    %4057 = vmatpush2.msra.mxu0 0.0
    %4058 = vmatprep.subr.mxu0 0.0
    %4059 = vmatpush2.msra.mxu0 0.0
    %4060 = vmatprep.subr.mxu0 0.0
    %4061 = vmatpush2.msra.mxu0 0.0
    %4062 = vmatprep.subr.mxu0 0.0
    %4063 = vmatpush2.msra.mxu0 0.0
    %4064 = vmatprep.subr.mxu0 0.0
    %4065 = vmatpush2.msra.mxu0 0.0
    %4066 = vmatprep.subr.mxu0 0.0
    %4067 = vmatpush2.msra.mxu0 0.0
    %4068 = vmatprep.subr.mxu0 0.0
    %4069 = vmatpush2.msra.mxu0 0.0
    %4070 = vmatprep.subr.mxu0 0.0
    %4071 = vmatpush2.msra.mxu0 0.0
    %4072 = vmatprep.subr.mxu0 0.0
    %4073 = vmatpush2.msra.mxu0 0.0
    %4074 = vmatprep.mubr.f32.mxu0 0.0
    %4075 = vmatmul.mubr.f32.gmra.mxu0 %v2951
    %v4076 = vpop.f32.mrf.mxu0
    %v4077 = vadd.f32 0.0, %v4076
    %v4078 = vpop.f32.mrf.mxu0
    %4079 = vmatprep.mubr.f32.mxu0 0.0
    %4080 = vmatmul.mubr.f32.gmra.mxu0 %v2954
    %v4081 = vpop.f32.mrf.mxu0
    %v4082 = vadd.f32 0.0, %v4081
    %v4083 = vpop.f32.mrf.mxu0
    %4084 = vmatprep.mubr.f32.mxu0 0.0
    %4085 = vmatmul.mubr.f32.gmra.mxu0 %v2957
    %v4086 = vpop.f32.mrf.mxu0
    %v4087 = vadd.f32 0.0, %v4086
    %v4088 = vpop.f32.mrf.mxu0
    %4089 = vmatprep.mubr.f32.mxu0 0.0
    %4090 = vmatmul.mubr.f32.gmra.mxu0 %v2960
    %v4091 = vpop.f32.mrf.mxu0
    %v4092 = vadd.f32 0.0, %v4091
    %v4093 = vpop.f32.mrf.mxu0
    %4094 = vmatprep.mubr.f32.mxu0 0.0
    %4095 = vmatmul.mubr.f32.gmra.mxu0 %v2963
    %v4096 = vpop.f32.mrf.mxu0
    %v4097 = vadd.f32 0.0, %v4096
    %v4098 = vpop.f32.mrf.mxu0
    %4099 = vmatprep.mubr.f32.mxu0 0.0
    %4100 = vmatmul.mubr.f32.gmra.mxu0 %v2966
    %v4101 = vpop.f32.mrf.mxu0
    %v4102 = vadd.f32 0.0, %v4101
    %v4103 = vpop.f32.mrf.mxu0
    %4104 = vmatprep.mubr.f32.mxu0 0.0
    %4105 = vmatmul.mubr.f32.gmra.mxu0 %v2969
    %v4106 = vpop.f32.mrf.mxu0
    %v4107 = vadd.f32 0.0, %v4106
    %v4108 = vpop.f32.mrf.mxu0
    %4109 = vmatprep.mubr.f32.mxu0 0.0
    %4110 = vmatmul.mubr.f32.gmra.mxu0 %v3987
    %v4111 = vpop.f32.mrf.mxu0
    %v4112 = vadd.f32 0.0, %v4111
    %v4113 = vpop.f32.mrf.mxu0
    %4114 = vmatprep.mubr.f32.mxu0 0.0
    %4115 = vmatmul.mubr.f32.gmra.mxu0 %v2975
    %v4116 = vpop.f32.mrf.mxu0
    %v4117 = vadd.f32 0.0, %v4116
    %v4118 = vpop.f32.mrf.mxu0
    %4119 = vmatprep.mubr.f32.mxu0 0.0
    %4120 = vmatmul.mubr.f32.gmra.mxu0 %v2978
    %v4121 = vpop.f32.mrf.mxu0
    %v4122 = vadd.f32 0.0, %v4121
    %v4123 = vpop.f32.mrf.mxu0
    %4124 = vmatprep.mubr.f32.mxu0 0.0
    %4125 = vmatmul.mubr.f32.gmra.mxu0 %v2981
    %v4126 = vpop.f32.mrf.mxu0
    %v4127 = vadd.f32 0.0, %v4126
    %v4128 = vpop.f32.mrf.mxu0
    %4129 = vmatprep.mubr.f32.mxu0 0.0
    %4130 = vmatmul.mubr.f32.gmra.mxu0 %v2984
    %v4131 = vpop.f32.mrf.mxu0
    %v4132 = vadd.f32 0.0, %v4131
    %v4133 = vpop.f32.mrf.mxu0
    %4134 = vmatprep.mubr.f32.mxu0 0.0
    %4135 = vmatmul.mubr.f32.gmra.mxu0 %v2987
    %v4136 = vpop.f32.mrf.mxu0
    %v4137 = vadd.f32 0.0, %v4136
    %v4138 = vpop.f32.mrf.mxu0
    %4139 = vmatprep.mubr.f32.mxu0 0.0
    %4140 = vmatmul.mubr.f32.gmra.mxu0 %v2990
    %v4141 = vpop.f32.mrf.mxu0
    %v4142 = vadd.f32 0.0, %v4141
    %v4143 = vpop.f32.mrf.mxu0
    %4144 = vmatprep.mubr.f32.mxu0 0.0
    %4145 = vmatmul.mubr.f32.gmra.mxu0 %v2993
    %v4146 = vpop.f32.mrf.mxu0
    %v4147 = vadd.f32 0.0, %v4146
    %v4148 = vpop.f32.mrf.mxu0
    %4149 = vmatprep.mubr.f32.mxu0 0.0
    %4150 = vmatmul.mubr.f32.gmra.mxu0 %v3990
    %v4151 = vpop.f32.mrf.mxu0
    %v4152 = vadd.f32 0.0, %v4151
    %v4153 = vpop.f32.mrf.mxu0
    %4154 = vdwg.mxu0
    %v4155 = vadd.f32 %v3969, %v4077
    %v4156 = vadd.f32 %v3970, %v4082
    %v4157 = vadd.f32 %v3971, %v4087
    %v4158 = vadd.f32 %v3972, %v4092
    %v4159 = vadd.f32 %v3973, %v4097
    %v4160 = vadd.f32 %v3974, %v4102
    %v4161 = vadd.f32 %v3975, %v4107
    %v4162 = vadd.f32 %v3976, %v4112
    %v4163 = vadd.f32 %v3977, %v4117
    %v4164 = vadd.f32 %v3978, %v4122
    %v4165 = vadd.f32 %v3979, %v4127
    %v4166 = vadd.f32 %v3980, %v4132
    %v4167 = vadd.f32 %v3981, %v4137
    %v4168 = vadd.f32 %v3982, %v4142
    %v4169 = vadd.f32 %v3983, %v4147
    %v4170 = vadd.f32 %v3984, %v4152
    %v4171 = vrot.slane %v2250, 4
    %v4172 = vrot.slane %v2251, 4
    %v4173 = vsel %vm3188, %v4171, %v4172
    %v4174 = vrot.slane %v2274, 4
    %v4175 = vrot.slane %v2275, 4
    %v4176 = vsel %vm3188, %v4174, %v4175
    %s4179 = scalar_lea.vmem %s3, 1152
    %v4180 = vld [vmem:[%s4179] sm:$0xff]
    %v4181 = vld [vmem:[%s4179 + $0x8] sm:$0xff]
    %v4182 = vld [vmem:[%s4179 + $0x10] sm:$0xff]
    %v4183 = vld [vmem:[%s4179 + $0x18] sm:$0xff]
    %v4184 = vld [vmem:[%s4179 + $0x20] sm:$0xff]
    %v4185 = vld [vmem:[%s4179 + $0x28] sm:$0xff]
    %v4186 = vld [vmem:[%s4179 + $0x30] sm:$0xff]
    %v4187 = vld [vmem:[%s4179 + $0x38] sm:$0xff]
    %v4188 = vld [vmem:[%s4179 + $0x40] sm:$0xff]
    %v4189 = vld [vmem:[%s4179 + $0x48] sm:$0xff]
    %v4190 = vld [vmem:[%s4179 + $0x50] sm:$0xff]
    %v4191 = vld [vmem:[%s4179 + $0x58] sm:$0xff]
    %v4192 = vld [vmem:[%s4179 + $0x60] sm:$0xff]
    %v4193 = vld [vmem:[%s4179 + $0x68] sm:$0xff]
    %v4194 = vld [vmem:[%s4179 + $0x70] sm:$0xff]
    %v4195 = vld [vmem:[%s4179 + $0x78] sm:$0xff]
    %4196 = vmatprep.subr.mxu0 0.0
    %4197 = vmatpush1.msra.mxu0 %v4195
    %4198 = vmatprep.subr.mxu0 0.0
    %4199 = vmatpush1.msra.mxu0 %v4194
    %4200 = vmatprep.subr.mxu0 0.0
    %4201 = vmatpush1.msra.mxu0 %v4193
    %4202 = vmatprep.subr.mxu0 0.0
    %4203 = vmatpush1.msra.mxu0 %v4192
    %4204 = vmatprep.subr.mxu0 0.0
    %4205 = vmatpush1.msra.mxu0 %v4191
    %4206 = vmatprep.subr.mxu0 0.0
    %4207 = vmatpush1.msra.mxu0 %v4190
    %4208 = vmatprep.subr.mxu0 0.0
    %4209 = vmatpush1.msra.mxu0 %v4189
    %4210 = vmatprep.subr.mxu0 0.0
    %4211 = vmatpush1.msra.mxu0 %v4188
    %4212 = vmatprep.subr.mxu0 0.0
    %4213 = vmatpush1.msra.mxu0 %v4187
    %4214 = vmatprep.subr.mxu0 0.0
    %4215 = vmatpush1.msra.mxu0 %v4186
    %4216 = vmatprep.subr.mxu0 0.0
    %4217 = vmatpush1.msra.mxu0 %v4185
    %4218 = vmatprep.subr.mxu0 0.0
    %4219 = vmatpush1.msra.mxu0 %v4184
    %4220 = vmatprep.subr.mxu0 0.0
    %4221 = vmatpush1.msra.mxu0 %v4183
    %4222 = vmatprep.subr.mxu0 0.0
    %4223 = vmatpush1.msra.mxu0 %v4182
    %4224 = vmatprep.subr.mxu0 0.0
    %4225 = vmatpush1.msra.mxu0 %v4181
    %4226 = vmatprep.subr.mxu0 0.0
    %4227 = vmatpush1.msra.mxu0 %v4180
    %4228 = vmatprep.subr.mxu0 0.0
    %4229 = vmatpush2.msra.mxu0 0.0
    %4230 = vmatprep.subr.mxu0 0.0
    %4231 = vmatpush2.msra.mxu0 0.0
    %4232 = vmatprep.subr.mxu0 0.0
    %4233 = vmatpush2.msra.mxu0 0.0
    %4234 = vmatprep.subr.mxu0 0.0
    %4235 = vmatpush2.msra.mxu0 0.0
    %4236 = vmatprep.subr.mxu0 0.0
    %4237 = vmatpush2.msra.mxu0 0.0
    %4238 = vmatprep.subr.mxu0 0.0
    %4239 = vmatpush2.msra.mxu0 0.0
    %4240 = vmatprep.subr.mxu0 0.0
    %4241 = vmatpush2.msra.mxu0 0.0
    %4242 = vmatprep.subr.mxu0 0.0
    %4243 = vmatpush2.msra.mxu0 0.0
    %4244 = vmatprep.subr.mxu0 0.0
    %4245 = vmatpush2.msra.mxu0 0.0
    %4246 = vmatprep.subr.mxu0 0.0
    %4247 = vmatpush2.msra.mxu0 0.0
    %4248 = vmatprep.subr.mxu0 0.0
    %4249 = vmatpush2.msra.mxu0 0.0
    %4250 = vmatprep.subr.mxu0 0.0
    %4251 = vmatpush2.msra.mxu0 0.0
    %4252 = vmatprep.subr.mxu0 0.0
    %4253 = vmatpush2.msra.mxu0 0.0
    %4254 = vmatprep.subr.mxu0 0.0
    %4255 = vmatpush2.msra.mxu0 0.0
    %4256 = vmatprep.subr.mxu0 0.0
    %4257 = vmatpush2.msra.mxu0 0.0
    %4258 = vmatprep.subr.mxu0 0.0
    %4259 = vmatpush2.msra.mxu0 0.0
    %4260 = vmatprep.mubr.f32.mxu0 0.0
    %4261 = vmatmul.mubr.f32.gmra.mxu0 %v3194
    %v4262 = vpop.f32.mrf.mxu0
    %v4263 = vadd.f32 0.0, %v4262
    %v4264 = vpop.f32.mrf.mxu0
    %4265 = vmatprep.mubr.f32.mxu0 0.0
    %4266 = vmatmul.mubr.f32.gmra.mxu0 %v3197
    %v4267 = vpop.f32.mrf.mxu0
    %v4268 = vadd.f32 0.0, %v4267
    %v4269 = vpop.f32.mrf.mxu0
    %4270 = vmatprep.mubr.f32.mxu0 0.0
    %4271 = vmatmul.mubr.f32.gmra.mxu0 %v3200
    %v4272 = vpop.f32.mrf.mxu0
    %v4273 = vadd.f32 0.0, %v4272
    %v4274 = vpop.f32.mrf.mxu0
    %4275 = vmatprep.mubr.f32.mxu0 0.0
    %4276 = vmatmul.mubr.f32.gmra.mxu0 %v3203
    %v4277 = vpop.f32.mrf.mxu0
    %v4278 = vadd.f32 0.0, %v4277
    %v4279 = vpop.f32.mrf.mxu0
    %4280 = vmatprep.mubr.f32.mxu0 0.0
    %4281 = vmatmul.mubr.f32.gmra.mxu0 %v3206
    %v4282 = vpop.f32.mrf.mxu0
    %v4283 = vadd.f32 0.0, %v4282
    %v4284 = vpop.f32.mrf.mxu0
    %4285 = vmatprep.mubr.f32.mxu0 0.0
    %4286 = vmatmul.mubr.f32.gmra.mxu0 %v3209
    %v4287 = vpop.f32.mrf.mxu0
    %v4288 = vadd.f32 0.0, %v4287
    %v4289 = vpop.f32.mrf.mxu0
    %4290 = vmatprep.mubr.f32.mxu0 0.0
    %4291 = vmatmul.mubr.f32.gmra.mxu0 %v3212
    %v4292 = vpop.f32.mrf.mxu0
    %v4293 = vadd.f32 0.0, %v4292
    %v4294 = vpop.f32.mrf.mxu0
    %4295 = vmatprep.mubr.f32.mxu0 0.0
    %4296 = vmatmul.mubr.f32.gmra.mxu0 %v4173
    %v4297 = vpop.f32.mrf.mxu0
    %v4298 = vadd.f32 0.0, %v4297
    %v4299 = vpop.f32.mrf.mxu0
    %4300 = vmatprep.mubr.f32.mxu0 0.0
    %4301 = vmatmul.mubr.f32.gmra.mxu0 %v3218
    %v4302 = vpop.f32.mrf.mxu0
    %v4303 = vadd.f32 0.0, %v4302
    %v4304 = vpop.f32.mrf.mxu0
    %4305 = vmatprep.mubr.f32.mxu0 0.0
    %4306 = vmatmul.mubr.f32.gmra.mxu0 %v3221
    %v4307 = vpop.f32.mrf.mxu0
    %v4308 = vadd.f32 0.0, %v4307
    %v4309 = vpop.f32.mrf.mxu0
    %4310 = vmatprep.mubr.f32.mxu0 0.0
    %4311 = vmatmul.mubr.f32.gmra.mxu0 %v3224
    %v4312 = vpop.f32.mrf.mxu0
    %v4313 = vadd.f32 0.0, %v4312
    %v4314 = vpop.f32.mrf.mxu0
    %4315 = vmatprep.mubr.f32.mxu0 0.0
    %4316 = vmatmul.mubr.f32.gmra.mxu0 %v3227
    %v4317 = vpop.f32.mrf.mxu0
    %v4318 = vadd.f32 0.0, %v4317
    %v4319 = vpop.f32.mrf.mxu0
    %4320 = vmatprep.mubr.f32.mxu0 0.0
    %4321 = vmatmul.mubr.f32.gmra.mxu0 %v3230
    %v4322 = vpop.f32.mrf.mxu0
    %v4323 = vadd.f32 0.0, %v4322
    %v4324 = vpop.f32.mrf.mxu0
    %4325 = vmatprep.mubr.f32.mxu0 0.0
    %4326 = vmatmul.mubr.f32.gmra.mxu0 %v3233
    %v4327 = vpop.f32.mrf.mxu0
    %v4328 = vadd.f32 0.0, %v4327
    %v4329 = vpop.f32.mrf.mxu0
    %4330 = vmatprep.mubr.f32.mxu0 0.0
    %4331 = vmatmul.mubr.f32.gmra.mxu0 %v3236
    %v4332 = vpop.f32.mrf.mxu0
    %v4333 = vadd.f32 0.0, %v4332
    %v4334 = vpop.f32.mrf.mxu0
    %4335 = vmatprep.mubr.f32.mxu0 0.0
    %4336 = vmatmul.mubr.f32.gmra.mxu0 %v4176
    %v4337 = vpop.f32.mrf.mxu0
    %v4338 = vadd.f32 0.0, %v4337
    %v4339 = vpop.f32.mrf.mxu0
    %4340 = vdwg.mxu0
    %v4341 = vadd.f32 %v4155, %v4263
    %v4342 = vadd.f32 %v4156, %v4268
    %v4343 = vadd.f32 %v4157, %v4273
    %v4344 = vadd.f32 %v4158, %v4278
    %v4345 = vadd.f32 %v4159, %v4283
    %v4346 = vadd.f32 %v4160, %v4288
    %v4347 = vadd.f32 %v4161, %v4293
    %v4348 = vadd.f32 %v4162, %v4298
    %v4349 = vadd.f32 %v4163, %v4303
    %v4350 = vadd.f32 %v4164, %v4308
    %v4351 = vadd.f32 %v4165, %v4313
    %v4352 = vadd.f32 %v4166, %v4318
    %v4353 = vadd.f32 %v4167, %v4323
    %v4354 = vadd.f32 %v4168, %v4328
    %v4355 = vadd.f32 %v4169, %v4333
    %v4356 = vadd.f32 %v4170, %v4338
    %s4357 = scalar_lea.vmem %s3, 1280
    %v4358 = vld [vmem:[%s4357] sm:$0xff]
    %v4359 = vld [vmem:[%s4357 + $0x8] sm:$0xff]
    %v4360 = vld [vmem:[%s4357 + $0x10] sm:$0xff]
    %v4361 = vld [vmem:[%s4357 + $0x18] sm:$0xff]
    %v4362 = vld [vmem:[%s4357 + $0x20] sm:$0xff]
    %v4363 = vld [vmem:[%s4357 + $0x28] sm:$0xff]
    %v4364 = vld [vmem:[%s4357 + $0x30] sm:$0xff]
    %v4365 = vld [vmem:[%s4357 + $0x38] sm:$0xff]
    %v4366 = vld [vmem:[%s4357 + $0x40] sm:$0xff]
    %v4367 = vld [vmem:[%s4357 + $0x48] sm:$0xff]
    %v4368 = vld [vmem:[%s4357 + $0x50] sm:$0xff]
    %v4369 = vld [vmem:[%s4357 + $0x58] sm:$0xff]
    %v4370 = vld [vmem:[%s4357 + $0x60] sm:$0xff]
    %v4371 = vld [vmem:[%s4357 + $0x68] sm:$0xff]
    %v4372 = vld [vmem:[%s4357 + $0x70] sm:$0xff]
    %v4373 = vld [vmem:[%s4357 + $0x78] sm:$0xff]
    %4374 = vmatprep.subr.mxu0 0.0
    %4375 = vmatpush1.msra.mxu0 %v4373
    %4376 = vmatprep.subr.mxu0 0.0
    %4377 = vmatpush1.msra.mxu0 %v4372
    %4378 = vmatprep.subr.mxu0 0.0
    %4379 = vmatpush1.msra.mxu0 %v4371
    %4380 = vmatprep.subr.mxu0 0.0
    %4381 = vmatpush1.msra.mxu0 %v4370
    %4382 = vmatprep.subr.mxu0 0.0
    %4383 = vmatpush1.msra.mxu0 %v4369
    %4384 = vmatprep.subr.mxu0 0.0
    %4385 = vmatpush1.msra.mxu0 %v4368
    %4386 = vmatprep.subr.mxu0 0.0
    %4387 = vmatpush1.msra.mxu0 %v4367
    %4388 = vmatprep.subr.mxu0 0.0
    %4389 = vmatpush1.msra.mxu0 %v4366
    %4390 = vmatprep.subr.mxu0 0.0
    %4391 = vmatpush1.msra.mxu0 %v4365
    %4392 = vmatprep.subr.mxu0 0.0
    %4393 = vmatpush1.msra.mxu0 %v4364
    %4394 = vmatprep.subr.mxu0 0.0
    %4395 = vmatpush1.msra.mxu0 %v4363
    %4396 = vmatprep.subr.mxu0 0.0
    %4397 = vmatpush1.msra.mxu0 %v4362
    %4398 = vmatprep.subr.mxu0 0.0
    %4399 = vmatpush1.msra.mxu0 %v4361
    %4400 = vmatprep.subr.mxu0 0.0
    %4401 = vmatpush1.msra.mxu0 %v4360
    %4402 = vmatprep.subr.mxu0 0.0
    %4403 = vmatpush1.msra.mxu0 %v4359
    %4404 = vmatprep.subr.mxu0 0.0
    %4405 = vmatpush1.msra.mxu0 %v4358
    %4406 = vmatprep.subr.mxu0 0.0
    %4407 = vmatpush2.msra.mxu0 0.0
    %4408 = vmatprep.subr.mxu0 0.0
    %4409 = vmatpush2.msra.mxu0 0.0
    %4410 = vmatprep.subr.mxu0 0.0
    %4411 = vmatpush2.msra.mxu0 0.0
    %4412 = vmatprep.subr.mxu0 0.0
    %4413 = vmatpush2.msra.mxu0 0.0
    %4414 = vmatprep.subr.mxu0 0.0
    %4415 = vmatpush2.msra.mxu0 0.0
    %4416 = vmatprep.subr.mxu0 0.0
    %4417 = vmatpush2.msra.mxu0 0.0
    %4418 = vmatprep.subr.mxu0 0.0
    %4419 = vmatpush2.msra.mxu0 0.0
    %4420 = vmatprep.subr.mxu0 0.0
    %4421 = vmatpush2.msra.mxu0 0.0
    %4422 = vmatprep.subr.mxu0 0.0
    %4423 = vmatpush2.msra.mxu0 0.0
    %4424 = vmatprep.subr.mxu0 0.0
    %4425 = vmatpush2.msra.mxu0 0.0
    %4426 = vmatprep.subr.mxu0 0.0
    %4427 = vmatpush2.msra.mxu0 0.0
    %4428 = vmatprep.subr.mxu0 0.0
    %4429 = vmatpush2.msra.mxu0 0.0
    %4430 = vmatprep.subr.mxu0 0.0
    %4431 = vmatpush2.msra.mxu0 0.0
    %4432 = vmatprep.subr.mxu0 0.0
    %4433 = vmatpush2.msra.mxu0 0.0
    %4434 = vmatprep.subr.mxu0 0.0
    %4435 = vmatpush2.msra.mxu0 0.0
    %4436 = vmatprep.subr.mxu0 0.0
    %4437 = vmatpush2.msra.mxu0 0.0
    %4438 = vmatprep.mubr.f32.mxu0 0.0
    %4439 = vmatmul.mubr.f32.gmra.mxu0 %v2238
    %v4440 = vpop.f32.mrf.mxu0
    %v4441 = vadd.f32 0.0, %v4440
    %v4442 = vpop.f32.mrf.mxu0
    %4443 = vmatprep.mubr.f32.mxu0 0.0
    %4444 = vmatmul.mubr.f32.gmra.mxu0 %v2240
    %v4445 = vpop.f32.mrf.mxu0
    %v4446 = vadd.f32 0.0, %v4445
    %v4447 = vpop.f32.mrf.mxu0
    %4448 = vmatprep.mubr.f32.mxu0 0.0
    %4449 = vmatmul.mubr.f32.gmra.mxu0 %v2242
    %v4450 = vpop.f32.mrf.mxu0
    %v4451 = vadd.f32 0.0, %v4450
    %v4452 = vpop.f32.mrf.mxu0
    %4453 = vmatprep.mubr.f32.mxu0 0.0
    %4454 = vmatmul.mubr.f32.gmra.mxu0 %v2244
    %v4455 = vpop.f32.mrf.mxu0
    %v4456 = vadd.f32 0.0, %v4455
    %v4457 = vpop.f32.mrf.mxu0
    %4458 = vmatprep.mubr.f32.mxu0 0.0
    %4459 = vmatmul.mubr.f32.gmra.mxu0 %v2246
    %v4460 = vpop.f32.mrf.mxu0
    %v4461 = vadd.f32 0.0, %v4460
    %v4462 = vpop.f32.mrf.mxu0
    %4463 = vmatprep.mubr.f32.mxu0 0.0
    %4464 = vmatmul.mubr.f32.gmra.mxu0 %v2248
    %v4465 = vpop.f32.mrf.mxu0
    %v4466 = vadd.f32 0.0, %v4465
    %v4467 = vpop.f32.mrf.mxu0
    %4468 = vmatprep.mubr.f32.mxu0 0.0
    %4469 = vmatmul.mubr.f32.gmra.mxu0 %v2250
    %v4470 = vpop.f32.mrf.mxu0
    %v4471 = vadd.f32 0.0, %v4470
    %v4472 = vpop.f32.mrf.mxu0
    %4473 = vmatprep.mubr.f32.mxu0 0.0
    %4474 = vmatmul.mubr.f32.gmra.mxu0 %v2252
    %v4475 = vpop.f32.mrf.mxu0
    %v4476 = vadd.f32 0.0, %v4475
    %v4477 = vpop.f32.mrf.mxu0
    %4478 = vmatprep.mubr.f32.mxu0 0.0
    %4479 = vmatmul.mubr.f32.gmra.mxu0 %v2262
    %v4480 = vpop.f32.mrf.mxu0
    %v4481 = vadd.f32 0.0, %v4480
    %v4482 = vpop.f32.mrf.mxu0
    %4483 = vmatprep.mubr.f32.mxu0 0.0
    %4484 = vmatmul.mubr.f32.gmra.mxu0 %v2264
    %v4485 = vpop.f32.mrf.mxu0
    %v4486 = vadd.f32 0.0, %v4485
    %v4487 = vpop.f32.mrf.mxu0
    %4488 = vmatprep.mubr.f32.mxu0 0.0
    %4489 = vmatmul.mubr.f32.gmra.mxu0 %v2266
    %v4490 = vpop.f32.mrf.mxu0
    %v4491 = vadd.f32 0.0, %v4490
    %v4492 = vpop.f32.mrf.mxu0
    %4493 = vmatprep.mubr.f32.mxu0 0.0
    %4494 = vmatmul.mubr.f32.gmra.mxu0 %v2268
    %v4495 = vpop.f32.mrf.mxu0
    %v4496 = vadd.f32 0.0, %v4495
    %v4497 = vpop.f32.mrf.mxu0
    %4498 = vmatprep.mubr.f32.mxu0 0.0
    %4499 = vmatmul.mubr.f32.gmra.mxu0 %v2270
    %v4500 = vpop.f32.mrf.mxu0
    %v4501 = vadd.f32 0.0, %v4500
    %v4502 = vpop.f32.mrf.mxu0
    %4503 = vmatprep.mubr.f32.mxu0 0.0
    %4504 = vmatmul.mubr.f32.gmra.mxu0 %v2272
    %v4505 = vpop.f32.mrf.mxu0
    %v4506 = vadd.f32 0.0, %v4505
    %v4507 = vpop.f32.mrf.mxu0
    %4508 = vmatprep.mubr.f32.mxu0 0.0
    %4509 = vmatmul.mubr.f32.gmra.mxu0 %v2274
    %v4510 = vpop.f32.mrf.mxu0
    %v4511 = vadd.f32 0.0, %v4510
    %v4512 = vpop.f32.mrf.mxu0
    %4513 = vmatprep.mubr.f32.mxu0 0.0
    %4514 = vmatmul.mubr.f32.gmra.mxu0 %v2276
    %v4515 = vpop.f32.mrf.mxu0
    %v4516 = vadd.f32 0.0, %v4515
    %v4517 = vpop.f32.mrf.mxu0
    %4518 = vdwg.mxu0
    %v4519 = vadd.f32 %v4341, %v4441
    %v4520 = vadd.f32 %v4342, %v4446
    %v4521 = vadd.f32 %v4343, %v4451
    %v4522 = vadd.f32 %v4344, %v4456
    %v4523 = vadd.f32 %v4345, %v4461
    %v4524 = vadd.f32 %v4346, %v4466
    %v4525 = vadd.f32 %v4347, %v4471
    %v4526 = vadd.f32 %v4348, %v4476
    %v4527 = vadd.f32 %v4349, %v4481
    %v4528 = vadd.f32 %v4350, %v4486
    %v4529 = vadd.f32 %v4351, %v4491
    %v4530 = vadd.f32 %v4352, %v4496
    %v4531 = vadd.f32 %v4353, %v4501
    %v4532 = vadd.f32 %v4354, %v4506
    %v4533 = vadd.f32 %v4355, %v4511
    %v4534 = vadd.f32 %v4356, %v4516
    %v4539 = vrot.slane %v2252, 1
    %v4540 = vrot.slane %v2253, 1
    %v4541 = vsel %vm2330, %v4539, %v4540
    %v4542 = vrot.slane %v2276, 1
    %v4543 = vrot.slane %v2277, 1
    %v4544 = vsel %vm2330, %v4542, %v4543
    %s4547 = scalar_lea.vmem %s3, 1408
    %v4548 = vld [vmem:[%s4547] sm:$0xff]
    %v4549 = vld [vmem:[%s4547 + $0x8] sm:$0xff]
    %v4550 = vld [vmem:[%s4547 + $0x10] sm:$0xff]
    %v4551 = vld [vmem:[%s4547 + $0x18] sm:$0xff]
    %v4552 = vld [vmem:[%s4547 + $0x20] sm:$0xff]
    %v4553 = vld [vmem:[%s4547 + $0x28] sm:$0xff]
    %v4554 = vld [vmem:[%s4547 + $0x30] sm:$0xff]
    %v4555 = vld [vmem:[%s4547 + $0x38] sm:$0xff]
    %v4556 = vld [vmem:[%s4547 + $0x40] sm:$0xff]
    %v4557 = vld [vmem:[%s4547 + $0x48] sm:$0xff]
    %v4558 = vld [vmem:[%s4547 + $0x50] sm:$0xff]
    %v4559 = vld [vmem:[%s4547 + $0x58] sm:$0xff]
    %v4560 = vld [vmem:[%s4547 + $0x60] sm:$0xff]
    %v4561 = vld [vmem:[%s4547 + $0x68] sm:$0xff]
    %v4562 = vld [vmem:[%s4547 + $0x70] sm:$0xff]
    %v4563 = vld [vmem:[%s4547 + $0x78] sm:$0xff]
    %4564 = vmatprep.subr.mxu0 0.0
    %4565 = vmatpush1.msra.mxu0 %v4563
    %4566 = vmatprep.subr.mxu0 0.0
    %4567 = vmatpush1.msra.mxu0 %v4562
    %4568 = vmatprep.subr.mxu0 0.0
    %4569 = vmatpush1.msra.mxu0 %v4561
    %4570 = vmatprep.subr.mxu0 0.0
    %4571 = vmatpush1.msra.mxu0 %v4560
    %4572 = vmatprep.subr.mxu0 0.0
    %4573 = vmatpush1.msra.mxu0 %v4559
    %4574 = vmatprep.subr.mxu0 0.0
    %4575 = vmatpush1.msra.mxu0 %v4558
    %4576 = vmatprep.subr.mxu0 0.0
    %4577 = vmatpush1.msra.mxu0 %v4557
    %4578 = vmatprep.subr.mxu0 0.0
    %4579 = vmatpush1.msra.mxu0 %v4556
    %4580 = vmatprep.subr.mxu0 0.0
    %4581 = vmatpush1.msra.mxu0 %v4555
    %4582 = vmatprep.subr.mxu0 0.0
    %4583 = vmatpush1.msra.mxu0 %v4554
    %4584 = vmatprep.subr.mxu0 0.0
    %4585 = vmatpush1.msra.mxu0 %v4553
    %4586 = vmatprep.subr.mxu0 0.0
    %4587 = vmatpush1.msra.mxu0 %v4552
    %4588 = vmatprep.subr.mxu0 0.0
    %4589 = vmatpush1.msra.mxu0 %v4551
    %4590 = vmatprep.subr.mxu0 0.0
    %4591 = vmatpush1.msra.mxu0 %v4550
    %4592 = vmatprep.subr.mxu0 0.0
    %4593 = vmatpush1.msra.mxu0 %v4549
    %4594 = vmatprep.subr.mxu0 0.0
    %4595 = vmatpush1.msra.mxu0 %v4548
    %4596 = vmatprep.subr.mxu0 0.0
    %4597 = vmatpush2.msra.mxu0 0.0
    %4598 = vmatprep.subr.mxu0 0.0
    %4599 = vmatpush2.msra.mxu0 0.0
    %4600 = vmatprep.subr.mxu0 0.0
    %4601 = vmatpush2.msra.mxu0 0.0
    %4602 = vmatprep.subr.mxu0 0.0
    %4603 = vmatpush2.msra.mxu0 0.0
    %4604 = vmatprep.subr.mxu0 0.0
    %4605 = vmatpush2.msra.mxu0 0.0
    %4606 = vmatprep.subr.mxu0 0.0
    %4607 = vmatpush2.msra.mxu0 0.0
    %4608 = vmatprep.subr.mxu0 0.0
    %4609 = vmatpush2.msra.mxu0 0.0
    %4610 = vmatprep.subr.mxu0 0.0
    %4611 = vmatpush2.msra.mxu0 0.0
    %4612 = vmatprep.subr.mxu0 0.0
    %4613 = vmatpush2.msra.mxu0 0.0
    %4614 = vmatprep.subr.mxu0 0.0
    %4615 = vmatpush2.msra.mxu0 0.0
    %4616 = vmatprep.subr.mxu0 0.0
    %4617 = vmatpush2.msra.mxu0 0.0
    %4618 = vmatprep.subr.mxu0 0.0
    %4619 = vmatpush2.msra.mxu0 0.0
    %4620 = vmatprep.subr.mxu0 0.0
    %4621 = vmatpush2.msra.mxu0 0.0
    %4622 = vmatprep.subr.mxu0 0.0
    %4623 = vmatpush2.msra.mxu0 0.0
    %4624 = vmatprep.subr.mxu0 0.0
    %4625 = vmatpush2.msra.mxu0 0.0
    %4626 = vmatprep.subr.mxu0 0.0
    %4627 = vmatpush2.msra.mxu0 0.0
    %4628 = vmatprep.mubr.f32.mxu0 0.0
    %4629 = vmatmul.mubr.f32.gmra.mxu0 %v2339
    %v4630 = vpop.f32.mrf.mxu0
    %v4631 = vadd.f32 0.0, %v4630
    %v4632 = vpop.f32.mrf.mxu0
    %4633 = vmatprep.mubr.f32.mxu0 0.0
    %4634 = vmatmul.mubr.f32.gmra.mxu0 %v2342
    %v4635 = vpop.f32.mrf.mxu0
    %v4636 = vadd.f32 0.0, %v4635
    %v4637 = vpop.f32.mrf.mxu0
    %4638 = vmatprep.mubr.f32.mxu0 0.0
    %4639 = vmatmul.mubr.f32.gmra.mxu0 %v2345
    %v4640 = vpop.f32.mrf.mxu0
    %v4641 = vadd.f32 0.0, %v4640
    %v4642 = vpop.f32.mrf.mxu0
    %4643 = vmatprep.mubr.f32.mxu0 0.0
    %4644 = vmatmul.mubr.f32.gmra.mxu0 %v2348
    %v4645 = vpop.f32.mrf.mxu0
    %v4646 = vadd.f32 0.0, %v4645
    %v4647 = vpop.f32.mrf.mxu0
    %4648 = vmatprep.mubr.f32.mxu0 0.0
    %4649 = vmatmul.mubr.f32.gmra.mxu0 %v2351
    %v4650 = vpop.f32.mrf.mxu0
    %v4651 = vadd.f32 0.0, %v4650
    %v4652 = vpop.f32.mrf.mxu0
    %4653 = vmatprep.mubr.f32.mxu0 0.0
    %4654 = vmatmul.mubr.f32.gmra.mxu0 %v2354
    %v4655 = vpop.f32.mrf.mxu0
    %v4656 = vadd.f32 0.0, %v4655
    %v4657 = vpop.f32.mrf.mxu0
    %4658 = vmatprep.mubr.f32.mxu0 0.0
    %4659 = vmatmul.mubr.f32.gmra.mxu0 %v3615
    %v4660 = vpop.f32.mrf.mxu0
    %v4661 = vadd.f32 0.0, %v4660
    %v4662 = vpop.f32.mrf.mxu0
    %4663 = vmatprep.mubr.f32.mxu0 0.0
    %4664 = vmatmul.mubr.f32.gmra.mxu0 %v4541
    %v4665 = vpop.f32.mrf.mxu0
    %v4666 = vadd.f32 0.0, %v4665
    %v4667 = vpop.f32.mrf.mxu0
    %4668 = vmatprep.mubr.f32.mxu0 0.0
    %4669 = vmatmul.mubr.f32.gmra.mxu0 %v2363
    %v4670 = vpop.f32.mrf.mxu0
    %v4671 = vadd.f32 0.0, %v4670
    %v4672 = vpop.f32.mrf.mxu0
    %4673 = vmatprep.mubr.f32.mxu0 0.0
    %4674 = vmatmul.mubr.f32.gmra.mxu0 %v2366
    %v4675 = vpop.f32.mrf.mxu0
    %v4676 = vadd.f32 0.0, %v4675
    %v4677 = vpop.f32.mrf.mxu0
    %4678 = vmatprep.mubr.f32.mxu0 0.0
    %4679 = vmatmul.mubr.f32.gmra.mxu0 %v2369
    %v4680 = vpop.f32.mrf.mxu0
    %v4681 = vadd.f32 0.0, %v4680
    %v4682 = vpop.f32.mrf.mxu0
    %4683 = vmatprep.mubr.f32.mxu0 0.0
    %4684 = vmatmul.mubr.f32.gmra.mxu0 %v2372
    %v4685 = vpop.f32.mrf.mxu0
    %v4686 = vadd.f32 0.0, %v4685
    %v4687 = vpop.f32.mrf.mxu0
    %4688 = vmatprep.mubr.f32.mxu0 0.0
    %4689 = vmatmul.mubr.f32.gmra.mxu0 %v2375
    %v4690 = vpop.f32.mrf.mxu0
    %v4691 = vadd.f32 0.0, %v4690
    %v4692 = vpop.f32.mrf.mxu0
    %4693 = vmatprep.mubr.f32.mxu0 0.0
    %4694 = vmatmul.mubr.f32.gmra.mxu0 %v2378
    %v4695 = vpop.f32.mrf.mxu0
    %v4696 = vadd.f32 0.0, %v4695
    %v4697 = vpop.f32.mrf.mxu0
    %4698 = vmatprep.mubr.f32.mxu0 0.0
    %4699 = vmatmul.mubr.f32.gmra.mxu0 %v3618
    %v4700 = vpop.f32.mrf.mxu0
    %v4701 = vadd.f32 0.0, %v4700
    %v4702 = vpop.f32.mrf.mxu0
    %4703 = vmatprep.mubr.f32.mxu0 0.0
    %4704 = vmatmul.mubr.f32.gmra.mxu0 %v4544
    %v4705 = vpop.f32.mrf.mxu0
    %v4706 = vadd.f32 0.0, %v4705
    %v4707 = vpop.f32.mrf.mxu0
    %4708 = vdwg.mxu0
    %v4709 = vadd.f32 %v4519, %v4631
    %v4710 = vadd.f32 %v4520, %v4636
    %v4711 = vadd.f32 %v4521, %v4641
    %v4712 = vadd.f32 %v4522, %v4646
    %v4713 = vadd.f32 %v4523, %v4651
    %v4714 = vadd.f32 %v4524, %v4656
    %v4715 = vadd.f32 %v4525, %v4661
    %v4716 = vadd.f32 %v4526, %v4666
    %v4717 = vadd.f32 %v4527, %v4671
    %v4718 = vadd.f32 %v4528, %v4676
    %v4719 = vadd.f32 %v4529, %v4681
    %v4720 = vadd.f32 %v4530, %v4686
    %v4721 = vadd.f32 %v4531, %v4691
    %v4722 = vadd.f32 %v4532, %v4696
    %v4723 = vadd.f32 %v4533, %v4701
    %v4724 = vadd.f32 %v4534, %v4706
    %v4725 = vrot.slane %v2252, 2
    %v4726 = vrot.slane %v2253, 2
    %v4727 = vsel %vm2702, %v4725, %v4726
    %v4728 = vrot.slane %v2276, 2
    %v4729 = vrot.slane %v2277, 2
    %v4730 = vsel %vm2702, %v4728, %v4729
    %s4733 = scalar_lea.vmem %s3, 1536
    %v4734 = vld [vmem:[%s4733] sm:$0xff]
    %v4735 = vld [vmem:[%s4733 + $0x8] sm:$0xff]
    %v4736 = vld [vmem:[%s4733 + $0x10] sm:$0xff]
    %v4737 = vld [vmem:[%s4733 + $0x18] sm:$0xff]
    %v4738 = vld [vmem:[%s4733 + $0x20] sm:$0xff]
    %v4739 = vld [vmem:[%s4733 + $0x28] sm:$0xff]
    %v4740 = vld [vmem:[%s4733 + $0x30] sm:$0xff]
    %v4741 = vld [vmem:[%s4733 + $0x38] sm:$0xff]
    %v4742 = vld [vmem:[%s4733 + $0x40] sm:$0xff]
    %v4743 = vld [vmem:[%s4733 + $0x48] sm:$0xff]
    %v4744 = vld [vmem:[%s4733 + $0x50] sm:$0xff]
    %v4745 = vld [vmem:[%s4733 + $0x58] sm:$0xff]
    %v4746 = vld [vmem:[%s4733 + $0x60] sm:$0xff]
    %v4747 = vld [vmem:[%s4733 + $0x68] sm:$0xff]
    %v4748 = vld [vmem:[%s4733 + $0x70] sm:$0xff]
    %v4749 = vld [vmem:[%s4733 + $0x78] sm:$0xff]
    %4750 = vmatprep.subr.mxu0 0.0
    %4751 = vmatpush1.msra.mxu0 %v4749
    %4752 = vmatprep.subr.mxu0 0.0
    %4753 = vmatpush1.msra.mxu0 %v4748
    %4754 = vmatprep.subr.mxu0 0.0
    %4755 = vmatpush1.msra.mxu0 %v4747
    %4756 = vmatprep.subr.mxu0 0.0
    %4757 = vmatpush1.msra.mxu0 %v4746
    %4758 = vmatprep.subr.mxu0 0.0
    %4759 = vmatpush1.msra.mxu0 %v4745
    %4760 = vmatprep.subr.mxu0 0.0
    %4761 = vmatpush1.msra.mxu0 %v4744
    %4762 = vmatprep.subr.mxu0 0.0
    %4763 = vmatpush1.msra.mxu0 %v4743
    %4764 = vmatprep.subr.mxu0 0.0
    %4765 = vmatpush1.msra.mxu0 %v4742
    %4766 = vmatprep.subr.mxu0 0.0
    %4767 = vmatpush1.msra.mxu0 %v4741
    %4768 = vmatprep.subr.mxu0 0.0
    %4769 = vmatpush1.msra.mxu0 %v4740
    %4770 = vmatprep.subr.mxu0 0.0
    %4771 = vmatpush1.msra.mxu0 %v4739
    %4772 = vmatprep.subr.mxu0 0.0
    %4773 = vmatpush1.msra.mxu0 %v4738
    %4774 = vmatprep.subr.mxu0 0.0
    %4775 = vmatpush1.msra.mxu0 %v4737
    %4776 = vmatprep.subr.mxu0 0.0
    %4777 = vmatpush1.msra.mxu0 %v4736
    %4778 = vmatprep.subr.mxu0 0.0
    %4779 = vmatpush1.msra.mxu0 %v4735
    %4780 = vmatprep.subr.mxu0 0.0
    %4781 = vmatpush1.msra.mxu0 %v4734
    %4782 = vmatprep.subr.mxu0 0.0
    %4783 = vmatpush2.msra.mxu0 0.0
    %4784 = vmatprep.subr.mxu0 0.0
    %4785 = vmatpush2.msra.mxu0 0.0
    %4786 = vmatprep.subr.mxu0 0.0
    %4787 = vmatpush2.msra.mxu0 0.0
    %4788 = vmatprep.subr.mxu0 0.0
    %4789 = vmatpush2.msra.mxu0 0.0
    %4790 = vmatprep.subr.mxu0 0.0
    %4791 = vmatpush2.msra.mxu0 0.0
    %4792 = vmatprep.subr.mxu0 0.0
    %4793 = vmatpush2.msra.mxu0 0.0
    %4794 = vmatprep.subr.mxu0 0.0
    %4795 = vmatpush2.msra.mxu0 0.0
    %4796 = vmatprep.subr.mxu0 0.0
    %4797 = vmatpush2.msra.mxu0 0.0
    %4798 = vmatprep.subr.mxu0 0.0
    %4799 = vmatpush2.msra.mxu0 0.0
    %4800 = vmatprep.subr.mxu0 0.0
    %4801 = vmatpush2.msra.mxu0 0.0
    %4802 = vmatprep.subr.mxu0 0.0
    %4803 = vmatpush2.msra.mxu0 0.0
    %4804 = vmatprep.subr.mxu0 0.0
    %4805 = vmatpush2.msra.mxu0 0.0
    %4806 = vmatprep.subr.mxu0 0.0
    %4807 = vmatpush2.msra.mxu0 0.0
    %4808 = vmatprep.subr.mxu0 0.0
    %4809 = vmatpush2.msra.mxu0 0.0
    %4810 = vmatprep.subr.mxu0 0.0
    %4811 = vmatpush2.msra.mxu0 0.0
    %4812 = vmatprep.subr.mxu0 0.0
    %4813 = vmatpush2.msra.mxu0 0.0
    %4814 = vmatprep.mubr.f32.mxu0 0.0
    %4815 = vmatmul.mubr.f32.gmra.mxu0 %v2711
    %v4816 = vpop.f32.mrf.mxu0
    %v4817 = vadd.f32 0.0, %v4816
    %v4818 = vpop.f32.mrf.mxu0
    %4819 = vmatprep.mubr.f32.mxu0 0.0
    %4820 = vmatmul.mubr.f32.gmra.mxu0 %v2714
    %v4821 = vpop.f32.mrf.mxu0
    %v4822 = vadd.f32 0.0, %v4821
    %v4823 = vpop.f32.mrf.mxu0
    %4824 = vmatprep.mubr.f32.mxu0 0.0
    %4825 = vmatmul.mubr.f32.gmra.mxu0 %v2717
    %v4826 = vpop.f32.mrf.mxu0
    %v4827 = vadd.f32 0.0, %v4826
    %v4828 = vpop.f32.mrf.mxu0
    %4829 = vmatprep.mubr.f32.mxu0 0.0
    %4830 = vmatmul.mubr.f32.gmra.mxu0 %v2720
    %v4831 = vpop.f32.mrf.mxu0
    %v4832 = vadd.f32 0.0, %v4831
    %v4833 = vpop.f32.mrf.mxu0
    %4834 = vmatprep.mubr.f32.mxu0 0.0
    %4835 = vmatmul.mubr.f32.gmra.mxu0 %v2723
    %v4836 = vpop.f32.mrf.mxu0
    %v4837 = vadd.f32 0.0, %v4836
    %v4838 = vpop.f32.mrf.mxu0
    %4839 = vmatprep.mubr.f32.mxu0 0.0
    %4840 = vmatmul.mubr.f32.gmra.mxu0 %v2726
    %v4841 = vpop.f32.mrf.mxu0
    %v4842 = vadd.f32 0.0, %v4841
    %v4843 = vpop.f32.mrf.mxu0
    %4844 = vmatprep.mubr.f32.mxu0 0.0
    %4845 = vmatmul.mubr.f32.gmra.mxu0 %v3801
    %v4846 = vpop.f32.mrf.mxu0
    %v4847 = vadd.f32 0.0, %v4846
    %v4848 = vpop.f32.mrf.mxu0
    %4849 = vmatprep.mubr.f32.mxu0 0.0
    %4850 = vmatmul.mubr.f32.gmra.mxu0 %v4727
    %v4851 = vpop.f32.mrf.mxu0
    %v4852 = vadd.f32 0.0, %v4851
    %v4853 = vpop.f32.mrf.mxu0
    %4854 = vmatprep.mubr.f32.mxu0 0.0
    %4855 = vmatmul.mubr.f32.gmra.mxu0 %v2735
    %v4856 = vpop.f32.mrf.mxu0
    %v4857 = vadd.f32 0.0, %v4856
    %v4858 = vpop.f32.mrf.mxu0
    %4859 = vmatprep.mubr.f32.mxu0 0.0
    %4860 = vmatmul.mubr.f32.gmra.mxu0 %v2738
    %v4861 = vpop.f32.mrf.mxu0
    %v4862 = vadd.f32 0.0, %v4861
    %v4863 = vpop.f32.mrf.mxu0
    %4864 = vmatprep.mubr.f32.mxu0 0.0
    %4865 = vmatmul.mubr.f32.gmra.mxu0 %v2741
    %v4866 = vpop.f32.mrf.mxu0
    %v4867 = vadd.f32 0.0, %v4866
    %v4868 = vpop.f32.mrf.mxu0
    %4869 = vmatprep.mubr.f32.mxu0 0.0
    %4870 = vmatmul.mubr.f32.gmra.mxu0 %v2744
    %v4871 = vpop.f32.mrf.mxu0
    %v4872 = vadd.f32 0.0, %v4871
    %v4873 = vpop.f32.mrf.mxu0
    %4874 = vmatprep.mubr.f32.mxu0 0.0
    %4875 = vmatmul.mubr.f32.gmra.mxu0 %v2747
    %v4876 = vpop.f32.mrf.mxu0
    %v4877 = vadd.f32 0.0, %v4876
    %v4878 = vpop.f32.mrf.mxu0
    %4879 = vmatprep.mubr.f32.mxu0 0.0
    %4880 = vmatmul.mubr.f32.gmra.mxu0 %v2750
    %v4881 = vpop.f32.mrf.mxu0
    %v4882 = vadd.f32 0.0, %v4881
    %v4883 = vpop.f32.mrf.mxu0
    %4884 = vmatprep.mubr.f32.mxu0 0.0
    %4885 = vmatmul.mubr.f32.gmra.mxu0 %v3804
    %v4886 = vpop.f32.mrf.mxu0
    %v4887 = vadd.f32 0.0, %v4886
    %v4888 = vpop.f32.mrf.mxu0
    %4889 = vmatprep.mubr.f32.mxu0 0.0
    %4890 = vmatmul.mubr.f32.gmra.mxu0 %v4730
    %v4891 = vpop.f32.mrf.mxu0
    %v4892 = vadd.f32 0.0, %v4891
    %v4893 = vpop.f32.mrf.mxu0
    %4894 = vdwg.mxu0
    %v4895 = vadd.f32 %v4709, %v4817
    %v4896 = vadd.f32 %v4710, %v4822
    %v4897 = vadd.f32 %v4711, %v4827
    %v4898 = vadd.f32 %v4712, %v4832
    %v4899 = vadd.f32 %v4713, %v4837
    %v4900 = vadd.f32 %v4714, %v4842
    %v4901 = vadd.f32 %v4715, %v4847
    %v4902 = vadd.f32 %v4716, %v4852
    %v4903 = vadd.f32 %v4717, %v4857
    %v4904 = vadd.f32 %v4718, %v4862
    %v4905 = vadd.f32 %v4719, %v4867
    %v4906 = vadd.f32 %v4720, %v4872
    %v4907 = vadd.f32 %v4721, %v4877
    %v4908 = vadd.f32 %v4722, %v4882
    %v4909 = vadd.f32 %v4723, %v4887
    %v4910 = vadd.f32 %v4724, %v4892
    %v4911 = vrot.slane %v2252, 3
    %v4912 = vrot.slane %v2253, 3
    %v4913 = vsel %vm2945, %v4911, %v4912
    %v4914 = vrot.slane %v2276, 3
    %v4915 = vrot.slane %v2277, 3
    %v4916 = vsel %vm2945, %v4914, %v4915
    %s4919 = scalar_lea.vmem %s3, 1664
    %v4920 = vld [vmem:[%s4919] sm:$0xff]
    %v4921 = vld [vmem:[%s4919 + $0x8] sm:$0xff]
    %v4922 = vld [vmem:[%s4919 + $0x10] sm:$0xff]
    %v4923 = vld [vmem:[%s4919 + $0x18] sm:$0xff]
    %v4924 = vld [vmem:[%s4919 + $0x20] sm:$0xff]
    %v4925 = vld [vmem:[%s4919 + $0x28] sm:$0xff]
    %v4926 = vld [vmem:[%s4919 + $0x30] sm:$0xff]
    %v4927 = vld [vmem:[%s4919 + $0x38] sm:$0xff]
    %v4928 = vld [vmem:[%s4919 + $0x40] sm:$0xff]
    %v4929 = vld [vmem:[%s4919 + $0x48] sm:$0xff]
    %v4930 = vld [vmem:[%s4919 + $0x50] sm:$0xff]
    %v4931 = vld [vmem:[%s4919 + $0x58] sm:$0xff]
    %v4932 = vld [vmem:[%s4919 + $0x60] sm:$0xff]
    %v4933 = vld [vmem:[%s4919 + $0x68] sm:$0xff]
    %v4934 = vld [vmem:[%s4919 + $0x70] sm:$0xff]
    %v4935 = vld [vmem:[%s4919 + $0x78] sm:$0xff]
    %4936 = vmatprep.subr.mxu0 0.0
    %4937 = vmatpush1.msra.mxu0 %v4935
    %4938 = vmatprep.subr.mxu0 0.0
    %4939 = vmatpush1.msra.mxu0 %v4934
    %4940 = vmatprep.subr.mxu0 0.0
    %4941 = vmatpush1.msra.mxu0 %v4933
    %4942 = vmatprep.subr.mxu0 0.0
    %4943 = vmatpush1.msra.mxu0 %v4932
    %4944 = vmatprep.subr.mxu0 0.0
    %4945 = vmatpush1.msra.mxu0 %v4931
    %4946 = vmatprep.subr.mxu0 0.0
    %4947 = vmatpush1.msra.mxu0 %v4930
    %4948 = vmatprep.subr.mxu0 0.0
    %4949 = vmatpush1.msra.mxu0 %v4929
    %4950 = vmatprep.subr.mxu0 0.0
    %4951 = vmatpush1.msra.mxu0 %v4928
    %4952 = vmatprep.subr.mxu0 0.0
    %4953 = vmatpush1.msra.mxu0 %v4927
    %4954 = vmatprep.subr.mxu0 0.0
    %4955 = vmatpush1.msra.mxu0 %v4926
    %4956 = vmatprep.subr.mxu0 0.0
    %4957 = vmatpush1.msra.mxu0 %v4925
    %4958 = vmatprep.subr.mxu0 0.0
    %4959 = vmatpush1.msra.mxu0 %v4924
    %4960 = vmatprep.subr.mxu0 0.0
    %4961 = vmatpush1.msra.mxu0 %v4923
    %4962 = vmatprep.subr.mxu0 0.0
    %4963 = vmatpush1.msra.mxu0 %v4922
    %4964 = vmatprep.subr.mxu0 0.0
    %4965 = vmatpush1.msra.mxu0 %v4921
    %4966 = vmatprep.subr.mxu0 0.0
    %4967 = vmatpush1.msra.mxu0 %v4920
    %4968 = vmatprep.subr.mxu0 0.0
    %4969 = vmatpush2.msra.mxu0 0.0
    %4970 = vmatprep.subr.mxu0 0.0
    %4971 = vmatpush2.msra.mxu0 0.0
    %4972 = vmatprep.subr.mxu0 0.0
    %4973 = vmatpush2.msra.mxu0 0.0
    %4974 = vmatprep.subr.mxu0 0.0
    %4975 = vmatpush2.msra.mxu0 0.0
    %4976 = vmatprep.subr.mxu0 0.0
    %4977 = vmatpush2.msra.mxu0 0.0
    %4978 = vmatprep.subr.mxu0 0.0
    %4979 = vmatpush2.msra.mxu0 0.0
    %4980 = vmatprep.subr.mxu0 0.0
    %4981 = vmatpush2.msra.mxu0 0.0
    %4982 = vmatprep.subr.mxu0 0.0
    %4983 = vmatpush2.msra.mxu0 0.0
    %4984 = vmatprep.subr.mxu0 0.0
    %4985 = vmatpush2.msra.mxu0 0.0
    %4986 = vmatprep.subr.mxu0 0.0
    %4987 = vmatpush2.msra.mxu0 0.0
    %4988 = vmatprep.subr.mxu0 0.0
    %4989 = vmatpush2.msra.mxu0 0.0
    %4990 = vmatprep.subr.mxu0 0.0
    %4991 = vmatpush2.msra.mxu0 0.0
    %4992 = vmatprep.subr.mxu0 0.0
    %4993 = vmatpush2.msra.mxu0 0.0
    %4994 = vmatprep.subr.mxu0 0.0
    %4995 = vmatpush2.msra.mxu0 0.0
    %4996 = vmatprep.subr.mxu0 0.0
    %4997 = vmatpush2.msra.mxu0 0.0
    %4998 = vmatprep.subr.mxu0 0.0
    %4999 = vmatpush2.msra.mxu0 0.0
    %5000 = vmatprep.mubr.f32.mxu0 0.0
    %5001 = vmatmul.mubr.f32.gmra.mxu0 %v2954
    %v5002 = vpop.f32.mrf.mxu0
    %v5003 = vadd.f32 0.0, %v5002
    %v5004 = vpop.f32.mrf.mxu0
    %5005 = vmatprep.mubr.f32.mxu0 0.0
    %5006 = vmatmul.mubr.f32.gmra.mxu0 %v2957
    %v5007 = vpop.f32.mrf.mxu0
    %v5008 = vadd.f32 0.0, %v5007
    %v5009 = vpop.f32.mrf.mxu0
    %5010 = vmatprep.mubr.f32.mxu0 0.0
    %5011 = vmatmul.mubr.f32.gmra.mxu0 %v2960
    %v5012 = vpop.f32.mrf.mxu0
    %v5013 = vadd.f32 0.0, %v5012
    %v5014 = vpop.f32.mrf.mxu0
    %5015 = vmatprep.mubr.f32.mxu0 0.0
    %5016 = vmatmul.mubr.f32.gmra.mxu0 %v2963
    %v5017 = vpop.f32.mrf.mxu0
    %v5018 = vadd.f32 0.0, %v5017
    %v5019 = vpop.f32.mrf.mxu0
    %5020 = vmatprep.mubr.f32.mxu0 0.0
    %5021 = vmatmul.mubr.f32.gmra.mxu0 %v2966
    %v5022 = vpop.f32.mrf.mxu0
    %v5023 = vadd.f32 0.0, %v5022
    %v5024 = vpop.f32.mrf.mxu0
    %5025 = vmatprep.mubr.f32.mxu0 0.0
    %5026 = vmatmul.mubr.f32.gmra.mxu0 %v2969
    %v5027 = vpop.f32.mrf.mxu0
    %v5028 = vadd.f32 0.0, %v5027
    %v5029 = vpop.f32.mrf.mxu0
    %5030 = vmatprep.mubr.f32.mxu0 0.0
    %5031 = vmatmul.mubr.f32.gmra.mxu0 %v3987
    %v5032 = vpop.f32.mrf.mxu0
    %v5033 = vadd.f32 0.0, %v5032
    %v5034 = vpop.f32.mrf.mxu0
    %5035 = vmatprep.mubr.f32.mxu0 0.0
    %5036 = vmatmul.mubr.f32.gmra.mxu0 %v4913
    %v5037 = vpop.f32.mrf.mxu0
    %v5038 = vadd.f32 0.0, %v5037
    %v5039 = vpop.f32.mrf.mxu0
    %5040 = vmatprep.mubr.f32.mxu0 0.0
    %5041 = vmatmul.mubr.f32.gmra.mxu0 %v2978
    %v5042 = vpop.f32.mrf.mxu0
    %v5043 = vadd.f32 0.0, %v5042
    %v5044 = vpop.f32.mrf.mxu0
    %5045 = vmatprep.mubr.f32.mxu0 0.0
    %5046 = vmatmul.mubr.f32.gmra.mxu0 %v2981
    %v5047 = vpop.f32.mrf.mxu0
    %v5048 = vadd.f32 0.0, %v5047
    %v5049 = vpop.f32.mrf.mxu0
    %5050 = vmatprep.mubr.f32.mxu0 0.0
    %5051 = vmatmul.mubr.f32.gmra.mxu0 %v2984
    %v5052 = vpop.f32.mrf.mxu0
    %v5053 = vadd.f32 0.0, %v5052
    %v5054 = vpop.f32.mrf.mxu0
    %5055 = vmatprep.mubr.f32.mxu0 0.0
    %5056 = vmatmul.mubr.f32.gmra.mxu0 %v2987
    %v5057 = vpop.f32.mrf.mxu0
    %v5058 = vadd.f32 0.0, %v5057
    %v5059 = vpop.f32.mrf.mxu0
    %5060 = vmatprep.mubr.f32.mxu0 0.0
    %5061 = vmatmul.mubr.f32.gmra.mxu0 %v2990
    %v5062 = vpop.f32.mrf.mxu0
    %v5063 = vadd.f32 0.0, %v5062
    %v5064 = vpop.f32.mrf.mxu0
    %5065 = vmatprep.mubr.f32.mxu0 0.0
    %5066 = vmatmul.mubr.f32.gmra.mxu0 %v2993
    %v5067 = vpop.f32.mrf.mxu0
    %v5068 = vadd.f32 0.0, %v5067
    %v5069 = vpop.f32.mrf.mxu0
    %5070 = vmatprep.mubr.f32.mxu0 0.0
    %5071 = vmatmul.mubr.f32.gmra.mxu0 %v3990
    %v5072 = vpop.f32.mrf.mxu0
    %v5073 = vadd.f32 0.0, %v5072
    %v5074 = vpop.f32.mrf.mxu0
    %5075 = vmatprep.mubr.f32.mxu0 0.0
    %5076 = vmatmul.mubr.f32.gmra.mxu0 %v4916
    %v5077 = vpop.f32.mrf.mxu0
    %v5078 = vadd.f32 0.0, %v5077
    %v5079 = vpop.f32.mrf.mxu0
    %5080 = vdwg.mxu0
    %v5081 = vadd.f32 %v4895, %v5003
    %v5082 = vadd.f32 %v4896, %v5008
    %v5083 = vadd.f32 %v4897, %v5013
    %v5084 = vadd.f32 %v4898, %v5018
    %v5085 = vadd.f32 %v4899, %v5023
    %v5086 = vadd.f32 %v4900, %v5028
    %v5087 = vadd.f32 %v4901, %v5033
    %v5088 = vadd.f32 %v4902, %v5038
    %v5089 = vadd.f32 %v4903, %v5043
    %v5090 = vadd.f32 %v4904, %v5048
    %v5091 = vadd.f32 %v4905, %v5053
    %v5092 = vadd.f32 %v4906, %v5058
    %v5093 = vadd.f32 %v4907, %v5063
    %v5094 = vadd.f32 %v4908, %v5068
    %v5095 = vadd.f32 %v4909, %v5073
    %v5096 = vadd.f32 %v4910, %v5078
    %v5097 = vrot.slane %v2252, 4
    %v5098 = vrot.slane %v2253, 4
    %v5099 = vsel %vm3188, %v5097, %v5098
    %v5100 = vrot.slane %v2276, 4
    %v5101 = vrot.slane %v2277, 4
    %v5102 = vsel %vm3188, %v5100, %v5101
    %s5105 = scalar_lea.vmem %s3, 1792
    %v5106 = vld [vmem:[%s5105] sm:$0xff]
    %v5107 = vld [vmem:[%s5105 + $0x8] sm:$0xff]
    %v5108 = vld [vmem:[%s5105 + $0x10] sm:$0xff]
    %v5109 = vld [vmem:[%s5105 + $0x18] sm:$0xff]
    %v5110 = vld [vmem:[%s5105 + $0x20] sm:$0xff]
    %v5111 = vld [vmem:[%s5105 + $0x28] sm:$0xff]
    %v5112 = vld [vmem:[%s5105 + $0x30] sm:$0xff]
    %v5113 = vld [vmem:[%s5105 + $0x38] sm:$0xff]
    %v5114 = vld [vmem:[%s5105 + $0x40] sm:$0xff]
    %v5115 = vld [vmem:[%s5105 + $0x48] sm:$0xff]
    %v5116 = vld [vmem:[%s5105 + $0x50] sm:$0xff]
    %v5117 = vld [vmem:[%s5105 + $0x58] sm:$0xff]
    %v5118 = vld [vmem:[%s5105 + $0x60] sm:$0xff]
    %v5119 = vld [vmem:[%s5105 + $0x68] sm:$0xff]
    %v5120 = vld [vmem:[%s5105 + $0x70] sm:$0xff]
    %v5121 = vld [vmem:[%s5105 + $0x78] sm:$0xff]
    %5122 = vmatprep.subr.mxu0 0.0
    %5123 = vmatpush1.msra.mxu0 %v5121
    %5124 = vmatprep.subr.mxu0 0.0
    %5125 = vmatpush1.msra.mxu0 %v5120
    %5126 = vmatprep.subr.mxu0 0.0
    %5127 = vmatpush1.msra.mxu0 %v5119
    %5128 = vmatprep.subr.mxu0 0.0
    %5129 = vmatpush1.msra.mxu0 %v5118
    %5130 = vmatprep.subr.mxu0 0.0
    %5131 = vmatpush1.msra.mxu0 %v5117
    %5132 = vmatprep.subr.mxu0 0.0
    %5133 = vmatpush1.msra.mxu0 %v5116
    %5134 = vmatprep.subr.mxu0 0.0
    %5135 = vmatpush1.msra.mxu0 %v5115
    %5136 = vmatprep.subr.mxu0 0.0
    %5137 = vmatpush1.msra.mxu0 %v5114
    %5138 = vmatprep.subr.mxu0 0.0
    %5139 = vmatpush1.msra.mxu0 %v5113
    %5140 = vmatprep.subr.mxu0 0.0
    %5141 = vmatpush1.msra.mxu0 %v5112
    %5142 = vmatprep.subr.mxu0 0.0
    %5143 = vmatpush1.msra.mxu0 %v5111
    %5144 = vmatprep.subr.mxu0 0.0
    %5145 = vmatpush1.msra.mxu0 %v5110
    %5146 = vmatprep.subr.mxu0 0.0
    %5147 = vmatpush1.msra.mxu0 %v5109
    %5148 = vmatprep.subr.mxu0 0.0
    %5149 = vmatpush1.msra.mxu0 %v5108
    %5150 = vmatprep.subr.mxu0 0.0
    %5151 = vmatpush1.msra.mxu0 %v5107
    %5152 = vmatprep.subr.mxu0 0.0
    %5153 = vmatpush1.msra.mxu0 %v5106
    %5154 = vmatprep.subr.mxu0 0.0
    %5155 = vmatpush2.msra.mxu0 0.0
    %5156 = vmatprep.subr.mxu0 0.0
    %5157 = vmatpush2.msra.mxu0 0.0
    %5158 = vmatprep.subr.mxu0 0.0
    %5159 = vmatpush2.msra.mxu0 0.0
    %5160 = vmatprep.subr.mxu0 0.0
    %5161 = vmatpush2.msra.mxu0 0.0
    %5162 = vmatprep.subr.mxu0 0.0
    %5163 = vmatpush2.msra.mxu0 0.0
    %5164 = vmatprep.subr.mxu0 0.0
    %5165 = vmatpush2.msra.mxu0 0.0
    %5166 = vmatprep.subr.mxu0 0.0
    %5167 = vmatpush2.msra.mxu0 0.0
    %5168 = vmatprep.subr.mxu0 0.0
    %5169 = vmatpush2.msra.mxu0 0.0
    %5170 = vmatprep.subr.mxu0 0.0
    %5171 = vmatpush2.msra.mxu0 0.0
    %5172 = vmatprep.subr.mxu0 0.0
    %5173 = vmatpush2.msra.mxu0 0.0
    %5174 = vmatprep.subr.mxu0 0.0
    %5175 = vmatpush2.msra.mxu0 0.0
    %5176 = vmatprep.subr.mxu0 0.0
    %5177 = vmatpush2.msra.mxu0 0.0
    %5178 = vmatprep.subr.mxu0 0.0
    %5179 = vmatpush2.msra.mxu0 0.0
    %5180 = vmatprep.subr.mxu0 0.0
    %5181 = vmatpush2.msra.mxu0 0.0
    %5182 = vmatprep.subr.mxu0 0.0
    %5183 = vmatpush2.msra.mxu0 0.0
    %5184 = vmatprep.subr.mxu0 0.0
    %5185 = vmatpush2.msra.mxu0 0.0
    %5186 = vmatprep.mubr.f32.mxu0 0.0
    %5187 = vmatmul.mubr.f32.gmra.mxu0 %v3197
    %v5188 = vpop.f32.mrf.mxu0
    %v5189 = vadd.f32 0.0, %v5188
    %v5190 = vpop.f32.mrf.mxu0
    %5191 = vmatprep.mubr.f32.mxu0 0.0
    %5192 = vmatmul.mubr.f32.gmra.mxu0 %v3200
    %v5193 = vpop.f32.mrf.mxu0
    %v5194 = vadd.f32 0.0, %v5193
    %v5195 = vpop.f32.mrf.mxu0
    %5196 = vmatprep.mubr.f32.mxu0 0.0
    %5197 = vmatmul.mubr.f32.gmra.mxu0 %v3203
    %v5198 = vpop.f32.mrf.mxu0
    %v5199 = vadd.f32 0.0, %v5198
    %v5200 = vpop.f32.mrf.mxu0
    %5201 = vmatprep.mubr.f32.mxu0 0.0
    %5202 = vmatmul.mubr.f32.gmra.mxu0 %v3206
    %v5203 = vpop.f32.mrf.mxu0
    %v5204 = vadd.f32 0.0, %v5203
    %v5205 = vpop.f32.mrf.mxu0
    %5206 = vmatprep.mubr.f32.mxu0 0.0
    %5207 = vmatmul.mubr.f32.gmra.mxu0 %v3209
    %v5208 = vpop.f32.mrf.mxu0
    %v5209 = vadd.f32 0.0, %v5208
    %v5210 = vpop.f32.mrf.mxu0
    %5211 = vmatprep.mubr.f32.mxu0 0.0
    %5212 = vmatmul.mubr.f32.gmra.mxu0 %v3212
    %v5213 = vpop.f32.mrf.mxu0
    %v5214 = vadd.f32 0.0, %v5213
    %v5215 = vpop.f32.mrf.mxu0
    %5216 = vmatprep.mubr.f32.mxu0 0.0
    %5217 = vmatmul.mubr.f32.gmra.mxu0 %v4173
    %v5218 = vpop.f32.mrf.mxu0
    %v5219 = vadd.f32 0.0, %v5218
    %v5220 = vpop.f32.mrf.mxu0
    %5221 = vmatprep.mubr.f32.mxu0 0.0
    %5222 = vmatmul.mubr.f32.gmra.mxu0 %v5099
    %v5223 = vpop.f32.mrf.mxu0
    %v5224 = vadd.f32 0.0, %v5223
    %v5225 = vpop.f32.mrf.mxu0
    %5226 = vmatprep.mubr.f32.mxu0 0.0
    %5227 = vmatmul.mubr.f32.gmra.mxu0 %v3221
    %v5228 = vpop.f32.mrf.mxu0
    %v5229 = vadd.f32 0.0, %v5228
    %v5230 = vpop.f32.mrf.mxu0
    %5231 = vmatprep.mubr.f32.mxu0 0.0
    %5232 = vmatmul.mubr.f32.gmra.mxu0 %v3224
    %v5233 = vpop.f32.mrf.mxu0
    %v5234 = vadd.f32 0.0, %v5233
    %v5235 = vpop.f32.mrf.mxu0
    %5236 = vmatprep.mubr.f32.mxu0 0.0
    %5237 = vmatmul.mubr.f32.gmra.mxu0 %v3227
    %v5238 = vpop.f32.mrf.mxu0
    %v5239 = vadd.f32 0.0, %v5238
    %v5240 = vpop.f32.mrf.mxu0
    %5241 = vmatprep.mubr.f32.mxu0 0.0
    %5242 = vmatmul.mubr.f32.gmra.mxu0 %v3230
    %v5243 = vpop.f32.mrf.mxu0
    %v5244 = vadd.f32 0.0, %v5243
    %v5245 = vpop.f32.mrf.mxu0
    %5246 = vmatprep.mubr.f32.mxu0 0.0
    %5247 = vmatmul.mubr.f32.gmra.mxu0 %v3233
    %v5248 = vpop.f32.mrf.mxu0
    %v5249 = vadd.f32 0.0, %v5248
    %v5250 = vpop.f32.mrf.mxu0
    %5251 = vmatprep.mubr.f32.mxu0 0.0
    %5252 = vmatmul.mubr.f32.gmra.mxu0 %v3236
    %v5253 = vpop.f32.mrf.mxu0
    %v5254 = vadd.f32 0.0, %v5253
    %v5255 = vpop.f32.mrf.mxu0
    %5256 = vmatprep.mubr.f32.mxu0 0.0
    %5257 = vmatmul.mubr.f32.gmra.mxu0 %v4176
    %v5258 = vpop.f32.mrf.mxu0
    %v5259 = vadd.f32 0.0, %v5258
    %v5260 = vpop.f32.mrf.mxu0
    %5261 = vmatprep.mubr.f32.mxu0 0.0
    %5262 = vmatmul.mubr.f32.gmra.mxu0 %v5102
    %v5263 = vpop.f32.mrf.mxu0
    %v5264 = vadd.f32 0.0, %v5263
    %v5265 = vpop.f32.mrf.mxu0
    %5266 = vdwg.mxu0
    %v5267 = vadd.f32 %v5081, %v5189
    %v5268 = vadd.f32 %v5082, %v5194
    %v5269 = vadd.f32 %v5083, %v5199
    %v5270 = vadd.f32 %v5084, %v5204
    %v5271 = vadd.f32 %v5085, %v5209
    %v5272 = vadd.f32 %v5086, %v5214
    %v5273 = vadd.f32 %v5087, %v5219
    %v5274 = vadd.f32 %v5088, %v5224
    %v5275 = vadd.f32 %v5089, %v5229
    %v5276 = vadd.f32 %v5090, %v5234
    %v5277 = vadd.f32 %v5091, %v5239
    %v5278 = vadd.f32 %v5092, %v5244
    %v5279 = vadd.f32 %v5093, %v5249
    %v5280 = vadd.f32 %v5094, %v5254
    %v5281 = vadd.f32 %v5095, %v5259
    %v5282 = vadd.f32 %v5096, %v5264
    %s5283 = scalar_lea.vmem %s3, 1920
    %v5284 = vld [vmem:[%s5283] sm:$0xff]
    %v5285 = vld [vmem:[%s5283 + $0x8] sm:$0xff]
    %v5286 = vld [vmem:[%s5283 + $0x10] sm:$0xff]
    %v5287 = vld [vmem:[%s5283 + $0x18] sm:$0xff]
    %v5288 = vld [vmem:[%s5283 + $0x20] sm:$0xff]
    %v5289 = vld [vmem:[%s5283 + $0x28] sm:$0xff]
    %v5290 = vld [vmem:[%s5283 + $0x30] sm:$0xff]
    %v5291 = vld [vmem:[%s5283 + $0x38] sm:$0xff]
    %v5292 = vld [vmem:[%s5283 + $0x40] sm:$0xff]
    %v5293 = vld [vmem:[%s5283 + $0x48] sm:$0xff]
    %v5294 = vld [vmem:[%s5283 + $0x50] sm:$0xff]
    %v5295 = vld [vmem:[%s5283 + $0x58] sm:$0xff]
    %v5296 = vld [vmem:[%s5283 + $0x60] sm:$0xff]
    %v5297 = vld [vmem:[%s5283 + $0x68] sm:$0xff]
    %v5298 = vld [vmem:[%s5283 + $0x70] sm:$0xff]
    %v5299 = vld [vmem:[%s5283 + $0x78] sm:$0xff]
    %5300 = vmatprep.subr.mxu0 0.0
    %5301 = vmatpush1.msra.mxu0 %v5299
    %5302 = vmatprep.subr.mxu0 0.0
    %5303 = vmatpush1.msra.mxu0 %v5298
    %5304 = vmatprep.subr.mxu0 0.0
    %5305 = vmatpush1.msra.mxu0 %v5297
    %5306 = vmatprep.subr.mxu0 0.0
    %5307 = vmatpush1.msra.mxu0 %v5296
    %5308 = vmatprep.subr.mxu0 0.0
    %5309 = vmatpush1.msra.mxu0 %v5295
    %5310 = vmatprep.subr.mxu0 0.0
    %5311 = vmatpush1.msra.mxu0 %v5294
    %5312 = vmatprep.subr.mxu0 0.0
    %5313 = vmatpush1.msra.mxu0 %v5293
    %5314 = vmatprep.subr.mxu0 0.0
    %5315 = vmatpush1.msra.mxu0 %v5292
    %5316 = vmatprep.subr.mxu0 0.0
    %5317 = vmatpush1.msra.mxu0 %v5291
    %5318 = vmatprep.subr.mxu0 0.0
    %5319 = vmatpush1.msra.mxu0 %v5290
    %5320 = vmatprep.subr.mxu0 0.0
    %5321 = vmatpush1.msra.mxu0 %v5289
    %5322 = vmatprep.subr.mxu0 0.0
    %5323 = vmatpush1.msra.mxu0 %v5288
    %5324 = vmatprep.subr.mxu0 0.0
    %5325 = vmatpush1.msra.mxu0 %v5287
    %5326 = vmatprep.subr.mxu0 0.0
    %5327 = vmatpush1.msra.mxu0 %v5286
    %5328 = vmatprep.subr.mxu0 0.0
    %5329 = vmatpush1.msra.mxu0 %v5285
    %5330 = vmatprep.subr.mxu0 0.0
    %5331 = vmatpush1.msra.mxu0 %v5284
    %5332 = vmatprep.subr.mxu0 0.0
    %5333 = vmatpush2.msra.mxu0 0.0
    %5334 = vmatprep.subr.mxu0 0.0
    %5335 = vmatpush2.msra.mxu0 0.0
    %5336 = vmatprep.subr.mxu0 0.0
    %5337 = vmatpush2.msra.mxu0 0.0
    %5338 = vmatprep.subr.mxu0 0.0
    %5339 = vmatpush2.msra.mxu0 0.0
    %5340 = vmatprep.subr.mxu0 0.0
    %5341 = vmatpush2.msra.mxu0 0.0
    %5342 = vmatprep.subr.mxu0 0.0
    %5343 = vmatpush2.msra.mxu0 0.0
    %5344 = vmatprep.subr.mxu0 0.0
    %5345 = vmatpush2.msra.mxu0 0.0
    %5346 = vmatprep.subr.mxu0 0.0
    %5347 = vmatpush2.msra.mxu0 0.0
    %5348 = vmatprep.subr.mxu0 0.0
    %5349 = vmatpush2.msra.mxu0 0.0
    %5350 = vmatprep.subr.mxu0 0.0
    %5351 = vmatpush2.msra.mxu0 0.0
    %5352 = vmatprep.subr.mxu0 0.0
    %5353 = vmatpush2.msra.mxu0 0.0
    %5354 = vmatprep.subr.mxu0 0.0
    %5355 = vmatpush2.msra.mxu0 0.0
    %5356 = vmatprep.subr.mxu0 0.0
    %5357 = vmatpush2.msra.mxu0 0.0
    %5358 = vmatprep.subr.mxu0 0.0
    %5359 = vmatpush2.msra.mxu0 0.0
    %5360 = vmatprep.subr.mxu0 0.0
    %5361 = vmatpush2.msra.mxu0 0.0
    %5362 = vmatprep.subr.mxu0 0.0
    %5363 = vmatpush2.msra.mxu0 0.0
    %5364 = vmatprep.mubr.f32.mxu0 0.0
    %5365 = vmatmul.mubr.f32.gmra.mxu0 %v2240
    %v5366 = vpop.f32.mrf.mxu0
    %v5367 = vadd.f32 0.0, %v5366
    %v5368 = vpop.f32.mrf.mxu0
    %5369 = vmatprep.mubr.f32.mxu0 0.0
    %5370 = vmatmul.mubr.f32.gmra.mxu0 %v2242
    %v5371 = vpop.f32.mrf.mxu0
    %v5372 = vadd.f32 0.0, %v5371
    %v5373 = vpop.f32.mrf.mxu0
    %5374 = vmatprep.mubr.f32.mxu0 0.0
    %5375 = vmatmul.mubr.f32.gmra.mxu0 %v2244
    %v5376 = vpop.f32.mrf.mxu0
    %v5377 = vadd.f32 0.0, %v5376
    %v5378 = vpop.f32.mrf.mxu0
    %5379 = vmatprep.mubr.f32.mxu0 0.0
    %5380 = vmatmul.mubr.f32.gmra.mxu0 %v2246
    %v5381 = vpop.f32.mrf.mxu0
    %v5382 = vadd.f32 0.0, %v5381
    %v5383 = vpop.f32.mrf.mxu0
    %5384 = vmatprep.mubr.f32.mxu0 0.0
    %5385 = vmatmul.mubr.f32.gmra.mxu0 %v2248
    %v5386 = vpop.f32.mrf.mxu0
    %v5387 = vadd.f32 0.0, %v5386
    %v5388 = vpop.f32.mrf.mxu0
    %5389 = vmatprep.mubr.f32.mxu0 0.0
    %5390 = vmatmul.mubr.f32.gmra.mxu0 %v2250
    %v5391 = vpop.f32.mrf.mxu0
    %v5392 = vadd.f32 0.0, %v5391
    %v5393 = vpop.f32.mrf.mxu0
    %5394 = vmatprep.mubr.f32.mxu0 0.0
    %5395 = vmatmul.mubr.f32.gmra.mxu0 %v2252
    %v5396 = vpop.f32.mrf.mxu0
    %v5397 = vadd.f32 0.0, %v5396
    %v5398 = vpop.f32.mrf.mxu0
    %5399 = vmatprep.mubr.f32.mxu0 0.0
    %5400 = vmatmul.mubr.f32.gmra.mxu0 %v2254
    %v5401 = vpop.f32.mrf.mxu0
    %v5402 = vadd.f32 0.0, %v5401
    %v5403 = vpop.f32.mrf.mxu0
    %5404 = vmatprep.mubr.f32.mxu0 0.0
    %5405 = vmatmul.mubr.f32.gmra.mxu0 %v2264
    %v5406 = vpop.f32.mrf.mxu0
    %v5407 = vadd.f32 0.0, %v5406
    %v5408 = vpop.f32.mrf.mxu0
    %5409 = vmatprep.mubr.f32.mxu0 0.0
    %5410 = vmatmul.mubr.f32.gmra.mxu0 %v2266
    %v5411 = vpop.f32.mrf.mxu0
    %v5412 = vadd.f32 0.0, %v5411
    %v5413 = vpop.f32.mrf.mxu0
    %5414 = vmatprep.mubr.f32.mxu0 0.0
    %5415 = vmatmul.mubr.f32.gmra.mxu0 %v2268
    %v5416 = vpop.f32.mrf.mxu0
    %v5417 = vadd.f32 0.0, %v5416
    %v5418 = vpop.f32.mrf.mxu0
    %5419 = vmatprep.mubr.f32.mxu0 0.0
    %5420 = vmatmul.mubr.f32.gmra.mxu0 %v2270
    %v5421 = vpop.f32.mrf.mxu0
    %v5422 = vadd.f32 0.0, %v5421
    %v5423 = vpop.f32.mrf.mxu0
    %5424 = vmatprep.mubr.f32.mxu0 0.0
    %5425 = vmatmul.mubr.f32.gmra.mxu0 %v2272
    %v5426 = vpop.f32.mrf.mxu0
    %v5427 = vadd.f32 0.0, %v5426
    %v5428 = vpop.f32.mrf.mxu0
    %5429 = vmatprep.mubr.f32.mxu0 0.0
    %5430 = vmatmul.mubr.f32.gmra.mxu0 %v2274
    %v5431 = vpop.f32.mrf.mxu0
    %v5432 = vadd.f32 0.0, %v5431
    %v5433 = vpop.f32.mrf.mxu0
    %5434 = vmatprep.mubr.f32.mxu0 0.0
    %5435 = vmatmul.mubr.f32.gmra.mxu0 %v2276
    %v5436 = vpop.f32.mrf.mxu0
    %v5437 = vadd.f32 0.0, %v5436
    %v5438 = vpop.f32.mrf.mxu0
    %5439 = vmatprep.mubr.f32.mxu0 0.0
    %5440 = vmatmul.mubr.f32.gmra.mxu0 %v2278
    %v5441 = vpop.f32.mrf.mxu0
    %v5442 = vadd.f32 0.0, %v5441
    %v5443 = vpop.f32.mrf.mxu0
    %5444 = vdwg.mxu0
    %v5445 = vadd.f32 %v5267, %v5367
    %v5446 = vadd.f32 %v5268, %v5372
    %v5447 = vadd.f32 %v5269, %v5377
    %v5448 = vadd.f32 %v5270, %v5382
    %v5449 = vadd.f32 %v5271, %v5387
    %v5450 = vadd.f32 %v5272, %v5392
    %v5451 = vadd.f32 %v5273, %v5397
    %v5452 = vadd.f32 %v5274, %v5402
    %v5453 = vadd.f32 %v5275, %v5407
    %v5454 = vadd.f32 %v5276, %v5412
    %v5455 = vadd.f32 %v5277, %v5417
    %v5456 = vadd.f32 %v5278, %v5422
    %v5457 = vadd.f32 %v5279, %v5427
    %v5458 = vadd.f32 %v5280, %v5432
    %v5459 = vadd.f32 %v5281, %v5437
    %v5460 = vadd.f32 %v5282, %v5442
    %v5465 = vrot.slane %v2254, 1
    %v5466 = vrot.slane %v2255, 1
    %v5467 = vsel %vm2330, %v5465, %v5466
    %v5468 = vrot.slane %v2278, 1
    %v5469 = vrot.slane %v2279, 1
    %v5470 = vsel %vm2330, %v5468, %v5469
    %s5473 = scalar_lea.vmem %s3, 2048
    %v5474 = vld [vmem:[%s5473] sm:$0xff]
    %v5475 = vld [vmem:[%s5473 + $0x8] sm:$0xff]
    %v5476 = vld [vmem:[%s5473 + $0x10] sm:$0xff]
    %v5477 = vld [vmem:[%s5473 + $0x18] sm:$0xff]
    %v5478 = vld [vmem:[%s5473 + $0x20] sm:$0xff]
    %v5479 = vld [vmem:[%s5473 + $0x28] sm:$0xff]
    %v5480 = vld [vmem:[%s5473 + $0x30] sm:$0xff]
    %v5481 = vld [vmem:[%s5473 + $0x38] sm:$0xff]
    %v5482 = vld [vmem:[%s5473 + $0x40] sm:$0xff]
    %v5483 = vld [vmem:[%s5473 + $0x48] sm:$0xff]
    %v5484 = vld [vmem:[%s5473 + $0x50] sm:$0xff]
    %v5485 = vld [vmem:[%s5473 + $0x58] sm:$0xff]
    %v5486 = vld [vmem:[%s5473 + $0x60] sm:$0xff]
    %v5487 = vld [vmem:[%s5473 + $0x68] sm:$0xff]
    %v5488 = vld [vmem:[%s5473 + $0x70] sm:$0xff]
    %v5489 = vld [vmem:[%s5473 + $0x78] sm:$0xff]
    %5490 = vmatprep.subr.mxu0 0.0
    %5491 = vmatpush1.msra.mxu0 %v5489
    %5492 = vmatprep.subr.mxu0 0.0
    %5493 = vmatpush1.msra.mxu0 %v5488
    %5494 = vmatprep.subr.mxu0 0.0
    %5495 = vmatpush1.msra.mxu0 %v5487
    %5496 = vmatprep.subr.mxu0 0.0
    %5497 = vmatpush1.msra.mxu0 %v5486
    %5498 = vmatprep.subr.mxu0 0.0
    %5499 = vmatpush1.msra.mxu0 %v5485
    %5500 = vmatprep.subr.mxu0 0.0
    %5501 = vmatpush1.msra.mxu0 %v5484
    %5502 = vmatprep.subr.mxu0 0.0
    %5503 = vmatpush1.msra.mxu0 %v5483
    %5504 = vmatprep.subr.mxu0 0.0
    %5505 = vmatpush1.msra.mxu0 %v5482
    %5506 = vmatprep.subr.mxu0 0.0
    %5507 = vmatpush1.msra.mxu0 %v5481
    %5508 = vmatprep.subr.mxu0 0.0
    %5509 = vmatpush1.msra.mxu0 %v5480
    %5510 = vmatprep.subr.mxu0 0.0
    %5511 = vmatpush1.msra.mxu0 %v5479
    %5512 = vmatprep.subr.mxu0 0.0
    %5513 = vmatpush1.msra.mxu0 %v5478
    %5514 = vmatprep.subr.mxu0 0.0
    %5515 = vmatpush1.msra.mxu0 %v5477
    %5516 = vmatprep.subr.mxu0 0.0
    %5517 = vmatpush1.msra.mxu0 %v5476
    %5518 = vmatprep.subr.mxu0 0.0
    %5519 = vmatpush1.msra.mxu0 %v5475
    %5520 = vmatprep.subr.mxu0 0.0
    %5521 = vmatpush1.msra.mxu0 %v5474
    %5522 = vmatprep.subr.mxu0 0.0
    %5523 = vmatpush2.msra.mxu0 0.0
    %5524 = vmatprep.subr.mxu0 0.0
    %5525 = vmatpush2.msra.mxu0 0.0
    %5526 = vmatprep.subr.mxu0 0.0
    %5527 = vmatpush2.msra.mxu0 0.0
    %5528 = vmatprep.subr.mxu0 0.0
    %5529 = vmatpush2.msra.mxu0 0.0
    %5530 = vmatprep.subr.mxu0 0.0
    %5531 = vmatpush2.msra.mxu0 0.0
    %5532 = vmatprep.subr.mxu0 0.0
    %5533 = vmatpush2.msra.mxu0 0.0
    %5534 = vmatprep.subr.mxu0 0.0
    %5535 = vmatpush2.msra.mxu0 0.0
    %5536 = vmatprep.subr.mxu0 0.0
    %5537 = vmatpush2.msra.mxu0 0.0
    %5538 = vmatprep.subr.mxu0 0.0
    %5539 = vmatpush2.msra.mxu0 0.0
    %5540 = vmatprep.subr.mxu0 0.0
    %5541 = vmatpush2.msra.mxu0 0.0
    %5542 = vmatprep.subr.mxu0 0.0
    %5543 = vmatpush2.msra.mxu0 0.0
    %5544 = vmatprep.subr.mxu0 0.0
    %5545 = vmatpush2.msra.mxu0 0.0
    %5546 = vmatprep.subr.mxu0 0.0
    %5547 = vmatpush2.msra.mxu0 0.0
    %5548 = vmatprep.subr.mxu0 0.0
    %5549 = vmatpush2.msra.mxu0 0.0
    %5550 = vmatprep.subr.mxu0 0.0
    %5551 = vmatpush2.msra.mxu0 0.0
    %5552 = vmatprep.subr.mxu0 0.0
    %5553 = vmatpush2.msra.mxu0 0.0
    %5554 = vmatprep.mubr.f32.mxu0 0.0
    %5555 = vmatmul.mubr.f32.gmra.mxu0 %v2342
    %v5556 = vpop.f32.mrf.mxu0
    %v5557 = vadd.f32 0.0, %v5556
    %v5558 = vpop.f32.mrf.mxu0
    %5559 = vmatprep.mubr.f32.mxu0 0.0
    %5560 = vmatmul.mubr.f32.gmra.mxu0 %v2345
    %v5561 = vpop.f32.mrf.mxu0
    %v5562 = vadd.f32 0.0, %v5561
    %v5563 = vpop.f32.mrf.mxu0
    %5564 = vmatprep.mubr.f32.mxu0 0.0
    %5565 = vmatmul.mubr.f32.gmra.mxu0 %v2348
    %v5566 = vpop.f32.mrf.mxu0
    %v5567 = vadd.f32 0.0, %v5566
    %v5568 = vpop.f32.mrf.mxu0
    %5569 = vmatprep.mubr.f32.mxu0 0.0
    %5570 = vmatmul.mubr.f32.gmra.mxu0 %v2351
    %v5571 = vpop.f32.mrf.mxu0
    %v5572 = vadd.f32 0.0, %v5571
    %v5573 = vpop.f32.mrf.mxu0
    %5574 = vmatprep.mubr.f32.mxu0 0.0
    %5575 = vmatmul.mubr.f32.gmra.mxu0 %v2354
    %v5576 = vpop.f32.mrf.mxu0
    %v5577 = vadd.f32 0.0, %v5576
    %v5578 = vpop.f32.mrf.mxu0
    %5579 = vmatprep.mubr.f32.mxu0 0.0
    %5580 = vmatmul.mubr.f32.gmra.mxu0 %v3615
    %v5581 = vpop.f32.mrf.mxu0
    %v5582 = vadd.f32 0.0, %v5581
    %v5583 = vpop.f32.mrf.mxu0
    %5584 = vmatprep.mubr.f32.mxu0 0.0
    %5585 = vmatmul.mubr.f32.gmra.mxu0 %v4541
    %v5586 = vpop.f32.mrf.mxu0
    %v5587 = vadd.f32 0.0, %v5586
    %v5588 = vpop.f32.mrf.mxu0
    %5589 = vmatprep.mubr.f32.mxu0 0.0
    %5590 = vmatmul.mubr.f32.gmra.mxu0 %v5467
    %v5591 = vpop.f32.mrf.mxu0
    %v5592 = vadd.f32 0.0, %v5591
    %v5593 = vpop.f32.mrf.mxu0
    %5594 = vmatprep.mubr.f32.mxu0 0.0
    %5595 = vmatmul.mubr.f32.gmra.mxu0 %v2366
    %v5596 = vpop.f32.mrf.mxu0
    %v5597 = vadd.f32 0.0, %v5596
    %v5598 = vpop.f32.mrf.mxu0
    %5599 = vmatprep.mubr.f32.mxu0 0.0
    %5600 = vmatmul.mubr.f32.gmra.mxu0 %v2369
    %v5601 = vpop.f32.mrf.mxu0
    %v5602 = vadd.f32 0.0, %v5601
    %v5603 = vpop.f32.mrf.mxu0
    %5604 = vmatprep.mubr.f32.mxu0 0.0
    %5605 = vmatmul.mubr.f32.gmra.mxu0 %v2372
    %v5606 = vpop.f32.mrf.mxu0
    %v5607 = vadd.f32 0.0, %v5606
    %v5608 = vpop.f32.mrf.mxu0
    %5609 = vmatprep.mubr.f32.mxu0 0.0
    %5610 = vmatmul.mubr.f32.gmra.mxu0 %v2375
    %v5611 = vpop.f32.mrf.mxu0
    %v5612 = vadd.f32 0.0, %v5611
    %v5613 = vpop.f32.mrf.mxu0
    %5614 = vmatprep.mubr.f32.mxu0 0.0
    %5615 = vmatmul.mubr.f32.gmra.mxu0 %v2378
    %v5616 = vpop.f32.mrf.mxu0
    %v5617 = vadd.f32 0.0, %v5616
    %v5618 = vpop.f32.mrf.mxu0
    %5619 = vmatprep.mubr.f32.mxu0 0.0
    %5620 = vmatmul.mubr.f32.gmra.mxu0 %v3618
    %v5621 = vpop.f32.mrf.mxu0
    %v5622 = vadd.f32 0.0, %v5621
    %v5623 = vpop.f32.mrf.mxu0
    %5624 = vmatprep.mubr.f32.mxu0 0.0
    %5625 = vmatmul.mubr.f32.gmra.mxu0 %v4544
    %v5626 = vpop.f32.mrf.mxu0
    %v5627 = vadd.f32 0.0, %v5626
    %v5628 = vpop.f32.mrf.mxu0
    %5629 = vmatprep.mubr.f32.mxu0 0.0
    %5630 = vmatmul.mubr.f32.gmra.mxu0 %v5470
    %v5631 = vpop.f32.mrf.mxu0
    %v5632 = vadd.f32 0.0, %v5631
    %v5633 = vpop.f32.mrf.mxu0
    %5634 = vdwg.mxu0
    %v5635 = vadd.f32 %v5445, %v5557
    %v5636 = vadd.f32 %v5446, %v5562
    %v5637 = vadd.f32 %v5447, %v5567
    %v5638 = vadd.f32 %v5448, %v5572
    %v5639 = vadd.f32 %v5449, %v5577
    %v5640 = vadd.f32 %v5450, %v5582
    %v5641 = vadd.f32 %v5451, %v5587
    %v5642 = vadd.f32 %v5452, %v5592
    %v5643 = vadd.f32 %v5453, %v5597
    %v5644 = vadd.f32 %v5454, %v5602
    %v5645 = vadd.f32 %v5455, %v5607
    %v5646 = vadd.f32 %v5456, %v5612
    %v5647 = vadd.f32 %v5457, %v5617
    %v5648 = vadd.f32 %v5458, %v5622
    %v5649 = vadd.f32 %v5459, %v5627
    %v5650 = vadd.f32 %v5460, %v5632
    %v5651 = vrot.slane %v2254, 2
    %v5652 = vrot.slane %v2255, 2
    %v5653 = vsel %vm2702, %v5651, %v5652
    %v5654 = vrot.slane %v2278, 2
    %v5655 = vrot.slane %v2279, 2
    %v5656 = vsel %vm2702, %v5654, %v5655
    %s5659 = scalar_lea.vmem %s3, 2176
    %v5660 = vld [vmem:[%s5659] sm:$0xff]
    %v5661 = vld [vmem:[%s5659 + $0x8] sm:$0xff]
    %v5662 = vld [vmem:[%s5659 + $0x10] sm:$0xff]
    %v5663 = vld [vmem:[%s5659 + $0x18] sm:$0xff]
    %v5664 = vld [vmem:[%s5659 + $0x20] sm:$0xff]
    %v5665 = vld [vmem:[%s5659 + $0x28] sm:$0xff]
    %v5666 = vld [vmem:[%s5659 + $0x30] sm:$0xff]
    %v5667 = vld [vmem:[%s5659 + $0x38] sm:$0xff]
    %v5668 = vld [vmem:[%s5659 + $0x40] sm:$0xff]
    %v5669 = vld [vmem:[%s5659 + $0x48] sm:$0xff]
    %v5670 = vld [vmem:[%s5659 + $0x50] sm:$0xff]
    %v5671 = vld [vmem:[%s5659 + $0x58] sm:$0xff]
    %v5672 = vld [vmem:[%s5659 + $0x60] sm:$0xff]
    %v5673 = vld [vmem:[%s5659 + $0x68] sm:$0xff]
    %v5674 = vld [vmem:[%s5659 + $0x70] sm:$0xff]
    %v5675 = vld [vmem:[%s5659 + $0x78] sm:$0xff]
    %5676 = vmatprep.subr.mxu0 0.0
    %5677 = vmatpush1.msra.mxu0 %v5675
    %5678 = vmatprep.subr.mxu0 0.0
    %5679 = vmatpush1.msra.mxu0 %v5674
    %5680 = vmatprep.subr.mxu0 0.0
    %5681 = vmatpush1.msra.mxu0 %v5673
    %5682 = vmatprep.subr.mxu0 0.0
    %5683 = vmatpush1.msra.mxu0 %v5672
    %5684 = vmatprep.subr.mxu0 0.0
    %5685 = vmatpush1.msra.mxu0 %v5671
    %5686 = vmatprep.subr.mxu0 0.0
    %5687 = vmatpush1.msra.mxu0 %v5670
    %5688 = vmatprep.subr.mxu0 0.0
    %5689 = vmatpush1.msra.mxu0 %v5669
    %5690 = vmatprep.subr.mxu0 0.0
    %5691 = vmatpush1.msra.mxu0 %v5668
    %5692 = vmatprep.subr.mxu0 0.0
    %5693 = vmatpush1.msra.mxu0 %v5667
    %5694 = vmatprep.subr.mxu0 0.0
    %5695 = vmatpush1.msra.mxu0 %v5666
    %5696 = vmatprep.subr.mxu0 0.0
    %5697 = vmatpush1.msra.mxu0 %v5665
    %5698 = vmatprep.subr.mxu0 0.0
    %5699 = vmatpush1.msra.mxu0 %v5664
    %5700 = vmatprep.subr.mxu0 0.0
    %5701 = vmatpush1.msra.mxu0 %v5663
    %5702 = vmatprep.subr.mxu0 0.0
    %5703 = vmatpush1.msra.mxu0 %v5662
    %5704 = vmatprep.subr.mxu0 0.0
    %5705 = vmatpush1.msra.mxu0 %v5661
    %5706 = vmatprep.subr.mxu0 0.0
    %5707 = vmatpush1.msra.mxu0 %v5660
    %5708 = vmatprep.subr.mxu0 0.0
    %5709 = vmatpush2.msra.mxu0 0.0
    %5710 = vmatprep.subr.mxu0 0.0
    %5711 = vmatpush2.msra.mxu0 0.0
    %5712 = vmatprep.subr.mxu0 0.0
    %5713 = vmatpush2.msra.mxu0 0.0
    %5714 = vmatprep.subr.mxu0 0.0
    %5715 = vmatpush2.msra.mxu0 0.0
    %5716 = vmatprep.subr.mxu0 0.0
    %5717 = vmatpush2.msra.mxu0 0.0
    %5718 = vmatprep.subr.mxu0 0.0
    %5719 = vmatpush2.msra.mxu0 0.0
    %5720 = vmatprep.subr.mxu0 0.0
    %5721 = vmatpush2.msra.mxu0 0.0
    %5722 = vmatprep.subr.mxu0 0.0
    %5723 = vmatpush2.msra.mxu0 0.0
    %5724 = vmatprep.subr.mxu0 0.0
    %5725 = vmatpush2.msra.mxu0 0.0
    %5726 = vmatprep.subr.mxu0 0.0
    %5727 = vmatpush2.msra.mxu0 0.0
    %5728 = vmatprep.subr.mxu0 0.0
    %5729 = vmatpush2.msra.mxu0 0.0
    %5730 = vmatprep.subr.mxu0 0.0
    %5731 = vmatpush2.msra.mxu0 0.0
    %5732 = vmatprep.subr.mxu0 0.0
    %5733 = vmatpush2.msra.mxu0 0.0
    %5734 = vmatprep.subr.mxu0 0.0
    %5735 = vmatpush2.msra.mxu0 0.0
    %5736 = vmatprep.subr.mxu0 0.0
    %5737 = vmatpush2.msra.mxu0 0.0
    %5738 = vmatprep.subr.mxu0 0.0
    %5739 = vmatpush2.msra.mxu0 0.0
    %5740 = vmatprep.mubr.f32.mxu0 0.0
    %5741 = vmatmul.mubr.f32.gmra.mxu0 %v2714
    %v5742 = vpop.f32.mrf.mxu0
    %v5743 = vadd.f32 0.0, %v5742
    %v5744 = vpop.f32.mrf.mxu0
    %5745 = vmatprep.mubr.f32.mxu0 0.0
    %5746 = vmatmul.mubr.f32.gmra.mxu0 %v2717
    %v5747 = vpop.f32.mrf.mxu0
    %v5748 = vadd.f32 0.0, %v5747
    %v5749 = vpop.f32.mrf.mxu0
    %5750 = vmatprep.mubr.f32.mxu0 0.0
    %5751 = vmatmul.mubr.f32.gmra.mxu0 %v2720
    %v5752 = vpop.f32.mrf.mxu0
    %v5753 = vadd.f32 0.0, %v5752
    %v5754 = vpop.f32.mrf.mxu0
    %5755 = vmatprep.mubr.f32.mxu0 0.0
    %5756 = vmatmul.mubr.f32.gmra.mxu0 %v2723
    %v5757 = vpop.f32.mrf.mxu0
    %v5758 = vadd.f32 0.0, %v5757
    %v5759 = vpop.f32.mrf.mxu0
    %5760 = vmatprep.mubr.f32.mxu0 0.0
    %5761 = vmatmul.mubr.f32.gmra.mxu0 %v2726
    %v5762 = vpop.f32.mrf.mxu0
    %v5763 = vadd.f32 0.0, %v5762
    %v5764 = vpop.f32.mrf.mxu0
    %5765 = vmatprep.mubr.f32.mxu0 0.0
    %5766 = vmatmul.mubr.f32.gmra.mxu0 %v3801
    %v5767 = vpop.f32.mrf.mxu0
    %v5768 = vadd.f32 0.0, %v5767
    %v5769 = vpop.f32.mrf.mxu0
    %5770 = vmatprep.mubr.f32.mxu0 0.0
    %5771 = vmatmul.mubr.f32.gmra.mxu0 %v4727
    %v5772 = vpop.f32.mrf.mxu0
    %v5773 = vadd.f32 0.0, %v5772
    %v5774 = vpop.f32.mrf.mxu0
    %5775 = vmatprep.mubr.f32.mxu0 0.0
    %5776 = vmatmul.mubr.f32.gmra.mxu0 %v5653
    %v5777 = vpop.f32.mrf.mxu0
    %v5778 = vadd.f32 0.0, %v5777
    %v5779 = vpop.f32.mrf.mxu0
    %5780 = vmatprep.mubr.f32.mxu0 0.0
    %5781 = vmatmul.mubr.f32.gmra.mxu0 %v2738
    %v5782 = vpop.f32.mrf.mxu0
    %v5783 = vadd.f32 0.0, %v5782
    %v5784 = vpop.f32.mrf.mxu0
    %5785 = vmatprep.mubr.f32.mxu0 0.0
    %5786 = vmatmul.mubr.f32.gmra.mxu0 %v2741
    %v5787 = vpop.f32.mrf.mxu0
    %v5788 = vadd.f32 0.0, %v5787
    %v5789 = vpop.f32.mrf.mxu0
    %5790 = vmatprep.mubr.f32.mxu0 0.0
    %5791 = vmatmul.mubr.f32.gmra.mxu0 %v2744
    %v5792 = vpop.f32.mrf.mxu0
    %v5793 = vadd.f32 0.0, %v5792
    %v5794 = vpop.f32.mrf.mxu0
    %5795 = vmatprep.mubr.f32.mxu0 0.0
    %5796 = vmatmul.mubr.f32.gmra.mxu0 %v2747
    %v5797 = vpop.f32.mrf.mxu0
    %v5798 = vadd.f32 0.0, %v5797
    %v5799 = vpop.f32.mrf.mxu0
    %5800 = vmatprep.mubr.f32.mxu0 0.0
    %5801 = vmatmul.mubr.f32.gmra.mxu0 %v2750
    %v5802 = vpop.f32.mrf.mxu0
    %v5803 = vadd.f32 0.0, %v5802
    %v5804 = vpop.f32.mrf.mxu0
    %5805 = vmatprep.mubr.f32.mxu0 0.0
    %5806 = vmatmul.mubr.f32.gmra.mxu0 %v3804
    %v5807 = vpop.f32.mrf.mxu0
    %v5808 = vadd.f32 0.0, %v5807
    %v5809 = vpop.f32.mrf.mxu0
    %5810 = vmatprep.mubr.f32.mxu0 0.0
    %5811 = vmatmul.mubr.f32.gmra.mxu0 %v4730
    %v5812 = vpop.f32.mrf.mxu0
    %v5813 = vadd.f32 0.0, %v5812
    %v5814 = vpop.f32.mrf.mxu0
    %5815 = vmatprep.mubr.f32.mxu0 0.0
    %5816 = vmatmul.mubr.f32.gmra.mxu0 %v5656
    %v5817 = vpop.f32.mrf.mxu0
    %v5818 = vadd.f32 0.0, %v5817
    %v5819 = vpop.f32.mrf.mxu0
    %5820 = vdwg.mxu0
    %v5821 = vadd.f32 %v5635, %v5743
    %v5822 = vadd.f32 %v5636, %v5748
    %v5823 = vadd.f32 %v5637, %v5753
    %v5824 = vadd.f32 %v5638, %v5758
    %v5825 = vadd.f32 %v5639, %v5763
    %v5826 = vadd.f32 %v5640, %v5768
    %v5827 = vadd.f32 %v5641, %v5773
    %v5828 = vadd.f32 %v5642, %v5778
    %v5829 = vadd.f32 %v5643, %v5783
    %v5830 = vadd.f32 %v5644, %v5788
    %v5831 = vadd.f32 %v5645, %v5793
    %v5832 = vadd.f32 %v5646, %v5798
    %v5833 = vadd.f32 %v5647, %v5803
    %v5834 = vadd.f32 %v5648, %v5808
    %v5835 = vadd.f32 %v5649, %v5813
    %v5836 = vadd.f32 %v5650, %v5818
    %v5837 = vrot.slane %v2254, 3
    %v5838 = vrot.slane %v2255, 3
    %v5839 = vsel %vm2945, %v5837, %v5838
    %v5840 = vrot.slane %v2278, 3
    %v5841 = vrot.slane %v2279, 3
    %v5842 = vsel %vm2945, %v5840, %v5841
    %s5845 = scalar_lea.vmem %s3, 2304
    %v5846 = vld [vmem:[%s5845] sm:$0xff]
    %v5847 = vld [vmem:[%s5845 + $0x8] sm:$0xff]
    %v5848 = vld [vmem:[%s5845 + $0x10] sm:$0xff]
    %v5849 = vld [vmem:[%s5845 + $0x18] sm:$0xff]
    %v5850 = vld [vmem:[%s5845 + $0x20] sm:$0xff]
    %v5851 = vld [vmem:[%s5845 + $0x28] sm:$0xff]
    %v5852 = vld [vmem:[%s5845 + $0x30] sm:$0xff]
    %v5853 = vld [vmem:[%s5845 + $0x38] sm:$0xff]
    %v5854 = vld [vmem:[%s5845 + $0x40] sm:$0xff]
    %v5855 = vld [vmem:[%s5845 + $0x48] sm:$0xff]
    %v5856 = vld [vmem:[%s5845 + $0x50] sm:$0xff]
    %v5857 = vld [vmem:[%s5845 + $0x58] sm:$0xff]
    %v5858 = vld [vmem:[%s5845 + $0x60] sm:$0xff]
    %v5859 = vld [vmem:[%s5845 + $0x68] sm:$0xff]
    %v5860 = vld [vmem:[%s5845 + $0x70] sm:$0xff]
    %v5861 = vld [vmem:[%s5845 + $0x78] sm:$0xff]
    %5862 = vmatprep.subr.mxu0 0.0
    %5863 = vmatpush1.msra.mxu0 %v5861
    %5864 = vmatprep.subr.mxu0 0.0
    %5865 = vmatpush1.msra.mxu0 %v5860
    %5866 = vmatprep.subr.mxu0 0.0
    %5867 = vmatpush1.msra.mxu0 %v5859
    %5868 = vmatprep.subr.mxu0 0.0
    %5869 = vmatpush1.msra.mxu0 %v5858
    %5870 = vmatprep.subr.mxu0 0.0
    %5871 = vmatpush1.msra.mxu0 %v5857
    %5872 = vmatprep.subr.mxu0 0.0
    %5873 = vmatpush1.msra.mxu0 %v5856
    %5874 = vmatprep.subr.mxu0 0.0
    %5875 = vmatpush1.msra.mxu0 %v5855
    %5876 = vmatprep.subr.mxu0 0.0
    %5877 = vmatpush1.msra.mxu0 %v5854
    %5878 = vmatprep.subr.mxu0 0.0
    %5879 = vmatpush1.msra.mxu0 %v5853
    %5880 = vmatprep.subr.mxu0 0.0
    %5881 = vmatpush1.msra.mxu0 %v5852
    %5882 = vmatprep.subr.mxu0 0.0
    %5883 = vmatpush1.msra.mxu0 %v5851
    %5884 = vmatprep.subr.mxu0 0.0
    %5885 = vmatpush1.msra.mxu0 %v5850
    %5886 = vmatprep.subr.mxu0 0.0
    %5887 = vmatpush1.msra.mxu0 %v5849
    %5888 = vmatprep.subr.mxu0 0.0
    %5889 = vmatpush1.msra.mxu0 %v5848
    %5890 = vmatprep.subr.mxu0 0.0
    %5891 = vmatpush1.msra.mxu0 %v5847
    %5892 = vmatprep.subr.mxu0 0.0
    %5893 = vmatpush1.msra.mxu0 %v5846
    %5894 = vmatprep.subr.mxu0 0.0
    %5895 = vmatpush2.msra.mxu0 0.0
    %5896 = vmatprep.subr.mxu0 0.0
    %5897 = vmatpush2.msra.mxu0 0.0
    %5898 = vmatprep.subr.mxu0 0.0
    %5899 = vmatpush2.msra.mxu0 0.0
    %5900 = vmatprep.subr.mxu0 0.0
    %5901 = vmatpush2.msra.mxu0 0.0
    %5902 = vmatprep.subr.mxu0 0.0
    %5903 = vmatpush2.msra.mxu0 0.0
    %5904 = vmatprep.subr.mxu0 0.0
    %5905 = vmatpush2.msra.mxu0 0.0
    %5906 = vmatprep.subr.mxu0 0.0
    %5907 = vmatpush2.msra.mxu0 0.0
    %5908 = vmatprep.subr.mxu0 0.0
    %5909 = vmatpush2.msra.mxu0 0.0
    %5910 = vmatprep.subr.mxu0 0.0
    %5911 = vmatpush2.msra.mxu0 0.0
    %5912 = vmatprep.subr.mxu0 0.0
    %5913 = vmatpush2.msra.mxu0 0.0
    %5914 = vmatprep.subr.mxu0 0.0
    %5915 = vmatpush2.msra.mxu0 0.0
    %5916 = vmatprep.subr.mxu0 0.0
    %5917 = vmatpush2.msra.mxu0 0.0
    %5918 = vmatprep.subr.mxu0 0.0
    %5919 = vmatpush2.msra.mxu0 0.0
    %5920 = vmatprep.subr.mxu0 0.0
    %5921 = vmatpush2.msra.mxu0 0.0
    %5922 = vmatprep.subr.mxu0 0.0
    %5923 = vmatpush2.msra.mxu0 0.0
    %5924 = vmatprep.subr.mxu0 0.0
    %5925 = vmatpush2.msra.mxu0 0.0
    %5926 = vmatprep.mubr.f32.mxu0 0.0
    %5927 = vmatmul.mubr.f32.gmra.mxu0 %v2957
    %v5928 = vpop.f32.mrf.mxu0
    %v5929 = vadd.f32 0.0, %v5928
    %v5930 = vpop.f32.mrf.mxu0
    %5931 = vmatprep.mubr.f32.mxu0 0.0
    %5932 = vmatmul.mubr.f32.gmra.mxu0 %v2960
    %v5933 = vpop.f32.mrf.mxu0
    %v5934 = vadd.f32 0.0, %v5933
    %v5935 = vpop.f32.mrf.mxu0
    %5936 = vmatprep.mubr.f32.mxu0 0.0
    %5937 = vmatmul.mubr.f32.gmra.mxu0 %v2963
    %v5938 = vpop.f32.mrf.mxu0
    %v5939 = vadd.f32 0.0, %v5938
    %v5940 = vpop.f32.mrf.mxu0
    %5941 = vmatprep.mubr.f32.mxu0 0.0
    %5942 = vmatmul.mubr.f32.gmra.mxu0 %v2966
    %v5943 = vpop.f32.mrf.mxu0
    %v5944 = vadd.f32 0.0, %v5943
    %v5945 = vpop.f32.mrf.mxu0
    %5946 = vmatprep.mubr.f32.mxu0 0.0
    %5947 = vmatmul.mubr.f32.gmra.mxu0 %v2969
    %v5948 = vpop.f32.mrf.mxu0
    %v5949 = vadd.f32 0.0, %v5948
    %v5950 = vpop.f32.mrf.mxu0
    %5951 = vmatprep.mubr.f32.mxu0 0.0
    %5952 = vmatmul.mubr.f32.gmra.mxu0 %v3987
    %v5953 = vpop.f32.mrf.mxu0
    %v5954 = vadd.f32 0.0, %v5953
    %v5955 = vpop.f32.mrf.mxu0
    %5956 = vmatprep.mubr.f32.mxu0 0.0
    %5957 = vmatmul.mubr.f32.gmra.mxu0 %v4913
    %v5958 = vpop.f32.mrf.mxu0
    %v5959 = vadd.f32 0.0, %v5958
    %v5960 = vpop.f32.mrf.mxu0
    %5961 = vmatprep.mubr.f32.mxu0 0.0
    %5962 = vmatmul.mubr.f32.gmra.mxu0 %v5839
    %v5963 = vpop.f32.mrf.mxu0
    %v5964 = vadd.f32 0.0, %v5963
    %v5965 = vpop.f32.mrf.mxu0
    %5966 = vmatprep.mubr.f32.mxu0 0.0
    %5967 = vmatmul.mubr.f32.gmra.mxu0 %v2981
    %v5968 = vpop.f32.mrf.mxu0
    %v5969 = vadd.f32 0.0, %v5968
    %v5970 = vpop.f32.mrf.mxu0
    %5971 = vmatprep.mubr.f32.mxu0 0.0
    %5972 = vmatmul.mubr.f32.gmra.mxu0 %v2984
    %v5973 = vpop.f32.mrf.mxu0
    %v5974 = vadd.f32 0.0, %v5973
    %v5975 = vpop.f32.mrf.mxu0
    %5976 = vmatprep.mubr.f32.mxu0 0.0
    %5977 = vmatmul.mubr.f32.gmra.mxu0 %v2987
    %v5978 = vpop.f32.mrf.mxu0
    %v5979 = vadd.f32 0.0, %v5978
    %v5980 = vpop.f32.mrf.mxu0
    %5981 = vmatprep.mubr.f32.mxu0 0.0
    %5982 = vmatmul.mubr.f32.gmra.mxu0 %v2990
    %v5983 = vpop.f32.mrf.mxu0
    %v5984 = vadd.f32 0.0, %v5983
    %v5985 = vpop.f32.mrf.mxu0
    %5986 = vmatprep.mubr.f32.mxu0 0.0
    %5987 = vmatmul.mubr.f32.gmra.mxu0 %v2993
    %v5988 = vpop.f32.mrf.mxu0
    %v5989 = vadd.f32 0.0, %v5988
    %v5990 = vpop.f32.mrf.mxu0
    %5991 = vmatprep.mubr.f32.mxu0 0.0
    %5992 = vmatmul.mubr.f32.gmra.mxu0 %v3990
    %v5993 = vpop.f32.mrf.mxu0
    %v5994 = vadd.f32 0.0, %v5993
    %v5995 = vpop.f32.mrf.mxu0
    %5996 = vmatprep.mubr.f32.mxu0 0.0
    %5997 = vmatmul.mubr.f32.gmra.mxu0 %v4916
    %v5998 = vpop.f32.mrf.mxu0
    %v5999 = vadd.f32 0.0, %v5998
    %v6000 = vpop.f32.mrf.mxu0
    %6001 = vmatprep.mubr.f32.mxu0 0.0
    %6002 = vmatmul.mubr.f32.gmra.mxu0 %v5842
    %v6003 = vpop.f32.mrf.mxu0
    %v6004 = vadd.f32 0.0, %v6003
    %v6005 = vpop.f32.mrf.mxu0
    %6006 = vdwg.mxu0
    %v6007 = vadd.f32 %v5821, %v5929
    %v6008 = vadd.f32 %v5822, %v5934
    %v6009 = vadd.f32 %v5823, %v5939
    %v6010 = vadd.f32 %v5824, %v5944
    %v6011 = vadd.f32 %v5825, %v5949
    %v6012 = vadd.f32 %v5826, %v5954
    %v6013 = vadd.f32 %v5827, %v5959
    %v6014 = vadd.f32 %v5828, %v5964
    %v6015 = vadd.f32 %v5829, %v5969
    %v6016 = vadd.f32 %v5830, %v5974
    %v6017 = vadd.f32 %v5831, %v5979
    %v6018 = vadd.f32 %v5832, %v5984
    %v6019 = vadd.f32 %v5833, %v5989
    %v6020 = vadd.f32 %v5834, %v5994
    %v6021 = vadd.f32 %v5835, %v5999
    %v6022 = vadd.f32 %v5836, %v6004
    %v6023 = vrot.slane %v2254, 4
    %v6024 = vrot.slane %v2255, 4
    %v6025 = vsel %vm3188, %v6023, %v6024
    %v6026 = vrot.slane %v2278, 4
    %v6027 = vrot.slane %v2279, 4
    %v6028 = vsel %vm3188, %v6026, %v6027
    %s6031 = scalar_lea.vmem %s3, 2432
    %v6032 = vld [vmem:[%s6031] sm:$0xff]
    %v6033 = vld [vmem:[%s6031 + $0x8] sm:$0xff]
    %v6034 = vld [vmem:[%s6031 + $0x10] sm:$0xff]
    %v6035 = vld [vmem:[%s6031 + $0x18] sm:$0xff]
    %v6036 = vld [vmem:[%s6031 + $0x20] sm:$0xff]
    %v6037 = vld [vmem:[%s6031 + $0x28] sm:$0xff]
    %v6038 = vld [vmem:[%s6031 + $0x30] sm:$0xff]
    %v6039 = vld [vmem:[%s6031 + $0x38] sm:$0xff]
    %v6040 = vld [vmem:[%s6031 + $0x40] sm:$0xff]
    %v6041 = vld [vmem:[%s6031 + $0x48] sm:$0xff]
    %v6042 = vld [vmem:[%s6031 + $0x50] sm:$0xff]
    %v6043 = vld [vmem:[%s6031 + $0x58] sm:$0xff]
    %v6044 = vld [vmem:[%s6031 + $0x60] sm:$0xff]
    %v6045 = vld [vmem:[%s6031 + $0x68] sm:$0xff]
    %v6046 = vld [vmem:[%s6031 + $0x70] sm:$0xff]
    %v6047 = vld [vmem:[%s6031 + $0x78] sm:$0xff]
    %6048 = vmatprep.subr.mxu0 0.0
    %6049 = vmatpush1.msra.mxu0 %v6047
    %6050 = vmatprep.subr.mxu0 0.0
    %6051 = vmatpush1.msra.mxu0 %v6046
    %6052 = vmatprep.subr.mxu0 0.0
    %6053 = vmatpush1.msra.mxu0 %v6045
    %6054 = vmatprep.subr.mxu0 0.0
    %6055 = vmatpush1.msra.mxu0 %v6044
    %6056 = vmatprep.subr.mxu0 0.0
    %6057 = vmatpush1.msra.mxu0 %v6043
    %6058 = vmatprep.subr.mxu0 0.0
    %6059 = vmatpush1.msra.mxu0 %v6042
    %6060 = vmatprep.subr.mxu0 0.0
    %6061 = vmatpush1.msra.mxu0 %v6041
    %6062 = vmatprep.subr.mxu0 0.0
    %6063 = vmatpush1.msra.mxu0 %v6040
    %6064 = vmatprep.subr.mxu0 0.0
    %6065 = vmatpush1.msra.mxu0 %v6039
    %6066 = vmatprep.subr.mxu0 0.0
    %6067 = vmatpush1.msra.mxu0 %v6038
    %6068 = vmatprep.subr.mxu0 0.0
    %6069 = vmatpush1.msra.mxu0 %v6037
    %6070 = vmatprep.subr.mxu0 0.0
    %6071 = vmatpush1.msra.mxu0 %v6036
    %6072 = vmatprep.subr.mxu0 0.0
    %6073 = vmatpush1.msra.mxu0 %v6035
    %6074 = vmatprep.subr.mxu0 0.0
    %6075 = vmatpush1.msra.mxu0 %v6034
    %6076 = vmatprep.subr.mxu0 0.0
    %6077 = vmatpush1.msra.mxu0 %v6033
    %6078 = vmatprep.subr.mxu0 0.0
    %6079 = vmatpush1.msra.mxu0 %v6032
    %6080 = vmatprep.subr.mxu0 0.0
    %6081 = vmatpush2.msra.mxu0 0.0
    %6082 = vmatprep.subr.mxu0 0.0
    %6083 = vmatpush2.msra.mxu0 0.0
    %6084 = vmatprep.subr.mxu0 0.0
    %6085 = vmatpush2.msra.mxu0 0.0
    %6086 = vmatprep.subr.mxu0 0.0
    %6087 = vmatpush2.msra.mxu0 0.0
    %6088 = vmatprep.subr.mxu0 0.0
    %6089 = vmatpush2.msra.mxu0 0.0
    %6090 = vmatprep.subr.mxu0 0.0
    %6091 = vmatpush2.msra.mxu0 0.0
    %6092 = vmatprep.subr.mxu0 0.0
    %6093 = vmatpush2.msra.mxu0 0.0
    %6094 = vmatprep.subr.mxu0 0.0
    %6095 = vmatpush2.msra.mxu0 0.0
    %6096 = vmatprep.subr.mxu0 0.0
    %6097 = vmatpush2.msra.mxu0 0.0
    %6098 = vmatprep.subr.mxu0 0.0
    %6099 = vmatpush2.msra.mxu0 0.0
    %6100 = vmatprep.subr.mxu0 0.0
    %6101 = vmatpush2.msra.mxu0 0.0
    %6102 = vmatprep.subr.mxu0 0.0
    %6103 = vmatpush2.msra.mxu0 0.0
    %6104 = vmatprep.subr.mxu0 0.0
    %6105 = vmatpush2.msra.mxu0 0.0
    %6106 = vmatprep.subr.mxu0 0.0
    %6107 = vmatpush2.msra.mxu0 0.0
    %6108 = vmatprep.subr.mxu0 0.0
    %6109 = vmatpush2.msra.mxu0 0.0
    %6110 = vmatprep.subr.mxu0 0.0
    %6111 = vmatpush2.msra.mxu0 0.0
    %6112 = vmatprep.mubr.f32.mxu0 0.0
    %6113 = vmatmul.mubr.f32.gmra.mxu0 %v3200
    %v6114 = vpop.f32.mrf.mxu0
    %v6115 = vadd.f32 0.0, %v6114
    %v6116 = vpop.f32.mrf.mxu0
    %6117 = vmatprep.mubr.f32.mxu0 0.0
    %6118 = vmatmul.mubr.f32.gmra.mxu0 %v3203
    %v6119 = vpop.f32.mrf.mxu0
    %v6120 = vadd.f32 0.0, %v6119
    %v6121 = vpop.f32.mrf.mxu0
    %6122 = vmatprep.mubr.f32.mxu0 0.0
    %6123 = vmatmul.mubr.f32.gmra.mxu0 %v3206
    %v6124 = vpop.f32.mrf.mxu0
    %v6125 = vadd.f32 0.0, %v6124
    %v6126 = vpop.f32.mrf.mxu0
    %6127 = vmatprep.mubr.f32.mxu0 0.0
    %6128 = vmatmul.mubr.f32.gmra.mxu0 %v3209
    %v6129 = vpop.f32.mrf.mxu0
    %v6130 = vadd.f32 0.0, %v6129
    %v6131 = vpop.f32.mrf.mxu0
    %6132 = vmatprep.mubr.f32.mxu0 0.0
    %6133 = vmatmul.mubr.f32.gmra.mxu0 %v3212
    %v6134 = vpop.f32.mrf.mxu0
    %v6135 = vadd.f32 0.0, %v6134
    %v6136 = vpop.f32.mrf.mxu0
    %6137 = vmatprep.mubr.f32.mxu0 0.0
    %6138 = vmatmul.mubr.f32.gmra.mxu0 %v4173
    %v6139 = vpop.f32.mrf.mxu0
    %v6140 = vadd.f32 0.0, %v6139
    %v6141 = vpop.f32.mrf.mxu0
    %6142 = vmatprep.mubr.f32.mxu0 0.0
    %6143 = vmatmul.mubr.f32.gmra.mxu0 %v5099
    %v6144 = vpop.f32.mrf.mxu0
    %v6145 = vadd.f32 0.0, %v6144
    %v6146 = vpop.f32.mrf.mxu0
    %6147 = vmatprep.mubr.f32.mxu0 0.0
    %6148 = vmatmul.mubr.f32.gmra.mxu0 %v6025
    %v6149 = vpop.f32.mrf.mxu0
    %v6150 = vadd.f32 0.0, %v6149
    %v6151 = vpop.f32.mrf.mxu0
    %6152 = vmatprep.mubr.f32.mxu0 0.0
    %6153 = vmatmul.mubr.f32.gmra.mxu0 %v3224
    %v6154 = vpop.f32.mrf.mxu0
    %v6155 = vadd.f32 0.0, %v6154
    %v6156 = vpop.f32.mrf.mxu0
    %6157 = vmatprep.mubr.f32.mxu0 0.0
    %6158 = vmatmul.mubr.f32.gmra.mxu0 %v3227
    %v6159 = vpop.f32.mrf.mxu0
    %v6160 = vadd.f32 0.0, %v6159
    %v6161 = vpop.f32.mrf.mxu0
    %6162 = vmatprep.mubr.f32.mxu0 0.0
    %6163 = vmatmul.mubr.f32.gmra.mxu0 %v3230
    %v6164 = vpop.f32.mrf.mxu0
    %v6165 = vadd.f32 0.0, %v6164
    %v6166 = vpop.f32.mrf.mxu0
    %6167 = vmatprep.mubr.f32.mxu0 0.0
    %6168 = vmatmul.mubr.f32.gmra.mxu0 %v3233
    %v6169 = vpop.f32.mrf.mxu0
    %v6170 = vadd.f32 0.0, %v6169
    %v6171 = vpop.f32.mrf.mxu0
    %6172 = vmatprep.mubr.f32.mxu0 0.0
    %6173 = vmatmul.mubr.f32.gmra.mxu0 %v3236
    %v6174 = vpop.f32.mrf.mxu0
    %v6175 = vadd.f32 0.0, %v6174
    %v6176 = vpop.f32.mrf.mxu0
    %6177 = vmatprep.mubr.f32.mxu0 0.0
    %6178 = vmatmul.mubr.f32.gmra.mxu0 %v4176
    %v6179 = vpop.f32.mrf.mxu0
    %v6180 = vadd.f32 0.0, %v6179
    %v6181 = vpop.f32.mrf.mxu0
    %6182 = vmatprep.mubr.f32.mxu0 0.0
    %6183 = vmatmul.mubr.f32.gmra.mxu0 %v5102
    %v6184 = vpop.f32.mrf.mxu0
    %v6185 = vadd.f32 0.0, %v6184
    %v6186 = vpop.f32.mrf.mxu0
    %6187 = vmatprep.mubr.f32.mxu0 0.0
    %6188 = vmatmul.mubr.f32.gmra.mxu0 %v6028
    %v6189 = vpop.f32.mrf.mxu0
    %v6190 = vadd.f32 0.0, %v6189
    %v6191 = vpop.f32.mrf.mxu0
    %6192 = vdwg.mxu0
    %v6193 = vadd.f32 %v6007, %v6115
    %v6194 = vadd.f32 %v6008, %v6120
    %v6195 = vadd.f32 %v6009, %v6125
    %v6196 = vadd.f32 %v6010, %v6130
    %v6197 = vadd.f32 %v6011, %v6135
    %v6198 = vadd.f32 %v6012, %v6140
    %v6199 = vadd.f32 %v6013, %v6145
    %v6200 = vadd.f32 %v6014, %v6150
    %v6201 = vadd.f32 %v6015, %v6155
    %v6202 = vadd.f32 %v6016, %v6160
    %v6203 = vadd.f32 %v6017, %v6165
    %v6204 = vadd.f32 %v6018, %v6170
    %v6205 = vadd.f32 %v6019, %v6175
    %v6206 = vadd.f32 %v6020, %v6180
    %v6207 = vadd.f32 %v6021, %v6185
    %v6208 = vadd.f32 %v6022, %v6190
    %s6209 = scalar_lea.vmem %s3, 2560
    %v6210 = vld [vmem:[%s6209] sm:$0xff]
    %v6211 = vld [vmem:[%s6209 + $0x8] sm:$0xff]
    %v6212 = vld [vmem:[%s6209 + $0x10] sm:$0xff]
    %v6213 = vld [vmem:[%s6209 + $0x18] sm:$0xff]
    %v6214 = vld [vmem:[%s6209 + $0x20] sm:$0xff]
    %v6215 = vld [vmem:[%s6209 + $0x28] sm:$0xff]
    %v6216 = vld [vmem:[%s6209 + $0x30] sm:$0xff]
    %v6217 = vld [vmem:[%s6209 + $0x38] sm:$0xff]
    %v6218 = vld [vmem:[%s6209 + $0x40] sm:$0xff]
    %v6219 = vld [vmem:[%s6209 + $0x48] sm:$0xff]
    %v6220 = vld [vmem:[%s6209 + $0x50] sm:$0xff]
    %v6221 = vld [vmem:[%s6209 + $0x58] sm:$0xff]
    %v6222 = vld [vmem:[%s6209 + $0x60] sm:$0xff]
    %v6223 = vld [vmem:[%s6209 + $0x68] sm:$0xff]
    %v6224 = vld [vmem:[%s6209 + $0x70] sm:$0xff]
    %v6225 = vld [vmem:[%s6209 + $0x78] sm:$0xff]
    %6226 = vmatprep.subr.mxu0 0.0
    %6227 = vmatpush1.msra.mxu0 %v6225
    %6228 = vmatprep.subr.mxu0 0.0
    %6229 = vmatpush1.msra.mxu0 %v6224
    %6230 = vmatprep.subr.mxu0 0.0
    %6231 = vmatpush1.msra.mxu0 %v6223
    %6232 = vmatprep.subr.mxu0 0.0
    %6233 = vmatpush1.msra.mxu0 %v6222
    %6234 = vmatprep.subr.mxu0 0.0
    %6235 = vmatpush1.msra.mxu0 %v6221
    %6236 = vmatprep.subr.mxu0 0.0
    %6237 = vmatpush1.msra.mxu0 %v6220
    %6238 = vmatprep.subr.mxu0 0.0
    %6239 = vmatpush1.msra.mxu0 %v6219
    %6240 = vmatprep.subr.mxu0 0.0
    %6241 = vmatpush1.msra.mxu0 %v6218
    %6242 = vmatprep.subr.mxu0 0.0
    %6243 = vmatpush1.msra.mxu0 %v6217
    %6244 = vmatprep.subr.mxu0 0.0
    %6245 = vmatpush1.msra.mxu0 %v6216
    %6246 = vmatprep.subr.mxu0 0.0
    %6247 = vmatpush1.msra.mxu0 %v6215
    %6248 = vmatprep.subr.mxu0 0.0
    %6249 = vmatpush1.msra.mxu0 %v6214
    %6250 = vmatprep.subr.mxu0 0.0
    %6251 = vmatpush1.msra.mxu0 %v6213
    %6252 = vmatprep.subr.mxu0 0.0
    %6253 = vmatpush1.msra.mxu0 %v6212
    %6254 = vmatprep.subr.mxu0 0.0
    %6255 = vmatpush1.msra.mxu0 %v6211
    %6256 = vmatprep.subr.mxu0 0.0
    %6257 = vmatpush1.msra.mxu0 %v6210
    %6258 = vmatprep.subr.mxu0 0.0
    %6259 = vmatpush2.msra.mxu0 0.0
    %6260 = vmatprep.subr.mxu0 0.0
    %6261 = vmatpush2.msra.mxu0 0.0
    %6262 = vmatprep.subr.mxu0 0.0
    %6263 = vmatpush2.msra.mxu0 0.0
    %6264 = vmatprep.subr.mxu0 0.0
    %6265 = vmatpush2.msra.mxu0 0.0
    %6266 = vmatprep.subr.mxu0 0.0
    %6267 = vmatpush2.msra.mxu0 0.0
    %6268 = vmatprep.subr.mxu0 0.0
    %6269 = vmatpush2.msra.mxu0 0.0
    %6270 = vmatprep.subr.mxu0 0.0
    %6271 = vmatpush2.msra.mxu0 0.0
    %6272 = vmatprep.subr.mxu0 0.0
    %6273 = vmatpush2.msra.mxu0 0.0
    %6274 = vmatprep.subr.mxu0 0.0
    %6275 = vmatpush2.msra.mxu0 0.0
    %6276 = vmatprep.subr.mxu0 0.0
    %6277 = vmatpush2.msra.mxu0 0.0
    %6278 = vmatprep.subr.mxu0 0.0
    %6279 = vmatpush2.msra.mxu0 0.0
    %6280 = vmatprep.subr.mxu0 0.0
    %6281 = vmatpush2.msra.mxu0 0.0
    %6282 = vmatprep.subr.mxu0 0.0
    %6283 = vmatpush2.msra.mxu0 0.0
    %6284 = vmatprep.subr.mxu0 0.0
    %6285 = vmatpush2.msra.mxu0 0.0
    %6286 = vmatprep.subr.mxu0 0.0
    %6287 = vmatpush2.msra.mxu0 0.0
    %6288 = vmatprep.subr.mxu0 0.0
    %6289 = vmatpush2.msra.mxu0 0.0
    %6290 = vmatprep.mubr.f32.mxu0 0.0
    %6291 = vmatmul.mubr.f32.gmra.mxu0 %v2242
    %v6292 = vpop.f32.mrf.mxu0
    %v6293 = vadd.f32 0.0, %v6292
    %v6294 = vpop.f32.mrf.mxu0
    %6295 = vmatprep.mubr.f32.mxu0 0.0
    %6296 = vmatmul.mubr.f32.gmra.mxu0 %v2244
    %v6297 = vpop.f32.mrf.mxu0
    %v6298 = vadd.f32 0.0, %v6297
    %v6299 = vpop.f32.mrf.mxu0
    %6300 = vmatprep.mubr.f32.mxu0 0.0
    %6301 = vmatmul.mubr.f32.gmra.mxu0 %v2246
    %v6302 = vpop.f32.mrf.mxu0
    %v6303 = vadd.f32 0.0, %v6302
    %v6304 = vpop.f32.mrf.mxu0
    %6305 = vmatprep.mubr.f32.mxu0 0.0
    %6306 = vmatmul.mubr.f32.gmra.mxu0 %v2248
    %v6307 = vpop.f32.mrf.mxu0
    %v6308 = vadd.f32 0.0, %v6307
    %v6309 = vpop.f32.mrf.mxu0
    %6310 = vmatprep.mubr.f32.mxu0 0.0
    %6311 = vmatmul.mubr.f32.gmra.mxu0 %v2250
    %v6312 = vpop.f32.mrf.mxu0
    %v6313 = vadd.f32 0.0, %v6312
    %v6314 = vpop.f32.mrf.mxu0
    %6315 = vmatprep.mubr.f32.mxu0 0.0
    %6316 = vmatmul.mubr.f32.gmra.mxu0 %v2252
    %v6317 = vpop.f32.mrf.mxu0
    %v6318 = vadd.f32 0.0, %v6317
    %v6319 = vpop.f32.mrf.mxu0
    %6320 = vmatprep.mubr.f32.mxu0 0.0
    %6321 = vmatmul.mubr.f32.gmra.mxu0 %v2254
    %v6322 = vpop.f32.mrf.mxu0
    %v6323 = vadd.f32 0.0, %v6322
    %v6324 = vpop.f32.mrf.mxu0
    %6325 = vmatprep.mubr.f32.mxu0 0.0
    %6326 = vmatmul.mubr.f32.gmra.mxu0 %v2256
    %v6327 = vpop.f32.mrf.mxu0
    %v6328 = vadd.f32 0.0, %v6327
    %v6329 = vpop.f32.mrf.mxu0
    %6330 = vmatprep.mubr.f32.mxu0 0.0
    %6331 = vmatmul.mubr.f32.gmra.mxu0 %v2266
    %v6332 = vpop.f32.mrf.mxu0
    %v6333 = vadd.f32 0.0, %v6332
    %v6334 = vpop.f32.mrf.mxu0
    %6335 = vmatprep.mubr.f32.mxu0 0.0
    %6336 = vmatmul.mubr.f32.gmra.mxu0 %v2268
    %v6337 = vpop.f32.mrf.mxu0
    %v6338 = vadd.f32 0.0, %v6337
    %v6339 = vpop.f32.mrf.mxu0
    %6340 = vmatprep.mubr.f32.mxu0 0.0
    %6341 = vmatmul.mubr.f32.gmra.mxu0 %v2270
    %v6342 = vpop.f32.mrf.mxu0
    %v6343 = vadd.f32 0.0, %v6342
    %v6344 = vpop.f32.mrf.mxu0
    %6345 = vmatprep.mubr.f32.mxu0 0.0
    %6346 = vmatmul.mubr.f32.gmra.mxu0 %v2272
    %v6347 = vpop.f32.mrf.mxu0
    %v6348 = vadd.f32 0.0, %v6347
    %v6349 = vpop.f32.mrf.mxu0
    %6350 = vmatprep.mubr.f32.mxu0 0.0
    %6351 = vmatmul.mubr.f32.gmra.mxu0 %v2274
    %v6352 = vpop.f32.mrf.mxu0
    %v6353 = vadd.f32 0.0, %v6352
    %v6354 = vpop.f32.mrf.mxu0
    %6355 = vmatprep.mubr.f32.mxu0 0.0
    %6356 = vmatmul.mubr.f32.gmra.mxu0 %v2276
    %v6357 = vpop.f32.mrf.mxu0
    %v6358 = vadd.f32 0.0, %v6357
    %v6359 = vpop.f32.mrf.mxu0
    %6360 = vmatprep.mubr.f32.mxu0 0.0
    %6361 = vmatmul.mubr.f32.gmra.mxu0 %v2278
    %v6362 = vpop.f32.mrf.mxu0
    %v6363 = vadd.f32 0.0, %v6362
    %v6364 = vpop.f32.mrf.mxu0
    %6365 = vmatprep.mubr.f32.mxu0 0.0
    %6366 = vmatmul.mubr.f32.gmra.mxu0 %v2280
    %v6367 = vpop.f32.mrf.mxu0
    %v6368 = vadd.f32 0.0, %v6367
    %v6369 = vpop.f32.mrf.mxu0
    %6370 = vdwg.mxu0
    %v6371 = vadd.f32 %v6193, %v6293
    %v6372 = vadd.f32 %v6194, %v6298
    %v6373 = vadd.f32 %v6195, %v6303
    %v6374 = vadd.f32 %v6196, %v6308
    %v6375 = vadd.f32 %v6197, %v6313
    %v6376 = vadd.f32 %v6198, %v6318
    %v6377 = vadd.f32 %v6199, %v6323
    %v6378 = vadd.f32 %v6200, %v6328
    %v6379 = vadd.f32 %v6201, %v6333
    %v6380 = vadd.f32 %v6202, %v6338
    %v6381 = vadd.f32 %v6203, %v6343
    %v6382 = vadd.f32 %v6204, %v6348
    %v6383 = vadd.f32 %v6205, %v6353
    %v6384 = vadd.f32 %v6206, %v6358
    %v6385 = vadd.f32 %v6207, %v6363
    %v6386 = vadd.f32 %v6208, %v6368
    %v6391 = vrot.slane %v2256, 1
    %v6392 = vrot.slane %v2257, 1
    %v6393 = vsel %vm2330, %v6391, %v6392
    %v6394 = vrot.slane %v2280, 1
    %v6395 = vrot.slane %v2281, 1
    %v6396 = vsel %vm2330, %v6394, %v6395
    %s6399 = scalar_lea.vmem %s3, 2688
    %v6400 = vld [vmem:[%s6399] sm:$0xff]
    %v6401 = vld [vmem:[%s6399 + $0x8] sm:$0xff]
    %v6402 = vld [vmem:[%s6399 + $0x10] sm:$0xff]
    %v6403 = vld [vmem:[%s6399 + $0x18] sm:$0xff]
    %v6404 = vld [vmem:[%s6399 + $0x20] sm:$0xff]
    %v6405 = vld [vmem:[%s6399 + $0x28] sm:$0xff]
    %v6406 = vld [vmem:[%s6399 + $0x30] sm:$0xff]
    %v6407 = vld [vmem:[%s6399 + $0x38] sm:$0xff]
    %v6408 = vld [vmem:[%s6399 + $0x40] sm:$0xff]
    %v6409 = vld [vmem:[%s6399 + $0x48] sm:$0xff]
    %v6410 = vld [vmem:[%s6399 + $0x50] sm:$0xff]
    %v6411 = vld [vmem:[%s6399 + $0x58] sm:$0xff]
    %v6412 = vld [vmem:[%s6399 + $0x60] sm:$0xff]
    %v6413 = vld [vmem:[%s6399 + $0x68] sm:$0xff]
    %v6414 = vld [vmem:[%s6399 + $0x70] sm:$0xff]
    %v6415 = vld [vmem:[%s6399 + $0x78] sm:$0xff]
    %6416 = vmatprep.subr.mxu0 0.0
    %6417 = vmatpush1.msra.mxu0 %v6415
    %6418 = vmatprep.subr.mxu0 0.0
    %6419 = vmatpush1.msra.mxu0 %v6414
    %6420 = vmatprep.subr.mxu0 0.0
    %6421 = vmatpush1.msra.mxu0 %v6413
    %6422 = vmatprep.subr.mxu0 0.0
    %6423 = vmatpush1.msra.mxu0 %v6412
    %6424 = vmatprep.subr.mxu0 0.0
    %6425 = vmatpush1.msra.mxu0 %v6411
    %6426 = vmatprep.subr.mxu0 0.0
    %6427 = vmatpush1.msra.mxu0 %v6410
    %6428 = vmatprep.subr.mxu0 0.0
    %6429 = vmatpush1.msra.mxu0 %v6409
    %6430 = vmatprep.subr.mxu0 0.0
    %6431 = vmatpush1.msra.mxu0 %v6408
    %6432 = vmatprep.subr.mxu0 0.0
    %6433 = vmatpush1.msra.mxu0 %v6407
    %6434 = vmatprep.subr.mxu0 0.0
    %6435 = vmatpush1.msra.mxu0 %v6406
    %6436 = vmatprep.subr.mxu0 0.0
    %6437 = vmatpush1.msra.mxu0 %v6405
    %6438 = vmatprep.subr.mxu0 0.0
    %6439 = vmatpush1.msra.mxu0 %v6404
    %6440 = vmatprep.subr.mxu0 0.0
    %6441 = vmatpush1.msra.mxu0 %v6403
    %6442 = vmatprep.subr.mxu0 0.0
    %6443 = vmatpush1.msra.mxu0 %v6402
    %6444 = vmatprep.subr.mxu0 0.0
    %6445 = vmatpush1.msra.mxu0 %v6401
    %6446 = vmatprep.subr.mxu0 0.0
    %6447 = vmatpush1.msra.mxu0 %v6400
    %6448 = vmatprep.subr.mxu0 0.0
    %6449 = vmatpush2.msra.mxu0 0.0
    %6450 = vmatprep.subr.mxu0 0.0
    %6451 = vmatpush2.msra.mxu0 0.0
    %6452 = vmatprep.subr.mxu0 0.0
    %6453 = vmatpush2.msra.mxu0 0.0
    %6454 = vmatprep.subr.mxu0 0.0
    %6455 = vmatpush2.msra.mxu0 0.0
    %6456 = vmatprep.subr.mxu0 0.0
    %6457 = vmatpush2.msra.mxu0 0.0
    %6458 = vmatprep.subr.mxu0 0.0
    %6459 = vmatpush2.msra.mxu0 0.0
    %6460 = vmatprep.subr.mxu0 0.0
    %6461 = vmatpush2.msra.mxu0 0.0
    %6462 = vmatprep.subr.mxu0 0.0
    %6463 = vmatpush2.msra.mxu0 0.0
    %6464 = vmatprep.subr.mxu0 0.0
    %6465 = vmatpush2.msra.mxu0 0.0
    %6466 = vmatprep.subr.mxu0 0.0
    %6467 = vmatpush2.msra.mxu0 0.0
    %6468 = vmatprep.subr.mxu0 0.0
    %6469 = vmatpush2.msra.mxu0 0.0
    %6470 = vmatprep.subr.mxu0 0.0
    %6471 = vmatpush2.msra.mxu0 0.0
    %6472 = vmatprep.subr.mxu0 0.0
    %6473 = vmatpush2.msra.mxu0 0.0
    %6474 = vmatprep.subr.mxu0 0.0
    %6475 = vmatpush2.msra.mxu0 0.0
    %6476 = vmatprep.subr.mxu0 0.0
    %6477 = vmatpush2.msra.mxu0 0.0
    %6478 = vmatprep.subr.mxu0 0.0
    %6479 = vmatpush2.msra.mxu0 0.0
    %6480 = vmatprep.mubr.f32.mxu0 0.0
    %6481 = vmatmul.mubr.f32.gmra.mxu0 %v2345
    %v6482 = vpop.f32.mrf.mxu0
    %v6483 = vadd.f32 0.0, %v6482
    %v6484 = vpop.f32.mrf.mxu0
    %6485 = vmatprep.mubr.f32.mxu0 0.0
    %6486 = vmatmul.mubr.f32.gmra.mxu0 %v2348
    %v6487 = vpop.f32.mrf.mxu0
    %v6488 = vadd.f32 0.0, %v6487
    %v6489 = vpop.f32.mrf.mxu0
    %6490 = vmatprep.mubr.f32.mxu0 0.0
    %6491 = vmatmul.mubr.f32.gmra.mxu0 %v2351
    %v6492 = vpop.f32.mrf.mxu0
    %v6493 = vadd.f32 0.0, %v6492
    %v6494 = vpop.f32.mrf.mxu0
    %6495 = vmatprep.mubr.f32.mxu0 0.0
    %6496 = vmatmul.mubr.f32.gmra.mxu0 %v2354
    %v6497 = vpop.f32.mrf.mxu0
    %v6498 = vadd.f32 0.0, %v6497
    %v6499 = vpop.f32.mrf.mxu0
    %6500 = vmatprep.mubr.f32.mxu0 0.0
    %6501 = vmatmul.mubr.f32.gmra.mxu0 %v3615
    %v6502 = vpop.f32.mrf.mxu0
    %v6503 = vadd.f32 0.0, %v6502
    %v6504 = vpop.f32.mrf.mxu0
    %6505 = vmatprep.mubr.f32.mxu0 0.0
    %6506 = vmatmul.mubr.f32.gmra.mxu0 %v4541
    %v6507 = vpop.f32.mrf.mxu0
    %v6508 = vadd.f32 0.0, %v6507
    %v6509 = vpop.f32.mrf.mxu0
    %6510 = vmatprep.mubr.f32.mxu0 0.0
    %6511 = vmatmul.mubr.f32.gmra.mxu0 %v5467
    %v6512 = vpop.f32.mrf.mxu0
    %v6513 = vadd.f32 0.0, %v6512
    %v6514 = vpop.f32.mrf.mxu0
    %6515 = vmatprep.mubr.f32.mxu0 0.0
    %6516 = vmatmul.mubr.f32.gmra.mxu0 %v6393
    %v6517 = vpop.f32.mrf.mxu0
    %v6518 = vadd.f32 0.0, %v6517
    %v6519 = vpop.f32.mrf.mxu0
    %6520 = vmatprep.mubr.f32.mxu0 0.0
    %6521 = vmatmul.mubr.f32.gmra.mxu0 %v2369
    %v6522 = vpop.f32.mrf.mxu0
    %v6523 = vadd.f32 0.0, %v6522
    %v6524 = vpop.f32.mrf.mxu0
    %6525 = vmatprep.mubr.f32.mxu0 0.0
    %6526 = vmatmul.mubr.f32.gmra.mxu0 %v2372
    %v6527 = vpop.f32.mrf.mxu0
    %v6528 = vadd.f32 0.0, %v6527
    %v6529 = vpop.f32.mrf.mxu0
    %6530 = vmatprep.mubr.f32.mxu0 0.0
    %6531 = vmatmul.mubr.f32.gmra.mxu0 %v2375
    %v6532 = vpop.f32.mrf.mxu0
    %v6533 = vadd.f32 0.0, %v6532
    %v6534 = vpop.f32.mrf.mxu0
    %6535 = vmatprep.mubr.f32.mxu0 0.0
    %6536 = vmatmul.mubr.f32.gmra.mxu0 %v2378
    %v6537 = vpop.f32.mrf.mxu0
    %v6538 = vadd.f32 0.0, %v6537
    %v6539 = vpop.f32.mrf.mxu0
    %6540 = vmatprep.mubr.f32.mxu0 0.0
    %6541 = vmatmul.mubr.f32.gmra.mxu0 %v3618
    %v6542 = vpop.f32.mrf.mxu0
    %v6543 = vadd.f32 0.0, %v6542
    %v6544 = vpop.f32.mrf.mxu0
    %6545 = vmatprep.mubr.f32.mxu0 0.0
    %6546 = vmatmul.mubr.f32.gmra.mxu0 %v4544
    %v6547 = vpop.f32.mrf.mxu0
    %v6548 = vadd.f32 0.0, %v6547
    %v6549 = vpop.f32.mrf.mxu0
    %6550 = vmatprep.mubr.f32.mxu0 0.0
    %6551 = vmatmul.mubr.f32.gmra.mxu0 %v5470
    %v6552 = vpop.f32.mrf.mxu0
    %v6553 = vadd.f32 0.0, %v6552
    %v6554 = vpop.f32.mrf.mxu0
    %6555 = vmatprep.mubr.f32.mxu0 0.0
    %6556 = vmatmul.mubr.f32.gmra.mxu0 %v6396
    %v6557 = vpop.f32.mrf.mxu0
    %v6558 = vadd.f32 0.0, %v6557
    %v6559 = vpop.f32.mrf.mxu0
    %6560 = vdwg.mxu0
    %v6561 = vadd.f32 %v6371, %v6483
    %v6562 = vadd.f32 %v6372, %v6488
    %v6563 = vadd.f32 %v6373, %v6493
    %v6564 = vadd.f32 %v6374, %v6498
    %v6565 = vadd.f32 %v6375, %v6503
    %v6566 = vadd.f32 %v6376, %v6508
    %v6567 = vadd.f32 %v6377, %v6513
    %v6568 = vadd.f32 %v6378, %v6518
    %v6569 = vadd.f32 %v6379, %v6523
    %v6570 = vadd.f32 %v6380, %v6528
    %v6571 = vadd.f32 %v6381, %v6533
    %v6572 = vadd.f32 %v6382, %v6538
    %v6573 = vadd.f32 %v6383, %v6543
    %v6574 = vadd.f32 %v6384, %v6548
    %v6575 = vadd.f32 %v6385, %v6553
    %v6576 = vadd.f32 %v6386, %v6558
    %v6577 = vrot.slane %v2256, 2
    %v6578 = vrot.slane %v2257, 2
    %v6579 = vsel %vm2702, %v6577, %v6578
    %v6580 = vrot.slane %v2280, 2
    %v6581 = vrot.slane %v2281, 2
    %v6582 = vsel %vm2702, %v6580, %v6581
    %s6585 = scalar_lea.vmem %s3, 2816
    %v6586 = vld [vmem:[%s6585] sm:$0xff]
    %v6587 = vld [vmem:[%s6585 + $0x8] sm:$0xff]
    %v6588 = vld [vmem:[%s6585 + $0x10] sm:$0xff]
    %v6589 = vld [vmem:[%s6585 + $0x18] sm:$0xff]
    %v6590 = vld [vmem:[%s6585 + $0x20] sm:$0xff]
    %v6591 = vld [vmem:[%s6585 + $0x28] sm:$0xff]
    %v6592 = vld [vmem:[%s6585 + $0x30] sm:$0xff]
    %v6593 = vld [vmem:[%s6585 + $0x38] sm:$0xff]
    %v6594 = vld [vmem:[%s6585 + $0x40] sm:$0xff]
    %v6595 = vld [vmem:[%s6585 + $0x48] sm:$0xff]
    %v6596 = vld [vmem:[%s6585 + $0x50] sm:$0xff]
    %v6597 = vld [vmem:[%s6585 + $0x58] sm:$0xff]
    %v6598 = vld [vmem:[%s6585 + $0x60] sm:$0xff]
    %v6599 = vld [vmem:[%s6585 + $0x68] sm:$0xff]
    %v6600 = vld [vmem:[%s6585 + $0x70] sm:$0xff]
    %v6601 = vld [vmem:[%s6585 + $0x78] sm:$0xff]
    %6602 = vmatprep.subr.mxu0 0.0
    %6603 = vmatpush1.msra.mxu0 %v6601
    %6604 = vmatprep.subr.mxu0 0.0
    %6605 = vmatpush1.msra.mxu0 %v6600
    %6606 = vmatprep.subr.mxu0 0.0
    %6607 = vmatpush1.msra.mxu0 %v6599
    %6608 = vmatprep.subr.mxu0 0.0
    %6609 = vmatpush1.msra.mxu0 %v6598
    %6610 = vmatprep.subr.mxu0 0.0
    %6611 = vmatpush1.msra.mxu0 %v6597
    %6612 = vmatprep.subr.mxu0 0.0
    %6613 = vmatpush1.msra.mxu0 %v6596
    %6614 = vmatprep.subr.mxu0 0.0
    %6615 = vmatpush1.msra.mxu0 %v6595
    %6616 = vmatprep.subr.mxu0 0.0
    %6617 = vmatpush1.msra.mxu0 %v6594
    %6618 = vmatprep.subr.mxu0 0.0
    %6619 = vmatpush1.msra.mxu0 %v6593
    %6620 = vmatprep.subr.mxu0 0.0
    %6621 = vmatpush1.msra.mxu0 %v6592
    %6622 = vmatprep.subr.mxu0 0.0
    %6623 = vmatpush1.msra.mxu0 %v6591
    %6624 = vmatprep.subr.mxu0 0.0
    %6625 = vmatpush1.msra.mxu0 %v6590
    %6626 = vmatprep.subr.mxu0 0.0
    %6627 = vmatpush1.msra.mxu0 %v6589
    %6628 = vmatprep.subr.mxu0 0.0
    %6629 = vmatpush1.msra.mxu0 %v6588
    %6630 = vmatprep.subr.mxu0 0.0
    %6631 = vmatpush1.msra.mxu0 %v6587
    %6632 = vmatprep.subr.mxu0 0.0
    %6633 = vmatpush1.msra.mxu0 %v6586
    %6634 = vmatprep.subr.mxu0 0.0
    %6635 = vmatpush2.msra.mxu0 0.0
    %6636 = vmatprep.subr.mxu0 0.0
    %6637 = vmatpush2.msra.mxu0 0.0
    %6638 = vmatprep.subr.mxu0 0.0
    %6639 = vmatpush2.msra.mxu0 0.0
    %6640 = vmatprep.subr.mxu0 0.0
    %6641 = vmatpush2.msra.mxu0 0.0
    %6642 = vmatprep.subr.mxu0 0.0
    %6643 = vmatpush2.msra.mxu0 0.0
    %6644 = vmatprep.subr.mxu0 0.0
    %6645 = vmatpush2.msra.mxu0 0.0
    %6646 = vmatprep.subr.mxu0 0.0
    %6647 = vmatpush2.msra.mxu0 0.0
    %6648 = vmatprep.subr.mxu0 0.0
    %6649 = vmatpush2.msra.mxu0 0.0
    %6650 = vmatprep.subr.mxu0 0.0
    %6651 = vmatpush2.msra.mxu0 0.0
    %6652 = vmatprep.subr.mxu0 0.0
    %6653 = vmatpush2.msra.mxu0 0.0
    %6654 = vmatprep.subr.mxu0 0.0
    %6655 = vmatpush2.msra.mxu0 0.0
    %6656 = vmatprep.subr.mxu0 0.0
    %6657 = vmatpush2.msra.mxu0 0.0
    %6658 = vmatprep.subr.mxu0 0.0
    %6659 = vmatpush2.msra.mxu0 0.0
    %6660 = vmatprep.subr.mxu0 0.0
    %6661 = vmatpush2.msra.mxu0 0.0
    %6662 = vmatprep.subr.mxu0 0.0
    %6663 = vmatpush2.msra.mxu0 0.0
    %6664 = vmatprep.subr.mxu0 0.0
    %6665 = vmatpush2.msra.mxu0 0.0
    %6666 = vmatprep.mubr.f32.mxu0 0.0
    %6667 = vmatmul.mubr.f32.gmra.mxu0 %v2717
    %v6668 = vpop.f32.mrf.mxu0
    %v6669 = vadd.f32 0.0, %v6668
    %v6670 = vpop.f32.mrf.mxu0
    %6671 = vmatprep.mubr.f32.mxu0 0.0
    %6672 = vmatmul.mubr.f32.gmra.mxu0 %v2720
    %v6673 = vpop.f32.mrf.mxu0
    %v6674 = vadd.f32 0.0, %v6673
    %v6675 = vpop.f32.mrf.mxu0
    %6676 = vmatprep.mubr.f32.mxu0 0.0
    %6677 = vmatmul.mubr.f32.gmra.mxu0 %v2723
    %v6678 = vpop.f32.mrf.mxu0
    %v6679 = vadd.f32 0.0, %v6678
    %v6680 = vpop.f32.mrf.mxu0
    %6681 = vmatprep.mubr.f32.mxu0 0.0
    %6682 = vmatmul.mubr.f32.gmra.mxu0 %v2726
    %v6683 = vpop.f32.mrf.mxu0
    %v6684 = vadd.f32 0.0, %v6683
    %v6685 = vpop.f32.mrf.mxu0
    %6686 = vmatprep.mubr.f32.mxu0 0.0
    %6687 = vmatmul.mubr.f32.gmra.mxu0 %v3801
    %v6688 = vpop.f32.mrf.mxu0
    %v6689 = vadd.f32 0.0, %v6688
    %v6690 = vpop.f32.mrf.mxu0
    %6691 = vmatprep.mubr.f32.mxu0 0.0
    %6692 = vmatmul.mubr.f32.gmra.mxu0 %v4727
    %v6693 = vpop.f32.mrf.mxu0
    %v6694 = vadd.f32 0.0, %v6693
    %v6695 = vpop.f32.mrf.mxu0
    %6696 = vmatprep.mubr.f32.mxu0 0.0
    %6697 = vmatmul.mubr.f32.gmra.mxu0 %v5653
    %v6698 = vpop.f32.mrf.mxu0
    %v6699 = vadd.f32 0.0, %v6698
    %v6700 = vpop.f32.mrf.mxu0
    %6701 = vmatprep.mubr.f32.mxu0 0.0
    %6702 = vmatmul.mubr.f32.gmra.mxu0 %v6579
    %v6703 = vpop.f32.mrf.mxu0
    %v6704 = vadd.f32 0.0, %v6703
    %v6705 = vpop.f32.mrf.mxu0
    %6706 = vmatprep.mubr.f32.mxu0 0.0
    %6707 = vmatmul.mubr.f32.gmra.mxu0 %v2741
    %v6708 = vpop.f32.mrf.mxu0
    %v6709 = vadd.f32 0.0, %v6708
    %v6710 = vpop.f32.mrf.mxu0
    %6711 = vmatprep.mubr.f32.mxu0 0.0
    %6712 = vmatmul.mubr.f32.gmra.mxu0 %v2744
    %v6713 = vpop.f32.mrf.mxu0
    %v6714 = vadd.f32 0.0, %v6713
    %v6715 = vpop.f32.mrf.mxu0
    %6716 = vmatprep.mubr.f32.mxu0 0.0
    %6717 = vmatmul.mubr.f32.gmra.mxu0 %v2747
    %v6718 = vpop.f32.mrf.mxu0
    %v6719 = vadd.f32 0.0, %v6718
    %v6720 = vpop.f32.mrf.mxu0
    %6721 = vmatprep.mubr.f32.mxu0 0.0
    %6722 = vmatmul.mubr.f32.gmra.mxu0 %v2750
    %v6723 = vpop.f32.mrf.mxu0
    %v6724 = vadd.f32 0.0, %v6723
    %v6725 = vpop.f32.mrf.mxu0
    %6726 = vmatprep.mubr.f32.mxu0 0.0
    %6727 = vmatmul.mubr.f32.gmra.mxu0 %v3804
    %v6728 = vpop.f32.mrf.mxu0
    %v6729 = vadd.f32 0.0, %v6728
    %v6730 = vpop.f32.mrf.mxu0
    %6731 = vmatprep.mubr.f32.mxu0 0.0
    %6732 = vmatmul.mubr.f32.gmra.mxu0 %v4730
    %v6733 = vpop.f32.mrf.mxu0
    %v6734 = vadd.f32 0.0, %v6733
    %v6735 = vpop.f32.mrf.mxu0
    %6736 = vmatprep.mubr.f32.mxu0 0.0
    %6737 = vmatmul.mubr.f32.gmra.mxu0 %v5656
    %v6738 = vpop.f32.mrf.mxu0
    %v6739 = vadd.f32 0.0, %v6738
    %v6740 = vpop.f32.mrf.mxu0
    %6741 = vmatprep.mubr.f32.mxu0 0.0
    %6742 = vmatmul.mubr.f32.gmra.mxu0 %v6582
    %v6743 = vpop.f32.mrf.mxu0
    %v6744 = vadd.f32 0.0, %v6743
    %v6745 = vpop.f32.mrf.mxu0
    %6746 = vdwg.mxu0
    %v6747 = vadd.f32 %v6561, %v6669
    %v6748 = vadd.f32 %v6562, %v6674
    %v6749 = vadd.f32 %v6563, %v6679
    %v6750 = vadd.f32 %v6564, %v6684
    %v6751 = vadd.f32 %v6565, %v6689
    %v6752 = vadd.f32 %v6566, %v6694
    %v6753 = vadd.f32 %v6567, %v6699
    %v6754 = vadd.f32 %v6568, %v6704
    %v6755 = vadd.f32 %v6569, %v6709
    %v6756 = vadd.f32 %v6570, %v6714
    %v6757 = vadd.f32 %v6571, %v6719
    %v6758 = vadd.f32 %v6572, %v6724
    %v6759 = vadd.f32 %v6573, %v6729
    %v6760 = vadd.f32 %v6574, %v6734
    %v6761 = vadd.f32 %v6575, %v6739
    %v6762 = vadd.f32 %v6576, %v6744
    %v6763 = vrot.slane %v2256, 3
    %v6764 = vrot.slane %v2257, 3
    %v6765 = vsel %vm2945, %v6763, %v6764
    %v6766 = vrot.slane %v2280, 3
    %v6767 = vrot.slane %v2281, 3
    %v6768 = vsel %vm2945, %v6766, %v6767
    %s6771 = scalar_lea.vmem %s3, 2944
    %v6772 = vld [vmem:[%s6771] sm:$0xff]
    %v6773 = vld [vmem:[%s6771 + $0x8] sm:$0xff]
    %v6774 = vld [vmem:[%s6771 + $0x10] sm:$0xff]
    %v6775 = vld [vmem:[%s6771 + $0x18] sm:$0xff]
    %v6776 = vld [vmem:[%s6771 + $0x20] sm:$0xff]
    %v6777 = vld [vmem:[%s6771 + $0x28] sm:$0xff]
    %v6778 = vld [vmem:[%s6771 + $0x30] sm:$0xff]
    %v6779 = vld [vmem:[%s6771 + $0x38] sm:$0xff]
    %v6780 = vld [vmem:[%s6771 + $0x40] sm:$0xff]
    %v6781 = vld [vmem:[%s6771 + $0x48] sm:$0xff]
    %v6782 = vld [vmem:[%s6771 + $0x50] sm:$0xff]
    %v6783 = vld [vmem:[%s6771 + $0x58] sm:$0xff]
    %v6784 = vld [vmem:[%s6771 + $0x60] sm:$0xff]
    %v6785 = vld [vmem:[%s6771 + $0x68] sm:$0xff]
    %v6786 = vld [vmem:[%s6771 + $0x70] sm:$0xff]
    %v6787 = vld [vmem:[%s6771 + $0x78] sm:$0xff]
    %6788 = vmatprep.subr.mxu0 0.0
    %6789 = vmatpush1.msra.mxu0 %v6787
    %6790 = vmatprep.subr.mxu0 0.0
    %6791 = vmatpush1.msra.mxu0 %v6786
    %6792 = vmatprep.subr.mxu0 0.0
    %6793 = vmatpush1.msra.mxu0 %v6785
    %6794 = vmatprep.subr.mxu0 0.0
    %6795 = vmatpush1.msra.mxu0 %v6784
    %6796 = vmatprep.subr.mxu0 0.0
    %6797 = vmatpush1.msra.mxu0 %v6783
    %6798 = vmatprep.subr.mxu0 0.0
    %6799 = vmatpush1.msra.mxu0 %v6782
    %6800 = vmatprep.subr.mxu0 0.0
    %6801 = vmatpush1.msra.mxu0 %v6781
    %6802 = vmatprep.subr.mxu0 0.0
    %6803 = vmatpush1.msra.mxu0 %v6780
    %6804 = vmatprep.subr.mxu0 0.0
    %6805 = vmatpush1.msra.mxu0 %v6779
    %6806 = vmatprep.subr.mxu0 0.0
    %6807 = vmatpush1.msra.mxu0 %v6778
    %6808 = vmatprep.subr.mxu0 0.0
    %6809 = vmatpush1.msra.mxu0 %v6777
    %6810 = vmatprep.subr.mxu0 0.0
    %6811 = vmatpush1.msra.mxu0 %v6776
    %6812 = vmatprep.subr.mxu0 0.0
    %6813 = vmatpush1.msra.mxu0 %v6775
    %6814 = vmatprep.subr.mxu0 0.0
    %6815 = vmatpush1.msra.mxu0 %v6774
    %6816 = vmatprep.subr.mxu0 0.0
    %6817 = vmatpush1.msra.mxu0 %v6773
    %6818 = vmatprep.subr.mxu0 0.0
    %6819 = vmatpush1.msra.mxu0 %v6772
    %6820 = vmatprep.subr.mxu0 0.0
    %6821 = vmatpush2.msra.mxu0 0.0
    %6822 = vmatprep.subr.mxu0 0.0
    %6823 = vmatpush2.msra.mxu0 0.0
    %6824 = vmatprep.subr.mxu0 0.0
    %6825 = vmatpush2.msra.mxu0 0.0
    %6826 = vmatprep.subr.mxu0 0.0
    %6827 = vmatpush2.msra.mxu0 0.0
    %6828 = vmatprep.subr.mxu0 0.0
    %6829 = vmatpush2.msra.mxu0 0.0
    %6830 = vmatprep.subr.mxu0 0.0
    %6831 = vmatpush2.msra.mxu0 0.0
    %6832 = vmatprep.subr.mxu0 0.0
    %6833 = vmatpush2.msra.mxu0 0.0
    %6834 = vmatprep.subr.mxu0 0.0
    %6835 = vmatpush2.msra.mxu0 0.0
    %6836 = vmatprep.subr.mxu0 0.0
    %6837 = vmatpush2.msra.mxu0 0.0
    %6838 = vmatprep.subr.mxu0 0.0
    %6839 = vmatpush2.msra.mxu0 0.0
    %6840 = vmatprep.subr.mxu0 0.0
    %6841 = vmatpush2.msra.mxu0 0.0
    %6842 = vmatprep.subr.mxu0 0.0
    %6843 = vmatpush2.msra.mxu0 0.0
    %6844 = vmatprep.subr.mxu0 0.0
    %6845 = vmatpush2.msra.mxu0 0.0
    %6846 = vmatprep.subr.mxu0 0.0
    %6847 = vmatpush2.msra.mxu0 0.0
    %6848 = vmatprep.subr.mxu0 0.0
    %6849 = vmatpush2.msra.mxu0 0.0
    %6850 = vmatprep.subr.mxu0 0.0
    %6851 = vmatpush2.msra.mxu0 0.0
    %6852 = vmatprep.mubr.f32.mxu0 0.0
    %6853 = vmatmul.mubr.f32.gmra.mxu0 %v2960
    %v6854 = vpop.f32.mrf.mxu0
    %v6855 = vadd.f32 0.0, %v6854
    %v6856 = vpop.f32.mrf.mxu0
    %6857 = vmatprep.mubr.f32.mxu0 0.0
    %6858 = vmatmul.mubr.f32.gmra.mxu0 %v2963
    %v6859 = vpop.f32.mrf.mxu0
    %v6860 = vadd.f32 0.0, %v6859
    %v6861 = vpop.f32.mrf.mxu0
    %6862 = vmatprep.mubr.f32.mxu0 0.0
    %6863 = vmatmul.mubr.f32.gmra.mxu0 %v2966
    %v6864 = vpop.f32.mrf.mxu0
    %v6865 = vadd.f32 0.0, %v6864
    %v6866 = vpop.f32.mrf.mxu0
    %6867 = vmatprep.mubr.f32.mxu0 0.0
    %6868 = vmatmul.mubr.f32.gmra.mxu0 %v2969
    %v6869 = vpop.f32.mrf.mxu0
    %v6870 = vadd.f32 0.0, %v6869
    %v6871 = vpop.f32.mrf.mxu0
    %6872 = vmatprep.mubr.f32.mxu0 0.0
    %6873 = vmatmul.mubr.f32.gmra.mxu0 %v3987
    %v6874 = vpop.f32.mrf.mxu0
    %v6875 = vadd.f32 0.0, %v6874
    %v6876 = vpop.f32.mrf.mxu0
    %6877 = vmatprep.mubr.f32.mxu0 0.0
    %6878 = vmatmul.mubr.f32.gmra.mxu0 %v4913
    %v6879 = vpop.f32.mrf.mxu0
    %v6880 = vadd.f32 0.0, %v6879
    %v6881 = vpop.f32.mrf.mxu0
    %6882 = vmatprep.mubr.f32.mxu0 0.0
    %6883 = vmatmul.mubr.f32.gmra.mxu0 %v5839
    %v6884 = vpop.f32.mrf.mxu0
    %v6885 = vadd.f32 0.0, %v6884
    %v6886 = vpop.f32.mrf.mxu0
    %6887 = vmatprep.mubr.f32.mxu0 0.0
    %6888 = vmatmul.mubr.f32.gmra.mxu0 %v6765
    %v6889 = vpop.f32.mrf.mxu0
    %v6890 = vadd.f32 0.0, %v6889
    %v6891 = vpop.f32.mrf.mxu0
    %6892 = vmatprep.mubr.f32.mxu0 0.0
    %6893 = vmatmul.mubr.f32.gmra.mxu0 %v2984
    %v6894 = vpop.f32.mrf.mxu0
    %v6895 = vadd.f32 0.0, %v6894
    %v6896 = vpop.f32.mrf.mxu0
    %6897 = vmatprep.mubr.f32.mxu0 0.0
    %6898 = vmatmul.mubr.f32.gmra.mxu0 %v2987
    %v6899 = vpop.f32.mrf.mxu0
    %v6900 = vadd.f32 0.0, %v6899
    %v6901 = vpop.f32.mrf.mxu0
    %6902 = vmatprep.mubr.f32.mxu0 0.0
    %6903 = vmatmul.mubr.f32.gmra.mxu0 %v2990
    %v6904 = vpop.f32.mrf.mxu0
    %v6905 = vadd.f32 0.0, %v6904
    %v6906 = vpop.f32.mrf.mxu0
    %6907 = vmatprep.mubr.f32.mxu0 0.0
    %6908 = vmatmul.mubr.f32.gmra.mxu0 %v2993
    %v6909 = vpop.f32.mrf.mxu0
    %v6910 = vadd.f32 0.0, %v6909
    %v6911 = vpop.f32.mrf.mxu0
    %6912 = vmatprep.mubr.f32.mxu0 0.0
    %6913 = vmatmul.mubr.f32.gmra.mxu0 %v3990
    %v6914 = vpop.f32.mrf.mxu0
    %v6915 = vadd.f32 0.0, %v6914
    %v6916 = vpop.f32.mrf.mxu0
    %6917 = vmatprep.mubr.f32.mxu0 0.0
    %6918 = vmatmul.mubr.f32.gmra.mxu0 %v4916
    %v6919 = vpop.f32.mrf.mxu0
    %v6920 = vadd.f32 0.0, %v6919
    %v6921 = vpop.f32.mrf.mxu0
    %6922 = vmatprep.mubr.f32.mxu0 0.0
    %6923 = vmatmul.mubr.f32.gmra.mxu0 %v5842
    %v6924 = vpop.f32.mrf.mxu0
    %v6925 = vadd.f32 0.0, %v6924
    %v6926 = vpop.f32.mrf.mxu0
    %6927 = vmatprep.mubr.f32.mxu0 0.0
    %6928 = vmatmul.mubr.f32.gmra.mxu0 %v6768
    %v6929 = vpop.f32.mrf.mxu0
    %v6930 = vadd.f32 0.0, %v6929
    %v6931 = vpop.f32.mrf.mxu0
    %6932 = vdwg.mxu0
    %v6933 = vadd.f32 %v6747, %v6855
    %v6934 = vadd.f32 %v6748, %v6860
    %v6935 = vadd.f32 %v6749, %v6865
    %v6936 = vadd.f32 %v6750, %v6870
    %v6937 = vadd.f32 %v6751, %v6875
    %v6938 = vadd.f32 %v6752, %v6880
    %v6939 = vadd.f32 %v6753, %v6885
    %v6940 = vadd.f32 %v6754, %v6890
    %v6941 = vadd.f32 %v6755, %v6895
    %v6942 = vadd.f32 %v6756, %v6900
    %v6943 = vadd.f32 %v6757, %v6905
    %v6944 = vadd.f32 %v6758, %v6910
    %v6945 = vadd.f32 %v6759, %v6915
    %v6946 = vadd.f32 %v6760, %v6920
    %v6947 = vadd.f32 %v6761, %v6925
    %v6948 = vadd.f32 %v6762, %v6930
    %v6949 = vrot.slane %v2256, 4
    %v6950 = vrot.slane %v2257, 4
    %v6951 = vsel %vm3188, %v6949, %v6950
    %v6952 = vrot.slane %v2280, 4
    %v6953 = vrot.slane %v2281, 4
    %v6954 = vsel %vm3188, %v6952, %v6953
    %s6957 = scalar_lea.vmem %s3, 3072
    %v6958 = vld [vmem:[%s6957] sm:$0xff]
    %v6959 = vld [vmem:[%s6957 + $0x8] sm:$0xff]
    %v6960 = vld [vmem:[%s6957 + $0x10] sm:$0xff]
    %v6961 = vld [vmem:[%s6957 + $0x18] sm:$0xff]
    %v6962 = vld [vmem:[%s6957 + $0x20] sm:$0xff]
    %v6963 = vld [vmem:[%s6957 + $0x28] sm:$0xff]
    %v6964 = vld [vmem:[%s6957 + $0x30] sm:$0xff]
    %v6965 = vld [vmem:[%s6957 + $0x38] sm:$0xff]
    %v6966 = vld [vmem:[%s6957 + $0x40] sm:$0xff]
    %v6967 = vld [vmem:[%s6957 + $0x48] sm:$0xff]
    %v6968 = vld [vmem:[%s6957 + $0x50] sm:$0xff]
    %v6969 = vld [vmem:[%s6957 + $0x58] sm:$0xff]
    %v6970 = vld [vmem:[%s6957 + $0x60] sm:$0xff]
    %v6971 = vld [vmem:[%s6957 + $0x68] sm:$0xff]
    %v6972 = vld [vmem:[%s6957 + $0x70] sm:$0xff]
    %v6973 = vld [vmem:[%s6957 + $0x78] sm:$0xff]
    %6974 = vmatprep.subr.mxu0 0.0
    %6975 = vmatpush1.msra.mxu0 %v6973
    %6976 = vmatprep.subr.mxu0 0.0
    %6977 = vmatpush1.msra.mxu0 %v6972
    %6978 = vmatprep.subr.mxu0 0.0
    %6979 = vmatpush1.msra.mxu0 %v6971
    %6980 = vmatprep.subr.mxu0 0.0
    %6981 = vmatpush1.msra.mxu0 %v6970
    %6982 = vmatprep.subr.mxu0 0.0
    %6983 = vmatpush1.msra.mxu0 %v6969
    %6984 = vmatprep.subr.mxu0 0.0
    %6985 = vmatpush1.msra.mxu0 %v6968
    %6986 = vmatprep.subr.mxu0 0.0
    %6987 = vmatpush1.msra.mxu0 %v6967
    %6988 = vmatprep.subr.mxu0 0.0
    %6989 = vmatpush1.msra.mxu0 %v6966
    %6990 = vmatprep.subr.mxu0 0.0
    %6991 = vmatpush1.msra.mxu0 %v6965
    %6992 = vmatprep.subr.mxu0 0.0
    %6993 = vmatpush1.msra.mxu0 %v6964
    %6994 = vmatprep.subr.mxu0 0.0
    %6995 = vmatpush1.msra.mxu0 %v6963
    %6996 = vmatprep.subr.mxu0 0.0
    %6997 = vmatpush1.msra.mxu0 %v6962
    %6998 = vmatprep.subr.mxu0 0.0
    %6999 = vmatpush1.msra.mxu0 %v6961
    %7000 = vmatprep.subr.mxu0 0.0
    %7001 = vmatpush1.msra.mxu0 %v6960
    %7002 = vmatprep.subr.mxu0 0.0
    %7003 = vmatpush1.msra.mxu0 %v6959
    %7004 = vmatprep.subr.mxu0 0.0
    %7005 = vmatpush1.msra.mxu0 %v6958
    %7006 = vmatprep.subr.mxu0 0.0
    %7007 = vmatpush2.msra.mxu0 0.0
    %7008 = vmatprep.subr.mxu0 0.0
    %7009 = vmatpush2.msra.mxu0 0.0
    %7010 = vmatprep.subr.mxu0 0.0
    %7011 = vmatpush2.msra.mxu0 0.0
    %7012 = vmatprep.subr.mxu0 0.0
    %7013 = vmatpush2.msra.mxu0 0.0
    %7014 = vmatprep.subr.mxu0 0.0
    %7015 = vmatpush2.msra.mxu0 0.0
    %7016 = vmatprep.subr.mxu0 0.0
    %7017 = vmatpush2.msra.mxu0 0.0
    %7018 = vmatprep.subr.mxu0 0.0
    %7019 = vmatpush2.msra.mxu0 0.0
    %7020 = vmatprep.subr.mxu0 0.0
    %7021 = vmatpush2.msra.mxu0 0.0
    %7022 = vmatprep.subr.mxu0 0.0
    %7023 = vmatpush2.msra.mxu0 0.0
    %7024 = vmatprep.subr.mxu0 0.0
    %7025 = vmatpush2.msra.mxu0 0.0
    %7026 = vmatprep.subr.mxu0 0.0
    %7027 = vmatpush2.msra.mxu0 0.0
    %7028 = vmatprep.subr.mxu0 0.0
    %7029 = vmatpush2.msra.mxu0 0.0
    %7030 = vmatprep.subr.mxu0 0.0
    %7031 = vmatpush2.msra.mxu0 0.0
    %7032 = vmatprep.subr.mxu0 0.0
    %7033 = vmatpush2.msra.mxu0 0.0
    %7034 = vmatprep.subr.mxu0 0.0
    %7035 = vmatpush2.msra.mxu0 0.0
    %7036 = vmatprep.subr.mxu0 0.0
    %7037 = vmatpush2.msra.mxu0 0.0
    %7038 = vmatprep.mubr.f32.mxu0 0.0
    %7039 = vmatmul.mubr.f32.gmra.mxu0 %v3203
    %v7040 = vpop.f32.mrf.mxu0
    %v7041 = vadd.f32 0.0, %v7040
    %v7042 = vpop.f32.mrf.mxu0
    %7043 = vmatprep.mubr.f32.mxu0 0.0
    %7044 = vmatmul.mubr.f32.gmra.mxu0 %v3206
    %v7045 = vpop.f32.mrf.mxu0
    %v7046 = vadd.f32 0.0, %v7045
    %v7047 = vpop.f32.mrf.mxu0
    %7048 = vmatprep.mubr.f32.mxu0 0.0
    %7049 = vmatmul.mubr.f32.gmra.mxu0 %v3209
    %v7050 = vpop.f32.mrf.mxu0
    %v7051 = vadd.f32 0.0, %v7050
    %v7052 = vpop.f32.mrf.mxu0
    %7053 = vmatprep.mubr.f32.mxu0 0.0
    %7054 = vmatmul.mubr.f32.gmra.mxu0 %v3212
    %v7055 = vpop.f32.mrf.mxu0
    %v7056 = vadd.f32 0.0, %v7055
    %v7057 = vpop.f32.mrf.mxu0
    %7058 = vmatprep.mubr.f32.mxu0 0.0
    %7059 = vmatmul.mubr.f32.gmra.mxu0 %v4173
    %v7060 = vpop.f32.mrf.mxu0
    %v7061 = vadd.f32 0.0, %v7060
    %v7062 = vpop.f32.mrf.mxu0
    %7063 = vmatprep.mubr.f32.mxu0 0.0
    %7064 = vmatmul.mubr.f32.gmra.mxu0 %v5099
    %v7065 = vpop.f32.mrf.mxu0
    %v7066 = vadd.f32 0.0, %v7065
    %v7067 = vpop.f32.mrf.mxu0
    %7068 = vmatprep.mubr.f32.mxu0 0.0
    %7069 = vmatmul.mubr.f32.gmra.mxu0 %v6025
    %v7070 = vpop.f32.mrf.mxu0
    %v7071 = vadd.f32 0.0, %v7070
    %v7072 = vpop.f32.mrf.mxu0
    %7073 = vmatprep.mubr.f32.mxu0 0.0
    %7074 = vmatmul.mubr.f32.gmra.mxu0 %v6951
    %v7075 = vpop.f32.mrf.mxu0
    %v7076 = vadd.f32 0.0, %v7075
    %v7077 = vpop.f32.mrf.mxu0
    %7078 = vmatprep.mubr.f32.mxu0 0.0
    %7079 = vmatmul.mubr.f32.gmra.mxu0 %v3227
    %v7080 = vpop.f32.mrf.mxu0
    %v7081 = vadd.f32 0.0, %v7080
    %v7082 = vpop.f32.mrf.mxu0
    %7083 = vmatprep.mubr.f32.mxu0 0.0
    %7084 = vmatmul.mubr.f32.gmra.mxu0 %v3230
    %v7085 = vpop.f32.mrf.mxu0
    %v7086 = vadd.f32 0.0, %v7085
    %v7087 = vpop.f32.mrf.mxu0
    %7088 = vmatprep.mubr.f32.mxu0 0.0
    %7089 = vmatmul.mubr.f32.gmra.mxu0 %v3233
    %v7090 = vpop.f32.mrf.mxu0
    %v7091 = vadd.f32 0.0, %v7090
    %v7092 = vpop.f32.mrf.mxu0
    %7093 = vmatprep.mubr.f32.mxu0 0.0
    %7094 = vmatmul.mubr.f32.gmra.mxu0 %v3236
    %v7095 = vpop.f32.mrf.mxu0
    %v7096 = vadd.f32 0.0, %v7095
    %v7097 = vpop.f32.mrf.mxu0
    %7098 = vmatprep.mubr.f32.mxu0 0.0
    %7099 = vmatmul.mubr.f32.gmra.mxu0 %v4176
    %v7100 = vpop.f32.mrf.mxu0
    %v7101 = vadd.f32 0.0, %v7100
    %v7102 = vpop.f32.mrf.mxu0
    %7103 = vmatprep.mubr.f32.mxu0 0.0
    %7104 = vmatmul.mubr.f32.gmra.mxu0 %v5102
    %v7105 = vpop.f32.mrf.mxu0
    %v7106 = vadd.f32 0.0, %v7105
    %v7107 = vpop.f32.mrf.mxu0
    %7108 = vmatprep.mubr.f32.mxu0 0.0
    %7109 = vmatmul.mubr.f32.gmra.mxu0 %v6028
    %v7110 = vpop.f32.mrf.mxu0
    %v7111 = vadd.f32 0.0, %v7110
    %v7112 = vpop.f32.mrf.mxu0
    %7113 = vmatprep.mubr.f32.mxu0 0.0
    %7114 = vmatmul.mubr.f32.gmra.mxu0 %v6954
    %v7115 = vpop.f32.mrf.mxu0
    %v7116 = vadd.f32 0.0, %v7115
    %v7117 = vpop.f32.mrf.mxu0
    %7118 = vdwg.mxu0
    %v7119 = vadd.f32 %v6933, %v7041
    %v7120 = vadd.f32 %v6934, %v7046
    %v7121 = vadd.f32 %v6935, %v7051
    %v7122 = vadd.f32 %v6936, %v7056
    %v7123 = vadd.f32 %v6937, %v7061
    %v7124 = vadd.f32 %v6938, %v7066
    %v7125 = vadd.f32 %v6939, %v7071
    %v7126 = vadd.f32 %v6940, %v7076
    %v7127 = vadd.f32 %v6941, %v7081
    %v7128 = vadd.f32 %v6942, %v7086
    %v7129 = vadd.f32 %v6943, %v7091
    %v7130 = vadd.f32 %v6944, %v7096
    %v7131 = vadd.f32 %v6945, %v7101
    %v7132 = vadd.f32 %v6946, %v7106
    %v7133 = vadd.f32 %v6947, %v7111
    %v7134 = vadd.f32 %v6948, %v7116
    %v7135 = vld [vmem:[%s4] sm:$0x1]
    %v7137 = vlaneseq
    %v7138 = vshrl.u32 %v7137, 7
    %v7139 = vsub.s32 0, %v7138
    %v7140 = vrot.slane %v7135, %v7139
    %v7142 = vadd.f32 %v7119, %v7140
    %v7143 = vadd.f32 %v7120, %v7140
    %v7144 = vadd.f32 %v7121, %v7140
    %v7145 = vadd.f32 %v7122, %v7140
    %v7146 = vadd.f32 %v7123, %v7140
    %v7147 = vadd.f32 %v7124, %v7140
    %v7148 = vadd.f32 %v7125, %v7140
    %v7149 = vadd.f32 %v7126, %v7140
    %v7150 = vadd.f32 %v7127, %v7140
    %v7151 = vadd.f32 %v7128, %v7140
    %v7152 = vadd.f32 %v7129, %v7140
    %v7153 = vadd.f32 %v7130, %v7140
    %v7154 = vadd.f32 %v7131, %v7140
    %v7155 = vadd.f32 %v7132, %v7140
    %v7156 = vadd.f32 %v7133, %v7140
    %v7157 = vadd.f32 %v7134, %v7140
    %v7158 = vmax.f32 %v7142, %v7143
    %v7159 = vmax.f32 %v7144, %v7145
    %v7160 = vmax.f32 %v7146, %v7147
    %v7161 = vmax.f32 %v7148, %v7149
    %v7162 = vmax.f32 %v7150, %v7151
    %v7163 = vmax.f32 %v7152, %v7153
    %v7164 = vmax.f32 %v7154, %v7155
    %v7165 = vmax.f32 %v7156, %v7157
    %v7174 = vrot.slane %v7158, 1
    %v7175 = vrot.slane %v7159, 1
    %v7176 = vrot.slane %v7160, 1
    %v7177 = vrot.slane %v7161, 1
    %v7178 = vrot.slane %v7162, 1
    %v7179 = vrot.slane %v7163, 1
    %v7180 = vrot.slane %v7164, 1
    %v7181 = vrot.slane %v7165, 1
    %v7190 = vmax.f32 %v7158, %v7174
    %v7191 = vmax.f32 %v7159, %v7175
    %v7192 = vmax.f32 %v7160, %v7176
    %v7193 = vmax.f32 %v7161, %v7177
    %v7194 = vmax.f32 %v7162, %v7178
    %v7195 = vmax.f32 %v7163, %v7179
    %v7196 = vmax.f32 %v7164, %v7180
    %v7197 = vmax.f32 %v7165, %v7181
    %v7198 = vmax.f32 %v7190, 0.0
    %v7199 = vmax.f32 %v7191, 0.0
    %v7200 = vmax.f32 %v7192, 0.0
    %v7201 = vmax.f32 %v7193, 0.0
    %v7202 = vmax.f32 %v7194, 0.0
    %v7203 = vmax.f32 %v7195, 0.0
    %v7204 = vmax.f32 %v7196, 0.0
    %v7205 = vmax.f32 %v7197, 0.0
    %v7206 = vld [vmem:[%s5] sm:$0xff]
    %v7207 = vld [vmem:[%s5 + $0x8] sm:$0xff]
    %v7208 = vld [vmem:[%s5 + $0x10] sm:$0xff]
    %v7209 = vld [vmem:[%s5 + $0x18] sm:$0xff]
    %v7210 = vld [vmem:[%s5 + $0x20] sm:$0xff]
    %v7211 = vld [vmem:[%s5 + $0x28] sm:$0xff]
    %v7212 = vld [vmem:[%s5 + $0x30] sm:$0xff]
    %v7213 = vld [vmem:[%s5 + $0x38] sm:$0xff]
    %v7214 = vld [vmem:[%s5 + $0x40] sm:$0xff]
    %v7215 = vld [vmem:[%s5 + $0x48] sm:$0xff]
    %v7216 = vld [vmem:[%s5 + $0x50] sm:$0xff]
    %v7217 = vld [vmem:[%s5 + $0x58] sm:$0xff]
    %v7218 = vld [vmem:[%s5 + $0x60] sm:$0xff]
    %v7219 = vld [vmem:[%s5 + $0x68] sm:$0xff]
    %v7220 = vld [vmem:[%s5 + $0x70] sm:$0xff]
    %v7221 = vld [vmem:[%s5 + $0x78] sm:$0xff]
    %s7222 = scalar_lea.vmem %s5, 128
    %v7223 = vld [vmem:[%s7222] sm:$0xff]
    %v7224 = vld [vmem:[%s7222 + $0x8] sm:$0xff]
    %v7225 = vld [vmem:[%s7222 + $0x10] sm:$0xff]
    %v7226 = vld [vmem:[%s7222 + $0x18] sm:$0xff]
    %v7227 = vld [vmem:[%s7222 + $0x20] sm:$0xff]
    %v7228 = vld [vmem:[%s7222 + $0x28] sm:$0xff]
    %v7229 = vld [vmem:[%s7222 + $0x30] sm:$0xff]
    %v7230 = vld [vmem:[%s7222 + $0x38] sm:$0xff]
    %v7231 = vld [vmem:[%s7222 + $0x40] sm:$0xff]
    %v7232 = vld [vmem:[%s7222 + $0x48] sm:$0xff]
    %v7233 = vld [vmem:[%s7222 + $0x50] sm:$0xff]
    %v7234 = vld [vmem:[%s7222 + $0x58] sm:$0xff]
    %v7235 = vld [vmem:[%s7222 + $0x60] sm:$0xff]
    %v7236 = vld [vmem:[%s7222 + $0x68] sm:$0xff]
    %v7237 = vld [vmem:[%s7222 + $0x70] sm:$0xff]
    %v7238 = vld [vmem:[%s7222 + $0x78] sm:$0xff]
    %v7241 = vrot.slane %v7198, 2
    %v7242 = vrot.slane %v7202, 1
    %vm7243 = vcmask 1041409
    %v7244 = vsel %vm7243, %v7242, %v7241
    %7246 = vmatprep.subr.mxu0 0.0
    %7247 = vmatpush1.msra.mxu0 %v7238
    %7248 = vmatprep.subr.mxu0 0.0
    %7249 = vmatpush1.msra.mxu0 %v7237
    %7250 = vmatprep.subr.mxu0 0.0
    %7251 = vmatpush1.msra.mxu0 %v7236
    %7252 = vmatprep.subr.mxu0 0.0
    %7253 = vmatpush1.msra.mxu0 %v7235
    %7254 = vmatprep.subr.mxu0 0.0
    %7255 = vmatpush1.msra.mxu0 %v7234
    %7256 = vmatprep.subr.mxu0 0.0
    %7257 = vmatpush1.msra.mxu0 %v7233
    %7258 = vmatprep.subr.mxu0 0.0
    %7259 = vmatpush1.msra.mxu0 %v7232
    %7260 = vmatprep.subr.mxu0 0.0
    %7261 = vmatpush1.msra.mxu0 %v7231
    %7262 = vmatprep.subr.mxu0 0.0
    %7263 = vmatpush1.msra.mxu0 %v7230
    %7264 = vmatprep.subr.mxu0 0.0
    %7265 = vmatpush1.msra.mxu0 %v7229
    %7266 = vmatprep.subr.mxu0 0.0
    %7267 = vmatpush1.msra.mxu0 %v7228
    %7268 = vmatprep.subr.mxu0 0.0
    %7269 = vmatpush1.msra.mxu0 %v7227
    %7270 = vmatprep.subr.mxu0 0.0
    %7271 = vmatpush1.msra.mxu0 %v7226
    %7272 = vmatprep.subr.mxu0 0.0
    %7273 = vmatpush1.msra.mxu0 %v7225
    %7274 = vmatprep.subr.mxu0 0.0
    %7275 = vmatpush1.msra.mxu0 %v7224
    %7276 = vmatprep.subr.mxu0 0.0
    %7277 = vmatpush1.msra.mxu0 %v7223
    %7278 = vmatprep.subr.mxu0 0.0
    %7279 = vmatpush2.msra.mxu0 0.0
    %7280 = vmatprep.subr.mxu0 0.0
    %7281 = vmatpush2.msra.mxu0 0.0
    %7282 = vmatprep.subr.mxu0 0.0
    %7283 = vmatpush2.msra.mxu0 0.0
    %7284 = vmatprep.subr.mxu0 0.0
    %7285 = vmatpush2.msra.mxu0 0.0
    %7286 = vmatprep.subr.mxu0 0.0
    %7287 = vmatpush2.msra.mxu0 0.0
    %7288 = vmatprep.subr.mxu0 0.0
    %7289 = vmatpush2.msra.mxu0 0.0
    %7290 = vmatprep.subr.mxu0 0.0
    %7291 = vmatpush2.msra.mxu0 0.0
    %7292 = vmatprep.subr.mxu0 0.0
    %7293 = vmatpush2.msra.mxu0 0.0
    %7294 = vmatprep.subr.mxu0 0.0
    %7295 = vmatpush2.msra.mxu0 0.0
    %7296 = vmatprep.subr.mxu0 0.0
    %7297 = vmatpush2.msra.mxu0 0.0
    %7298 = vmatprep.subr.mxu0 0.0
    %7299 = vmatpush2.msra.mxu0 0.0
    %7300 = vmatprep.subr.mxu0 0.0
    %7301 = vmatpush2.msra.mxu0 0.0
    %7302 = vmatprep.subr.mxu0 0.0
    %7303 = vmatpush2.msra.mxu0 0.0
    %7304 = vmatprep.subr.mxu0 0.0
    %7305 = vmatpush2.msra.mxu0 0.0
    %7306 = vmatprep.subr.mxu0 0.0
    %7307 = vmatpush2.msra.mxu0 0.0
    %7308 = vmatprep.subr.mxu0 0.0
    %7309 = vmatpush2.msra.mxu0 0.0
    %7310 = vmatprep.mubr.f32.mxu0 0.0
    %7311 = vmatmul.mubr.f32.gmra.mxu0 %v7244
    %v7312 = vpop.f32.mrf.mxu0
    %v7313 = vadd.f32 0.0, %v7312
    %v7314 = vpop.f32.mrf.mxu0
    %7315 = vdwg.mxu0
    %v7316 = vrot.slane %v7202, 7
    %v7317 = vsel %vm7243, %v7316, %v7198
    %7319 = vmatprep.subr.mxu0 0.0
    %7320 = vmatpush1.msra.mxu0 %v7221
    %7321 = vmatprep.subr.mxu0 0.0
    %7322 = vmatpush1.msra.mxu0 %v7220
    %7323 = vmatprep.subr.mxu0 0.0
    %7324 = vmatpush1.msra.mxu0 %v7219
    %7325 = vmatprep.subr.mxu0 0.0
    %7326 = vmatpush1.msra.mxu0 %v7218
    %7327 = vmatprep.subr.mxu0 0.0
    %7328 = vmatpush1.msra.mxu0 %v7217
    %7329 = vmatprep.subr.mxu0 0.0
    %7330 = vmatpush1.msra.mxu0 %v7216
    %7331 = vmatprep.subr.mxu0 0.0
    %7332 = vmatpush1.msra.mxu0 %v7215
    %7333 = vmatprep.subr.mxu0 0.0
    %7334 = vmatpush1.msra.mxu0 %v7214
    %7335 = vmatprep.subr.mxu0 0.0
    %7336 = vmatpush1.msra.mxu0 %v7213
    %7337 = vmatprep.subr.mxu0 0.0
    %7338 = vmatpush1.msra.mxu0 %v7212
    %7339 = vmatprep.subr.mxu0 0.0
    %7340 = vmatpush1.msra.mxu0 %v7211
    %7341 = vmatprep.subr.mxu0 0.0
    %7342 = vmatpush1.msra.mxu0 %v7210
    %7343 = vmatprep.subr.mxu0 0.0
    %7344 = vmatpush1.msra.mxu0 %v7209
    %7345 = vmatprep.subr.mxu0 0.0
    %7346 = vmatpush1.msra.mxu0 %v7208
    %7347 = vmatprep.subr.mxu0 0.0
    %7348 = vmatpush1.msra.mxu0 %v7207
    %7349 = vmatprep.subr.mxu0 0.0
    %7350 = vmatpush1.msra.mxu0 %v7206
    %7351 = vmatprep.subr.mxu0 0.0
    %7352 = vmatpush2.msra.mxu0 0.0
    %7353 = vmatprep.subr.mxu0 0.0
    %7354 = vmatpush2.msra.mxu0 0.0
    %7355 = vmatprep.subr.mxu0 0.0
    %7356 = vmatpush2.msra.mxu0 0.0
    %7357 = vmatprep.subr.mxu0 0.0
    %7358 = vmatpush2.msra.mxu0 0.0
    %7359 = vmatprep.subr.mxu0 0.0
    %7360 = vmatpush2.msra.mxu0 0.0
    %7361 = vmatprep.subr.mxu0 0.0
    %7362 = vmatpush2.msra.mxu0 0.0
    %7363 = vmatprep.subr.mxu0 0.0
    %7364 = vmatpush2.msra.mxu0 0.0
    %7365 = vmatprep.subr.mxu0 0.0
    %7366 = vmatpush2.msra.mxu0 0.0
    %7367 = vmatprep.subr.mxu0 0.0
    %7368 = vmatpush2.msra.mxu0 0.0
    %7369 = vmatprep.subr.mxu0 0.0
    %7370 = vmatpush2.msra.mxu0 0.0
    %7371 = vmatprep.subr.mxu0 0.0
    %7372 = vmatpush2.msra.mxu0 0.0
    %7373 = vmatprep.subr.mxu0 0.0
    %7374 = vmatpush2.msra.mxu0 0.0
    %7375 = vmatprep.subr.mxu0 0.0
    %7376 = vmatpush2.msra.mxu0 0.0
    %7377 = vmatprep.subr.mxu0 0.0
    %7378 = vmatpush2.msra.mxu0 0.0
    %7379 = vmatprep.subr.mxu0 0.0
    %7380 = vmatpush2.msra.mxu0 0.0
    %7381 = vmatprep.subr.mxu0 0.0
    %7382 = vmatpush2.msra.mxu0 0.0
    %7383 = vmatprep.mubr.f32.mxu0 0.0
    %7384 = vmatmul.mubr.f32.gmra.mxu0 %v7317
    %v7385 = vpop.f32.mrf.mxu0
    %v7386 = vadd.f32 %v7313, %v7385
    %v7387 = vpop.f32.mrf.mxu0
    %7388 = vdwg.mxu0
    %s7389 = scalar_lea.vmem %s5, 256
    %v7390 = vld [vmem:[%s7389] sm:$0xff]
    %v7391 = vld [vmem:[%s7389 + $0x8] sm:$0xff]
    %v7392 = vld [vmem:[%s7389 + $0x10] sm:$0xff]
    %v7393 = vld [vmem:[%s7389 + $0x18] sm:$0xff]
    %v7394 = vld [vmem:[%s7389 + $0x20] sm:$0xff]
    %v7395 = vld [vmem:[%s7389 + $0x28] sm:$0xff]
    %v7396 = vld [vmem:[%s7389 + $0x30] sm:$0xff]
    %v7397 = vld [vmem:[%s7389 + $0x38] sm:$0xff]
    %v7398 = vld [vmem:[%s7389 + $0x40] sm:$0xff]
    %v7399 = vld [vmem:[%s7389 + $0x48] sm:$0xff]
    %v7400 = vld [vmem:[%s7389 + $0x50] sm:$0xff]
    %v7401 = vld [vmem:[%s7389 + $0x58] sm:$0xff]
    %v7402 = vld [vmem:[%s7389 + $0x60] sm:$0xff]
    %v7403 = vld [vmem:[%s7389 + $0x68] sm:$0xff]
    %v7404 = vld [vmem:[%s7389 + $0x70] sm:$0xff]
    %v7405 = vld [vmem:[%s7389 + $0x78] sm:$0xff]
    %v7406 = vrot.slane %v7198, 4
    %v7407 = vrot.slane %v7202, 3
    %v7408 = vsel %vm7243, %v7407, %v7406
    %7410 = vmatprep.subr.mxu0 0.0
    %7411 = vmatpush1.msra.mxu0 %v7405
    %7412 = vmatprep.subr.mxu0 0.0
    %7413 = vmatpush1.msra.mxu0 %v7404
    %7414 = vmatprep.subr.mxu0 0.0
    %7415 = vmatpush1.msra.mxu0 %v7403
    %7416 = vmatprep.subr.mxu0 0.0
    %7417 = vmatpush1.msra.mxu0 %v7402
    %7418 = vmatprep.subr.mxu0 0.0
    %7419 = vmatpush1.msra.mxu0 %v7401
    %7420 = vmatprep.subr.mxu0 0.0
    %7421 = vmatpush1.msra.mxu0 %v7400
    %7422 = vmatprep.subr.mxu0 0.0
    %7423 = vmatpush1.msra.mxu0 %v7399
    %7424 = vmatprep.subr.mxu0 0.0
    %7425 = vmatpush1.msra.mxu0 %v7398
    %7426 = vmatprep.subr.mxu0 0.0
    %7427 = vmatpush1.msra.mxu0 %v7397
    %7428 = vmatprep.subr.mxu0 0.0
    %7429 = vmatpush1.msra.mxu0 %v7396
    %7430 = vmatprep.subr.mxu0 0.0
    %7431 = vmatpush1.msra.mxu0 %v7395
    %7432 = vmatprep.subr.mxu0 0.0
    %7433 = vmatpush1.msra.mxu0 %v7394
    %7434 = vmatprep.subr.mxu0 0.0
    %7435 = vmatpush1.msra.mxu0 %v7393
    %7436 = vmatprep.subr.mxu0 0.0
    %7437 = vmatpush1.msra.mxu0 %v7392
    %7438 = vmatprep.subr.mxu0 0.0
    %7439 = vmatpush1.msra.mxu0 %v7391
    %7440 = vmatprep.subr.mxu0 0.0
    %7441 = vmatpush1.msra.mxu0 %v7390
    %7442 = vmatprep.subr.mxu0 0.0
    %7443 = vmatpush2.msra.mxu0 0.0
    %7444 = vmatprep.subr.mxu0 0.0
    %7445 = vmatpush2.msra.mxu0 0.0
    %7446 = vmatprep.subr.mxu0 0.0
    %7447 = vmatpush2.msra.mxu0 0.0
    %7448 = vmatprep.subr.mxu0 0.0
    %7449 = vmatpush2.msra.mxu0 0.0
    %7450 = vmatprep.subr.mxu0 0.0
    %7451 = vmatpush2.msra.mxu0 0.0
    %7452 = vmatprep.subr.mxu0 0.0
    %7453 = vmatpush2.msra.mxu0 0.0
    %7454 = vmatprep.subr.mxu0 0.0
    %7455 = vmatpush2.msra.mxu0 0.0
    %7456 = vmatprep.subr.mxu0 0.0
    %7457 = vmatpush2.msra.mxu0 0.0
    %7458 = vmatprep.subr.mxu0 0.0
    %7459 = vmatpush2.msra.mxu0 0.0
    %7460 = vmatprep.subr.mxu0 0.0
    %7461 = vmatpush2.msra.mxu0 0.0
    %7462 = vmatprep.subr.mxu0 0.0
    %7463 = vmatpush2.msra.mxu0 0.0
    %7464 = vmatprep.subr.mxu0 0.0
    %7465 = vmatpush2.msra.mxu0 0.0
    %7466 = vmatprep.subr.mxu0 0.0
    %7467 = vmatpush2.msra.mxu0 0.0
    %7468 = vmatprep.subr.mxu0 0.0
    %7469 = vmatpush2.msra.mxu0 0.0
    %7470 = vmatprep.subr.mxu0 0.0
    %7471 = vmatpush2.msra.mxu0 0.0
    %7472 = vmatprep.subr.mxu0 0.0
    %7473 = vmatpush2.msra.mxu0 0.0
    %7474 = vmatprep.mubr.f32.mxu0 0.0
    %7475 = vmatmul.mubr.f32.gmra.mxu0 %v7408
    %v7476 = vpop.f32.mrf.mxu0
    %v7477 = vadd.f32 0.0, %v7476
    %v7478 = vpop.f32.mrf.mxu0
    %7479 = vdwg.mxu0
    %v7480 = vadd.f32 %v7386, %v7477
    %s7481 = scalar_lea.vmem %s5, 384
    %v7482 = vld [vmem:[%s7481] sm:$0xff]
    %v7483 = vld [vmem:[%s7481 + $0x8] sm:$0xff]
    %v7484 = vld [vmem:[%s7481 + $0x10] sm:$0xff]
    %v7485 = vld [vmem:[%s7481 + $0x18] sm:$0xff]
    %v7486 = vld [vmem:[%s7481 + $0x20] sm:$0xff]
    %v7487 = vld [vmem:[%s7481 + $0x28] sm:$0xff]
    %v7488 = vld [vmem:[%s7481 + $0x30] sm:$0xff]
    %v7489 = vld [vmem:[%s7481 + $0x38] sm:$0xff]
    %v7490 = vld [vmem:[%s7481 + $0x40] sm:$0xff]
    %v7491 = vld [vmem:[%s7481 + $0x48] sm:$0xff]
    %v7492 = vld [vmem:[%s7481 + $0x50] sm:$0xff]
    %v7493 = vld [vmem:[%s7481 + $0x58] sm:$0xff]
    %v7494 = vld [vmem:[%s7481 + $0x60] sm:$0xff]
    %v7495 = vld [vmem:[%s7481 + $0x68] sm:$0xff]
    %v7496 = vld [vmem:[%s7481 + $0x70] sm:$0xff]
    %v7497 = vld [vmem:[%s7481 + $0x78] sm:$0xff]
    %v7498 = vrot.slane %v7198, 6
    %v7499 = vrot.slane %v7202, 5
    %v7500 = vsel %vm7243, %v7499, %v7498
    %7502 = vmatprep.subr.mxu0 0.0
    %7503 = vmatpush1.msra.mxu0 %v7497
    %7504 = vmatprep.subr.mxu0 0.0
    %7505 = vmatpush1.msra.mxu0 %v7496
    %7506 = vmatprep.subr.mxu0 0.0
    %7507 = vmatpush1.msra.mxu0 %v7495
    %7508 = vmatprep.subr.mxu0 0.0
    %7509 = vmatpush1.msra.mxu0 %v7494
    %7510 = vmatprep.subr.mxu0 0.0
    %7511 = vmatpush1.msra.mxu0 %v7493
    %7512 = vmatprep.subr.mxu0 0.0
    %7513 = vmatpush1.msra.mxu0 %v7492
    %7514 = vmatprep.subr.mxu0 0.0
    %7515 = vmatpush1.msra.mxu0 %v7491
    %7516 = vmatprep.subr.mxu0 0.0
    %7517 = vmatpush1.msra.mxu0 %v7490
    %7518 = vmatprep.subr.mxu0 0.0
    %7519 = vmatpush1.msra.mxu0 %v7489
    %7520 = vmatprep.subr.mxu0 0.0
    %7521 = vmatpush1.msra.mxu0 %v7488
    %7522 = vmatprep.subr.mxu0 0.0
    %7523 = vmatpush1.msra.mxu0 %v7487
    %7524 = vmatprep.subr.mxu0 0.0
    %7525 = vmatpush1.msra.mxu0 %v7486
    %7526 = vmatprep.subr.mxu0 0.0
    %7527 = vmatpush1.msra.mxu0 %v7485
    %7528 = vmatprep.subr.mxu0 0.0
    %7529 = vmatpush1.msra.mxu0 %v7484
    %7530 = vmatprep.subr.mxu0 0.0
    %7531 = vmatpush1.msra.mxu0 %v7483
    %7532 = vmatprep.subr.mxu0 0.0
    %7533 = vmatpush1.msra.mxu0 %v7482
    %7534 = vmatprep.subr.mxu0 0.0
    %7535 = vmatpush2.msra.mxu0 0.0
    %7536 = vmatprep.subr.mxu0 0.0
    %7537 = vmatpush2.msra.mxu0 0.0
    %7538 = vmatprep.subr.mxu0 0.0
    %7539 = vmatpush2.msra.mxu0 0.0
    %7540 = vmatprep.subr.mxu0 0.0
    %7541 = vmatpush2.msra.mxu0 0.0
    %7542 = vmatprep.subr.mxu0 0.0
    %7543 = vmatpush2.msra.mxu0 0.0
    %7544 = vmatprep.subr.mxu0 0.0
    %7545 = vmatpush2.msra.mxu0 0.0
    %7546 = vmatprep.subr.mxu0 0.0
    %7547 = vmatpush2.msra.mxu0 0.0
    %7548 = vmatprep.subr.mxu0 0.0
    %7549 = vmatpush2.msra.mxu0 0.0
    %7550 = vmatprep.subr.mxu0 0.0
    %7551 = vmatpush2.msra.mxu0 0.0
    %7552 = vmatprep.subr.mxu0 0.0
    %7553 = vmatpush2.msra.mxu0 0.0
    %7554 = vmatprep.subr.mxu0 0.0
    %7555 = vmatpush2.msra.mxu0 0.0
    %7556 = vmatprep.subr.mxu0 0.0
    %7557 = vmatpush2.msra.mxu0 0.0
    %7558 = vmatprep.subr.mxu0 0.0
    %7559 = vmatpush2.msra.mxu0 0.0
    %7560 = vmatprep.subr.mxu0 0.0
    %7561 = vmatpush2.msra.mxu0 0.0
    %7562 = vmatprep.subr.mxu0 0.0
    %7563 = vmatpush2.msra.mxu0 0.0
    %7564 = vmatprep.subr.mxu0 0.0
    %7565 = vmatpush2.msra.mxu0 0.0
    %7566 = vmatprep.mubr.f32.mxu0 0.0
    %7567 = vmatmul.mubr.f32.gmra.mxu0 %v7500
    %v7568 = vpop.f32.mrf.mxu0
    %v7569 = vadd.f32 0.0, %v7568
    %v7570 = vpop.f32.mrf.mxu0
    %7571 = vdwg.mxu0
    %v7572 = vadd.f32 %v7480, %v7569
    %s7573 = scalar_lea.vmem %s5, 512
    %v7574 = vld [vmem:[%s7573] sm:$0xff]
    %v7575 = vld [vmem:[%s7573 + $0x8] sm:$0xff]
    %v7576 = vld [vmem:[%s7573 + $0x10] sm:$0xff]
    %v7577 = vld [vmem:[%s7573 + $0x18] sm:$0xff]
    %v7578 = vld [vmem:[%s7573 + $0x20] sm:$0xff]
    %v7579 = vld [vmem:[%s7573 + $0x28] sm:$0xff]
    %v7580 = vld [vmem:[%s7573 + $0x30] sm:$0xff]
    %v7581 = vld [vmem:[%s7573 + $0x38] sm:$0xff]
    %v7582 = vld [vmem:[%s7573 + $0x40] sm:$0xff]
    %v7583 = vld [vmem:[%s7573 + $0x48] sm:$0xff]
    %v7584 = vld [vmem:[%s7573 + $0x50] sm:$0xff]
    %v7585 = vld [vmem:[%s7573 + $0x58] sm:$0xff]
    %v7586 = vld [vmem:[%s7573 + $0x60] sm:$0xff]
    %v7587 = vld [vmem:[%s7573 + $0x68] sm:$0xff]
    %v7588 = vld [vmem:[%s7573 + $0x70] sm:$0xff]
    %v7589 = vld [vmem:[%s7573 + $0x78] sm:$0xff]
    %v7592 = vrot.slane %v7203, 7
    %v7593 = vsel %vm7243, %v7592, %v7199
    %7595 = vmatprep.subr.mxu0 0.0
    %7596 = vmatpush1.msra.mxu0 %v7589
    %7597 = vmatprep.subr.mxu0 0.0
    %7598 = vmatpush1.msra.mxu0 %v7588
    %7599 = vmatprep.subr.mxu0 0.0
    %7600 = vmatpush1.msra.mxu0 %v7587
    %7601 = vmatprep.subr.mxu0 0.0
    %7602 = vmatpush1.msra.mxu0 %v7586
    %7603 = vmatprep.subr.mxu0 0.0
    %7604 = vmatpush1.msra.mxu0 %v7585
    %7605 = vmatprep.subr.mxu0 0.0
    %7606 = vmatpush1.msra.mxu0 %v7584
    %7607 = vmatprep.subr.mxu0 0.0
    %7608 = vmatpush1.msra.mxu0 %v7583
    %7609 = vmatprep.subr.mxu0 0.0
    %7610 = vmatpush1.msra.mxu0 %v7582
    %7611 = vmatprep.subr.mxu0 0.0
    %7612 = vmatpush1.msra.mxu0 %v7581
    %7613 = vmatprep.subr.mxu0 0.0
    %7614 = vmatpush1.msra.mxu0 %v7580
    %7615 = vmatprep.subr.mxu0 0.0
    %7616 = vmatpush1.msra.mxu0 %v7579
    %7617 = vmatprep.subr.mxu0 0.0
    %7618 = vmatpush1.msra.mxu0 %v7578
    %7619 = vmatprep.subr.mxu0 0.0
    %7620 = vmatpush1.msra.mxu0 %v7577
    %7621 = vmatprep.subr.mxu0 0.0
    %7622 = vmatpush1.msra.mxu0 %v7576
    %7623 = vmatprep.subr.mxu0 0.0
    %7624 = vmatpush1.msra.mxu0 %v7575
    %7625 = vmatprep.subr.mxu0 0.0
    %7626 = vmatpush1.msra.mxu0 %v7574
    %7627 = vmatprep.subr.mxu0 0.0
    %7628 = vmatpush2.msra.mxu0 0.0
    %7629 = vmatprep.subr.mxu0 0.0
    %7630 = vmatpush2.msra.mxu0 0.0
    %7631 = vmatprep.subr.mxu0 0.0
    %7632 = vmatpush2.msra.mxu0 0.0
    %7633 = vmatprep.subr.mxu0 0.0
    %7634 = vmatpush2.msra.mxu0 0.0
    %7635 = vmatprep.subr.mxu0 0.0
    %7636 = vmatpush2.msra.mxu0 0.0
    %7637 = vmatprep.subr.mxu0 0.0
    %7638 = vmatpush2.msra.mxu0 0.0
    %7639 = vmatprep.subr.mxu0 0.0
    %7640 = vmatpush2.msra.mxu0 0.0
    %7641 = vmatprep.subr.mxu0 0.0
    %7642 = vmatpush2.msra.mxu0 0.0
    %7643 = vmatprep.subr.mxu0 0.0
    %7644 = vmatpush2.msra.mxu0 0.0
    %7645 = vmatprep.subr.mxu0 0.0
    %7646 = vmatpush2.msra.mxu0 0.0
    %7647 = vmatprep.subr.mxu0 0.0
    %7648 = vmatpush2.msra.mxu0 0.0
    %7649 = vmatprep.subr.mxu0 0.0
    %7650 = vmatpush2.msra.mxu0 0.0
    %7651 = vmatprep.subr.mxu0 0.0
    %7652 = vmatpush2.msra.mxu0 0.0
    %7653 = vmatprep.subr.mxu0 0.0
    %7654 = vmatpush2.msra.mxu0 0.0
    %7655 = vmatprep.subr.mxu0 0.0
    %7656 = vmatpush2.msra.mxu0 0.0
    %7657 = vmatprep.subr.mxu0 0.0
    %7658 = vmatpush2.msra.mxu0 0.0
    %7659 = vmatprep.mubr.f32.mxu0 0.0
    %7660 = vmatmul.mubr.f32.gmra.mxu0 %v7593
    %v7661 = vpop.f32.mrf.mxu0
    %v7662 = vadd.f32 0.0, %v7661
    %v7663 = vpop.f32.mrf.mxu0
    %7664 = vdwg.mxu0
    %v7665 = vadd.f32 %v7572, %v7662
    %s7666 = scalar_lea.vmem %s5, 640
    %v7667 = vld [vmem:[%s7666] sm:$0xff]
    %v7668 = vld [vmem:[%s7666 + $0x8] sm:$0xff]
    %v7669 = vld [vmem:[%s7666 + $0x10] sm:$0xff]
    %v7670 = vld [vmem:[%s7666 + $0x18] sm:$0xff]
    %v7671 = vld [vmem:[%s7666 + $0x20] sm:$0xff]
    %v7672 = vld [vmem:[%s7666 + $0x28] sm:$0xff]
    %v7673 = vld [vmem:[%s7666 + $0x30] sm:$0xff]
    %v7674 = vld [vmem:[%s7666 + $0x38] sm:$0xff]
    %v7675 = vld [vmem:[%s7666 + $0x40] sm:$0xff]
    %v7676 = vld [vmem:[%s7666 + $0x48] sm:$0xff]
    %v7677 = vld [vmem:[%s7666 + $0x50] sm:$0xff]
    %v7678 = vld [vmem:[%s7666 + $0x58] sm:$0xff]
    %v7679 = vld [vmem:[%s7666 + $0x60] sm:$0xff]
    %v7680 = vld [vmem:[%s7666 + $0x68] sm:$0xff]
    %v7681 = vld [vmem:[%s7666 + $0x70] sm:$0xff]
    %v7682 = vld [vmem:[%s7666 + $0x78] sm:$0xff]
    %v7683 = vrot.slane %v7199, 2
    %v7684 = vrot.slane %v7203, 1
    %v7685 = vsel %vm7243, %v7684, %v7683
    %7687 = vmatprep.subr.mxu0 0.0
    %7688 = vmatpush1.msra.mxu0 %v7682
    %7689 = vmatprep.subr.mxu0 0.0
    %7690 = vmatpush1.msra.mxu0 %v7681
    %7691 = vmatprep.subr.mxu0 0.0
    %7692 = vmatpush1.msra.mxu0 %v7680
    %7693 = vmatprep.subr.mxu0 0.0
    %7694 = vmatpush1.msra.mxu0 %v7679
    %7695 = vmatprep.subr.mxu0 0.0
    %7696 = vmatpush1.msra.mxu0 %v7678
    %7697 = vmatprep.subr.mxu0 0.0
    %7698 = vmatpush1.msra.mxu0 %v7677
    %7699 = vmatprep.subr.mxu0 0.0
    %7700 = vmatpush1.msra.mxu0 %v7676
    %7701 = vmatprep.subr.mxu0 0.0
    %7702 = vmatpush1.msra.mxu0 %v7675
    %7703 = vmatprep.subr.mxu0 0.0
    %7704 = vmatpush1.msra.mxu0 %v7674
    %7705 = vmatprep.subr.mxu0 0.0
    %7706 = vmatpush1.msra.mxu0 %v7673
    %7707 = vmatprep.subr.mxu0 0.0
    %7708 = vmatpush1.msra.mxu0 %v7672
    %7709 = vmatprep.subr.mxu0 0.0
    %7710 = vmatpush1.msra.mxu0 %v7671
    %7711 = vmatprep.subr.mxu0 0.0
    %7712 = vmatpush1.msra.mxu0 %v7670
    %7713 = vmatprep.subr.mxu0 0.0
    %7714 = vmatpush1.msra.mxu0 %v7669
    %7715 = vmatprep.subr.mxu0 0.0
    %7716 = vmatpush1.msra.mxu0 %v7668
    %7717 = vmatprep.subr.mxu0 0.0
    %7718 = vmatpush1.msra.mxu0 %v7667
    %7719 = vmatprep.subr.mxu0 0.0
    %7720 = vmatpush2.msra.mxu0 0.0
    %7721 = vmatprep.subr.mxu0 0.0
    %7722 = vmatpush2.msra.mxu0 0.0
    %7723 = vmatprep.subr.mxu0 0.0
    %7724 = vmatpush2.msra.mxu0 0.0
    %7725 = vmatprep.subr.mxu0 0.0
    %7726 = vmatpush2.msra.mxu0 0.0
    %7727 = vmatprep.subr.mxu0 0.0
    %7728 = vmatpush2.msra.mxu0 0.0
    %7729 = vmatprep.subr.mxu0 0.0
    %7730 = vmatpush2.msra.mxu0 0.0
    %7731 = vmatprep.subr.mxu0 0.0
    %7732 = vmatpush2.msra.mxu0 0.0
    %7733 = vmatprep.subr.mxu0 0.0
    %7734 = vmatpush2.msra.mxu0 0.0
    %7735 = vmatprep.subr.mxu0 0.0
    %7736 = vmatpush2.msra.mxu0 0.0
    %7737 = vmatprep.subr.mxu0 0.0
    %7738 = vmatpush2.msra.mxu0 0.0
    %7739 = vmatprep.subr.mxu0 0.0
    %7740 = vmatpush2.msra.mxu0 0.0
    %7741 = vmatprep.subr.mxu0 0.0
    %7742 = vmatpush2.msra.mxu0 0.0
    %7743 = vmatprep.subr.mxu0 0.0
    %7744 = vmatpush2.msra.mxu0 0.0
    %7745 = vmatprep.subr.mxu0 0.0
    %7746 = vmatpush2.msra.mxu0 0.0
    %7747 = vmatprep.subr.mxu0 0.0
    %7748 = vmatpush2.msra.mxu0 0.0
    %7749 = vmatprep.subr.mxu0 0.0
    %7750 = vmatpush2.msra.mxu0 0.0
    %7751 = vmatprep.mubr.f32.mxu0 0.0
    %7752 = vmatmul.mubr.f32.gmra.mxu0 %v7685
    %v7753 = vpop.f32.mrf.mxu0
    %v7754 = vadd.f32 0.0, %v7753
    %v7755 = vpop.f32.mrf.mxu0
    %7756 = vdwg.mxu0
    %v7757 = vadd.f32 %v7665, %v7754
    %s7758 = scalar_lea.vmem %s5, 768
    %v7759 = vld [vmem:[%s7758] sm:$0xff]
    %v7760 = vld [vmem:[%s7758 + $0x8] sm:$0xff]
    %v7761 = vld [vmem:[%s7758 + $0x10] sm:$0xff]
    %v7762 = vld [vmem:[%s7758 + $0x18] sm:$0xff]
    %v7763 = vld [vmem:[%s7758 + $0x20] sm:$0xff]
    %v7764 = vld [vmem:[%s7758 + $0x28] sm:$0xff]
    %v7765 = vld [vmem:[%s7758 + $0x30] sm:$0xff]
    %v7766 = vld [vmem:[%s7758 + $0x38] sm:$0xff]
    %v7767 = vld [vmem:[%s7758 + $0x40] sm:$0xff]
    %v7768 = vld [vmem:[%s7758 + $0x48] sm:$0xff]
    %v7769 = vld [vmem:[%s7758 + $0x50] sm:$0xff]
    %v7770 = vld [vmem:[%s7758 + $0x58] sm:$0xff]
    %v7771 = vld [vmem:[%s7758 + $0x60] sm:$0xff]
    %v7772 = vld [vmem:[%s7758 + $0x68] sm:$0xff]
    %v7773 = vld [vmem:[%s7758 + $0x70] sm:$0xff]
    %v7774 = vld [vmem:[%s7758 + $0x78] sm:$0xff]
    %v7775 = vrot.slane %v7199, 4
    %v7776 = vrot.slane %v7203, 3
    %v7777 = vsel %vm7243, %v7776, %v7775
    %7779 = vmatprep.subr.mxu0 0.0
    %7780 = vmatpush1.msra.mxu0 %v7774
    %7781 = vmatprep.subr.mxu0 0.0
    %7782 = vmatpush1.msra.mxu0 %v7773
    %7783 = vmatprep.subr.mxu0 0.0
    %7784 = vmatpush1.msra.mxu0 %v7772
    %7785 = vmatprep.subr.mxu0 0.0
    %7786 = vmatpush1.msra.mxu0 %v7771
    %7787 = vmatprep.subr.mxu0 0.0
    %7788 = vmatpush1.msra.mxu0 %v7770
    %7789 = vmatprep.subr.mxu0 0.0
    %7790 = vmatpush1.msra.mxu0 %v7769
    %7791 = vmatprep.subr.mxu0 0.0
    %7792 = vmatpush1.msra.mxu0 %v7768
    %7793 = vmatprep.subr.mxu0 0.0
    %7794 = vmatpush1.msra.mxu0 %v7767
    %7795 = vmatprep.subr.mxu0 0.0
    %7796 = vmatpush1.msra.mxu0 %v7766
    %7797 = vmatprep.subr.mxu0 0.0
    %7798 = vmatpush1.msra.mxu0 %v7765
    %7799 = vmatprep.subr.mxu0 0.0
    %7800 = vmatpush1.msra.mxu0 %v7764
    %7801 = vmatprep.subr.mxu0 0.0
    %7802 = vmatpush1.msra.mxu0 %v7763
    %7803 = vmatprep.subr.mxu0 0.0
    %7804 = vmatpush1.msra.mxu0 %v7762
    %7805 = vmatprep.subr.mxu0 0.0
    %7806 = vmatpush1.msra.mxu0 %v7761
    %7807 = vmatprep.subr.mxu0 0.0
    %7808 = vmatpush1.msra.mxu0 %v7760
    %7809 = vmatprep.subr.mxu0 0.0
    %7810 = vmatpush1.msra.mxu0 %v7759
    %7811 = vmatprep.subr.mxu0 0.0
    %7812 = vmatpush2.msra.mxu0 0.0
    %7813 = vmatprep.subr.mxu0 0.0
    %7814 = vmatpush2.msra.mxu0 0.0
    %7815 = vmatprep.subr.mxu0 0.0
    %7816 = vmatpush2.msra.mxu0 0.0
    %7817 = vmatprep.subr.mxu0 0.0
    %7818 = vmatpush2.msra.mxu0 0.0
    %7819 = vmatprep.subr.mxu0 0.0
    %7820 = vmatpush2.msra.mxu0 0.0
    %7821 = vmatprep.subr.mxu0 0.0
    %7822 = vmatpush2.msra.mxu0 0.0
    %7823 = vmatprep.subr.mxu0 0.0
    %7824 = vmatpush2.msra.mxu0 0.0
    %7825 = vmatprep.subr.mxu0 0.0
    %7826 = vmatpush2.msra.mxu0 0.0
    %7827 = vmatprep.subr.mxu0 0.0
    %7828 = vmatpush2.msra.mxu0 0.0
    %7829 = vmatprep.subr.mxu0 0.0
    %7830 = vmatpush2.msra.mxu0 0.0
    %7831 = vmatprep.subr.mxu0 0.0
    %7832 = vmatpush2.msra.mxu0 0.0
    %7833 = vmatprep.subr.mxu0 0.0
    %7834 = vmatpush2.msra.mxu0 0.0
    %7835 = vmatprep.subr.mxu0 0.0
    %7836 = vmatpush2.msra.mxu0 0.0
    %7837 = vmatprep.subr.mxu0 0.0
    %7838 = vmatpush2.msra.mxu0 0.0
    %7839 = vmatprep.subr.mxu0 0.0
    %7840 = vmatpush2.msra.mxu0 0.0
    %7841 = vmatprep.subr.mxu0 0.0
    %7842 = vmatpush2.msra.mxu0 0.0
    %7843 = vmatprep.mubr.f32.mxu0 0.0
    %7844 = vmatmul.mubr.f32.gmra.mxu0 %v7777
    %v7845 = vpop.f32.mrf.mxu0
    %v7846 = vadd.f32 0.0, %v7845
    %v7847 = vpop.f32.mrf.mxu0
    %7848 = vdwg.mxu0
    %v7849 = vadd.f32 %v7757, %v7846
    %s7850 = scalar_lea.vmem %s5, 896
    %v7851 = vld [vmem:[%s7850] sm:$0xff]
    %v7852 = vld [vmem:[%s7850 + $0x8] sm:$0xff]
    %v7853 = vld [vmem:[%s7850 + $0x10] sm:$0xff]
    %v7854 = vld [vmem:[%s7850 + $0x18] sm:$0xff]
    %v7855 = vld [vmem:[%s7850 + $0x20] sm:$0xff]
    %v7856 = vld [vmem:[%s7850 + $0x28] sm:$0xff]
    %v7857 = vld [vmem:[%s7850 + $0x30] sm:$0xff]
    %v7858 = vld [vmem:[%s7850 + $0x38] sm:$0xff]
    %v7859 = vld [vmem:[%s7850 + $0x40] sm:$0xff]
    %v7860 = vld [vmem:[%s7850 + $0x48] sm:$0xff]
    %v7861 = vld [vmem:[%s7850 + $0x50] sm:$0xff]
    %v7862 = vld [vmem:[%s7850 + $0x58] sm:$0xff]
    %v7863 = vld [vmem:[%s7850 + $0x60] sm:$0xff]
    %v7864 = vld [vmem:[%s7850 + $0x68] sm:$0xff]
    %v7865 = vld [vmem:[%s7850 + $0x70] sm:$0xff]
    %v7866 = vld [vmem:[%s7850 + $0x78] sm:$0xff]
    %v7867 = vrot.slane %v7199, 6
    %v7868 = vrot.slane %v7203, 5
    %v7869 = vsel %vm7243, %v7868, %v7867
    %7871 = vmatprep.subr.mxu0 0.0
    %7872 = vmatpush1.msra.mxu0 %v7866
    %7873 = vmatprep.subr.mxu0 0.0
    %7874 = vmatpush1.msra.mxu0 %v7865
    %7875 = vmatprep.subr.mxu0 0.0
    %7876 = vmatpush1.msra.mxu0 %v7864
    %7877 = vmatprep.subr.mxu0 0.0
    %7878 = vmatpush1.msra.mxu0 %v7863
    %7879 = vmatprep.subr.mxu0 0.0
    %7880 = vmatpush1.msra.mxu0 %v7862
    %7881 = vmatprep.subr.mxu0 0.0
    %7882 = vmatpush1.msra.mxu0 %v7861
    %7883 = vmatprep.subr.mxu0 0.0
    %7884 = vmatpush1.msra.mxu0 %v7860
    %7885 = vmatprep.subr.mxu0 0.0
    %7886 = vmatpush1.msra.mxu0 %v7859
    %7887 = vmatprep.subr.mxu0 0.0
    %7888 = vmatpush1.msra.mxu0 %v7858
    %7889 = vmatprep.subr.mxu0 0.0
    %7890 = vmatpush1.msra.mxu0 %v7857
    %7891 = vmatprep.subr.mxu0 0.0
    %7892 = vmatpush1.msra.mxu0 %v7856
    %7893 = vmatprep.subr.mxu0 0.0
    %7894 = vmatpush1.msra.mxu0 %v7855
    %7895 = vmatprep.subr.mxu0 0.0
    %7896 = vmatpush1.msra.mxu0 %v7854
    %7897 = vmatprep.subr.mxu0 0.0
    %7898 = vmatpush1.msra.mxu0 %v7853
    %7899 = vmatprep.subr.mxu0 0.0
    %7900 = vmatpush1.msra.mxu0 %v7852
    %7901 = vmatprep.subr.mxu0 0.0
    %7902 = vmatpush1.msra.mxu0 %v7851
    %7903 = vmatprep.subr.mxu0 0.0
    %7904 = vmatpush2.msra.mxu0 0.0
    %7905 = vmatprep.subr.mxu0 0.0
    %7906 = vmatpush2.msra.mxu0 0.0
    %7907 = vmatprep.subr.mxu0 0.0
    %7908 = vmatpush2.msra.mxu0 0.0
    %7909 = vmatprep.subr.mxu0 0.0
    %7910 = vmatpush2.msra.mxu0 0.0
    %7911 = vmatprep.subr.mxu0 0.0
    %7912 = vmatpush2.msra.mxu0 0.0
    %7913 = vmatprep.subr.mxu0 0.0
    %7914 = vmatpush2.msra.mxu0 0.0
    %7915 = vmatprep.subr.mxu0 0.0
    %7916 = vmatpush2.msra.mxu0 0.0
    %7917 = vmatprep.subr.mxu0 0.0
    %7918 = vmatpush2.msra.mxu0 0.0
    %7919 = vmatprep.subr.mxu0 0.0
    %7920 = vmatpush2.msra.mxu0 0.0
    %7921 = vmatprep.subr.mxu0 0.0
    %7922 = vmatpush2.msra.mxu0 0.0
    %7923 = vmatprep.subr.mxu0 0.0
    %7924 = vmatpush2.msra.mxu0 0.0
    %7925 = vmatprep.subr.mxu0 0.0
    %7926 = vmatpush2.msra.mxu0 0.0
    %7927 = vmatprep.subr.mxu0 0.0
    %7928 = vmatpush2.msra.mxu0 0.0
    %7929 = vmatprep.subr.mxu0 0.0
    %7930 = vmatpush2.msra.mxu0 0.0
    %7931 = vmatprep.subr.mxu0 0.0
    %7932 = vmatpush2.msra.mxu0 0.0
    %7933 = vmatprep.subr.mxu0 0.0
    %7934 = vmatpush2.msra.mxu0 0.0
    %7935 = vmatprep.mubr.f32.mxu0 0.0
    %7936 = vmatmul.mubr.f32.gmra.mxu0 %v7869
    %v7937 = vpop.f32.mrf.mxu0
    %v7938 = vadd.f32 0.0, %v7937
    %v7939 = vpop.f32.mrf.mxu0
    %7940 = vdwg.mxu0
    %v7941 = vadd.f32 %v7849, %v7938
    %s7942 = scalar_lea.vmem %s5, 1024
    %v7943 = vld [vmem:[%s7942] sm:$0xff]
    %v7944 = vld [vmem:[%s7942 + $0x8] sm:$0xff]
    %v7945 = vld [vmem:[%s7942 + $0x10] sm:$0xff]
    %v7946 = vld [vmem:[%s7942 + $0x18] sm:$0xff]
    %v7947 = vld [vmem:[%s7942 + $0x20] sm:$0xff]
    %v7948 = vld [vmem:[%s7942 + $0x28] sm:$0xff]
    %v7949 = vld [vmem:[%s7942 + $0x30] sm:$0xff]
    %v7950 = vld [vmem:[%s7942 + $0x38] sm:$0xff]
    %v7951 = vld [vmem:[%s7942 + $0x40] sm:$0xff]
    %v7952 = vld [vmem:[%s7942 + $0x48] sm:$0xff]
    %v7953 = vld [vmem:[%s7942 + $0x50] sm:$0xff]
    %v7954 = vld [vmem:[%s7942 + $0x58] sm:$0xff]
    %v7955 = vld [vmem:[%s7942 + $0x60] sm:$0xff]
    %v7956 = vld [vmem:[%s7942 + $0x68] sm:$0xff]
    %v7957 = vld [vmem:[%s7942 + $0x70] sm:$0xff]
    %v7958 = vld [vmem:[%s7942 + $0x78] sm:$0xff]
    %v7961 = vrot.slane %v7204, 7
    %v7962 = vsel %vm7243, %v7961, %v7200
    %7964 = vmatprep.subr.mxu0 0.0
    %7965 = vmatpush1.msra.mxu0 %v7958
    %7966 = vmatprep.subr.mxu0 0.0
    %7967 = vmatpush1.msra.mxu0 %v7957
    %7968 = vmatprep.subr.mxu0 0.0
    %7969 = vmatpush1.msra.mxu0 %v7956
    %7970 = vmatprep.subr.mxu0 0.0
    %7971 = vmatpush1.msra.mxu0 %v7955
    %7972 = vmatprep.subr.mxu0 0.0
    %7973 = vmatpush1.msra.mxu0 %v7954
    %7974 = vmatprep.subr.mxu0 0.0
    %7975 = vmatpush1.msra.mxu0 %v7953
    %7976 = vmatprep.subr.mxu0 0.0
    %7977 = vmatpush1.msra.mxu0 %v7952
    %7978 = vmatprep.subr.mxu0 0.0
    %7979 = vmatpush1.msra.mxu0 %v7951
    %7980 = vmatprep.subr.mxu0 0.0
    %7981 = vmatpush1.msra.mxu0 %v7950
    %7982 = vmatprep.subr.mxu0 0.0
    %7983 = vmatpush1.msra.mxu0 %v7949
    %7984 = vmatprep.subr.mxu0 0.0
    %7985 = vmatpush1.msra.mxu0 %v7948
    %7986 = vmatprep.subr.mxu0 0.0
    %7987 = vmatpush1.msra.mxu0 %v7947
    %7988 = vmatprep.subr.mxu0 0.0
    %7989 = vmatpush1.msra.mxu0 %v7946
    %7990 = vmatprep.subr.mxu0 0.0
    %7991 = vmatpush1.msra.mxu0 %v7945
    %7992 = vmatprep.subr.mxu0 0.0
    %7993 = vmatpush1.msra.mxu0 %v7944
    %7994 = vmatprep.subr.mxu0 0.0
    %7995 = vmatpush1.msra.mxu0 %v7943
    %7996 = vmatprep.subr.mxu0 0.0
    %7997 = vmatpush2.msra.mxu0 0.0
    %7998 = vmatprep.subr.mxu0 0.0
    %7999 = vmatpush2.msra.mxu0 0.0
    %8000 = vmatprep.subr.mxu0 0.0
    %8001 = vmatpush2.msra.mxu0 0.0
    %8002 = vmatprep.subr.mxu0 0.0
    %8003 = vmatpush2.msra.mxu0 0.0
    %8004 = vmatprep.subr.mxu0 0.0
    %8005 = vmatpush2.msra.mxu0 0.0
    %8006 = vmatprep.subr.mxu0 0.0
    %8007 = vmatpush2.msra.mxu0 0.0
    %8008 = vmatprep.subr.mxu0 0.0
    %8009 = vmatpush2.msra.mxu0 0.0
    %8010 = vmatprep.subr.mxu0 0.0
    %8011 = vmatpush2.msra.mxu0 0.0
    %8012 = vmatprep.subr.mxu0 0.0
    %8013 = vmatpush2.msra.mxu0 0.0
    %8014 = vmatprep.subr.mxu0 0.0
    %8015 = vmatpush2.msra.mxu0 0.0
    %8016 = vmatprep.subr.mxu0 0.0
    %8017 = vmatpush2.msra.mxu0 0.0
    %8018 = vmatprep.subr.mxu0 0.0
    %8019 = vmatpush2.msra.mxu0 0.0
    %8020 = vmatprep.subr.mxu0 0.0
    %8021 = vmatpush2.msra.mxu0 0.0
    %8022 = vmatprep.subr.mxu0 0.0
    %8023 = vmatpush2.msra.mxu0 0.0
    %8024 = vmatprep.subr.mxu0 0.0
    %8025 = vmatpush2.msra.mxu0 0.0
    %8026 = vmatprep.subr.mxu0 0.0
    %8027 = vmatpush2.msra.mxu0 0.0
    %8028 = vmatprep.mubr.f32.mxu0 0.0
    %8029 = vmatmul.mubr.f32.gmra.mxu0 %v7962
    %v8030 = vpop.f32.mrf.mxu0
    %v8031 = vadd.f32 0.0, %v8030
    %v8032 = vpop.f32.mrf.mxu0
    %8033 = vdwg.mxu0
    %v8034 = vadd.f32 %v7941, %v8031
    %s8035 = scalar_lea.vmem %s5, 1152
    %v8036 = vld [vmem:[%s8035] sm:$0xff]
    %v8037 = vld [vmem:[%s8035 + $0x8] sm:$0xff]
    %v8038 = vld [vmem:[%s8035 + $0x10] sm:$0xff]
    %v8039 = vld [vmem:[%s8035 + $0x18] sm:$0xff]
    %v8040 = vld [vmem:[%s8035 + $0x20] sm:$0xff]
    %v8041 = vld [vmem:[%s8035 + $0x28] sm:$0xff]
    %v8042 = vld [vmem:[%s8035 + $0x30] sm:$0xff]
    %v8043 = vld [vmem:[%s8035 + $0x38] sm:$0xff]
    %v8044 = vld [vmem:[%s8035 + $0x40] sm:$0xff]
    %v8045 = vld [vmem:[%s8035 + $0x48] sm:$0xff]
    %v8046 = vld [vmem:[%s8035 + $0x50] sm:$0xff]
    %v8047 = vld [vmem:[%s8035 + $0x58] sm:$0xff]
    %v8048 = vld [vmem:[%s8035 + $0x60] sm:$0xff]
    %v8049 = vld [vmem:[%s8035 + $0x68] sm:$0xff]
    %v8050 = vld [vmem:[%s8035 + $0x70] sm:$0xff]
    %v8051 = vld [vmem:[%s8035 + $0x78] sm:$0xff]
    %v8052 = vrot.slane %v7200, 2
    %v8053 = vrot.slane %v7204, 1
    %v8054 = vsel %vm7243, %v8053, %v8052
    %8056 = vmatprep.subr.mxu0 0.0
    %8057 = vmatpush1.msra.mxu0 %v8051
    %8058 = vmatprep.subr.mxu0 0.0
    %8059 = vmatpush1.msra.mxu0 %v8050
    %8060 = vmatprep.subr.mxu0 0.0
    %8061 = vmatpush1.msra.mxu0 %v8049
    %8062 = vmatprep.subr.mxu0 0.0
    %8063 = vmatpush1.msra.mxu0 %v8048
    %8064 = vmatprep.subr.mxu0 0.0
    %8065 = vmatpush1.msra.mxu0 %v8047
    %8066 = vmatprep.subr.mxu0 0.0
    %8067 = vmatpush1.msra.mxu0 %v8046
    %8068 = vmatprep.subr.mxu0 0.0
    %8069 = vmatpush1.msra.mxu0 %v8045
    %8070 = vmatprep.subr.mxu0 0.0
    %8071 = vmatpush1.msra.mxu0 %v8044
    %8072 = vmatprep.subr.mxu0 0.0
    %8073 = vmatpush1.msra.mxu0 %v8043
    %8074 = vmatprep.subr.mxu0 0.0
    %8075 = vmatpush1.msra.mxu0 %v8042
    %8076 = vmatprep.subr.mxu0 0.0
    %8077 = vmatpush1.msra.mxu0 %v8041
    %8078 = vmatprep.subr.mxu0 0.0
    %8079 = vmatpush1.msra.mxu0 %v8040
    %8080 = vmatprep.subr.mxu0 0.0
    %8081 = vmatpush1.msra.mxu0 %v8039
    %8082 = vmatprep.subr.mxu0 0.0
    %8083 = vmatpush1.msra.mxu0 %v8038
    %8084 = vmatprep.subr.mxu0 0.0
    %8085 = vmatpush1.msra.mxu0 %v8037
    %8086 = vmatprep.subr.mxu0 0.0
    %8087 = vmatpush1.msra.mxu0 %v8036
    %8088 = vmatprep.subr.mxu0 0.0
    %8089 = vmatpush2.msra.mxu0 0.0
    %8090 = vmatprep.subr.mxu0 0.0
    %8091 = vmatpush2.msra.mxu0 0.0
    %8092 = vmatprep.subr.mxu0 0.0
    %8093 = vmatpush2.msra.mxu0 0.0
    %8094 = vmatprep.subr.mxu0 0.0
    %8095 = vmatpush2.msra.mxu0 0.0
    %8096 = vmatprep.subr.mxu0 0.0
    %8097 = vmatpush2.msra.mxu0 0.0
    %8098 = vmatprep.subr.mxu0 0.0
    %8099 = vmatpush2.msra.mxu0 0.0
    %8100 = vmatprep.subr.mxu0 0.0
    %8101 = vmatpush2.msra.mxu0 0.0
    %8102 = vmatprep.subr.mxu0 0.0
    %8103 = vmatpush2.msra.mxu0 0.0
    %8104 = vmatprep.subr.mxu0 0.0
    %8105 = vmatpush2.msra.mxu0 0.0
    %8106 = vmatprep.subr.mxu0 0.0
    %8107 = vmatpush2.msra.mxu0 0.0
    %8108 = vmatprep.subr.mxu0 0.0
    %8109 = vmatpush2.msra.mxu0 0.0
    %8110 = vmatprep.subr.mxu0 0.0
    %8111 = vmatpush2.msra.mxu0 0.0
    %8112 = vmatprep.subr.mxu0 0.0
    %8113 = vmatpush2.msra.mxu0 0.0
    %8114 = vmatprep.subr.mxu0 0.0
    %8115 = vmatpush2.msra.mxu0 0.0
    %8116 = vmatprep.subr.mxu0 0.0
    %8117 = vmatpush2.msra.mxu0 0.0
    %8118 = vmatprep.subr.mxu0 0.0
    %8119 = vmatpush2.msra.mxu0 0.0
    %8120 = vmatprep.mubr.f32.mxu0 0.0
    %8121 = vmatmul.mubr.f32.gmra.mxu0 %v8054
    %v8122 = vpop.f32.mrf.mxu0
    %v8123 = vadd.f32 0.0, %v8122
    %v8124 = vpop.f32.mrf.mxu0
    %8125 = vdwg.mxu0
    %v8126 = vadd.f32 %v8034, %v8123
    %s8127 = scalar_lea.vmem %s5, 1280
    %v8128 = vld [vmem:[%s8127] sm:$0xff]
    %v8129 = vld [vmem:[%s8127 + $0x8] sm:$0xff]
    %v8130 = vld [vmem:[%s8127 + $0x10] sm:$0xff]
    %v8131 = vld [vmem:[%s8127 + $0x18] sm:$0xff]
    %v8132 = vld [vmem:[%s8127 + $0x20] sm:$0xff]
    %v8133 = vld [vmem:[%s8127 + $0x28] sm:$0xff]
    %v8134 = vld [vmem:[%s8127 + $0x30] sm:$0xff]
    %v8135 = vld [vmem:[%s8127 + $0x38] sm:$0xff]
    %v8136 = vld [vmem:[%s8127 + $0x40] sm:$0xff]
    %v8137 = vld [vmem:[%s8127 + $0x48] sm:$0xff]
    %v8138 = vld [vmem:[%s8127 + $0x50] sm:$0xff]
    %v8139 = vld [vmem:[%s8127 + $0x58] sm:$0xff]
    %v8140 = vld [vmem:[%s8127 + $0x60] sm:$0xff]
    %v8141 = vld [vmem:[%s8127 + $0x68] sm:$0xff]
    %v8142 = vld [vmem:[%s8127 + $0x70] sm:$0xff]
    %v8143 = vld [vmem:[%s8127 + $0x78] sm:$0xff]
    %v8144 = vrot.slane %v7200, 4
    %v8145 = vrot.slane %v7204, 3
    %v8146 = vsel %vm7243, %v8145, %v8144
    %8148 = vmatprep.subr.mxu0 0.0
    %8149 = vmatpush1.msra.mxu0 %v8143
    %8150 = vmatprep.subr.mxu0 0.0
    %8151 = vmatpush1.msra.mxu0 %v8142
    %8152 = vmatprep.subr.mxu0 0.0
    %8153 = vmatpush1.msra.mxu0 %v8141
    %8154 = vmatprep.subr.mxu0 0.0
    %8155 = vmatpush1.msra.mxu0 %v8140
    %8156 = vmatprep.subr.mxu0 0.0
    %8157 = vmatpush1.msra.mxu0 %v8139
    %8158 = vmatprep.subr.mxu0 0.0
    %8159 = vmatpush1.msra.mxu0 %v8138
    %8160 = vmatprep.subr.mxu0 0.0
    %8161 = vmatpush1.msra.mxu0 %v8137
    %8162 = vmatprep.subr.mxu0 0.0
    %8163 = vmatpush1.msra.mxu0 %v8136
    %8164 = vmatprep.subr.mxu0 0.0
    %8165 = vmatpush1.msra.mxu0 %v8135
    %8166 = vmatprep.subr.mxu0 0.0
    %8167 = vmatpush1.msra.mxu0 %v8134
    %8168 = vmatprep.subr.mxu0 0.0
    %8169 = vmatpush1.msra.mxu0 %v8133
    %8170 = vmatprep.subr.mxu0 0.0
    %8171 = vmatpush1.msra.mxu0 %v8132
    %8172 = vmatprep.subr.mxu0 0.0
    %8173 = vmatpush1.msra.mxu0 %v8131
    %8174 = vmatprep.subr.mxu0 0.0
    %8175 = vmatpush1.msra.mxu0 %v8130
    %8176 = vmatprep.subr.mxu0 0.0
    %8177 = vmatpush1.msra.mxu0 %v8129
    %8178 = vmatprep.subr.mxu0 0.0
    %8179 = vmatpush1.msra.mxu0 %v8128
    %8180 = vmatprep.subr.mxu0 0.0
    %8181 = vmatpush2.msra.mxu0 0.0
    %8182 = vmatprep.subr.mxu0 0.0
    %8183 = vmatpush2.msra.mxu0 0.0
    %8184 = vmatprep.subr.mxu0 0.0
    %8185 = vmatpush2.msra.mxu0 0.0
    %8186 = vmatprep.subr.mxu0 0.0
    %8187 = vmatpush2.msra.mxu0 0.0
    %8188 = vmatprep.subr.mxu0 0.0
    %8189 = vmatpush2.msra.mxu0 0.0
    %8190 = vmatprep.subr.mxu0 0.0
    %8191 = vmatpush2.msra.mxu0 0.0
    %8192 = vmatprep.subr.mxu0 0.0
    %8193 = vmatpush2.msra.mxu0 0.0
    %8194 = vmatprep.subr.mxu0 0.0
    %8195 = vmatpush2.msra.mxu0 0.0
    %8196 = vmatprep.subr.mxu0 0.0
    %8197 = vmatpush2.msra.mxu0 0.0
    %8198 = vmatprep.subr.mxu0 0.0
    %8199 = vmatpush2.msra.mxu0 0.0
    %8200 = vmatprep.subr.mxu0 0.0
    %8201 = vmatpush2.msra.mxu0 0.0
    %8202 = vmatprep.subr.mxu0 0.0
    %8203 = vmatpush2.msra.mxu0 0.0
    %8204 = vmatprep.subr.mxu0 0.0
    %8205 = vmatpush2.msra.mxu0 0.0
    %8206 = vmatprep.subr.mxu0 0.0
    %8207 = vmatpush2.msra.mxu0 0.0
    %8208 = vmatprep.subr.mxu0 0.0
    %8209 = vmatpush2.msra.mxu0 0.0
    %8210 = vmatprep.subr.mxu0 0.0
    %8211 = vmatpush2.msra.mxu0 0.0
    %8212 = vmatprep.mubr.f32.mxu0 0.0
    %8213 = vmatmul.mubr.f32.gmra.mxu0 %v8146
    %v8214 = vpop.f32.mrf.mxu0
    %v8215 = vadd.f32 0.0, %v8214
    %v8216 = vpop.f32.mrf.mxu0
    %8217 = vdwg.mxu0
    %v8218 = vadd.f32 %v8126, %v8215
    %s8219 = scalar_lea.vmem %s5, 1408
    %v8220 = vld [vmem:[%s8219] sm:$0xff]
    %v8221 = vld [vmem:[%s8219 + $0x8] sm:$0xff]
    %v8222 = vld [vmem:[%s8219 + $0x10] sm:$0xff]
    %v8223 = vld [vmem:[%s8219 + $0x18] sm:$0xff]
    %v8224 = vld [vmem:[%s8219 + $0x20] sm:$0xff]
    %v8225 = vld [vmem:[%s8219 + $0x28] sm:$0xff]
    %v8226 = vld [vmem:[%s8219 + $0x30] sm:$0xff]
    %v8227 = vld [vmem:[%s8219 + $0x38] sm:$0xff]
    %v8228 = vld [vmem:[%s8219 + $0x40] sm:$0xff]
    %v8229 = vld [vmem:[%s8219 + $0x48] sm:$0xff]
    %v8230 = vld [vmem:[%s8219 + $0x50] sm:$0xff]
    %v8231 = vld [vmem:[%s8219 + $0x58] sm:$0xff]
    %v8232 = vld [vmem:[%s8219 + $0x60] sm:$0xff]
    %v8233 = vld [vmem:[%s8219 + $0x68] sm:$0xff]
    %v8234 = vld [vmem:[%s8219 + $0x70] sm:$0xff]
    %v8235 = vld [vmem:[%s8219 + $0x78] sm:$0xff]
    %v8236 = vrot.slane %v7200, 6
    %v8237 = vrot.slane %v7204, 5
    %v8238 = vsel %vm7243, %v8237, %v8236
    %8240 = vmatprep.subr.mxu0 0.0
    %8241 = vmatpush1.msra.mxu0 %v8235
    %8242 = vmatprep.subr.mxu0 0.0
    %8243 = vmatpush1.msra.mxu0 %v8234
    %8244 = vmatprep.subr.mxu0 0.0
    %8245 = vmatpush1.msra.mxu0 %v8233
    %8246 = vmatprep.subr.mxu0 0.0
    %8247 = vmatpush1.msra.mxu0 %v8232
    %8248 = vmatprep.subr.mxu0 0.0
    %8249 = vmatpush1.msra.mxu0 %v8231
    %8250 = vmatprep.subr.mxu0 0.0
    %8251 = vmatpush1.msra.mxu0 %v8230
    %8252 = vmatprep.subr.mxu0 0.0
    %8253 = vmatpush1.msra.mxu0 %v8229
    %8254 = vmatprep.subr.mxu0 0.0
    %8255 = vmatpush1.msra.mxu0 %v8228
    %8256 = vmatprep.subr.mxu0 0.0
    %8257 = vmatpush1.msra.mxu0 %v8227
    %8258 = vmatprep.subr.mxu0 0.0
    %8259 = vmatpush1.msra.mxu0 %v8226
    %8260 = vmatprep.subr.mxu0 0.0
    %8261 = vmatpush1.msra.mxu0 %v8225
    %8262 = vmatprep.subr.mxu0 0.0
    %8263 = vmatpush1.msra.mxu0 %v8224
    %8264 = vmatprep.subr.mxu0 0.0
    %8265 = vmatpush1.msra.mxu0 %v8223
    %8266 = vmatprep.subr.mxu0 0.0
    %8267 = vmatpush1.msra.mxu0 %v8222
    %8268 = vmatprep.subr.mxu0 0.0
    %8269 = vmatpush1.msra.mxu0 %v8221
    %8270 = vmatprep.subr.mxu0 0.0
    %8271 = vmatpush1.msra.mxu0 %v8220
    %8272 = vmatprep.subr.mxu0 0.0
    %8273 = vmatpush2.msra.mxu0 0.0
    %8274 = vmatprep.subr.mxu0 0.0
    %8275 = vmatpush2.msra.mxu0 0.0
    %8276 = vmatprep.subr.mxu0 0.0
    %8277 = vmatpush2.msra.mxu0 0.0
    %8278 = vmatprep.subr.mxu0 0.0
    %8279 = vmatpush2.msra.mxu0 0.0
    %8280 = vmatprep.subr.mxu0 0.0
    %8281 = vmatpush2.msra.mxu0 0.0
    %8282 = vmatprep.subr.mxu0 0.0
    %8283 = vmatpush2.msra.mxu0 0.0
    %8284 = vmatprep.subr.mxu0 0.0
    %8285 = vmatpush2.msra.mxu0 0.0
    %8286 = vmatprep.subr.mxu0 0.0
    %8287 = vmatpush2.msra.mxu0 0.0
    %8288 = vmatprep.subr.mxu0 0.0
    %8289 = vmatpush2.msra.mxu0 0.0
    %8290 = vmatprep.subr.mxu0 0.0
    %8291 = vmatpush2.msra.mxu0 0.0
    %8292 = vmatprep.subr.mxu0 0.0
    %8293 = vmatpush2.msra.mxu0 0.0
    %8294 = vmatprep.subr.mxu0 0.0
    %8295 = vmatpush2.msra.mxu0 0.0
    %8296 = vmatprep.subr.mxu0 0.0
    %8297 = vmatpush2.msra.mxu0 0.0
    %8298 = vmatprep.subr.mxu0 0.0
    %8299 = vmatpush2.msra.mxu0 0.0
    %8300 = vmatprep.subr.mxu0 0.0
    %8301 = vmatpush2.msra.mxu0 0.0
    %8302 = vmatprep.subr.mxu0 0.0
    %8303 = vmatpush2.msra.mxu0 0.0
    %8304 = vmatprep.mubr.f32.mxu0 0.0
    %8305 = vmatmul.mubr.f32.gmra.mxu0 %v8238
    %v8306 = vpop.f32.mrf.mxu0
    %v8307 = vadd.f32 0.0, %v8306
    %v8308 = vpop.f32.mrf.mxu0
    %8309 = vdwg.mxu0
    %v8310 = vadd.f32 %v8218, %v8307
    %s8311 = scalar_lea.vmem %s5, 1536
    %v8312 = vld [vmem:[%s8311] sm:$0xff]
    %v8313 = vld [vmem:[%s8311 + $0x8] sm:$0xff]
    %v8314 = vld [vmem:[%s8311 + $0x10] sm:$0xff]
    %v8315 = vld [vmem:[%s8311 + $0x18] sm:$0xff]
    %v8316 = vld [vmem:[%s8311 + $0x20] sm:$0xff]
    %v8317 = vld [vmem:[%s8311 + $0x28] sm:$0xff]
    %v8318 = vld [vmem:[%s8311 + $0x30] sm:$0xff]
    %v8319 = vld [vmem:[%s8311 + $0x38] sm:$0xff]
    %v8320 = vld [vmem:[%s8311 + $0x40] sm:$0xff]
    %v8321 = vld [vmem:[%s8311 + $0x48] sm:$0xff]
    %v8322 = vld [vmem:[%s8311 + $0x50] sm:$0xff]
    %v8323 = vld [vmem:[%s8311 + $0x58] sm:$0xff]
    %v8324 = vld [vmem:[%s8311 + $0x60] sm:$0xff]
    %v8325 = vld [vmem:[%s8311 + $0x68] sm:$0xff]
    %v8326 = vld [vmem:[%s8311 + $0x70] sm:$0xff]
    %v8327 = vld [vmem:[%s8311 + $0x78] sm:$0xff]
    %v8330 = vrot.slane %v7205, 7
    %v8331 = vsel %vm7243, %v8330, %v7201
    %8333 = vmatprep.subr.mxu0 0.0
    %8334 = vmatpush1.msra.mxu0 %v8327
    %8335 = vmatprep.subr.mxu0 0.0
    %8336 = vmatpush1.msra.mxu0 %v8326
    %8337 = vmatprep.subr.mxu0 0.0
    %8338 = vmatpush1.msra.mxu0 %v8325
    %8339 = vmatprep.subr.mxu0 0.0
    %8340 = vmatpush1.msra.mxu0 %v8324
    %8341 = vmatprep.subr.mxu0 0.0
    %8342 = vmatpush1.msra.mxu0 %v8323
    %8343 = vmatprep.subr.mxu0 0.0
    %8344 = vmatpush1.msra.mxu0 %v8322
    %8345 = vmatprep.subr.mxu0 0.0
    %8346 = vmatpush1.msra.mxu0 %v8321
    %8347 = vmatprep.subr.mxu0 0.0
    %8348 = vmatpush1.msra.mxu0 %v8320
    %8349 = vmatprep.subr.mxu0 0.0
    %8350 = vmatpush1.msra.mxu0 %v8319
    %8351 = vmatprep.subr.mxu0 0.0
    %8352 = vmatpush1.msra.mxu0 %v8318
    %8353 = vmatprep.subr.mxu0 0.0
    %8354 = vmatpush1.msra.mxu0 %v8317
    %8355 = vmatprep.subr.mxu0 0.0
    %8356 = vmatpush1.msra.mxu0 %v8316
    %8357 = vmatprep.subr.mxu0 0.0
    %8358 = vmatpush1.msra.mxu0 %v8315
    %8359 = vmatprep.subr.mxu0 0.0
    %8360 = vmatpush1.msra.mxu0 %v8314
    %8361 = vmatprep.subr.mxu0 0.0
    %8362 = vmatpush1.msra.mxu0 %v8313
    %8363 = vmatprep.subr.mxu0 0.0
    %8364 = vmatpush1.msra.mxu0 %v8312
    %8365 = vmatprep.subr.mxu0 0.0
    %8366 = vmatpush2.msra.mxu0 0.0
    %8367 = vmatprep.subr.mxu0 0.0
    %8368 = vmatpush2.msra.mxu0 0.0
    %8369 = vmatprep.subr.mxu0 0.0
    %8370 = vmatpush2.msra.mxu0 0.0
    %8371 = vmatprep.subr.mxu0 0.0
    %8372 = vmatpush2.msra.mxu0 0.0
    %8373 = vmatprep.subr.mxu0 0.0
    %8374 = vmatpush2.msra.mxu0 0.0
    %8375 = vmatprep.subr.mxu0 0.0
    %8376 = vmatpush2.msra.mxu0 0.0
    %8377 = vmatprep.subr.mxu0 0.0
    %8378 = vmatpush2.msra.mxu0 0.0
    %8379 = vmatprep.subr.mxu0 0.0
    %8380 = vmatpush2.msra.mxu0 0.0
    %8381 = vmatprep.subr.mxu0 0.0
    %8382 = vmatpush2.msra.mxu0 0.0
    %8383 = vmatprep.subr.mxu0 0.0
    %8384 = vmatpush2.msra.mxu0 0.0
    %8385 = vmatprep.subr.mxu0 0.0
    %8386 = vmatpush2.msra.mxu0 0.0
    %8387 = vmatprep.subr.mxu0 0.0
    %8388 = vmatpush2.msra.mxu0 0.0
    %8389 = vmatprep.subr.mxu0 0.0
    %8390 = vmatpush2.msra.mxu0 0.0
    %8391 = vmatprep.subr.mxu0 0.0
    %8392 = vmatpush2.msra.mxu0 0.0
    %8393 = vmatprep.subr.mxu0 0.0
    %8394 = vmatpush2.msra.mxu0 0.0
    %8395 = vmatprep.subr.mxu0 0.0
    %8396 = vmatpush2.msra.mxu0 0.0
    %8397 = vmatprep.mubr.f32.mxu0 0.0
    %8398 = vmatmul.mubr.f32.gmra.mxu0 %v8331
    %v8399 = vpop.f32.mrf.mxu0
    %v8400 = vadd.f32 0.0, %v8399
    %v8401 = vpop.f32.mrf.mxu0
    %8402 = vdwg.mxu0
    %v8403 = vadd.f32 %v8310, %v8400
    %s8404 = scalar_lea.vmem %s5, 1664
    %v8405 = vld [vmem:[%s8404] sm:$0xff]
    %v8406 = vld [vmem:[%s8404 + $0x8] sm:$0xff]
    %v8407 = vld [vmem:[%s8404 + $0x10] sm:$0xff]
    %v8408 = vld [vmem:[%s8404 + $0x18] sm:$0xff]
    %v8409 = vld [vmem:[%s8404 + $0x20] sm:$0xff]
    %v8410 = vld [vmem:[%s8404 + $0x28] sm:$0xff]
    %v8411 = vld [vmem:[%s8404 + $0x30] sm:$0xff]
    %v8412 = vld [vmem:[%s8404 + $0x38] sm:$0xff]
    %v8413 = vld [vmem:[%s8404 + $0x40] sm:$0xff]
    %v8414 = vld [vmem:[%s8404 + $0x48] sm:$0xff]
    %v8415 = vld [vmem:[%s8404 + $0x50] sm:$0xff]
    %v8416 = vld [vmem:[%s8404 + $0x58] sm:$0xff]
    %v8417 = vld [vmem:[%s8404 + $0x60] sm:$0xff]
    %v8418 = vld [vmem:[%s8404 + $0x68] sm:$0xff]
    %v8419 = vld [vmem:[%s8404 + $0x70] sm:$0xff]
    %v8420 = vld [vmem:[%s8404 + $0x78] sm:$0xff]
    %v8421 = vrot.slane %v7201, 2
    %v8422 = vrot.slane %v7205, 1
    %v8423 = vsel %vm7243, %v8422, %v8421
    %8425 = vmatprep.subr.mxu0 0.0
    %8426 = vmatpush1.msra.mxu0 %v8420
    %8427 = vmatprep.subr.mxu0 0.0
    %8428 = vmatpush1.msra.mxu0 %v8419
    %8429 = vmatprep.subr.mxu0 0.0
    %8430 = vmatpush1.msra.mxu0 %v8418
    %8431 = vmatprep.subr.mxu0 0.0
    %8432 = vmatpush1.msra.mxu0 %v8417
    %8433 = vmatprep.subr.mxu0 0.0
    %8434 = vmatpush1.msra.mxu0 %v8416
    %8435 = vmatprep.subr.mxu0 0.0
    %8436 = vmatpush1.msra.mxu0 %v8415
    %8437 = vmatprep.subr.mxu0 0.0
    %8438 = vmatpush1.msra.mxu0 %v8414
    %8439 = vmatprep.subr.mxu0 0.0
    %8440 = vmatpush1.msra.mxu0 %v8413
    %8441 = vmatprep.subr.mxu0 0.0
    %8442 = vmatpush1.msra.mxu0 %v8412
    %8443 = vmatprep.subr.mxu0 0.0
    %8444 = vmatpush1.msra.mxu0 %v8411
    %8445 = vmatprep.subr.mxu0 0.0
    %8446 = vmatpush1.msra.mxu0 %v8410
    %8447 = vmatprep.subr.mxu0 0.0
    %8448 = vmatpush1.msra.mxu0 %v8409
    %8449 = vmatprep.subr.mxu0 0.0
    %8450 = vmatpush1.msra.mxu0 %v8408
    %8451 = vmatprep.subr.mxu0 0.0
    %8452 = vmatpush1.msra.mxu0 %v8407
    %8453 = vmatprep.subr.mxu0 0.0
    %8454 = vmatpush1.msra.mxu0 %v8406
    %8455 = vmatprep.subr.mxu0 0.0
    %8456 = vmatpush1.msra.mxu0 %v8405
    %8457 = vmatprep.subr.mxu0 0.0
    %8458 = vmatpush2.msra.mxu0 0.0
    %8459 = vmatprep.subr.mxu0 0.0
    %8460 = vmatpush2.msra.mxu0 0.0
    %8461 = vmatprep.subr.mxu0 0.0
    %8462 = vmatpush2.msra.mxu0 0.0
    %8463 = vmatprep.subr.mxu0 0.0
    %8464 = vmatpush2.msra.mxu0 0.0
    %8465 = vmatprep.subr.mxu0 0.0
    %8466 = vmatpush2.msra.mxu0 0.0
    %8467 = vmatprep.subr.mxu0 0.0
    %8468 = vmatpush2.msra.mxu0 0.0
    %8469 = vmatprep.subr.mxu0 0.0
    %8470 = vmatpush2.msra.mxu0 0.0
    %8471 = vmatprep.subr.mxu0 0.0
    %8472 = vmatpush2.msra.mxu0 0.0
    %8473 = vmatprep.subr.mxu0 0.0
    %8474 = vmatpush2.msra.mxu0 0.0
    %8475 = vmatprep.subr.mxu0 0.0
    %8476 = vmatpush2.msra.mxu0 0.0
    %8477 = vmatprep.subr.mxu0 0.0
    %8478 = vmatpush2.msra.mxu0 0.0
    %8479 = vmatprep.subr.mxu0 0.0
    %8480 = vmatpush2.msra.mxu0 0.0
    %8481 = vmatprep.subr.mxu0 0.0
    %8482 = vmatpush2.msra.mxu0 0.0
    %8483 = vmatprep.subr.mxu0 0.0
    %8484 = vmatpush2.msra.mxu0 0.0
    %8485 = vmatprep.subr.mxu0 0.0
    %8486 = vmatpush2.msra.mxu0 0.0
    %8487 = vmatprep.subr.mxu0 0.0
    %8488 = vmatpush2.msra.mxu0 0.0
    %8489 = vmatprep.mubr.f32.mxu0 0.0
    %8490 = vmatmul.mubr.f32.gmra.mxu0 %v8423
    %v8491 = vpop.f32.mrf.mxu0
    %v8492 = vadd.f32 0.0, %v8491
    %v8493 = vpop.f32.mrf.mxu0
    %8494 = vdwg.mxu0
    %v8495 = vadd.f32 %v8403, %v8492
    %s8496 = scalar_lea.vmem %s5, 1792
    %v8497 = vld [vmem:[%s8496] sm:$0xff]
    %v8498 = vld [vmem:[%s8496 + $0x8] sm:$0xff]
    %v8499 = vld [vmem:[%s8496 + $0x10] sm:$0xff]
    %v8500 = vld [vmem:[%s8496 + $0x18] sm:$0xff]
    %v8501 = vld [vmem:[%s8496 + $0x20] sm:$0xff]
    %v8502 = vld [vmem:[%s8496 + $0x28] sm:$0xff]
    %v8503 = vld [vmem:[%s8496 + $0x30] sm:$0xff]
    %v8504 = vld [vmem:[%s8496 + $0x38] sm:$0xff]
    %v8505 = vld [vmem:[%s8496 + $0x40] sm:$0xff]
    %v8506 = vld [vmem:[%s8496 + $0x48] sm:$0xff]
    %v8507 = vld [vmem:[%s8496 + $0x50] sm:$0xff]
    %v8508 = vld [vmem:[%s8496 + $0x58] sm:$0xff]
    %v8509 = vld [vmem:[%s8496 + $0x60] sm:$0xff]
    %v8510 = vld [vmem:[%s8496 + $0x68] sm:$0xff]
    %v8511 = vld [vmem:[%s8496 + $0x70] sm:$0xff]
    %v8512 = vld [vmem:[%s8496 + $0x78] sm:$0xff]
    %v8513 = vrot.slane %v7201, 4
    %v8514 = vrot.slane %v7205, 3
    %v8515 = vsel %vm7243, %v8514, %v8513
    %8517 = vmatprep.subr.mxu0 0.0
    %8518 = vmatpush1.msra.mxu0 %v8512
    %8519 = vmatprep.subr.mxu0 0.0
    %8520 = vmatpush1.msra.mxu0 %v8511
    %8521 = vmatprep.subr.mxu0 0.0
    %8522 = vmatpush1.msra.mxu0 %v8510
    %8523 = vmatprep.subr.mxu0 0.0
    %8524 = vmatpush1.msra.mxu0 %v8509
    %8525 = vmatprep.subr.mxu0 0.0
    %8526 = vmatpush1.msra.mxu0 %v8508
    %8527 = vmatprep.subr.mxu0 0.0
    %8528 = vmatpush1.msra.mxu0 %v8507
    %8529 = vmatprep.subr.mxu0 0.0
    %8530 = vmatpush1.msra.mxu0 %v8506
    %8531 = vmatprep.subr.mxu0 0.0
    %8532 = vmatpush1.msra.mxu0 %v8505
    %8533 = vmatprep.subr.mxu0 0.0
    %8534 = vmatpush1.msra.mxu0 %v8504
    %8535 = vmatprep.subr.mxu0 0.0
    %8536 = vmatpush1.msra.mxu0 %v8503
    %8537 = vmatprep.subr.mxu0 0.0
    %8538 = vmatpush1.msra.mxu0 %v8502
    %8539 = vmatprep.subr.mxu0 0.0
    %8540 = vmatpush1.msra.mxu0 %v8501
    %8541 = vmatprep.subr.mxu0 0.0
    %8542 = vmatpush1.msra.mxu0 %v8500
    %8543 = vmatprep.subr.mxu0 0.0
    %8544 = vmatpush1.msra.mxu0 %v8499
    %8545 = vmatprep.subr.mxu0 0.0
    %8546 = vmatpush1.msra.mxu0 %v8498
    %8547 = vmatprep.subr.mxu0 0.0
    %8548 = vmatpush1.msra.mxu0 %v8497
    %8549 = vmatprep.subr.mxu0 0.0
    %8550 = vmatpush2.msra.mxu0 0.0
    %8551 = vmatprep.subr.mxu0 0.0
    %8552 = vmatpush2.msra.mxu0 0.0
    %8553 = vmatprep.subr.mxu0 0.0
    %8554 = vmatpush2.msra.mxu0 0.0
    %8555 = vmatprep.subr.mxu0 0.0
    %8556 = vmatpush2.msra.mxu0 0.0
    %8557 = vmatprep.subr.mxu0 0.0
    %8558 = vmatpush2.msra.mxu0 0.0
    %8559 = vmatprep.subr.mxu0 0.0
    %8560 = vmatpush2.msra.mxu0 0.0
    %8561 = vmatprep.subr.mxu0 0.0
    %8562 = vmatpush2.msra.mxu0 0.0
    %8563 = vmatprep.subr.mxu0 0.0
    %8564 = vmatpush2.msra.mxu0 0.0
    %8565 = vmatprep.subr.mxu0 0.0
    %8566 = vmatpush2.msra.mxu0 0.0
    %8567 = vmatprep.subr.mxu0 0.0
    %8568 = vmatpush2.msra.mxu0 0.0
    %8569 = vmatprep.subr.mxu0 0.0
    %8570 = vmatpush2.msra.mxu0 0.0
    %8571 = vmatprep.subr.mxu0 0.0
    %8572 = vmatpush2.msra.mxu0 0.0
    %8573 = vmatprep.subr.mxu0 0.0
    %8574 = vmatpush2.msra.mxu0 0.0
    %8575 = vmatprep.subr.mxu0 0.0
    %8576 = vmatpush2.msra.mxu0 0.0
    %8577 = vmatprep.subr.mxu0 0.0
    %8578 = vmatpush2.msra.mxu0 0.0
    %8579 = vmatprep.subr.mxu0 0.0
    %8580 = vmatpush2.msra.mxu0 0.0
    %8581 = vmatprep.mubr.f32.mxu0 0.0
    %8582 = vmatmul.mubr.f32.gmra.mxu0 %v8515
    %v8583 = vpop.f32.mrf.mxu0
    %v8584 = vadd.f32 0.0, %v8583
    %v8585 = vpop.f32.mrf.mxu0
    %8586 = vdwg.mxu0
    %v8587 = vadd.f32 %v8495, %v8584
    %s8588 = scalar_lea.vmem %s5, 1920
    %v8589 = vld [vmem:[%s8588] sm:$0xff]
    %v8590 = vld [vmem:[%s8588 + $0x8] sm:$0xff]
    %v8591 = vld [vmem:[%s8588 + $0x10] sm:$0xff]
    %v8592 = vld [vmem:[%s8588 + $0x18] sm:$0xff]
    %v8593 = vld [vmem:[%s8588 + $0x20] sm:$0xff]
    %v8594 = vld [vmem:[%s8588 + $0x28] sm:$0xff]
    %v8595 = vld [vmem:[%s8588 + $0x30] sm:$0xff]
    %v8596 = vld [vmem:[%s8588 + $0x38] sm:$0xff]
    %v8597 = vld [vmem:[%s8588 + $0x40] sm:$0xff]
    %v8598 = vld [vmem:[%s8588 + $0x48] sm:$0xff]
    %v8599 = vld [vmem:[%s8588 + $0x50] sm:$0xff]
    %v8600 = vld [vmem:[%s8588 + $0x58] sm:$0xff]
    %v8601 = vld [vmem:[%s8588 + $0x60] sm:$0xff]
    %v8602 = vld [vmem:[%s8588 + $0x68] sm:$0xff]
    %v8603 = vld [vmem:[%s8588 + $0x70] sm:$0xff]
    %v8604 = vld [vmem:[%s8588 + $0x78] sm:$0xff]
    %v8605 = vrot.slane %v7201, 6
    %v8606 = vrot.slane %v7205, 5
    %v8607 = vsel %vm7243, %v8606, %v8605
    %8609 = vmatprep.subr.mxu0 0.0
    %8610 = vmatpush1.msra.mxu0 %v8604
    %8611 = vmatprep.subr.mxu0 0.0
    %8612 = vmatpush1.msra.mxu0 %v8603
    %8613 = vmatprep.subr.mxu0 0.0
    %8614 = vmatpush1.msra.mxu0 %v8602
    %8615 = vmatprep.subr.mxu0 0.0
    %8616 = vmatpush1.msra.mxu0 %v8601
    %8617 = vmatprep.subr.mxu0 0.0
    %8618 = vmatpush1.msra.mxu0 %v8600
    %8619 = vmatprep.subr.mxu0 0.0
    %8620 = vmatpush1.msra.mxu0 %v8599
    %8621 = vmatprep.subr.mxu0 0.0
    %8622 = vmatpush1.msra.mxu0 %v8598
    %8623 = vmatprep.subr.mxu0 0.0
    %8624 = vmatpush1.msra.mxu0 %v8597
    %8625 = vmatprep.subr.mxu0 0.0
    %8626 = vmatpush1.msra.mxu0 %v8596
    %8627 = vmatprep.subr.mxu0 0.0
    %8628 = vmatpush1.msra.mxu0 %v8595
    %8629 = vmatprep.subr.mxu0 0.0
    %8630 = vmatpush1.msra.mxu0 %v8594
    %8631 = vmatprep.subr.mxu0 0.0
    %8632 = vmatpush1.msra.mxu0 %v8593
    %8633 = vmatprep.subr.mxu0 0.0
    %8634 = vmatpush1.msra.mxu0 %v8592
    %8635 = vmatprep.subr.mxu0 0.0
    %8636 = vmatpush1.msra.mxu0 %v8591
    %8637 = vmatprep.subr.mxu0 0.0
    %8638 = vmatpush1.msra.mxu0 %v8590
    %8639 = vmatprep.subr.mxu0 0.0
    %8640 = vmatpush1.msra.mxu0 %v8589
    %8641 = vmatprep.subr.mxu0 0.0
    %8642 = vmatpush2.msra.mxu0 0.0
    %8643 = vmatprep.subr.mxu0 0.0
    %8644 = vmatpush2.msra.mxu0 0.0
    %8645 = vmatprep.subr.mxu0 0.0
    %8646 = vmatpush2.msra.mxu0 0.0
    %8647 = vmatprep.subr.mxu0 0.0
    %8648 = vmatpush2.msra.mxu0 0.0
    %8649 = vmatprep.subr.mxu0 0.0
    %8650 = vmatpush2.msra.mxu0 0.0
    %8651 = vmatprep.subr.mxu0 0.0
    %8652 = vmatpush2.msra.mxu0 0.0
    %8653 = vmatprep.subr.mxu0 0.0
    %8654 = vmatpush2.msra.mxu0 0.0
    %8655 = vmatprep.subr.mxu0 0.0
    %8656 = vmatpush2.msra.mxu0 0.0
    %8657 = vmatprep.subr.mxu0 0.0
    %8658 = vmatpush2.msra.mxu0 0.0
    %8659 = vmatprep.subr.mxu0 0.0
    %8660 = vmatpush2.msra.mxu0 0.0
    %8661 = vmatprep.subr.mxu0 0.0
    %8662 = vmatpush2.msra.mxu0 0.0
    %8663 = vmatprep.subr.mxu0 0.0
    %8664 = vmatpush2.msra.mxu0 0.0
    %8665 = vmatprep.subr.mxu0 0.0
    %8666 = vmatpush2.msra.mxu0 0.0
    %8667 = vmatprep.subr.mxu0 0.0
    %8668 = vmatpush2.msra.mxu0 0.0
    %8669 = vmatprep.subr.mxu0 0.0
    %8670 = vmatpush2.msra.mxu0 0.0
    %8671 = vmatprep.subr.mxu0 0.0
    %8672 = vmatpush2.msra.mxu0 0.0
    %8673 = vmatprep.mubr.f32.mxu0 0.0
    %8674 = vmatmul.mubr.f32.gmra.mxu0 %v8607
    %v8675 = vpop.f32.mrf.mxu0
    %v8676 = vadd.f32 0.0, %v8675
    %v8677 = vpop.f32.mrf.mxu0
    %8678 = vdwg.mxu0
    %v8679 = vadd.f32 %v8587, %v8676
    %v8680 = vld [vmem:[%s6] sm:$0x1]
    %v8682 = vlaneseq
    %v8683 = vshrl.u32 %v8682, 7
    %v8684 = vsub.s32 0, %v8683
    %v8685 = vrot.slane %v8680, %v8684
    %v8687 = vadd.f32 %v8679, %v8685
    %v8688 = vmax.f32 %v8687, 0.0
    %v8689 = vld [vmem:[%s7] sm:$0xff]
    %v8690 = vld [vmem:[%s7 + $0x8] sm:$0xff]
    %v8691 = vld [vmem:[%s7 + $0x10] sm:$0xff]
    %v8692 = vld [vmem:[%s7 + $0x18] sm:$0xff]
    %v8693 = vld [vmem:[%s7 + $0x20] sm:$0xff]
    %v8694 = vld [vmem:[%s7 + $0x28] sm:$0xff]
    %v8695 = vld [vmem:[%s7 + $0x30] sm:$0xff]
    %v8696 = vld [vmem:[%s7 + $0x38] sm:$0xff]
    %v8697 = vld [vmem:[%s7 + $0x40] sm:$0xff]
    %v8698 = vld [vmem:[%s7 + $0x48] sm:$0xff]
    %v8699 = vld [vmem:[%s7 + $0x50] sm:$0xff]
    %v8700 = vld [vmem:[%s7 + $0x58] sm:$0xff]
    %v8701 = vld [vmem:[%s7 + $0x60] sm:$0xff]
    %v8702 = vld [vmem:[%s7 + $0x68] sm:$0xff]
    %v8703 = vld [vmem:[%s7 + $0x70] sm:$0xff]
    %v8704 = vld [vmem:[%s7 + $0x78] sm:$0xff]
    %v8705 = vld [vmem:[%s8] sm:$0x1]
    %v8707 = vlaneseq
    %v8708 = vshrl.u32 %v8707, 7
    %v8709 = vsub.s32 0, %v8708
    %v8710 = vrot.slane %v8705, %v8709
    %8712 = vmatprep.subr.mxu0 0.0
    %8713 = vmatpush1.msra.mxu0 %v8704
    %8714 = vmatprep.subr.mxu0 0.0
    %8715 = vmatpush1.msra.mxu0 %v8703
    %8716 = vmatprep.subr.mxu0 0.0
    %8717 = vmatpush1.msra.mxu0 %v8702
    %8718 = vmatprep.subr.mxu0 0.0
    %8719 = vmatpush1.msra.mxu0 %v8701
    %8720 = vmatprep.subr.mxu0 0.0
    %8721 = vmatpush1.msra.mxu0 %v8700
    %8722 = vmatprep.subr.mxu0 0.0
    %8723 = vmatpush1.msra.mxu0 %v8699
    %8724 = vmatprep.subr.mxu0 0.0
    %8725 = vmatpush1.msra.mxu0 %v8698
    %8726 = vmatprep.subr.mxu0 0.0
    %8727 = vmatpush1.msra.mxu0 %v8697
    %8728 = vmatprep.subr.mxu0 0.0
    %8729 = vmatpush1.msra.mxu0 %v8696
    %8730 = vmatprep.subr.mxu0 0.0
    %8731 = vmatpush1.msra.mxu0 %v8695
    %8732 = vmatprep.subr.mxu0 0.0
    %8733 = vmatpush1.msra.mxu0 %v8694
    %8734 = vmatprep.subr.mxu0 0.0
    %8735 = vmatpush1.msra.mxu0 %v8693
    %8736 = vmatprep.subr.mxu0 0.0
    %8737 = vmatpush1.msra.mxu0 %v8692
    %8738 = vmatprep.subr.mxu0 0.0
    %8739 = vmatpush1.msra.mxu0 %v8691
    %8740 = vmatprep.subr.mxu0 0.0
    %8741 = vmatpush1.msra.mxu0 %v8690
    %8742 = vmatprep.subr.mxu0 0.0
    %8743 = vmatpush1.msra.mxu0 %v8689
    %8744 = vmatprep.subr.mxu0 0.0
    %8745 = vmatpush2.msra.mxu0 0.0
    %8746 = vmatprep.subr.mxu0 0.0
    %8747 = vmatpush2.msra.mxu0 0.0
    %8748 = vmatprep.subr.mxu0 0.0
    %8749 = vmatpush2.msra.mxu0 0.0
    %8750 = vmatprep.subr.mxu0 0.0
    %8751 = vmatpush2.msra.mxu0 0.0
    %8752 = vmatprep.subr.mxu0 0.0
    %8753 = vmatpush2.msra.mxu0 0.0
    %8754 = vmatprep.subr.mxu0 0.0
    %8755 = vmatpush2.msra.mxu0 0.0
    %8756 = vmatprep.subr.mxu0 0.0
    %8757 = vmatpush2.msra.mxu0 0.0
    %8758 = vmatprep.subr.mxu0 0.0
    %8759 = vmatpush2.msra.mxu0 0.0
    %8760 = vmatprep.subr.mxu0 0.0
    %8761 = vmatpush2.msra.mxu0 0.0
    %8762 = vmatprep.subr.mxu0 0.0
    %8763 = vmatpush2.msra.mxu0 0.0
    %8764 = vmatprep.subr.mxu0 0.0
    %8765 = vmatpush2.msra.mxu0 0.0
    %8766 = vmatprep.subr.mxu0 0.0
    %8767 = vmatpush2.msra.mxu0 0.0
    %8768 = vmatprep.subr.mxu0 0.0
    %8769 = vmatpush2.msra.mxu0 0.0
    %8770 = vmatprep.subr.mxu0 0.0
    %8771 = vmatpush2.msra.mxu0 0.0
    %8772 = vmatprep.subr.mxu0 0.0
    %8773 = vmatpush2.msra.mxu0 0.0
    %8774 = vmatprep.subr.mxu0 0.0
    %8775 = vmatpush2.msra.mxu0 0.0
    %8776 = vmatprep.mubr.f32.mxu0 0.0
    %8777 = vmatmul.mubr.f32.gmra.mxu0 %v8688
    %v8778 = vpop.f32.mrf.mxu0
    %v8779 = vadd.f32 %v8710, %v8778
    %v8780 = vpop.f32.mrf.mxu0
    %8781 = vdwg.mxu0
    %v8782 = vmax.f32 %v8779, 0.0
    %v8783 = vld [vmem:[%s9] sm:$0xff]
    %v8784 = vld [vmem:[%s9 + $0x8] sm:$0xff]
    %v8785 = vld [vmem:[%s9 + $0x10] sm:$0xff]
    %v8786 = vld [vmem:[%s9 + $0x18] sm:$0xff]
    %v8787 = vld [vmem:[%s9 + $0x20] sm:$0xff]
    %v8788 = vld [vmem:[%s9 + $0x28] sm:$0xff]
    %v8789 = vld [vmem:[%s9 + $0x30] sm:$0xff]
    %v8790 = vld [vmem:[%s9 + $0x38] sm:$0xff]
    %v8791 = vld [vmem:[%s9 + $0x40] sm:$0xff]
    %v8792 = vld [vmem:[%s9 + $0x48] sm:$0xff]
    %v8793 = vld [vmem:[%s9 + $0x50] sm:$0xff]
    %v8794 = vld [vmem:[%s9 + $0x58] sm:$0xff]
    %v8795 = vld [vmem:[%s9 + $0x60] sm:$0xff]
    %v8796 = vld [vmem:[%s9 + $0x68] sm:$0xff]
    %v8797 = vld [vmem:[%s9 + $0x70] sm:$0xff]
    %v8798 = vld [vmem:[%s9 + $0x78] sm:$0xff]
    %v8799 = vld [vmem:[%s10] sm:$0x1]
    %v8801 = vlaneseq
    %v8802 = vshrl.u32 %v8801, 7
    %v8803 = vsub.s32 0, %v8802
    %v8804 = vrot.slane %v8799, %v8803
    %8806 = vmatprep.subr.mxu0 0.0
    %8807 = vmatpush1.msra.mxu0 %v8798
    %8808 = vmatprep.subr.mxu0 0.0
    %8809 = vmatpush1.msra.mxu0 %v8797
    %8810 = vmatprep.subr.mxu0 0.0
    %8811 = vmatpush1.msra.mxu0 %v8796
    %8812 = vmatprep.subr.mxu0 0.0
    %8813 = vmatpush1.msra.mxu0 %v8795
    %8814 = vmatprep.subr.mxu0 0.0
    %8815 = vmatpush1.msra.mxu0 %v8794
    %8816 = vmatprep.subr.mxu0 0.0
    %8817 = vmatpush1.msra.mxu0 %v8793
    %8818 = vmatprep.subr.mxu0 0.0
    %8819 = vmatpush1.msra.mxu0 %v8792
    %8820 = vmatprep.subr.mxu0 0.0
    %8821 = vmatpush1.msra.mxu0 %v8791
    %8822 = vmatprep.subr.mxu0 0.0
    %8823 = vmatpush1.msra.mxu0 %v8790
    %8824 = vmatprep.subr.mxu0 0.0
    %8825 = vmatpush1.msra.mxu0 %v8789
    %8826 = vmatprep.subr.mxu0 0.0
    %8827 = vmatpush1.msra.mxu0 %v8788
    %8828 = vmatprep.subr.mxu0 0.0
    %8829 = vmatpush1.msra.mxu0 %v8787
    %8830 = vmatprep.subr.mxu0 0.0
    %8831 = vmatpush1.msra.mxu0 %v8786
    %8832 = vmatprep.subr.mxu0 0.0
    %8833 = vmatpush1.msra.mxu0 %v8785
    %8834 = vmatprep.subr.mxu0 0.0
    %8835 = vmatpush1.msra.mxu0 %v8784
    %8836 = vmatprep.subr.mxu0 0.0
    %8837 = vmatpush1.msra.mxu0 %v8783
    %8838 = vmatprep.subr.mxu0 0.0
    %8839 = vmatpush2.msra.mxu0 0.0
    %8840 = vmatprep.subr.mxu0 0.0
    %8841 = vmatpush2.msra.mxu0 0.0
    %8842 = vmatprep.subr.mxu0 0.0
    %8843 = vmatpush2.msra.mxu0 0.0
    %8844 = vmatprep.subr.mxu0 0.0
    %8845 = vmatpush2.msra.mxu0 0.0
    %8846 = vmatprep.subr.mxu0 0.0
    %8847 = vmatpush2.msra.mxu0 0.0
    %8848 = vmatprep.subr.mxu0 0.0
    %8849 = vmatpush2.msra.mxu0 0.0
    %8850 = vmatprep.subr.mxu0 0.0
    %8851 = vmatpush2.msra.mxu0 0.0
    %8852 = vmatprep.subr.mxu0 0.0
    %8853 = vmatpush2.msra.mxu0 0.0
    %8854 = vmatprep.subr.mxu0 0.0
    %8855 = vmatpush2.msra.mxu0 0.0
    %8856 = vmatprep.subr.mxu0 0.0
    %8857 = vmatpush2.msra.mxu0 0.0
    %8858 = vmatprep.subr.mxu0 0.0
    %8859 = vmatpush2.msra.mxu0 0.0
    %8860 = vmatprep.subr.mxu0 0.0
    %8861 = vmatpush2.msra.mxu0 0.0
    %8862 = vmatprep.subr.mxu0 0.0
    %8863 = vmatpush2.msra.mxu0 0.0
    %8864 = vmatprep.subr.mxu0 0.0
    %8865 = vmatpush2.msra.mxu0 0.0
    %8866 = vmatprep.subr.mxu0 0.0
    %8867 = vmatpush2.msra.mxu0 0.0
    %8868 = vmatprep.subr.mxu0 0.0
    %8869 = vmatpush2.msra.mxu0 0.0
    %8870 = vmatprep.mubr.f32.mxu0 0.0
    %8871 = vmatmul.mubr.f32.gmra.mxu0 %v8782
    %v8872 = vpop.f32.mrf.mxu0
    %v8873 = vadd.f32 %v8804, %v8872
    %v8874 = vpop.f32.mrf.mxu0
    %8875 = vdwg.mxu0
    %8876 = vst [vmem:[#allocation2] sm:$0x3] %v8873
    // Predicated region
    $region46: #{lenet_forward.1} parent=1 // pred_check
      _
    $region47: #{lenet_forward.1} parent=1 // pred_check_branch
      %8878 = sbr.rel (0) target = $region49
    $region48: #{lenet_forward.1} parent=1 // pred_region
      %s8880 = ssub.s32 32, 32
      %8881 = vsyncadd [#allocation3], %s8880
      %s8883 = sshll.u32 [#allocation2], 4
      %s8884 = int_to_ptr.vmem [resolvable:$true] %s8883
      %8886 = dma.vmem_to_hbm [thread:$0]  %s8884, 32, %s11, [#allocation3]
    $region49: #{lenet_forward.1} parent=1 // pred_fallthru
      _
    // Predicated region
    $region50: #{lenet_forward.1} parent=1 // pred_check
      _
    $region51: #{lenet_forward.1} parent=1 // pred_check_branch
      %8888 = sbr.rel (0) target = $region53
    $region52: #{lenet_forward.1} parent=1 // pred_region
      %8889 = dma.done [#allocation3], 32
    $region53: #{lenet_forward.1} parent=1 // pred_fallthru
      _
    %8890 = vsyncpa [#allocation3], 1

</llo_original>
